<compile_context>
chip_gen: v6e
topology: v6e:2x2x1
jax: 0.10.0
libtpu: 0.0.40
codegen_flags: <defaults>
</compile_context>

<pallas_src>
import numpy as np

import jax
import jax.numpy as jnp
from jax import lax
from jax.experimental import pallas as pl
from jax.experimental.pallas import tpu as pltpu


# ----------------------------------------------------------------------------
# Fused forward kernel (runs once per batch tile)
# ----------------------------------------------------------------------------
def _conv_bn_relu_pool(x3, wt_ref, ss_ref, se_ref, so_ref):
    """conv3x3(pad=1) + folded-BN + ReLU + 2x2 max-pool, all in VMEM.

    x3:    (H, TB, W*Cin) bf16 activation rows (batch in sublanes, W*Cin lanes).
    wt:    (3, W*Cin, W*Cout) bf16 row-Toeplitz conv weights (one per ky).
    ss:    (2, 1, W*Cout) f32 folded BatchNorm (scale, shift), conv bias absorbed.
    se/so: (W*Cout, (W//2)*Cout) 0/1 bf16 column-selection (pool) matrices.
    Returns (H//2, TB, (W//2)*Cout) bf16.
    """
    H, TB, KL = x3.shape
    N = wt_ref.shape[2]

    # Zero halo rows for padding=1 in y; the x-halo is folded into the weights.
    zrow = jnp.zeros((1, TB, KL), x3.dtype)
    xe = jnp.concatenate([zrow, x3, zrow], axis=0)            # (H+2, TB, W*Cin)
    xe2 = xe.reshape((H + 2) * TB, KL)                        # view (TB % 16 == 0)

    # One matmul per kernel row; f32 accumulation on the MXU.
    r0 = jnp.dot(xe2, wt_ref[0],
                 preferred_element_type=jnp.float32).reshape(H + 2, TB, N)
    r1 = jnp.dot(xe2, wt_ref[1],
                 preferred_element_type=jnp.float32).reshape(H + 2, TB, N)
    r2 = jnp.dot(xe2, wt_ref[2],
                 preferred_element_type=jnp.float32).reshape(H + 2, TB, N)
    y = r0[0:H] + r1[1:H + 1] + r2[2:H + 2]                   # (H, TB, W*Cout) f32

    # Folded BatchNorm affine + ReLU (f32 epilogue).
    y = jnp.maximum(y * ss_ref[0] + ss_ref[1], 0.0)

    # 2x2 max-pool, stride 2, floor mode (drops odd trailing row/column).
    Ho = H // 2
    y = y[:2 * Ho].reshape(Ho, 2, TB, N)                      # split untiled dim
    yr = jnp.maximum(y[:, 0], y[:, 1])                        # row pairs
    yr2 = yr.reshape(Ho * TB, N).astype(se_ref.dtype)
    pe = jnp.dot(yr2, se_ref[...], preferred_element_type=jnp.float32)
    po = jnp.dot(yr2, so_ref[...], preferred_element_type=jnp.float32)
    p = jnp.maximum(pe, po)                                   # column pairs
    return p.reshape(Ho, TB, se_ref.shape[1]).astype(x3.dtype)


def _mycnn_kernel(x_ref,
                  wt1_ref, ss1_ref, se1_ref, so1_ref,
                  wt2_ref, ss2_ref, se2_ref, so2_ref,
                  wt3_ref, ss3_ref, se3_ref, so3_ref,
                  fc1w_ref, fc1b_ref, fc2w_ref, fc2b_ref,
                  out_ref):
    a = _conv_bn_relu_pool(x_ref[...], wt1_ref, ss1_ref, se1_ref, so1_ref)  # (14,TB,14*C1)
    a = _conv_bn_relu_pool(a, wt2_ref, ss2_ref, se2_ref, so2_ref)           # (7, TB, 7*C2)
    a = _conv_bn_relu_pool(a, wt3_ref, ss3_ref, se3_ref, so3_ref)           # (3, TB, 3*C3)

    # fc1 over torch's channel-major flatten (permutation folded into fc1_w),
    # done as 3 matmuls over the pooled rows — no activation relayout needed.
    h = (jnp.dot(a[0], fc1w_ref[0], preferred_element_type=jnp.float32)
         + jnp.dot(a[1], fc1w_ref[1], preferred_element_type=jnp.float32)
         + jnp.dot(a[2], fc1w_ref[2], preferred_element_type=jnp.float32)
         + fc1b_ref[...])
    h = jnp.maximum(h, 0.0)
    # TODO(synk): nn.Dropout is identity at inference; training-mode masking
    #             is not implemented.
    logits = jnp.dot(h.astype(fc2w_ref.dtype), fc2w_ref[...],
                     preferred_element_type=jnp.float32) + fc2b_ref[...]
    out_ref[...] = logits.astype(out_ref.dtype)


# ----------------------------------------------------------------------------
# One-time weight packing (all transposes / BN folds / Toeplitz builds happen
# here on the host, not in the steady-state graph)
# ----------------------------------------------------------------------------
def pack_params(params, eps=1e-5):
    def fold_bn(bias, bn):
        inv = 1.0 / np.sqrt(np.asarray(bn["var"], np.float32) + eps)
        scale = np.asarray(bn["gamma"], np.float32) * inv
        shift = (scale * (np.asarray(bias, np.float32)
                          - np.asarray(bn["mean"], np.float32))
                 + np.asarray(bn["beta"], np.float32))
        return scale, shift

    def pack_conv(w, bias, bn, W):
        w = np.asarray(w, np.float32)                        # (Cout, Cin, 3, 3)
        cout, cin = w.shape[0], w.shape[1]
        # Row-Toeplitz: wt[ky, wi*Cin+ci, wo*Cout+co] = w[co, ci, ky, wi-wo+1],
        # out-of-range kx taps dropped (implicit zero x-padding).
        wt = np.zeros((3, W * cin, W * cout), np.float32)
        for ky in range(3):
            for kx in range(3):
                tap = w[:, :, ky, kx].T                      # (Cin, Cout)
                for wo in range(W):
                    wi = wo + kx - 1
                    if 0 <= wi < W:
                        wt[ky, wi * cin:(wi + 1) * cin,
                           wo * cout:(wo + 1) * cout] = tap
        scale, shift = fold_bn(bias, bn)
        ss = np.stack([np.tile(scale, W), np.tile(shift, W)])[:, None, :]  # (2,1,W*Cout)
        # 0/1 column-selection matrices for the 2x2 max-pool (even/odd column).
        Wo = W // 2
        eye = np.eye(cout, dtype=np.float32)
        se = np.zeros((W * cout, Wo * cout), np.float32)
        so = np.zeros((W * cout, Wo * cout), np.float32)
        for wo in range(Wo):
            se[(2 * wo) * cout:(2 * wo + 1) * cout, wo * cout:(wo + 1) * cout] = eye
            so[(2 * wo + 1) * cout:(2 * wo + 2) * cout, wo * cout:(wo + 1) * cout] = eye
        return (jnp.asarray(wt, jnp.bfloat16), jnp.asarray(ss, jnp.float32),
                jnp.asarray(se, jnp.bfloat16), jnp.asarray(so, jnp.bfloat16))

    wt1, ss1, se1, so1 = pack_conv(params["conv1_w"], params["conv1_b"], params["bn1"], 28)
    wt2, ss2, se2, so2 = pack_conv(params["conv2_w"], params["conv2_b"], params["bn2"], 14)
    wt3, ss3, se3, so3 = pack_conv(params["conv3_w"], params["conv3_b"], params["bn3"], 7)

    f1 = params["fc1_w"].shape[0]
    c3 = params["conv3_w"].shape[0]
    # fc1: fold the (in,out) transpose and the NCHW channel-major-flatten
    # permutation: kernel activation layout is [y, x*C3+c]; torch's flatten is
    # [c*9 + y*3 + x].
    fc1_w = np.asarray(params["fc1_w"], np.float32).reshape(f1, c3, 3, 3)
    fc1_w = np.transpose(fc1_w, (2, 3, 1, 0)).reshape(3, 3 * c3, f1)
    fc1_b = np.asarray(params["fc1_b"], np.float32).reshape(1, f1)

    # fc2: transpose + zero-pad classes to 128 lanes (lane-dense logits).
    nc = params["fc2_w"].shape[0]
    ncp = 128
    fc2_w = np.zeros((f1, ncp), np.float32)
    fc2_w[:, :nc] = np.asarray(params["fc2_w"], np.float32).T
    fc2_b = np.zeros((1, ncp), np.float32)
    fc2_b[:, :nc] = np.asarray(params["fc2_b"], np.float32)

    return dict(
        wt1=wt1, ss1=ss1, se1=se1, so1=so1,
        wt2=wt2, ss2=ss2, se2=se2, so2=so2,
        wt3=wt3, ss3=ss3, se3=se3, so3=so3,
        fc1_w=jnp.asarray(fc1_w, jnp.bfloat16),
        fc1_b=jnp.asarray(fc1_b, jnp.float32),
        fc2_w=jnp.asarray(fc2_w, jnp.bfloat16),
        fc2_b=jnp.asarray(fc2_b, jnp.float32),
    )


# ----------------------------------------------------------------------------
# Public forward
# ----------------------------------------------------------------------------
def my_cnn_forward(packed, x_nchw, *, num_classes=4, batch_tile=64):
    """Forward matching MyCNN.forward (inference). x: (N, Cin, 28, 28) NCHW."""
    N, Cin, H, W = x_nchw.shape
    assert (H, W) == (28, 28), "MyCNN assumes 28x28 inputs"

    # Batch tile: multiple of 16 (bf16 sublane tile); capped so the batch grid
    # has >= 2 steps, keeping both v7x TensorCores busy.
    TB = max(16, (int(batch_tile) // 16) * 16)
    if N >= 32:
        TB = min(TB, max(16, (N // 2 // 16) * 16))
    Np = ((N + TB - 1) // TB) * TB

    # Lane-dense, batch-in-sublanes layout: (H, N, W*Cin), bf16 matmul operand.
    xt = jnp.transpose(x_nchw, (2, 0, 3, 1)).reshape(28, N, 28 * Cin)
    if Np != N:
        xt = jnp.pad(xt, ((0, 0), (0, Np - N), (0, 0)))
    xt = xt.astype(jnp.bfloat16)

    consts = [packed[k] for k in (
        "wt1", "ss1", "se1", "so1",
        "wt2", "ss2", "se2", "so2",
        "wt3", "ss3", "se3", "so3",
        "fc1_w", "fc1_b", "fc2_w", "fc2_b")]

    def bcast_spec(a):
        return pl.BlockSpec(a.shape, lambda i, _n=a.ndim: (0,) * _n)

    NCp = packed["fc2_w"].shape[1]                           # 128 (padded classes)
    C1 = packed["ss1"].shape[2] // 28
    C2 = packed["ss2"].shape[2] // 14
    C3 = packed["ss3"].shape[2] // 7
    F1 = packed["fc1_w"].shape[2]
    flops = 2 * Np * (28 * 28 * 9 * Cin * C1 + 14 * 14 * 9 * C1 * C2
                      + 7 * 7 * 9 * C2 * C3 + 9 * C3 * F1 + F1 * NCp)
    bytes_accessed = (int(xt.size) * 2 + Np * NCp * 4
                      + sum(int(a.size) * a.dtype.itemsize for a in consts))

    out = pl.pallas_call(
        _mycnn_kernel,
        out_shape=jax.ShapeDtypeStruct((Np, NCp), jnp.float32),
        grid=(Np // TB,),
        in_specs=[pl.BlockSpec((28, TB, 28 * Cin), lambda i: (0, i, 0))]
                 + [bcast_spec(a) for a in consts],
        out_specs=pl.BlockSpec((TB, NCp), lambda i: (i, 0)),
        compiler_params=pltpu.CompilerParams(
            dimension_semantics=("parallel",),               # both TCs on v7x
            vmem_limit_bytes=48 * 1024 * 1024),
        cost_estimate=pl.CostEstimate(flops=int(flops), transcendentals=0,
                                      bytes_accessed=int(bytes_accessed)),
    )(xt, *consts)
    return out[:N, :num_classes]


# ----------------------------------------------------------------------------
# Parameter init + pure-JAX reference (for the built-in correctness check)
# ----------------------------------------------------------------------------
def init_params(key, input_channels=1, num_classes=4,
                c1=8, c2=16, c3=32, fc1_neurons=32):
    ks = jax.random.split(key, 12)
    w_scale = 0.2

    def norm(k, shape, s=w_scale):
        return (s * jax.random.normal(k, shape)).astype(jnp.float32)

    def bn_stats(k, c):
        k1, k2, k3, k4 = jax.random.split(k, 4)
        return dict(
            gamma=(1.0 + 0.1 * jax.random.normal(k1, (c,))).astype(jnp.float32),
            beta=(0.1 * jax.random.normal(k2, (c,))).astype(jnp.float32),
            mean=(0.1 * jax.random.normal(k3, (c,))).astype(jnp.float32),
            var=jax.random.uniform(k4, (c,), minval=0.5, maxval=1.5,
                                   dtype=jnp.float32),
        )

    return {
        "conv1_w": norm(ks[0], (c1, input_channels, 3, 3)),
        "conv1_b": norm(ks[1], (c1,)),
        "bn1": bn_stats(ks[2], c1),
        "conv2_w": norm(ks[3], (c2, c1, 3, 3)),
        "conv2_b": norm(ks[4], (c2,)),
        "bn2": bn_stats(ks[5], c2),
        "conv3_w": norm(ks[6], (c3, c2, 3, 3)),
        "conv3_b": norm(ks[7], (c3,)),
        "bn3": bn_stats(ks[8], c3),
        "fc1_w": norm(ks[9], (fc1_neurons, c3 * 3 * 3)),
        "fc1_b": norm(ks[10], (fc1_neurons,), 0.05),
        "fc2_w": norm(ks[11], (num_classes, fc1_neurons)),
        "fc2_b": jnp.zeros((num_classes,), jnp.float32),
    }


def _reference_forward(params, x_nchw, eps=1e-5):
    """Plain-JAX/XLA f32 reference with PyTorch semantics (eval mode)."""
    x = jnp.transpose(x_nchw, (0, 2, 3, 1)).astype(jnp.float32)      # NHWC

    def block(x, w, b, bn):
        w_hwio = jnp.transpose(w, (2, 3, 1, 0))
        y = lax.conv_general_dilated(
            x, w_hwio, window_strides=(1, 1), padding=((1, 1), (1, 1)),
            dimension_numbers=("NHWC", "HWIO", "NHWC"))
        y = y + b.reshape(1, 1, 1, -1)
        y = (y - bn["mean"]) / jnp.sqrt(bn["var"] + eps) * bn["gamma"] + bn["beta"]
        y = jnp.maximum(y, 0.0)
        n, h, w_, c = y.shape
        ho, wo = h // 2, w_ // 2
        y = y[:, :2 * ho, :2 * wo, :].reshape(n, ho, 2, wo, 2, c)
        return y.max(axis=(2, 4))

    x = block(x, params["conv1_w"], params["conv1_b"], params["bn1"])
    x = block(x, params["conv2_w"], params["conv2_b"], params["bn2"])
    x = block(x, params["conv3_w"], params["conv3_b"], params["bn3"])
    n = x.shape[0]
    x = jnp.transpose(x, (0, 3, 1, 2)).reshape(n, -1)   # torch channel-major flatten
    x = jnp.maximum(x @ params["fc1_w"].T + params["fc1_b"], 0.0)
    return x @ params["fc2_w"].T + params["fc2_b"]


if __name__ == "__main__":
    key = jax.random.PRNGKey(0)
    k_params, k_x = jax.random.split(key)

    # Small-but-faithful config: 28x28 input is required by the module
    # (flattened_size = conv3_channels * 3 * 3); shrink channel counts instead.
    params = init_params(k_params, input_channels=1, num_classes=4,
                         c1=8, c2=16, c3=32, fc1_neurons=32)
    packed = pack_params(params)

    x = jax.random.normal(k_x, (32, 1, 28, 28), dtype=jnp.float32)   # NCHW, like PyTorch

    fwd = jax.jit(my_cnn_forward, static_argnames=("num_classes", "batch_tile"))
    out = jax.block_until_ready(fwd(packed, x, num_classes=4))

    assert out.shape == (32, 4), out.shape
    assert bool(jnp.all(jnp.isfinite(out)))

    # Correctness vs. the pure-JAX f32 reference; the kernel uses bf16 matmul
    # operands (f32 accumulation), hence the slightly looser tolerance.
    ref = jax.block_until_ready(_reference_forward(params, x))
    assert bool(jnp.allclose(out, ref, rtol=5e-2, atol=1e-1)), \
        float(jnp.max(jnp.abs(out - ref)))

    print("KERNEL_OK")
</pallas_src>

<mosaic_0001>
module attributes {stable_mosaic.version = 11 : i64} {
  func.func @_mycnn_kernel(%arg0: i32, %arg1: memref<28x16x28xbf16, #tpu.memory_space<vmem>>, %arg2: memref<3x28x224xbf16, #tpu.memory_space<vmem>>, %arg3: memref<2x1x224xf32, #tpu.memory_space<vmem>>, %arg4: memref<224x112xbf16, #tpu.memory_space<vmem>>, %arg5: memref<224x112xbf16, #tpu.memory_space<vmem>>, %arg6: memref<3x112x224xbf16, #tpu.memory_space<vmem>>, %arg7: memref<2x1x224xf32, #tpu.memory_space<vmem>>, %arg8: memref<224x112xbf16, #tpu.memory_space<vmem>>, %arg9: memref<224x112xbf16, #tpu.memory_space<vmem>>, %arg10: memref<3x112x224xbf16, #tpu.memory_space<vmem>>, %arg11: memref<2x1x224xf32, #tpu.memory_space<vmem>>, %arg12: memref<224x96xbf16, #tpu.memory_space<vmem>>, %arg13: memref<224x96xbf16, #tpu.memory_space<vmem>>, %arg14: memref<3x96x32xbf16, #tpu.memory_space<vmem>>, %arg15: memref<1x32xf32, #tpu.memory_space<vmem>>, %arg16: memref<32x128xbf16, #tpu.memory_space<vmem>>, %arg17: memref<1x128xf32, #tpu.memory_space<vmem>>, %arg18: memref<16x128xf32, #tpu.memory_space<vmem>>) attributes {dimension_semantics = [#tpu.dimension_semantics<parallel>], iteration_bounds = array<i64: 2>, scalar_prefetch = 0 : i64, scratch_operands = 0 : i64, tpu.core_type = #tpu.core_type<tc>, window_params = [{transform_indices = @transform_0, window_bounds = array<i64: 28, 16, 28>}, {pipeline_mode = #tpu.pipeline_mode<synchronous>, transform_indices = @transform_1, window_bounds = array<i64: 3, 28, 224>}, {pipeline_mode = #tpu.pipeline_mode<synchronous>, transform_indices = @transform_2, window_bounds = array<i64: 2, 1, 224>}, {pipeline_mode = #tpu.pipeline_mode<synchronous>, transform_indices = @transform_3, window_bounds = array<i64: 224, 112>}, {pipeline_mode = #tpu.pipeline_mode<synchronous>, transform_indices = @transform_4, window_bounds = array<i64: 224, 112>}, {pipeline_mode = #tpu.pipeline_mode<synchronous>, transform_indices = @transform_5, window_bounds = array<i64: 3, 112, 224>}, {pipeline_mode = #tpu.pipeline_mode<synchronous>, transform_indices = @transform_6, window_bounds = array<i64: 2, 1, 224>}, {pipeline_mode = #tpu.pipeline_mode<synchronous>, transform_indices = @transform_7, window_bounds = array<i64: 224, 112>}, {pipeline_mode = #tpu.pipeline_mode<synchronous>, transform_indices = @transform_8, window_bounds = array<i64: 224, 112>}, {pipeline_mode = #tpu.pipeline_mode<synchronous>, transform_indices = @transform_9, window_bounds = array<i64: 3, 112, 224>}, {pipeline_mode = #tpu.pipeline_mode<synchronous>, transform_indices = @transform_10, window_bounds = array<i64: 2, 1, 224>}, {pipeline_mode = #tpu.pipeline_mode<synchronous>, transform_indices = @transform_11, window_bounds = array<i64: 224, 96>}, {pipeline_mode = #tpu.pipeline_mode<synchronous>, transform_indices = @transform_12, window_bounds = array<i64: 224, 96>}, {pipeline_mode = #tpu.pipeline_mode<synchronous>, transform_indices = @transform_13, window_bounds = array<i64: 3, 96, 32>}, {pipeline_mode = #tpu.pipeline_mode<synchronous>, transform_indices = @transform_14, window_bounds = array<i64: 1, 32>}, {pipeline_mode = #tpu.pipeline_mode<synchronous>, transform_indices = @transform_15, window_bounds = array<i64: 32, 128>}, {pipeline_mode = #tpu.pipeline_mode<synchronous>, transform_indices = @transform_16, window_bounds = array<i64: 1, 128>}, {transform_indices = @transform_17, window_bounds = array<i64: 16, 128>}]} {
    %c0 = arith.constant 0 : index
    %c0_0 = arith.constant 0 : index
    %c0_1 = arith.constant 0 : index
    %0 = vector.load %arg1[%c0, %c0_0, %c0_1] : memref<28x16x28xbf16, #tpu.memory_space<vmem>>, vector<28x16x28xbf16>
    %cst = arith.constant 0.000000e+00 : bf16
    %1 = vector.broadcast %cst : bf16 to vector<1x16x28xbf16>
    %2 = tpu.concatenate %1, %0, %1 in 0 : vector<1x16x28xbf16>, vector<28x16x28xbf16>, vector<1x16x28xbf16> -> vector<30x16x28xbf16>
    %3 = vector.shape_cast %2 : vector<30x16x28xbf16> to vector<480x28xbf16>
    %c0_2 = arith.constant 0 : index
    %c0_3 = arith.constant 0 : index
    %c0_4 = arith.constant 0 : index
    %4 = vector.load %arg2[%c0_2, %c0_3, %c0_4] : memref<3x28x224xbf16, #tpu.memory_space<vmem>>, vector<1x28x224xbf16>
    %5 = vector.shape_cast %4 : vector<1x28x224xbf16> to vector<28x224xbf16>
    %cst_5 = arith.constant dense<0.000000e+00> : vector<480x224xf32>
    %6 = tpu.matmul %3, %5, %cst_5 {dimension_numbers = #tpu.dot_dimension_numbers<[1], [0], [0], [1], [0, 0, 1, 1], [], []>} : vector<480x28xbf16>, vector<28x224xbf16>, vector<480x224xf32> -> vector<480x224xf32>
    %7 = vector.shape_cast %6 : vector<480x224xf32> to vector<30x16x224xf32>
    %c1 = arith.constant 1 : index
    %c0_6 = arith.constant 0 : index
    %c0_7 = arith.constant 0 : index
    %8 = vector.load %arg2[%c1, %c0_6, %c0_7] : memref<3x28x224xbf16, #tpu.memory_space<vmem>>, vector<1x28x224xbf16>
    %9 = vector.shape_cast %8 : vector<1x28x224xbf16> to vector<28x224xbf16>
    %cst_8 = arith.constant dense<0.000000e+00> : vector<480x224xf32>
    %10 = tpu.matmul %3, %9, %cst_8 {dimension_numbers = #tpu.dot_dimension_numbers<[1], [0], [0], [1], [0, 0, 1, 1], [], []>} : vector<480x28xbf16>, vector<28x224xbf16>, vector<480x224xf32> -> vector<480x224xf32>
    %11 = vector.shape_cast %10 : vector<480x224xf32> to vector<30x16x224xf32>
    %c2 = arith.constant 2 : index
    %c0_9 = arith.constant 0 : index
    %c0_10 = arith.constant 0 : index
    %12 = vector.load %arg2[%c2, %c0_9, %c0_10] : memref<3x28x224xbf16, #tpu.memory_space<vmem>>, vector<1x28x224xbf16>
    %13 = vector.shape_cast %12 : vector<1x28x224xbf16> to vector<28x224xbf16>
    %cst_11 = arith.constant dense<0.000000e+00> : vector<480x224xf32>
    %14 = tpu.matmul %3, %13, %cst_11 {dimension_numbers = #tpu.dot_dimension_numbers<[1], [0], [0], [1], [0, 0, 1, 1], [], []>} : vector<480x28xbf16>, vector<28x224xbf16>, vector<480x224xf32> -> vector<480x224xf32>
    %15 = vector.shape_cast %14 : vector<480x224xf32> to vector<30x16x224xf32>
    %16 = vector.extract_strided_slice %7 {offsets = [0, 0, 0], sizes = [28, 16, 224], strides = [1, 1, 1]} : vector<30x16x224xf32> to vector<28x16x224xf32>
    %17 = vector.extract_strided_slice %11 {offsets = [1, 0, 0], sizes = [28, 16, 224], strides = [1, 1, 1]} : vector<30x16x224xf32> to vector<28x16x224xf32>
    %18 = arith.addf %16, %17 : vector<28x16x224xf32>
    %19 = vector.extract_strided_slice %15 {offsets = [2, 0, 0], sizes = [28, 16, 224], strides = [1, 1, 1]} : vector<30x16x224xf32> to vector<28x16x224xf32>
    %20 = arith.addf %18, %19 : vector<28x16x224xf32>
    %c0_12 = arith.constant 0 : index
    %c0_13 = arith.constant 0 : index
    %c0_14 = arith.constant 0 : index
    %21 = vector.load %arg3[%c0_12, %c0_13, %c0_14] : memref<2x1x224xf32, #tpu.memory_space<vmem>>, vector<1x1x224xf32>
    %22 = vector.shape_cast %21 : vector<1x1x224xf32> to vector<1x224xf32>
    %23 = vector.shape_cast %22 : vector<1x224xf32> to vector<1x1x224xf32>
    %24 = vector.broadcast %23 : vector<1x1x224xf32> to vector<28x16x224xf32>
    %25 = arith.mulf %20, %24 : vector<28x16x224xf32>
    %c1_15 = arith.constant 1 : index
    %c0_16 = arith.constant 0 : index
    %c0_17 = arith.constant 0 : index
    %26 = vector.load %arg3[%c1_15, %c0_16, %c0_17] : memref<2x1x224xf32, #tpu.memory_space<vmem>>, vector<1x1x224xf32>
    %27 = vector.shape_cast %26 : vector<1x1x224xf32> to vector<1x224xf32>
    %28 = vector.shape_cast %27 : vector<1x224xf32> to vector<1x1x224xf32>
    %29 = vector.broadcast %28 : vector<1x1x224xf32> to vector<28x16x224xf32>
    %30 = arith.addf %25, %29 : vector<28x16x224xf32>
    %cst_18 = arith.constant 0.000000e+00 : f32
    %31 = vector.broadcast %cst_18 : f32 to vector<28x16x224xf32>
    %32 = arith.maximumf %30, %31 : vector<28x16x224xf32>
    %33 = vector.shape_cast %32 : vector<28x16x224xf32> to vector<14x2x16x224xf32>
    %34 = vector.extract_strided_slice %33 {offsets = [0, 0, 0, 0], sizes = [14, 1, 16, 224], strides = [1, 1, 1, 1]} : vector<14x2x16x224xf32> to vector<14x1x16x224xf32>
    %35 = vector.shape_cast %34 : vector<14x1x16x224xf32> to vector<14x16x224xf32>
    %36 = vector.extract_strided_slice %33 {offsets = [0, 1, 0, 0], sizes = [14, 1, 16, 224], strides = [1, 1, 1, 1]} : vector<14x2x16x224xf32> to vector<14x1x16x224xf32>
    %37 = vector.shape_cast %36 : vector<14x1x16x224xf32> to vector<14x16x224xf32>
    %38 = arith.maximumf %35, %37 : vector<14x16x224xf32>
    %39 = vector.shape_cast %38 : vector<14x16x224xf32> to vector<224x224xf32>
    %40 = arith.truncf %39 : vector<224x224xf32> to vector<224x224xbf16>
    %c0_19 = arith.constant 0 : index
    %c0_20 = arith.constant 0 : index
    %41 = vector.load %arg4[%c0_19, %c0_20] : memref<224x112xbf16, #tpu.memory_space<vmem>>, vector<224x112xbf16>
    %cst_21 = arith.constant dense<0.000000e+00> : vector<224x112xf32>
    %42 = tpu.matmul %40, %41, %cst_21 {dimension_numbers = #tpu.dot_dimension_numbers<[1], [0], [0], [1], [0, 0, 1, 1], [], []>} : vector<224x224xbf16>, vector<224x112xbf16>, vector<224x112xf32> -> vector<224x112xf32>
    %c0_22 = arith.constant 0 : index
    %c0_23 = arith.constant 0 : index
    %43 = vector.load %arg5[%c0_22, %c0_23] : memref<224x112xbf16, #tpu.memory_space<vmem>>, vector<224x112xbf16>
    %cst_24 = arith.constant dense<0.000000e+00> : vector<224x112xf32>
    %44 = tpu.matmul %40, %43, %cst_24 {dimension_numbers = #tpu.dot_dimension_numbers<[1], [0], [0], [1], [0, 0, 1, 1], [], []>} : vector<224x224xbf16>, vector<224x112xbf16>, vector<224x112xf32> -> vector<224x112xf32>
    %45 = arith.maximumf %42, %44 : vector<224x112xf32>
    %46 = vector.shape_cast %45 : vector<224x112xf32> to vector<14x16x112xf32>
    %47 = arith.truncf %46 : vector<14x16x112xf32> to vector<14x16x112xbf16>
    %cst_25 = arith.constant 0.000000e+00 : bf16
    %48 = vector.broadcast %cst_25 : bf16 to vector<1x16x112xbf16>
    %49 = tpu.concatenate %48, %47, %48 in 0 : vector<1x16x112xbf16>, vector<14x16x112xbf16>, vector<1x16x112xbf16> -> vector<16x16x112xbf16>
    %50 = vector.shape_cast %49 : vector<16x16x112xbf16> to vector<256x112xbf16>
    %c0_26 = arith.constant 0 : index
    %c0_27 = arith.constant 0 : index
    %c0_28 = arith.constant 0 : index
    %51 = vector.load %arg6[%c0_26, %c0_27, %c0_28] : memref<3x112x224xbf16, #tpu.memory_space<vmem>>, vector<1x112x224xbf16>
    %52 = vector.shape_cast %51 : vector<1x112x224xbf16> to vector<112x224xbf16>
    %cst_29 = arith.constant dense<0.000000e+00> : vector<256x224xf32>
    %53 = tpu.matmul %50, %52, %cst_29 {dimension_numbers = #tpu.dot_dimension_numbers<[1], [0], [0], [1], [0, 0, 1, 1], [], []>} : vector<256x112xbf16>, vector<112x224xbf16>, vector<256x224xf32> -> vector<256x224xf32>
    %54 = vector.shape_cast %53 : vector<256x224xf32> to vector<16x16x224xf32>
    %c1_30 = arith.constant 1 : index
    %c0_31 = arith.constant 0 : index
    %c0_32 = arith.constant 0 : index
    %55 = vector.load %arg6[%c1_30, %c0_31, %c0_32] : memref<3x112x224xbf16, #tpu.memory_space<vmem>>, vector<1x112x224xbf16>
    %56 = vector.shape_cast %55 : vector<1x112x224xbf16> to vector<112x224xbf16>
    %cst_33 = arith.constant dense<0.000000e+00> : vector<256x224xf32>
    %57 = tpu.matmul %50, %56, %cst_33 {dimension_numbers = #tpu.dot_dimension_numbers<[1], [0], [0], [1], [0, 0, 1, 1], [], []>} : vector<256x112xbf16>, vector<112x224xbf16>, vector<256x224xf32> -> vector<256x224xf32>
    %58 = vector.shape_cast %57 : vector<256x224xf32> to vector<16x16x224xf32>
    %c2_34 = arith.constant 2 : index
    %c0_35 = arith.constant 0 : index
    %c0_36 = arith.constant 0 : index
    %59 = vector.load %arg6[%c2_34, %c0_35, %c0_36] : memref<3x112x224xbf16, #tpu.memory_space<vmem>>, vector<1x112x224xbf16>
    %60 = vector.shape_cast %59 : vector<1x112x224xbf16> to vector<112x224xbf16>
    %cst_37 = arith.constant dense<0.000000e+00> : vector<256x224xf32>
    %61 = tpu.matmul %50, %60, %cst_37 {dimension_numbers = #tpu.dot_dimension_numbers<[1], [0], [0], [1], [0, 0, 1, 1], [], []>} : vector<256x112xbf16>, vector<112x224xbf16>, vector<256x224xf32> -> vector<256x224xf32>
    %62 = vector.shape_cast %61 : vector<256x224xf32> to vector<16x16x224xf32>
    %63 = vector.extract_strided_slice %54 {offsets = [0, 0, 0], sizes = [14, 16, 224], strides = [1, 1, 1]} : vector<16x16x224xf32> to vector<14x16x224xf32>
    %64 = vector.extract_strided_slice %58 {offsets = [1, 0, 0], sizes = [14, 16, 224], strides = [1, 1, 1]} : vector<16x16x224xf32> to vector<14x16x224xf32>
    %65 = arith.addf %63, %64 : vector<14x16x224xf32>
    %66 = vector.extract_strided_slice %62 {offsets = [2, 0, 0], sizes = [14, 16, 224], strides = [1, 1, 1]} : vector<16x16x224xf32> to vector<14x16x224xf32>
    %67 = arith.addf %65, %66 : vector<14x16x224xf32>
    %c0_38 = arith.constant 0 : index
    %c0_39 = arith.constant 0 : index
    %c0_40 = arith.constant 0 : index
    %68 = vector.load %arg7[%c0_38, %c0_39, %c0_40] : memref<2x1x224xf32, #tpu.memory_space<vmem>>, vector<1x1x224xf32>
    %69 = vector.shape_cast %68 : vector<1x1x224xf32> to vector<1x224xf32>
    %70 = vector.shape_cast %69 : vector<1x224xf32> to vector<1x1x224xf32>
    %71 = vector.broadcast %70 : vector<1x1x224xf32> to vector<14x16x224xf32>
    %72 = arith.mulf %67, %71 : vector<14x16x224xf32>
    %c1_41 = arith.constant 1 : index
    %c0_42 = arith.constant 0 : index
    %c0_43 = arith.constant 0 : index
    %73 = vector.load %arg7[%c1_41, %c0_42, %c0_43] : memref<2x1x224xf32, #tpu.memory_space<vmem>>, vector<1x1x224xf32>
    %74 = vector.shape_cast %73 : vector<1x1x224xf32> to vector<1x224xf32>
    %75 = vector.shape_cast %74 : vector<1x224xf32> to vector<1x1x224xf32>
    %76 = vector.broadcast %75 : vector<1x1x224xf32> to vector<14x16x224xf32>
    %77 = arith.addf %72, %76 : vector<14x16x224xf32>
    %cst_44 = arith.constant 0.000000e+00 : f32
    %78 = vector.broadcast %cst_44 : f32 to vector<14x16x224xf32>
    %79 = arith.maximumf %77, %78 : vector<14x16x224xf32>
    %80 = vector.shape_cast %79 : vector<14x16x224xf32> to vector<7x2x16x224xf32>
    %81 = vector.extract_strided_slice %80 {offsets = [0, 0, 0, 0], sizes = [7, 1, 16, 224], strides = [1, 1, 1, 1]} : vector<7x2x16x224xf32> to vector<7x1x16x224xf32>
    %82 = vector.shape_cast %81 : vector<7x1x16x224xf32> to vector<7x16x224xf32>
    %83 = vector.extract_strided_slice %80 {offsets = [0, 1, 0, 0], sizes = [7, 1, 16, 224], strides = [1, 1, 1, 1]} : vector<7x2x16x224xf32> to vector<7x1x16x224xf32>
    %84 = vector.shape_cast %83 : vector<7x1x16x224xf32> to vector<7x16x224xf32>
    %85 = arith.maximumf %82, %84 : vector<7x16x224xf32>
    %86 = vector.shape_cast %85 : vector<7x16x224xf32> to vector<112x224xf32>
    %87 = arith.truncf %86 : vector<112x224xf32> to vector<112x224xbf16>
    %c0_45 = arith.constant 0 : index
    %c0_46 = arith.constant 0 : index
    %88 = vector.load %arg8[%c0_45, %c0_46] : memref<224x112xbf16, #tpu.memory_space<vmem>>, vector<224x112xbf16>
    %cst_47 = arith.constant dense<0.000000e+00> : vector<112x112xf32>
    %89 = tpu.matmul %87, %88, %cst_47 {dimension_numbers = #tpu.dot_dimension_numbers<[1], [0], [0], [1], [0, 0, 1, 1], [], []>} : vector<112x224xbf16>, vector<224x112xbf16>, vector<112x112xf32> -> vector<112x112xf32>
    %c0_48 = arith.constant 0 : index
    %c0_49 = arith.constant 0 : index
    %90 = vector.load %arg9[%c0_48, %c0_49] : memref<224x112xbf16, #tpu.memory_space<vmem>>, vector<224x112xbf16>
    %cst_50 = arith.constant dense<0.000000e+00> : vector<112x112xf32>
    %91 = tpu.matmul %87, %90, %cst_50 {dimension_numbers = #tpu.dot_dimension_numbers<[1], [0], [0], [1], [0, 0, 1, 1], [], []>} : vector<112x224xbf16>, vector<224x112xbf16>, vector<112x112xf32> -> vector<112x112xf32>
    %92 = arith.maximumf %89, %91 : vector<112x112xf32>
    %93 = vector.shape_cast %92 : vector<112x112xf32> to vector<7x16x112xf32>
    %94 = arith.truncf %93 : vector<7x16x112xf32> to vector<7x16x112xbf16>
    %cst_51 = arith.constant 0.000000e+00 : bf16
    %95 = vector.broadcast %cst_51 : bf16 to vector<1x16x112xbf16>
    %96 = tpu.concatenate %95, %94, %95 in 0 : vector<1x16x112xbf16>, vector<7x16x112xbf16>, vector<1x16x112xbf16> -> vector<9x16x112xbf16>
    %97 = vector.shape_cast %96 : vector<9x16x112xbf16> to vector<144x112xbf16>
    %c0_52 = arith.constant 0 : index
    %c0_53 = arith.constant 0 : index
    %c0_54 = arith.constant 0 : index
    %98 = vector.load %arg10[%c0_52, %c0_53, %c0_54] : memref<3x112x224xbf16, #tpu.memory_space<vmem>>, vector<1x112x224xbf16>
    %99 = vector.shape_cast %98 : vector<1x112x224xbf16> to vector<112x224xbf16>
    %cst_55 = arith.constant dense<0.000000e+00> : vector<144x224xf32>
    %100 = tpu.matmul %97, %99, %cst_55 {dimension_numbers = #tpu.dot_dimension_numbers<[1], [0], [0], [1], [0, 0, 1, 1], [], []>} : vector<144x112xbf16>, vector<112x224xbf16>, vector<144x224xf32> -> vector<144x224xf32>
    %101 = vector.shape_cast %100 : vector<144x224xf32> to vector<9x16x224xf32>
    %c1_56 = arith.constant 1 : index
    %c0_57 = arith.constant 0 : index
    %c0_58 = arith.constant 0 : index
    %102 = vector.load %arg10[%c1_56, %c0_57, %c0_58] : memref<3x112x224xbf16, #tpu.memory_space<vmem>>, vector<1x112x224xbf16>
    %103 = vector.shape_cast %102 : vector<1x112x224xbf16> to vector<112x224xbf16>
    %cst_59 = arith.constant dense<0.000000e+00> : vector<144x224xf32>
    %104 = tpu.matmul %97, %103, %cst_59 {dimension_numbers = #tpu.dot_dimension_numbers<[1], [0], [0], [1], [0, 0, 1, 1], [], []>} : vector<144x112xbf16>, vector<112x224xbf16>, vector<144x224xf32> -> vector<144x224xf32>
    %105 = vector.shape_cast %104 : vector<144x224xf32> to vector<9x16x224xf32>
    %c2_60 = arith.constant 2 : index
    %c0_61 = arith.constant 0 : index
    %c0_62 = arith.constant 0 : index
    %106 = vector.load %arg10[%c2_60, %c0_61, %c0_62] : memref<3x112x224xbf16, #tpu.memory_space<vmem>>, vector<1x112x224xbf16>
    %107 = vector.shape_cast %106 : vector<1x112x224xbf16> to vector<112x224xbf16>
    %cst_63 = arith.constant dense<0.000000e+00> : vector<144x224xf32>
    %108 = tpu.matmul %97, %107, %cst_63 {dimension_numbers = #tpu.dot_dimension_numbers<[1], [0], [0], [1], [0, 0, 1, 1], [], []>} : vector<144x112xbf16>, vector<112x224xbf16>, vector<144x224xf32> -> vector<144x224xf32>
    %109 = vector.shape_cast %108 : vector<144x224xf32> to vector<9x16x224xf32>
    %110 = vector.extract_strided_slice %101 {offsets = [0, 0, 0], sizes = [7, 16, 224], strides = [1, 1, 1]} : vector<9x16x224xf32> to vector<7x16x224xf32>
    %111 = vector.extract_strided_slice %105 {offsets = [1, 0, 0], sizes = [7, 16, 224], strides = [1, 1, 1]} : vector<9x16x224xf32> to vector<7x16x224xf32>
    %112 = arith.addf %110, %111 : vector<7x16x224xf32>
    %113 = vector.extract_strided_slice %109 {offsets = [2, 0, 0], sizes = [7, 16, 224], strides = [1, 1, 1]} : vector<9x16x224xf32> to vector<7x16x224xf32>
    %114 = arith.addf %112, %113 : vector<7x16x224xf32>
    %c0_64 = arith.constant 0 : index
    %c0_65 = arith.constant 0 : index
    %c0_66 = arith.constant 0 : index
    %115 = vector.load %arg11[%c0_64, %c0_65, %c0_66] : memref<2x1x224xf32, #tpu.memory_space<vmem>>, vector<1x1x224xf32>
    %116 = vector.shape_cast %115 : vector<1x1x224xf32> to vector<1x224xf32>
    %117 = vector.shape_cast %116 : vector<1x224xf32> to vector<1x1x224xf32>
    %118 = vector.broadcast %117 : vector<1x1x224xf32> to vector<7x16x224xf32>
    %119 = arith.mulf %114, %118 : vector<7x16x224xf32>
    %c1_67 = arith.constant 1 : index
    %c0_68 = arith.constant 0 : index
    %c0_69 = arith.constant 0 : index
    %120 = vector.load %arg11[%c1_67, %c0_68, %c0_69] : memref<2x1x224xf32, #tpu.memory_space<vmem>>, vector<1x1x224xf32>
    %121 = vector.shape_cast %120 : vector<1x1x224xf32> to vector<1x224xf32>
    %122 = vector.shape_cast %121 : vector<1x224xf32> to vector<1x1x224xf32>
    %123 = vector.broadcast %122 : vector<1x1x224xf32> to vector<7x16x224xf32>
    %124 = arith.addf %119, %123 : vector<7x16x224xf32>
    %cst_70 = arith.constant 0.000000e+00 : f32
    %125 = vector.broadcast %cst_70 : f32 to vector<7x16x224xf32>
    %126 = arith.maximumf %124, %125 : vector<7x16x224xf32>
    %127 = vector.extract_strided_slice %126 {offsets = [0, 0, 0], sizes = [6, 16, 224], strides = [1, 1, 1]} : vector<7x16x224xf32> to vector<6x16x224xf32>
    %128 = vector.shape_cast %127 : vector<6x16x224xf32> to vector<3x2x16x224xf32>
    %129 = vector.extract_strided_slice %128 {offsets = [0, 0, 0, 0], sizes = [3, 1, 16, 224], strides = [1, 1, 1, 1]} : vector<3x2x16x224xf32> to vector<3x1x16x224xf32>
    %130 = vector.shape_cast %129 : vector<3x1x16x224xf32> to vector<3x16x224xf32>
    %131 = vector.extract_strided_slice %128 {offsets = [0, 1, 0, 0], sizes = [3, 1, 16, 224], strides = [1, 1, 1, 1]} : vector<3x2x16x224xf32> to vector<3x1x16x224xf32>
    %132 = vector.shape_cast %131 : vector<3x1x16x224xf32> to vector<3x16x224xf32>
    %133 = arith.maximumf %130, %132 : vector<3x16x224xf32>
    %134 = vector.shape_cast %133 : vector<3x16x224xf32> to vector<48x224xf32>
    %135 = arith.truncf %134 : vector<48x224xf32> to vector<48x224xbf16>
    %c0_71 = arith.constant 0 : index
    %c0_72 = arith.constant 0 : index
    %136 = vector.load %arg12[%c0_71, %c0_72] : memref<224x96xbf16, #tpu.memory_space<vmem>>, vector<224x96xbf16>
    %cst_73 = arith.constant dense<0.000000e+00> : vector<48x96xf32>
    %137 = tpu.matmul %135, %136, %cst_73 {dimension_numbers = #tpu.dot_dimension_numbers<[1], [0], [0], [1], [0, 0, 1, 1], [], []>} : vector<48x224xbf16>, vector<224x96xbf16>, vector<48x96xf32> -> vector<48x96xf32>
    %c0_74 = arith.constant 0 : index
    %c0_75 = arith.constant 0 : index
    %138 = vector.load %arg13[%c0_74, %c0_75] : memref<224x96xbf16, #tpu.memory_space<vmem>>, vector<224x96xbf16>
    %cst_76 = arith.constant dense<0.000000e+00> : vector<48x96xf32>
    %139 = tpu.matmul %135, %138, %cst_76 {dimension_numbers = #tpu.dot_dimension_numbers<[1], [0], [0], [1], [0, 0, 1, 1], [], []>} : vector<48x224xbf16>, vector<224x96xbf16>, vector<48x96xf32> -> vector<48x96xf32>
    %140 = arith.maximumf %137, %139 : vector<48x96xf32>
    %141 = vector.shape_cast %140 : vector<48x96xf32> to vector<3x16x96xf32>
    %142 = arith.truncf %141 : vector<3x16x96xf32> to vector<3x16x96xbf16>
    %143 = vector.extract_strided_slice %142 {offsets = [0, 0, 0], sizes = [1, 16, 96], strides = [1, 1, 1]} : vector<3x16x96xbf16> to vector<1x16x96xbf16>
    %144 = vector.shape_cast %143 : vector<1x16x96xbf16> to vector<16x96xbf16>
    %c0_77 = arith.constant 0 : index
    %c0_78 = arith.constant 0 : index
    %c0_79 = arith.constant 0 : index
    %145 = vector.load %arg14[%c0_77, %c0_78, %c0_79] : memref<3x96x32xbf16, #tpu.memory_space<vmem>>, vector<1x96x32xbf16>
    %146 = vector.shape_cast %145 : vector<1x96x32xbf16> to vector<96x32xbf16>
    %cst_80 = arith.constant dense<0.000000e+00> : vector<16x32xf32>
    %147 = tpu.matmul %144, %146, %cst_80 {dimension_numbers = #tpu.dot_dimension_numbers<[1], [0], [0], [1], [0, 0, 1, 1], [], []>} : vector<16x96xbf16>, vector<96x32xbf16>, vector<16x32xf32> -> vector<16x32xf32>
    %148 = vector.extract_strided_slice %142 {offsets = [1, 0, 0], sizes = [1, 16, 96], strides = [1, 1, 1]} : vector<3x16x96xbf16> to vector<1x16x96xbf16>
    %149 = vector.shape_cast %148 : vector<1x16x96xbf16> to vector<16x96xbf16>
    %c1_81 = arith.constant 1 : index
    %c0_82 = arith.constant 0 : index
    %c0_83 = arith.constant 0 : index
    %150 = vector.load %arg14[%c1_81, %c0_82, %c0_83] : memref<3x96x32xbf16, #tpu.memory_space<vmem>>, vector<1x96x32xbf16>
    %151 = vector.shape_cast %150 : vector<1x96x32xbf16> to vector<96x32xbf16>
    %cst_84 = arith.constant dense<0.000000e+00> : vector<16x32xf32>
    %152 = tpu.matmul %149, %151, %cst_84 {dimension_numbers = #tpu.dot_dimension_numbers<[1], [0], [0], [1], [0, 0, 1, 1], [], []>} : vector<16x96xbf16>, vector<96x32xbf16>, vector<16x32xf32> -> vector<16x32xf32>
    %153 = arith.addf %147, %152 : vector<16x32xf32>
    %154 = vector.extract_strided_slice %142 {offsets = [2, 0, 0], sizes = [1, 16, 96], strides = [1, 1, 1]} : vector<3x16x96xbf16> to vector<1x16x96xbf16>
    %155 = vector.shape_cast %154 : vector<1x16x96xbf16> to vector<16x96xbf16>
    %c2_85 = arith.constant 2 : index
    %c0_86 = arith.constant 0 : index
    %c0_87 = arith.constant 0 : index
    %156 = vector.load %arg14[%c2_85, %c0_86, %c0_87] : memref<3x96x32xbf16, #tpu.memory_space<vmem>>, vector<1x96x32xbf16>
    %157 = vector.shape_cast %156 : vector<1x96x32xbf16> to vector<96x32xbf16>
    %cst_88 = arith.constant dense<0.000000e+00> : vector<16x32xf32>
    %158 = tpu.matmul %155, %157, %cst_88 {dimension_numbers = #tpu.dot_dimension_numbers<[1], [0], [0], [1], [0, 0, 1, 1], [], []>} : vector<16x96xbf16>, vector<96x32xbf16>, vector<16x32xf32> -> vector<16x32xf32>
    %159 = arith.addf %153, %158 : vector<16x32xf32>
    %c0_89 = arith.constant 0 : index
    %c0_90 = arith.constant 0 : index
    %160 = vector.load %arg15[%c0_89, %c0_90] : memref<1x32xf32, #tpu.memory_space<vmem>>, vector<1x32xf32>
    %161 = vector.broadcast %160 : vector<1x32xf32> to vector<16x32xf32>
    %162 = arith.addf %159, %161 : vector<16x32xf32>
    %cst_91 = arith.constant 0.000000e+00 : f32
    %163 = vector.broadcast %cst_91 : f32 to vector<16x32xf32>
    %164 = arith.maximumf %162, %163 : vector<16x32xf32>
    %165 = arith.truncf %164 : vector<16x32xf32> to vector<16x32xbf16>
    %c0_92 = arith.constant 0 : index
    %c0_93 = arith.constant 0 : index
    %166 = vector.load %arg16[%c0_92, %c0_93] : memref<32x128xbf16, #tpu.memory_space<vmem>>, vector<32x128xbf16>
    %cst_94 = arith.constant dense<0.000000e+00> : vector<16x128xf32>
    %167 = tpu.matmul %165, %166, %cst_94 {dimension_numbers = #tpu.dot_dimension_numbers<[1], [0], [0], [1], [0, 0, 1, 1], [], []>} : vector<16x32xbf16>, vector<32x128xbf16>, vector<16x128xf32> -> vector<16x128xf32>
    %c0_95 = arith.constant 0 : index
    %c0_96 = arith.constant 0 : index
    %168 = vector.load %arg17[%c0_95, %c0_96] : memref<1x128xf32, #tpu.memory_space<vmem>>, vector<1x128xf32>
    %169 = vector.broadcast %168 : vector<1x128xf32> to vector<16x128xf32>
    %170 = arith.addf %167, %169 : vector<16x128xf32>
    %c0_97 = arith.constant 0 : index
    %c0_98 = arith.constant 0 : index
    %171 = vector.load %arg18[%c0_97, %c0_98] : memref<16x128xf32, #tpu.memory_space<vmem>>, vector<16x128xf32>
    tpu.vector_store %arg18[%c0_97, %c0_98], %170 {strides = array<i32>} : memref<16x128xf32, #tpu.memory_space<vmem>>, vector<16x128xf32>,
    return
  }
  func.func @transform_0(%arg0: i32) -> (i32, i32, i32) {
    %c0_i32 = arith.constant 0 : i32
    %c0_i32_0 = arith.constant 0 : i32
    %c0_i32_1 = arith.constant 0 : i32
    return %c0_i32, %arg0, %c0_i32_0 : i32, i32, i32
  }
  func.func @transform_1(%arg0: i32) -> (i32, i32, i32) {
    %c0_i32 = arith.constant 0 : i32
    %c0_i32_0 = arith.constant 0 : i32
    %c0_i32_1 = arith.constant 0 : i32
    %c0_i32_2 = arith.constant 0 : i32
    return %c0_i32, %c0_i32_0, %c0_i32_1 : i32, i32, i32
  }
  func.func @transform_2(%arg0: i32) -> (i32, i32, i32) {
    %c0_i32 = arith.constant 0 : i32
    %c0_i32_0 = arith.constant 0 : i32
    %c0_i32_1 = arith.constant 0 : i32
    %c0_i32_2 = arith.constant 0 : i32
    return %c0_i32, %c0_i32_0, %c0_i32_1 : i32, i32, i32
  }
  func.func @transform_3(%arg0: i32) -> (i32, i32) {
    %c0_i32 = arith.constant 0 : i32
    %c0_i32_0 = arith.constant 0 : i32
    %c0_i32_1 = arith.constant 0 : i32
    return %c0_i32, %c0_i32_0 : i32, i32
  }
  func.func @transform_4(%arg0: i32) -> (i32, i32) {
    %c0_i32 = arith.constant 0 : i32
    %c0_i32_0 = arith.constant 0 : i32
    %c0_i32_1 = arith.constant 0 : i32
    return %c0_i32, %c0_i32_0 : i32, i32
  }
  func.func @transform_5(%arg0: i32) -> (i32, i32, i32) {
    %c0_i32 = arith.constant 0 : i32
    %c0_i32_0 = arith.constant 0 : i32
    %c0_i32_1 = arith.constant 0 : i32
    %c0_i32_2 = arith.constant 0 : i32
    return %c0_i32, %c0_i32_0, %c0_i32_1 : i32, i32, i32
  }
  func.func @transform_6(%arg0: i32) -> (i32, i32, i32) {
    %c0_i32 = arith.constant 0 : i32
    %c0_i32_0 = arith.constant 0 : i32
    %c0_i32_1 = arith.constant 0 : i32
    %c0_i32_2 = arith.constant 0 : i32
    return %c0_i32, %c0_i32_0, %c0_i32_1 : i32, i32, i32
  }
  func.func @transform_7(%arg0: i32) -> (i32, i32) {
    %c0_i32 = arith.constant 0 : i32
    %c0_i32_0 = arith.constant 0 : i32
    %c0_i32_1 = arith.constant 0 : i32
    return %c0_i32, %c0_i32_0 : i32, i32
  }
  func.func @transform_8(%arg0: i32) -> (i32, i32) {
    %c0_i32 = arith.constant 0 : i32
    %c0_i32_0 = arith.constant 0 : i32
    %c0_i32_1 = arith.constant 0 : i32
    return %c0_i32, %c0_i32_0 : i32, i32
  }
  func.func @transform_9(%arg0: i32) -> (i32, i32, i32) {
    %c0_i32 = arith.constant 0 : i32
    %c0_i32_0 = arith.constant 0 : i32
    %c0_i32_1 = arith.constant 0 : i32
    %c0_i32_2 = arith.constant 0 : i32
    return %c0_i32, %c0_i32_0, %c0_i32_1 : i32, i32, i32
  }
  func.func @transform_10(%arg0: i32) -> (i32, i32, i32) {
    %c0_i32 = arith.constant 0 : i32
    %c0_i32_0 = arith.constant 0 : i32
    %c0_i32_1 = arith.constant 0 : i32
    %c0_i32_2 = arith.constant 0 : i32
    return %c0_i32, %c0_i32_0, %c0_i32_1 : i32, i32, i32
  }
  func.func @transform_11(%arg0: i32) -> (i32, i32) {
    %c0_i32 = arith.constant 0 : i32
    %c0_i32_0 = arith.constant 0 : i32
    %c0_i32_1 = arith.constant 0 : i32
    return %c0_i32, %c0_i32_0 : i32, i32
  }
  func.func @transform_12(%arg0: i32) -> (i32, i32) {
    %c0_i32 = arith.constant 0 : i32
    %c0_i32_0 = arith.constant 0 : i32
    %c0_i32_1 = arith.constant 0 : i32
    return %c0_i32, %c0_i32_0 : i32, i32
  }
  func.func @transform_13(%arg0: i32) -> (i32, i32, i32) {
    %c0_i32 = arith.constant 0 : i32
    %c0_i32_0 = arith.constant 0 : i32
    %c0_i32_1 = arith.constant 0 : i32
    %c0_i32_2 = arith.constant 0 : i32
    return %c0_i32, %c0_i32_0, %c0_i32_1 : i32, i32, i32
  }
  func.func @transform_14(%arg0: i32) -> (i32, i32) {
    %c0_i32 = arith.constant 0 : i32
    %c0_i32_0 = arith.constant 0 : i32
    %c0_i32_1 = arith.constant 0 : i32
    return %c0_i32, %c0_i32_0 : i32, i32
  }
  func.func @transform_15(%arg0: i32) -> (i32, i32) {
    %c0_i32 = arith.constant 0 : i32
    %c0_i32_0 = arith.constant 0 : i32
    %c0_i32_1 = arith.constant 0 : i32
    return %c0_i32, %c0_i32_0 : i32, i32
  }
  func.func @transform_16(%arg0: i32) -> (i32, i32) {
    %c0_i32 = arith.constant 0 : i32
    %c0_i32_0 = arith.constant 0 : i32
    %c0_i32_1 = arith.constant 0 : i32
    return %c0_i32, %c0_i32_0 : i32, i32
  }
  func.func @transform_17(%arg0: i32) -> (i32, i32) {
    %c0_i32 = arith.constant 0 : i32
    %c0_i32_0 = arith.constant 0 : i32
    return %arg0, %c0_i32 : i32, i32
  }
}

</mosaic_0001>

<llo_original>
// kernel: my_cnn_forward.1
$region0: #{my_cnn_forward.1}
  #allocation0 [shape = 'u32[]', space=smem, size = 0x4, offset = 0x4, fixed_abs, tag = 'smem constant byte address 0x4 - core index']
  #allocation1 [shape = 'u32[144,128]{1,0:T(1,128)}', space=vmem, size = 0x12000, scoped, tag = 'internal scratch']
  %s0 = inlined_call_operand.vmem [shape: bf16[28,32,28], index: 0, kind: input, shape index: {}]
  %s1 = inlined_call_operand.vmem [shape: bf16[3,28,224], index: 1, kind: input, shape index: {}]
  %s2 = inlined_call_operand.vmem [shape: f32[2,1,224], index: 2, kind: input, shape index: {}]
  %s3 = inlined_call_operand.vmem [shape: bf16[224,112], index: 3, kind: input, shape index: {}]
  %s4 = inlined_call_operand.vmem [shape: bf16[224,112], index: 4, kind: input, shape index: {}]
  %s5 = inlined_call_operand.vmem [shape: bf16[3,112,224], index: 5, kind: input, shape index: {}]
  %s6 = inlined_call_operand.vmem [shape: f32[2,1,224], index: 6, kind: input, shape index: {}]
  %s7 = inlined_call_operand.vmem [shape: bf16[224,112], index: 7, kind: input, shape index: {}]
  %s8 = inlined_call_operand.vmem [shape: bf16[224,112], index: 8, kind: input, shape index: {}]
  %s9 = inlined_call_operand.vmem [shape: bf16[3,112,224], index: 9, kind: input, shape index: {}]
  %s10 = inlined_call_operand.vmem [shape: f32[2,1,224], index: 10, kind: input, shape index: {}]
  %s11 = inlined_call_operand.vmem [shape: bf16[224,96], index: 11, kind: input, shape index: {}]
  %s12 = inlined_call_operand.vmem [shape: bf16[224,96], index: 12, kind: input, shape index: {}]
  %s13 = inlined_call_operand.vmem [shape: bf16[3,96,32], index: 13, kind: input, shape index: {}]
  %s14 = inlined_call_operand.vmem [shape: f32[1,32], index: 14, kind: input, shape index: {}]
  %s15 = inlined_call_operand.vmem [shape: bf16[32,128], index: 15, kind: input, shape index: {}]
  %s16 = inlined_call_operand.vmem [shape: f32[1,128], index: 16, kind: input, shape index: {}]
  %s17 = inlined_call_operand.vmem [shape: f32[32,128], index: 17, kind: output, shape index: {}]
  %s18 = sld [smem:[#allocation0]]
  $region142: #{my_cnn_forward.1} parent=0
    _
  %s20 = ssub.s32 1, %s18
  %s21 = scalar_select 0, %s20, %s18
  $region1: #{my_cnn_forward.1} parent=0
    #allocation2 [shape = 'u8[229376]{0}', space=vmem, size = 0x38000, scoped, tag = 'input window, operand 0']
    loop: start=0, step=1, limit=4
    $region2: #{my_cnn_forward.1} parent=1 // loop_pre_header
      _
    $region3: #{my_cnn_forward.1} parent=1 // loop_header
      %s23 = sphi 0, %s27
      %p24 = scmp.ge.s32.totalorder %s23, 4
      %s33 = sphi 0, %s35
      %s36 = sphi 0, %s33
      %s37 = sphi 0, %s36
      %s53 = sphi 0, %s37
      %s57 = sphi 0, %s57
      %s59 = sphi 0, %s57
      %s60 = sphi 0, %s59
      %s74 = sphi 0, %s60
      %s78 = sphi 0, %s78
      %s80 = sphi 0, %s78
      %s81 = sphi 0, %s80
      %s95 = sphi 0, %s81
      %s99 = sphi 0, %s99
      %s101 = sphi 0, %s99
      %s102 = sphi 0, %s101
      %s116 = sphi 0, %s102
      %s120 = sphi 0, %s120
      %s122 = sphi 0, %s120
      %s123 = sphi 0, %s122
      %s137 = sphi 0, %s123
      %s141 = sphi 0, %s141
      %s143 = sphi 0, %s141
      %s144 = sphi 0, %s143
      %s158 = sphi 0, %s144
      %s162 = sphi 0, %s162
      %s164 = sphi 0, %s162
      %s165 = sphi 0, %s164
      %s179 = sphi 0, %s165
      %s183 = sphi 0, %s183
      %s185 = sphi 0, %s183
      %s186 = sphi 0, %s185
      %s200 = sphi 0, %s186
      %s204 = sphi 0, %s204
      %s206 = sphi 0, %s204
      %s207 = sphi 0, %s206
      %s221 = sphi 0, %s207
      %s225 = sphi 0, %s225
      %s227 = sphi 0, %s225
      %s228 = sphi 0, %s227
      %s242 = sphi 0, %s228
      %s246 = sphi 0, %s246
      %s248 = sphi 0, %s246
      %s249 = sphi 0, %s248
      %s263 = sphi 0, %s249
      %s267 = sphi 0, %s267
      %s269 = sphi 0, %s267
      %s270 = sphi 0, %s269
      %s284 = sphi 0, %s270
      %s288 = sphi 0, %s288
      %s290 = sphi 0, %s288
      %s291 = sphi 0, %s290
      %s305 = sphi 0, %s291
      %s309 = sphi 0, %s309
      %s311 = sphi 0, %s309
      %s312 = sphi 0, %s311
      %s326 = sphi 0, %s312
      %s330 = sphi 0, %s330
      %s332 = sphi 0, %s330
      %s333 = sphi 0, %s332
      %s347 = sphi 0, %s333
      %s351 = sphi 0, %s351
      %s353 = sphi 0, %s351
      %s354 = sphi 0, %s353
      %s368 = sphi 0, %s354
      %s372 = sphi 0, %s372
      %s374 = sphi 0, %s372
      %s375 = sphi 0, %s374
      %s389 = sphi 0, %s375
      %s395 = sphi 0, %s397
      %s398 = sphi 0, %s395
      %s399 = sphi 0, %s398
      %s415 = sphi 0, %s399
    $region4: #{my_cnn_forward.1} parent=1 // loop_header_branch
      %26 = sbr.rel (%p24) target = $region8
    $region5: #{my_cnn_forward.1} parent=1 // loop_body
      %s28 = ssub.s32 %s23, 1
      %s29 = ssub.s32 %s23, 2
      %s30 = sadd.s32 %s23, 1
      %s31 = ssub.s32 %s23, %s30
      %p32 = scmp.eq.s32.totalorder %s31, 0
      %s34 = sadd.s32 %s33, 1
      %s35 = scalar_select %p32, %s33, %s34
      %p38 = pneg %p32
      %p39 = scmp.eq.s32.totalorder %s23, 1
      %p40 = por %p38, %p39
      %p41 = scmp.ne.s32.totalorder %s33, %s36
      %p42 = scmp.eq.s32.totalorder %s23, 0
      %p43 = por %p41, %p42
      %p44 = scmp.ne.s32.totalorder %s33, %s36
      %p45 = scmp.eq.s32.totalorder %s28, 1
      %p46 = por %p44, %p45
      %p47 = scmp.ne.s32.totalorder %s36, %s37
      %p48 = scmp.eq.s32.totalorder %s28, 0
      %p49 = por %p47, %p48
      %p50 = scmp.ne.s32.totalorder %s36, %s37
      %p51 = scmp.eq.s32.totalorder %s29, 1
      %p52 = por %p50, %p51
      %p54 = scmp.ne.s32.totalorder %s37, %s53
      %p55 = scmp.eq.s32.totalorder %s29, 0
      %p56 = por %p54, %p55
      %s58 = sadd.s32 %s57, 1
      %p61 = scmp.eq.s32.totalorder %s23, 1
      %p62 = scmp.ne.s32.totalorder %s57, %s59
      %p63 = scmp.eq.s32.totalorder %s23, 0
      %p64 = por %p62, %p63
      %p65 = scmp.ne.s32.totalorder %s57, %s59
      %p66 = scmp.eq.s32.totalorder %s28, 1
      %p67 = por %p65, %p66
      %p68 = scmp.ne.s32.totalorder %s59, %s60
      %p69 = scmp.eq.s32.totalorder %s28, 0
      %p70 = por %p68, %p69
      %p71 = scmp.ne.s32.totalorder %s59, %s60
      %p72 = scmp.eq.s32.totalorder %s29, 1
      %p73 = por %p71, %p72
      %p75 = scmp.ne.s32.totalorder %s60, %s74
      %p76 = scmp.eq.s32.totalorder %s29, 0
      %p77 = por %p75, %p76
      %s79 = sadd.s32 %s78, 1
      %p82 = scmp.eq.s32.totalorder %s23, 1
      %p83 = scmp.ne.s32.totalorder %s78, %s80
      %p84 = scmp.eq.s32.totalorder %s23, 0
      %p85 = por %p83, %p84
      %p86 = scmp.ne.s32.totalorder %s78, %s80
      %p87 = scmp.eq.s32.totalorder %s28, 1
      %p88 = por %p86, %p87
      %p89 = scmp.ne.s32.totalorder %s80, %s81
      %p90 = scmp.eq.s32.totalorder %s28, 0
      %p91 = por %p89, %p90
      %p92 = scmp.ne.s32.totalorder %s80, %s81
      %p93 = scmp.eq.s32.totalorder %s29, 1
      %p94 = por %p92, %p93
      %p96 = scmp.ne.s32.totalorder %s81, %s95
      %p97 = scmp.eq.s32.totalorder %s29, 0
      %p98 = por %p96, %p97
      %s100 = sadd.s32 %s99, 1
      %p103 = scmp.eq.s32.totalorder %s23, 1
      %p104 = scmp.ne.s32.totalorder %s99, %s101
      %p105 = scmp.eq.s32.totalorder %s23, 0
      %p106 = por %p104, %p105
      %p107 = scmp.ne.s32.totalorder %s99, %s101
      %p108 = scmp.eq.s32.totalorder %s28, 1
      %p109 = por %p107, %p108
      %p110 = scmp.ne.s32.totalorder %s101, %s102
      %p111 = scmp.eq.s32.totalorder %s28, 0
      %p112 = por %p110, %p111
      %p113 = scmp.ne.s32.totalorder %s101, %s102
      %p114 = scmp.eq.s32.totalorder %s29, 1
      %p115 = por %p113, %p114
      %p117 = scmp.ne.s32.totalorder %s102, %s116
      %p118 = scmp.eq.s32.totalorder %s29, 0
      %p119 = por %p117, %p118
      %s121 = sadd.s32 %s120, 1
      %p124 = scmp.eq.s32.totalorder %s23, 1
      %p125 = scmp.ne.s32.totalorder %s120, %s122
      %p126 = scmp.eq.s32.totalorder %s23, 0
      %p127 = por %p125, %p126
      %p128 = scmp.ne.s32.totalorder %s120, %s122
      %p129 = scmp.eq.s32.totalorder %s28, 1
      %p130 = por %p128, %p129
      %p131 = scmp.ne.s32.totalorder %s122, %s123
      %p132 = scmp.eq.s32.totalorder %s28, 0
      %p133 = por %p131, %p132
      %p134 = scmp.ne.s32.totalorder %s122, %s123
      %p135 = scmp.eq.s32.totalorder %s29, 1
      %p136 = por %p134, %p135
      %p138 = scmp.ne.s32.totalorder %s123, %s137
      %p139 = scmp.eq.s32.totalorder %s29, 0
      %p140 = por %p138, %p139
      %s142 = sadd.s32 %s141, 1
      %p145 = scmp.eq.s32.totalorder %s23, 1
      %p146 = scmp.ne.s32.totalorder %s141, %s143
      %p147 = scmp.eq.s32.totalorder %s23, 0
      %p148 = por %p146, %p147
      %p149 = scmp.ne.s32.totalorder %s141, %s143
      %p150 = scmp.eq.s32.totalorder %s28, 1
      %p151 = por %p149, %p150
      %p152 = scmp.ne.s32.totalorder %s143, %s144
      %p153 = scmp.eq.s32.totalorder %s28, 0
      %p154 = por %p152, %p153
      %p155 = scmp.ne.s32.totalorder %s143, %s144
      %p156 = scmp.eq.s32.totalorder %s29, 1
      %p157 = por %p155, %p156
      %p159 = scmp.ne.s32.totalorder %s144, %s158
      %p160 = scmp.eq.s32.totalorder %s29, 0
      %p161 = por %p159, %p160
      %s163 = sadd.s32 %s162, 1
      %p166 = scmp.eq.s32.totalorder %s23, 1
      %p167 = scmp.ne.s32.totalorder %s162, %s164
      %p168 = scmp.eq.s32.totalorder %s23, 0
      %p169 = por %p167, %p168
      %p170 = scmp.ne.s32.totalorder %s162, %s164
      %p171 = scmp.eq.s32.totalorder %s28, 1
      %p172 = por %p170, %p171
      %p173 = scmp.ne.s32.totalorder %s164, %s165
      %p174 = scmp.eq.s32.totalorder %s28, 0
      %p175 = por %p173, %p174
      %p176 = scmp.ne.s32.totalorder %s164, %s165
      %p177 = scmp.eq.s32.totalorder %s29, 1
      %p178 = por %p176, %p177
      %p180 = scmp.ne.s32.totalorder %s165, %s179
      %p181 = scmp.eq.s32.totalorder %s29, 0
      %p182 = por %p180, %p181
      %s184 = sadd.s32 %s183, 1
      %p187 = scmp.eq.s32.totalorder %s23, 1
      %p188 = scmp.ne.s32.totalorder %s183, %s185
      %p189 = scmp.eq.s32.totalorder %s23, 0
      %p190 = por %p188, %p189
      %p191 = scmp.ne.s32.totalorder %s183, %s185
      %p192 = scmp.eq.s32.totalorder %s28, 1
      %p193 = por %p191, %p192
      %p194 = scmp.ne.s32.totalorder %s185, %s186
      %p195 = scmp.eq.s32.totalorder %s28, 0
      %p196 = por %p194, %p195
      %p197 = scmp.ne.s32.totalorder %s185, %s186
      %p198 = scmp.eq.s32.totalorder %s29, 1
      %p199 = por %p197, %p198
      %p201 = scmp.ne.s32.totalorder %s186, %s200
      %p202 = scmp.eq.s32.totalorder %s29, 0
      %p203 = por %p201, %p202
      %s205 = sadd.s32 %s204, 1
      %p208 = scmp.eq.s32.totalorder %s23, 1
      %p209 = scmp.ne.s32.totalorder %s204, %s206
      %p210 = scmp.eq.s32.totalorder %s23, 0
      %p211 = por %p209, %p210
      %p212 = scmp.ne.s32.totalorder %s204, %s206
      %p213 = scmp.eq.s32.totalorder %s28, 1
      %p214 = por %p212, %p213
      %p215 = scmp.ne.s32.totalorder %s206, %s207
      %p216 = scmp.eq.s32.totalorder %s28, 0
      %p217 = por %p215, %p216
      %p218 = scmp.ne.s32.totalorder %s206, %s207
      %p219 = scmp.eq.s32.totalorder %s29, 1
      %p220 = por %p218, %p219
      %p222 = scmp.ne.s32.totalorder %s207, %s221
      %p223 = scmp.eq.s32.totalorder %s29, 0
      %p224 = por %p222, %p223
      %s226 = sadd.s32 %s225, 1
      %p229 = scmp.eq.s32.totalorder %s23, 1
      %p230 = scmp.ne.s32.totalorder %s225, %s227
      %p231 = scmp.eq.s32.totalorder %s23, 0
      %p232 = por %p230, %p231
      %p233 = scmp.ne.s32.totalorder %s225, %s227
      %p234 = scmp.eq.s32.totalorder %s28, 1
      %p235 = por %p233, %p234
      %p236 = scmp.ne.s32.totalorder %s227, %s228
      %p237 = scmp.eq.s32.totalorder %s28, 0
      %p238 = por %p236, %p237
      %p239 = scmp.ne.s32.totalorder %s227, %s228
      %p240 = scmp.eq.s32.totalorder %s29, 1
      %p241 = por %p239, %p240
      %p243 = scmp.ne.s32.totalorder %s228, %s242
      %p244 = scmp.eq.s32.totalorder %s29, 0
      %p245 = por %p243, %p244
      %s247 = sadd.s32 %s246, 1
      %p250 = scmp.eq.s32.totalorder %s23, 1
      %p251 = scmp.ne.s32.totalorder %s246, %s248
      %p252 = scmp.eq.s32.totalorder %s23, 0
      %p253 = por %p251, %p252
      %p254 = scmp.ne.s32.totalorder %s246, %s248
      %p255 = scmp.eq.s32.totalorder %s28, 1
      %p256 = por %p254, %p255
      %p257 = scmp.ne.s32.totalorder %s248, %s249
      %p258 = scmp.eq.s32.totalorder %s28, 0
      %p259 = por %p257, %p258
      %p260 = scmp.ne.s32.totalorder %s248, %s249
      %p261 = scmp.eq.s32.totalorder %s29, 1
      %p262 = por %p260, %p261
      %p264 = scmp.ne.s32.totalorder %s249, %s263
      %p265 = scmp.eq.s32.totalorder %s29, 0
      %p266 = por %p264, %p265
      %s268 = sadd.s32 %s267, 1
      %p271 = scmp.eq.s32.totalorder %s23, 1
      %p272 = scmp.ne.s32.totalorder %s267, %s269
      %p273 = scmp.eq.s32.totalorder %s23, 0
      %p274 = por %p272, %p273
      %p275 = scmp.ne.s32.totalorder %s267, %s269
      %p276 = scmp.eq.s32.totalorder %s28, 1
      %p277 = por %p275, %p276
      %p278 = scmp.ne.s32.totalorder %s269, %s270
      %p279 = scmp.eq.s32.totalorder %s28, 0
      %p280 = por %p278, %p279
      %p281 = scmp.ne.s32.totalorder %s269, %s270
      %p282 = scmp.eq.s32.totalorder %s29, 1
      %p283 = por %p281, %p282
      %p285 = scmp.ne.s32.totalorder %s270, %s284
      %p286 = scmp.eq.s32.totalorder %s29, 0
      %p287 = por %p285, %p286
      %s289 = sadd.s32 %s288, 1
      %p292 = scmp.eq.s32.totalorder %s23, 1
      %p293 = scmp.ne.s32.totalorder %s288, %s290
      %p294 = scmp.eq.s32.totalorder %s23, 0
      %p295 = por %p293, %p294
      %p296 = scmp.ne.s32.totalorder %s288, %s290
      %p297 = scmp.eq.s32.totalorder %s28, 1
      %p298 = por %p296, %p297
      %p299 = scmp.ne.s32.totalorder %s290, %s291
      %p300 = scmp.eq.s32.totalorder %s28, 0
      %p301 = por %p299, %p300
      %p302 = scmp.ne.s32.totalorder %s290, %s291
      %p303 = scmp.eq.s32.totalorder %s29, 1
      %p304 = por %p302, %p303
      %p306 = scmp.ne.s32.totalorder %s291, %s305
      %p307 = scmp.eq.s32.totalorder %s29, 0
      %p308 = por %p306, %p307
      %s310 = sadd.s32 %s309, 1
      %p313 = scmp.eq.s32.totalorder %s23, 1
      %p314 = scmp.ne.s32.totalorder %s309, %s311
      %p315 = scmp.eq.s32.totalorder %s23, 0
      %p316 = por %p314, %p315
      %p317 = scmp.ne.s32.totalorder %s309, %s311
      %p318 = scmp.eq.s32.totalorder %s28, 1
      %p319 = por %p317, %p318
      %p320 = scmp.ne.s32.totalorder %s311, %s312
      %p321 = scmp.eq.s32.totalorder %s28, 0
      %p322 = por %p320, %p321
      %p323 = scmp.ne.s32.totalorder %s311, %s312
      %p324 = scmp.eq.s32.totalorder %s29, 1
      %p325 = por %p323, %p324
      %p327 = scmp.ne.s32.totalorder %s312, %s326
      %p328 = scmp.eq.s32.totalorder %s29, 0
      %p329 = por %p327, %p328
      %s331 = sadd.s32 %s330, 1
      %p334 = scmp.eq.s32.totalorder %s23, 1
      %p335 = scmp.ne.s32.totalorder %s330, %s332
      %p336 = scmp.eq.s32.totalorder %s23, 0
      %p337 = por %p335, %p336
      %p338 = scmp.ne.s32.totalorder %s330, %s332
      %p339 = scmp.eq.s32.totalorder %s28, 1
      %p340 = por %p338, %p339
      %p341 = scmp.ne.s32.totalorder %s332, %s333
      %p342 = scmp.eq.s32.totalorder %s28, 0
      %p343 = por %p341, %p342
      %p344 = scmp.ne.s32.totalorder %s332, %s333
      %p345 = scmp.eq.s32.totalorder %s29, 1
      %p346 = por %p344, %p345
      %p348 = scmp.ne.s32.totalorder %s333, %s347
      %p349 = scmp.eq.s32.totalorder %s29, 0
      %p350 = por %p348, %p349
      %s352 = sadd.s32 %s351, 1
      %p355 = scmp.eq.s32.totalorder %s23, 1
      %p356 = scmp.ne.s32.totalorder %s351, %s353
      %p357 = scmp.eq.s32.totalorder %s23, 0
      %p358 = por %p356, %p357
      %p359 = scmp.ne.s32.totalorder %s351, %s353
      %p360 = scmp.eq.s32.totalorder %s28, 1
      %p361 = por %p359, %p360
      %p362 = scmp.ne.s32.totalorder %s353, %s354
      %p363 = scmp.eq.s32.totalorder %s28, 0
      %p364 = por %p362, %p363
      %p365 = scmp.ne.s32.totalorder %s353, %s354
      %p366 = scmp.eq.s32.totalorder %s29, 1
      %p367 = por %p365, %p366
      %p369 = scmp.ne.s32.totalorder %s354, %s368
      %p370 = scmp.eq.s32.totalorder %s29, 0
      %p371 = por %p369, %p370
      %s373 = sadd.s32 %s372, 1
      %p376 = scmp.eq.s32.totalorder %s23, 1
      %p377 = scmp.ne.s32.totalorder %s372, %s374
      %p378 = scmp.eq.s32.totalorder %s23, 0
      %p379 = por %p377, %p378
      %p380 = scmp.ne.s32.totalorder %s372, %s374
      %p381 = scmp.eq.s32.totalorder %s28, 1
      %p382 = por %p380, %p381
      %p383 = scmp.ne.s32.totalorder %s374, %s375
      %p384 = scmp.eq.s32.totalorder %s28, 0
      %p385 = por %p383, %p384
      %p386 = scmp.ne.s32.totalorder %s374, %s375
      %p387 = scmp.eq.s32.totalorder %s29, 1
      %p388 = por %p386, %p387
      %p390 = scmp.ne.s32.totalorder %s375, %s389
      %p391 = scmp.eq.s32.totalorder %s29, 0
      %p392 = por %p390, %p391
      %s393 = ssub.s32 %s23, %s30
      %p394 = scmp.eq.s32.totalorder %s393, 0
      %s396 = sadd.s32 %s395, 1
      %s397 = scalar_select %p394, %s395, %s396
      %p400 = pneg %p394
      %p401 = scmp.eq.s32.totalorder %s23, 1
      %p402 = por %p400, %p401
      %p403 = scmp.ne.s32.totalorder %s395, %s398
      %p404 = scmp.eq.s32.totalorder %s23, 0
      %p405 = por %p403, %p404
      %p406 = scmp.ne.s32.totalorder %s395, %s398
      %p407 = scmp.eq.s32.totalorder %s28, 1
      %p408 = por %p406, %p407
      %p409 = scmp.ne.s32.totalorder %s398, %s399
      %p410 = scmp.eq.s32.totalorder %s28, 0
      %p411 = por %p409, %p410
      %p412 = scmp.ne.s32.totalorder %s398, %s399
      %p413 = scmp.eq.s32.totalorder %s29, 1
      %p414 = por %p412, %p413
      %p416 = scmp.ne.s32.totalorder %s399, %s415
      %p417 = scmp.eq.s32.totalorder %s29, 0
      %p418 = por %p416, %p417
      %p419 = scmp.le.s32.totalorder 1, %s23
      %p420 = scmp.lt.s32.totalorder %s23, 3
      %p421 = pnand %p419, %p420
      %p422 = pneg %p421
      // Predicated region
      $region9: #{my_cnn_forward.1} parent=5 // pred_check
        _
      $region10: #{my_cnn_forward.1} parent=5 // pred_check_branch
        %424 = sbr.rel (%p421) target = $region12
      $region11: #{my_cnn_forward.1} parent=5 // pred_region
        %s425 = ssub.s32 %s23, 1
        // Predicated region
        $region13: #{my_cnn_forward.1} parent=11 // pred_check
          %p426 = pneg %p70
        $region14: #{my_cnn_forward.1} parent=11 // pred_check_branch
          %428 = sbr.rel (%p426) target = $region16
        $region15: #{my_cnn_forward.1} parent=11 // pred_region
          _
        $region16: #{my_cnn_forward.1} parent=11 // pred_fallthru
          _
        // Predicated region
        $region17: #{my_cnn_forward.1} parent=11 // pred_check
          %p429 = pneg %p91
        $region18: #{my_cnn_forward.1} parent=11 // pred_check_branch
          %431 = sbr.rel (%p429) target = $region20
        $region19: #{my_cnn_forward.1} parent=11 // pred_region
          _
        $region20: #{my_cnn_forward.1} parent=11 // pred_fallthru
          _
        // Predicated region
        $region21: #{my_cnn_forward.1} parent=11 // pred_check
          %p432 = pneg %p112
        $region22: #{my_cnn_forward.1} parent=11 // pred_check_branch
          %434 = sbr.rel (%p432) target = $region24
        $region23: #{my_cnn_forward.1} parent=11 // pred_region
          _
        $region24: #{my_cnn_forward.1} parent=11 // pred_fallthru
          _
        // Predicated region
        $region25: #{my_cnn_forward.1} parent=11 // pred_check
          %p435 = pneg %p133
        $region26: #{my_cnn_forward.1} parent=11 // pred_check_branch
          %437 = sbr.rel (%p435) target = $region28
        $region27: #{my_cnn_forward.1} parent=11 // pred_region
          _
        $region28: #{my_cnn_forward.1} parent=11 // pred_fallthru
          _
        // Predicated region
        $region29: #{my_cnn_forward.1} parent=11 // pred_check
          %p438 = pneg %p154
        $region30: #{my_cnn_forward.1} parent=11 // pred_check_branch
          %440 = sbr.rel (%p438) target = $region32
        $region31: #{my_cnn_forward.1} parent=11 // pred_region
          _
        $region32: #{my_cnn_forward.1} parent=11 // pred_fallthru
          _
        // Predicated region
        $region33: #{my_cnn_forward.1} parent=11 // pred_check
          %p441 = pneg %p175
        $region34: #{my_cnn_forward.1} parent=11 // pred_check_branch
          %443 = sbr.rel (%p441) target = $region36
        $region35: #{my_cnn_forward.1} parent=11 // pred_region
          _
        $region36: #{my_cnn_forward.1} parent=11 // pred_fallthru
          _
        // Predicated region
        $region37: #{my_cnn_forward.1} parent=11 // pred_check
          %p444 = pneg %p196
        $region38: #{my_cnn_forward.1} parent=11 // pred_check_branch
          %446 = sbr.rel (%p444) target = $region40
        $region39: #{my_cnn_forward.1} parent=11 // pred_region
          _
        $region40: #{my_cnn_forward.1} parent=11 // pred_fallthru
          _
        // Predicated region
        $region41: #{my_cnn_forward.1} parent=11 // pred_check
          %p447 = pneg %p217
        $region42: #{my_cnn_forward.1} parent=11 // pred_check_branch
          %449 = sbr.rel (%p447) target = $region44
        $region43: #{my_cnn_forward.1} parent=11 // pred_region
          _
        $region44: #{my_cnn_forward.1} parent=11 // pred_fallthru
          _
        // Predicated region
        $region45: #{my_cnn_forward.1} parent=11 // pred_check
          %p450 = pneg %p238
        $region46: #{my_cnn_forward.1} parent=11 // pred_check_branch
          %452 = sbr.rel (%p450) target = $region48
        $region47: #{my_cnn_forward.1} parent=11 // pred_region
          _
        $region48: #{my_cnn_forward.1} parent=11 // pred_fallthru
          _
        // Predicated region
        $region49: #{my_cnn_forward.1} parent=11 // pred_check
          %p453 = pneg %p259
        $region50: #{my_cnn_forward.1} parent=11 // pred_check_branch
          %455 = sbr.rel (%p453) target = $region52
        $region51: #{my_cnn_forward.1} parent=11 // pred_region
          _
        $region52: #{my_cnn_forward.1} parent=11 // pred_fallthru
          _
        // Predicated region
        $region53: #{my_cnn_forward.1} parent=11 // pred_check
          %p456 = pneg %p280
        $region54: #{my_cnn_forward.1} parent=11 // pred_check_branch
          %458 = sbr.rel (%p456) target = $region56
        $region55: #{my_cnn_forward.1} parent=11 // pred_region
          _
        $region56: #{my_cnn_forward.1} parent=11 // pred_fallthru
          _
        // Predicated region
        $region57: #{my_cnn_forward.1} parent=11 // pred_check
          %p459 = pneg %p301
        $region58: #{my_cnn_forward.1} parent=11 // pred_check_branch
          %461 = sbr.rel (%p459) target = $region60
        $region59: #{my_cnn_forward.1} parent=11 // pred_region
          _
        $region60: #{my_cnn_forward.1} parent=11 // pred_fallthru
          _
        // Predicated region
        $region61: #{my_cnn_forward.1} parent=11 // pred_check
          %p462 = pneg %p322
        $region62: #{my_cnn_forward.1} parent=11 // pred_check_branch
          %464 = sbr.rel (%p462) target = $region64
        $region63: #{my_cnn_forward.1} parent=11 // pred_region
          _
        $region64: #{my_cnn_forward.1} parent=11 // pred_fallthru
          _
        // Predicated region
        $region65: #{my_cnn_forward.1} parent=11 // pred_check
          %p465 = pneg %p343
        $region66: #{my_cnn_forward.1} parent=11 // pred_check_branch
          %467 = sbr.rel (%p465) target = $region68
        $region67: #{my_cnn_forward.1} parent=11 // pred_region
          _
        $region68: #{my_cnn_forward.1} parent=11 // pred_fallthru
          _
        // Predicated region
        $region69: #{my_cnn_forward.1} parent=11 // pred_check
          %p468 = pneg %p364
        $region70: #{my_cnn_forward.1} parent=11 // pred_check_branch
          %470 = sbr.rel (%p468) target = $region72
        $region71: #{my_cnn_forward.1} parent=11 // pred_region
          _
        $region72: #{my_cnn_forward.1} parent=11 // pred_fallthru
          _
        // Predicated region
        $region73: #{my_cnn_forward.1} parent=11 // pred_check
          %p471 = pneg %p385
        $region74: #{my_cnn_forward.1} parent=11 // pred_check_branch
          %473 = sbr.rel (%p471) target = $region76
        $region75: #{my_cnn_forward.1} parent=11 // pred_region
          _
        $region76: #{my_cnn_forward.1} parent=11 // pred_fallthru
          _
      $region12: #{my_cnn_forward.1} parent=5 // pred_fallthru
        _
      %p474 = scmp.lt.s32.totalorder %s23, 2
      // Predicated region
      $region77: #{my_cnn_forward.1} parent=5 // pred_check
        %p475 = pneg %p474
      $region78: #{my_cnn_forward.1} parent=5 // pred_check_branch
        %477 = sbr.rel (%p475) target = $region80
      $region79: #{my_cnn_forward.1} parent=5 // pred_region
        // Predicated region
        $region81: #{my_cnn_forward.1} parent=79 // pred_check
          %p478 = pneg %p43
        $region82: #{my_cnn_forward.1} parent=79 // pred_check_branch
          %480 = sbr.rel (%p478) target = $region84
        $region83: #{my_cnn_forward.1} parent=79 // pred_region
          %s481 = sand.u32 %s33, 1
          %s482 = sand.u32 %s33, 1
          %s483 = smul.addr %s482, 224
          %s484 = scalar_lea.vmem [#allocation2], %s483
          %s485 = smul.u32 2, %s23
          %s486 = smul.addr %s485, 4
          %s487 = scalar_lea.vmem %s0, %s486
          // Predicated region
          $region85: #{my_cnn_forward.1} parent=83 // pred_check
            _
          $region86: #{my_cnn_forward.1} parent=83 // pred_check_branch
            %489 = sbr.rel (0) target = $region88
          $region87: #{my_cnn_forward.1} parent=83 // pred_region
            // Predicated region
            $region89: #{my_cnn_forward.1} parent=87 // pred_check
              _
            $region90: #{my_cnn_forward.1} parent=87 // pred_check_branch
              %491 = sbr.rel target = $region92
            $region91: #{my_cnn_forward.1} parent=87 // pred_region
              // Predicated region
              $region104: #{my_cnn_forward.1} parent=91 // pred_check
                _
              $region105: #{my_cnn_forward.1} parent=91 // pred_check_branch
                %617 = sbr.rel (0) target = $region107
              $region106: #{my_cnn_forward.1} parent=91 // pred_region
                loop: start=0, step=1, limit=1
                $region108: #{my_cnn_forward.1} parent=106 // loop_pre_header
                  _
                $region109: #{my_cnn_forward.1} parent=106 // loop_header
                  %s619 = sphi 0, %s623
                  %p620 = scmp.ge.s32.totalorder %s619, 1
                  %s624 = sphi %s487, %s487
                  %s625 = sphi %s484, %s484
                $region110: #{my_cnn_forward.1} parent=106 // loop_header_branch
                  %622 = sbr.rel (%p620) target = $region114
                $region111: #{my_cnn_forward.1} parent=106 // loop_body
                  _
                $region112: #{my_cnn_forward.1} parent=106 // loop_footer
                  %s623 = sadd.s32 1, %s619
                $region113: #{my_cnn_forward.1} parent=106 // loop_footer_branch
                  %618 = sbr.rel target = $region109
                $region114: #{my_cnn_forward.1} parent=106 // loop_exit
                  _
                %s627 = ssub.s32 16, 1
                loop: start=0, step=1, limit=1
                $region115: #{my_cnn_forward.1} parent=106 // loop_pre_header
                  _
                $region116: #{my_cnn_forward.1} parent=106 // loop_header
                  %s629 = sphi 0, %s633
                  %p630 = scmp.ge.s32.totalorder %s629, 1
                  %s634 = sphi %s487, %s487
                  %s635 = sphi %s484, %s484
                $region117: #{my_cnn_forward.1} parent=106 // loop_header_branch
                  %632 = sbr.rel (%p630) target = $region121
                $region118: #{my_cnn_forward.1} parent=106 // loop_body
                  %v636 = vld [vmem:[%s634] sm:%s627]
                  %637 = vst [vmem:[%s635] sm:%s627] %v636
                  %v638 = vld [vmem:[%s634 + $0x4] sm:%s627]
                  %639 = vst [vmem:[%s635 + $0x4] sm:%s627] %v638
                  %v640 = vld [vmem:[%s634 + $0x10] sm:%s627]
                  %641 = vst [vmem:[%s635 + $0x8] sm:%s627] %v640
                  %v642 = vld [vmem:[%s634 + $0x14] sm:%s627]
                  %643 = vst [vmem:[%s635 + $0xc] sm:%s627] %v642
                  %v644 = vld [vmem:[%s634 + $0x20] sm:%s627]
                  %645 = vst [vmem:[%s635 + $0x10] sm:%s627] %v644
                  %v646 = vld [vmem:[%s634 + $0x24] sm:%s627]
                  %647 = vst [vmem:[%s635 + $0x14] sm:%s627] %v646
                  %v648 = vld [vmem:[%s634 + $0x30] sm:%s627]
                  %649 = vst [vmem:[%s635 + $0x18] sm:%s627] %v648
                  %v650 = vld [vmem:[%s634 + $0x34] sm:%s627]
                  %651 = vst [vmem:[%s635 + $0x1c] sm:%s627] %v650
                  %v652 = vld [vmem:[%s634 + $0x40] sm:%s627]
                  %653 = vst [vmem:[%s635 + $0x20] sm:%s627] %v652
                  %v654 = vld [vmem:[%s634 + $0x44] sm:%s627]
                  %655 = vst [vmem:[%s635 + $0x24] sm:%s627] %v654
                  %v656 = vld [vmem:[%s634 + $0x50] sm:%s627]
                  %657 = vst [vmem:[%s635 + $0x28] sm:%s627] %v656
                  %v658 = vld [vmem:[%s634 + $0x54] sm:%s627]
                  %659 = vst [vmem:[%s635 + $0x2c] sm:%s627] %v658
                  %v660 = vld [vmem:[%s634 + $0x60] sm:%s627]
                  %661 = vst [vmem:[%s635 + $0x30] sm:%s627] %v660
                  %v662 = vld [vmem:[%s634 + $0x64] sm:%s627]
                  %663 = vst [vmem:[%s635 + $0x34] sm:%s627] %v662
                  %v664 = vld [vmem:[%s634 + $0x70] sm:%s627]
                  %665 = vst [vmem:[%s635 + $0x38] sm:%s627] %v664
                  %v666 = vld [vmem:[%s634 + $0x74] sm:%s627]
                  %667 = vst [vmem:[%s635 + $0x3c] sm:%s627] %v666
                  %v668 = vld [vmem:[%s634 + $0x80] sm:%s627]
                  %669 = vst [vmem:[%s635 + $0x40] sm:%s627] %v668
                  %v670 = vld [vmem:[%s634 + $0x84] sm:%s627]
                  %671 = vst [vmem:[%s635 + $0x44] sm:%s627] %v670
                  %v672 = vld [vmem:[%s634 + $0x90] sm:%s627]
                  %673 = vst [vmem:[%s635 + $0x48] sm:%s627] %v672
                  %v674 = vld [vmem:[%s634 + $0x94] sm:%s627]
                  %675 = vst [vmem:[%s635 + $0x4c] sm:%s627] %v674
                  %v676 = vld [vmem:[%s634 + $0xa0] sm:%s627]
                  %677 = vst [vmem:[%s635 + $0x50] sm:%s627] %v676
                  %v678 = vld [vmem:[%s634 + $0xa4] sm:%s627]
                  %679 = vst [vmem:[%s635 + $0x54] sm:%s627] %v678
                  %v680 = vld [vmem:[%s634 + $0xb0] sm:%s627]
                  %681 = vst [vmem:[%s635 + $0x58] sm:%s627] %v680
                  %v682 = vld [vmem:[%s634 + $0xb4] sm:%s627]
                  %683 = vst [vmem:[%s635 + $0x5c] sm:%s627] %v682
                  %v684 = vld [vmem:[%s634 + $0xc0] sm:%s627]
                  %685 = vst [vmem:[%s635 + $0x60] sm:%s627] %v684
                  %v686 = vld [vmem:[%s634 + $0xc4] sm:%s627]
                  %687 = vst [vmem:[%s635 + $0x64] sm:%s627] %v686
                  %v688 = vld [vmem:[%s634 + $0xd0] sm:%s627]
                  %689 = vst [vmem:[%s635 + $0x68] sm:%s627] %v688
                  %v690 = vld [vmem:[%s634 + $0xd4] sm:%s627]
                  %691 = vst [vmem:[%s635 + $0x6c] sm:%s627] %v690
                  %v692 = vld [vmem:[%s634 + $0xe0] sm:%s627]
                  %693 = vst [vmem:[%s635 + $0x70] sm:%s627] %v692
                  %v694 = vld [vmem:[%s634 + $0xe4] sm:%s627]
                  %695 = vst [vmem:[%s635 + $0x74] sm:%s627] %v694
                  %v696 = vld [vmem:[%s634 + $0xf0] sm:%s627]
                  %697 = vst [vmem:[%s635 + $0x78] sm:%s627] %v696
                  %v698 = vld [vmem:[%s634 + $0xf4] sm:%s627]
                  %699 = vst [vmem:[%s635 + $0x7c] sm:%s627] %v698
                  %v700 = vld [vmem:[%s634 + $0x100] sm:%s627]
                  %701 = vst [vmem:[%s635 + $0x80] sm:%s627] %v700
                  %v702 = vld [vmem:[%s634 + $0x104] sm:%s627]
                  %703 = vst [vmem:[%s635 + $0x84] sm:%s627] %v702
                  %v704 = vld [vmem:[%s634 + $0x110] sm:%s627]
                  %705 = vst [vmem:[%s635 + $0x88] sm:%s627] %v704
                  %v706 = vld [vmem:[%s634 + $0x114] sm:%s627]
                  %707 = vst [vmem:[%s635 + $0x8c] sm:%s627] %v706
                  %v708 = vld [vmem:[%s634 + $0x120] sm:%s627]
                  %709 = vst [vmem:[%s635 + $0x90] sm:%s627] %v708
                  %v710 = vld [vmem:[%s634 + $0x124] sm:%s627]
                  %711 = vst [vmem:[%s635 + $0x94] sm:%s627] %v710
                  %v712 = vld [vmem:[%s634 + $0x130] sm:%s627]
                  %713 = vst [vmem:[%s635 + $0x98] sm:%s627] %v712
                  %v714 = vld [vmem:[%s634 + $0x134] sm:%s627]
                  %715 = vst [vmem:[%s635 + $0x9c] sm:%s627] %v714
                  %v716 = vld [vmem:[%s634 + $0x140] sm:%s627]
                  %717 = vst [vmem:[%s635 + $0xa0] sm:%s627] %v716
                  %v718 = vld [vmem:[%s634 + $0x144] sm:%s627]
                  %719 = vst [vmem:[%s635 + $0xa4] sm:%s627] %v718
                  %v720 = vld [vmem:[%s634 + $0x150] sm:%s627]
                  %721 = vst [vmem:[%s635 + $0xa8] sm:%s627] %v720
                  %v722 = vld [vmem:[%s634 + $0x154] sm:%s627]
                  %723 = vst [vmem:[%s635 + $0xac] sm:%s627] %v722
                  %v724 = vld [vmem:[%s634 + $0x160] sm:%s627]
                  %725 = vst [vmem:[%s635 + $0xb0] sm:%s627] %v724
                  %v726 = vld [vmem:[%s634 + $0x164] sm:%s627]
                  %727 = vst [vmem:[%s635 + $0xb4] sm:%s627] %v726
                  %v728 = vld [vmem:[%s634 + $0x170] sm:%s627]
                  %729 = vst [vmem:[%s635 + $0xb8] sm:%s627] %v728
                  %v730 = vld [vmem:[%s634 + $0x174] sm:%s627]
                  %731 = vst [vmem:[%s635 + $0xbc] sm:%s627] %v730
                  %v732 = vld [vmem:[%s634 + $0x180] sm:%s627]
                  %733 = vst [vmem:[%s635 + $0xc0] sm:%s627] %v732
                  %v734 = vld [vmem:[%s634 + $0x184] sm:%s627]
                  %735 = vst [vmem:[%s635 + $0xc4] sm:%s627] %v734
                  %v736 = vld [vmem:[%s634 + $0x190] sm:%s627]
                  %737 = vst [vmem:[%s635 + $0xc8] sm:%s627] %v736
                  %v738 = vld [vmem:[%s634 + $0x194] sm:%s627]
                  %739 = vst [vmem:[%s635 + $0xcc] sm:%s627] %v738
                  %v740 = vld [vmem:[%s634 + $0x1a0] sm:%s627]
                  %741 = vst [vmem:[%s635 + $0xd0] sm:%s627] %v740
                  %v742 = vld [vmem:[%s634 + $0x1a4] sm:%s627]
                  %743 = vst [vmem:[%s635 + $0xd4] sm:%s627] %v742
                  %v744 = vld [vmem:[%s634 + $0x1b0] sm:%s627]
                  %745 = vst [vmem:[%s635 + $0xd8] sm:%s627] %v744
                  %v746 = vld [vmem:[%s634 + $0x1b4] sm:%s627]
                  %747 = vst [vmem:[%s635 + $0xdc] sm:%s627] %v746
                $region119: #{my_cnn_forward.1} parent=106 // loop_footer
                  %s633 = sadd.s32 1, %s629
                $region120: #{my_cnn_forward.1} parent=106 // loop_footer_branch
                  %628 = sbr.rel target = $region116
                $region121: #{my_cnn_forward.1} parent=106 // loop_exit
                  _
              $region107: #{my_cnn_forward.1} parent=91 // pred_fallthru
                _
            $region92: #{my_cnn_forward.1} parent=87 // pred_fallthru
              _
            // Predicated region
            $region93: #{my_cnn_forward.1} parent=87 // pred_check
              _
            $region94: #{my_cnn_forward.1} parent=87 // pred_check_branch
              %493 = sbr.rel (0) target = $region96
            $region95: #{my_cnn_forward.1} parent=87 // pred_region
              %s495 = ssub.s32 16, 1
              loop: start=0, step=1, limit=1
              $region97: #{my_cnn_forward.1} parent=95 // loop_pre_header
                _
              $region98: #{my_cnn_forward.1} parent=95 // loop_header
                %s497 = sphi 0, %s501
                %p498 = scmp.ge.s32.totalorder %s497, 1
                %s502 = sphi %s487, %s487
                %s503 = sphi %s484, %s484
              $region99: #{my_cnn_forward.1} parent=95 // loop_header_branch
                %500 = sbr.rel (%p498) target = $region103
              $region100: #{my_cnn_forward.1} parent=95 // loop_body
                %v504 = vld [vmem:[%s502] sm:%s495]
                %505 = vst [vmem:[%s503] sm:%s495] %v504
                %v506 = vld [vmem:[%s502 + $0x4] sm:%s495]
                %507 = vst [vmem:[%s503 + $0x4] sm:%s495] %v506
                %v508 = vld [vmem:[%s502 + $0x10] sm:%s495]
                %509 = vst [vmem:[%s503 + $0x8] sm:%s495] %v508
                %v510 = vld [vmem:[%s502 + $0x14] sm:%s495]
                %511 = vst [vmem:[%s503 + $0xc] sm:%s495] %v510
                %v512 = vld [vmem:[%s502 + $0x20] sm:%s495]
                %513 = vst [vmem:[%s503 + $0x10] sm:%s495] %v512
                %v514 = vld [vmem:[%s502 + $0x24] sm:%s495]
                %515 = vst [vmem:[%s503 + $0x14] sm:%s495] %v514
                %v516 = vld [vmem:[%s502 + $0x30] sm:%s495]
                %517 = vst [vmem:[%s503 + $0x18] sm:%s495] %v516
                %v518 = vld [vmem:[%s502 + $0x34] sm:%s495]
                %519 = vst [vmem:[%s503 + $0x1c] sm:%s495] %v518
                %v520 = vld [vmem:[%s502 + $0x40] sm:%s495]
                %521 = vst [vmem:[%s503 + $0x20] sm:%s495] %v520
                %v522 = vld [vmem:[%s502 + $0x44] sm:%s495]
                %523 = vst [vmem:[%s503 + $0x24] sm:%s495] %v522
                %v524 = vld [vmem:[%s502 + $0x50] sm:%s495]
                %525 = vst [vmem:[%s503 + $0x28] sm:%s495] %v524
                %v526 = vld [vmem:[%s502 + $0x54] sm:%s495]
                %527 = vst [vmem:[%s503 + $0x2c] sm:%s495] %v526
                %v528 = vld [vmem:[%s502 + $0x60] sm:%s495]
                %529 = vst [vmem:[%s503 + $0x30] sm:%s495] %v528
                %v530 = vld [vmem:[%s502 + $0x64] sm:%s495]
                %531 = vst [vmem:[%s503 + $0x34] sm:%s495] %v530
                %v532 = vld [vmem:[%s502 + $0x70] sm:%s495]
                %533 = vst [vmem:[%s503 + $0x38] sm:%s495] %v532
                %v534 = vld [vmem:[%s502 + $0x74] sm:%s495]
                %535 = vst [vmem:[%s503 + $0x3c] sm:%s495] %v534
                %v536 = vld [vmem:[%s502 + $0x80] sm:%s495]
                %537 = vst [vmem:[%s503 + $0x40] sm:%s495] %v536
                %v538 = vld [vmem:[%s502 + $0x84] sm:%s495]
                %539 = vst [vmem:[%s503 + $0x44] sm:%s495] %v538
                %v540 = vld [vmem:[%s502 + $0x90] sm:%s495]
                %541 = vst [vmem:[%s503 + $0x48] sm:%s495] %v540
                %v542 = vld [vmem:[%s502 + $0x94] sm:%s495]
                %543 = vst [vmem:[%s503 + $0x4c] sm:%s495] %v542
                %v544 = vld [vmem:[%s502 + $0xa0] sm:%s495]
                %545 = vst [vmem:[%s503 + $0x50] sm:%s495] %v544
                %v546 = vld [vmem:[%s502 + $0xa4] sm:%s495]
                %547 = vst [vmem:[%s503 + $0x54] sm:%s495] %v546
                %v548 = vld [vmem:[%s502 + $0xb0] sm:%s495]
                %549 = vst [vmem:[%s503 + $0x58] sm:%s495] %v548
                %v550 = vld [vmem:[%s502 + $0xb4] sm:%s495]
                %551 = vst [vmem:[%s503 + $0x5c] sm:%s495] %v550
                %v552 = vld [vmem:[%s502 + $0xc0] sm:%s495]
                %553 = vst [vmem:[%s503 + $0x60] sm:%s495] %v552
                %v554 = vld [vmem:[%s502 + $0xc4] sm:%s495]
                %555 = vst [vmem:[%s503 + $0x64] sm:%s495] %v554
                %v556 = vld [vmem:[%s502 + $0xd0] sm:%s495]
                %557 = vst [vmem:[%s503 + $0x68] sm:%s495] %v556
                %v558 = vld [vmem:[%s502 + $0xd4] sm:%s495]
                %559 = vst [vmem:[%s503 + $0x6c] sm:%s495] %v558
                %v560 = vld [vmem:[%s502 + $0xe0] sm:%s495]
                %561 = vst [vmem:[%s503 + $0x70] sm:%s495] %v560
                %v562 = vld [vmem:[%s502 + $0xe4] sm:%s495]
                %563 = vst [vmem:[%s503 + $0x74] sm:%s495] %v562
                %v564 = vld [vmem:[%s502 + $0xf0] sm:%s495]
                %565 = vst [vmem:[%s503 + $0x78] sm:%s495] %v564
                %v566 = vld [vmem:[%s502 + $0xf4] sm:%s495]
                %567 = vst [vmem:[%s503 + $0x7c] sm:%s495] %v566
                %v568 = vld [vmem:[%s502 + $0x100] sm:%s495]
                %569 = vst [vmem:[%s503 + $0x80] sm:%s495] %v568
                %v570 = vld [vmem:[%s502 + $0x104] sm:%s495]
                %571 = vst [vmem:[%s503 + $0x84] sm:%s495] %v570
                %v572 = vld [vmem:[%s502 + $0x110] sm:%s495]
                %573 = vst [vmem:[%s503 + $0x88] sm:%s495] %v572
                %v574 = vld [vmem:[%s502 + $0x114] sm:%s495]
                %575 = vst [vmem:[%s503 + $0x8c] sm:%s495] %v574
                %v576 = vld [vmem:[%s502 + $0x120] sm:%s495]
                %577 = vst [vmem:[%s503 + $0x90] sm:%s495] %v576
                %v578 = vld [vmem:[%s502 + $0x124] sm:%s495]
                %579 = vst [vmem:[%s503 + $0x94] sm:%s495] %v578
                %v580 = vld [vmem:[%s502 + $0x130] sm:%s495]
                %581 = vst [vmem:[%s503 + $0x98] sm:%s495] %v580
                %v582 = vld [vmem:[%s502 + $0x134] sm:%s495]
                %583 = vst [vmem:[%s503 + $0x9c] sm:%s495] %v582
                %v584 = vld [vmem:[%s502 + $0x140] sm:%s495]
                %585 = vst [vmem:[%s503 + $0xa0] sm:%s495] %v584
                %v586 = vld [vmem:[%s502 + $0x144] sm:%s495]
                %587 = vst [vmem:[%s503 + $0xa4] sm:%s495] %v586
                %v588 = vld [vmem:[%s502 + $0x150] sm:%s495]
                %589 = vst [vmem:[%s503 + $0xa8] sm:%s495] %v588
                %v590 = vld [vmem:[%s502 + $0x154] sm:%s495]
                %591 = vst [vmem:[%s503 + $0xac] sm:%s495] %v590
                %v592 = vld [vmem:[%s502 + $0x160] sm:%s495]
                %593 = vst [vmem:[%s503 + $0xb0] sm:%s495] %v592
                %v594 = vld [vmem:[%s502 + $0x164] sm:%s495]
                %595 = vst [vmem:[%s503 + $0xb4] sm:%s495] %v594
                %v596 = vld [vmem:[%s502 + $0x170] sm:%s495]
                %597 = vst [vmem:[%s503 + $0xb8] sm:%s495] %v596
                %v598 = vld [vmem:[%s502 + $0x174] sm:%s495]
                %599 = vst [vmem:[%s503 + $0xbc] sm:%s495] %v598
                %v600 = vld [vmem:[%s502 + $0x180] sm:%s495]
                %601 = vst [vmem:[%s503 + $0xc0] sm:%s495] %v600
                %v602 = vld [vmem:[%s502 + $0x184] sm:%s495]
                %603 = vst [vmem:[%s503 + $0xc4] sm:%s495] %v602
                %v604 = vld [vmem:[%s502 + $0x190] sm:%s495]
                %605 = vst [vmem:[%s503 + $0xc8] sm:%s495] %v604
                %v606 = vld [vmem:[%s502 + $0x194] sm:%s495]
                %607 = vst [vmem:[%s503 + $0xcc] sm:%s495] %v606
                %v608 = vld [vmem:[%s502 + $0x1a0] sm:%s495]
                %609 = vst [vmem:[%s503 + $0xd0] sm:%s495] %v608
                %v610 = vld [vmem:[%s502 + $0x1a4] sm:%s495]
                %611 = vst [vmem:[%s503 + $0xd4] sm:%s495] %v610
                %v612 = vld [vmem:[%s502 + $0x1b0] sm:%s495]
                %613 = vst [vmem:[%s503 + $0xd8] sm:%s495] %v612
                %v614 = vld [vmem:[%s502 + $0x1b4] sm:%s495]
                %615 = vst [vmem:[%s503 + $0xdc] sm:%s495] %v614
              $region101: #{my_cnn_forward.1} parent=95 // loop_footer
                %s501 = sadd.s32 1, %s497
              $region102: #{my_cnn_forward.1} parent=95 // loop_footer_branch
                %496 = sbr.rel target = $region98
              $region103: #{my_cnn_forward.1} parent=95 // loop_exit
                _
            $region96: #{my_cnn_forward.1} parent=87 // pred_fallthru
              _
          $region88: #{my_cnn_forward.1} parent=83 // pred_fallthru
            _
          %748 = vnop
        $region84: #{my_cnn_forward.1} parent=79 // pred_fallthru
          _
      $region80: #{my_cnn_forward.1} parent=5 // pred_fallthru
        _
      %p749 = scmp.le.s32.totalorder 1, %s23
      %p750 = scmp.lt.s32.totalorder %s23, 3
      %p751 = pnand %p749, %p750
      %p752 = pneg %p751
      // Predicated region
      $region122: #{my_cnn_forward.1} parent=5 // pred_check
        _
      $region123: #{my_cnn_forward.1} parent=5 // pred_check_branch
        %754 = sbr.rel (%p751) target = $region125
      $region124: #{my_cnn_forward.1} parent=5 // pred_region
        %s755 = ssub.s32 %s23, 1
        %s756 = sand.u32 %s36, 1
        %s757 = sand.u32 %s36, 1
        %s758 = smul.addr %s757, 224
        %s759 = scalar_lea.vmem [#allocation2], %s758
        // Predicated region
        $region126: #{my_cnn_forward.1} parent=124 // pred_check
          %p760 = pneg %p49
        $region127: #{my_cnn_forward.1} parent=124 // pred_check_branch
          %762 = sbr.rel (%p760) target = $region129
        $region128: #{my_cnn_forward.1} parent=124 // pred_region
          _
        $region129: #{my_cnn_forward.1} parent=124 // pred_fallthru
          _
        %s763 = sand.u32 %s36, 1
        %s764 = sand.u32 %s36, 1
        %s765 = smul.addr %s764, 224
        %s766 = scalar_lea.vmem [#allocation2], %s765
        %p767 = pneg %p49
        %p768 = pneg %p46
        %p769 = pneg %p70
        %p770 = pneg %p67
        %p771 = pneg %p91
        %p772 = pneg %p88
        %p773 = pneg %p112
        %p774 = pneg %p109
        %p775 = pneg %p133
        %p776 = pneg %p130
        %p777 = pneg %p154
        %p778 = pneg %p151
        %p779 = pneg %p175
        %p780 = pneg %p172
        %p781 = pneg %p196
        %p782 = pneg %p193
        %p783 = pneg %p217
        %p784 = pneg %p214
        %p785 = pneg %p238
        %p786 = pneg %p235
        %p787 = pneg %p259
        %p788 = pneg %p256
        %p789 = pneg %p280
        %p790 = pneg %p277
        %p791 = pneg %p301
        %p792 = pneg %p298
        %p793 = pneg %p322
        %p794 = pneg %p319
        %p795 = pneg %p343
        %p796 = pneg %p340
        %p797 = pneg %p364
        %p798 = pneg %p361
        %p799 = pneg %p385
        %p800 = pneg %p382
        %p801 = pneg %p411
        %p802 = pneg %p408
        %s803 = smul.u32 2, %s28
        %p804 = scmp.lt.s32.totalorder %s803, 3
        %s805 = scalar_select %p804, %s803, 3
        %s806 = smul.addr %s805, 8
        %s807 = scalar_lea.vmem %s17, %s806
        %s808 = smul.u32 2, %s28
        %s809 = smul.u32 2, %s28
        %p810 = scmp.lt.s32.totalorder %s809, 3
        %s811 = scalar_select %p810, %s809, 3
        %s812 = smul.addr %s811, 8
        %s813 = scalar_lea.vmem %s17, %s812
        %s814 = smul.u32 2, %s28
        %v816 = vld [vmem:[%s759] sm:$0xf]
        %v817 = vld [vmem:[%s759 + $0x4] sm:$0xf]
        %v818 = vld [vmem:[%s759 + $0x8] sm:$0xf]
        %v819 = vld [vmem:[%s759 + $0xc] sm:$0xf]
        %v820 = vld [vmem:[%s759 + $0x10] sm:$0xf]
        %v821 = vld [vmem:[%s759 + $0x14] sm:$0xf]
        %v822 = vld [vmem:[%s759 + $0x18] sm:$0xf]
        %v823 = vld [vmem:[%s759 + $0x1c] sm:$0xf]
        %v824 = vld [vmem:[%s759 + $0x20] sm:$0xf]
        %v825 = vld [vmem:[%s759 + $0x24] sm:$0xf]
        %v826 = vld [vmem:[%s759 + $0x28] sm:$0xf]
        %v827 = vld [vmem:[%s759 + $0x2c] sm:$0xf]
        %v828 = vld [vmem:[%s759 + $0x30] sm:$0xf]
        %v829 = vld [vmem:[%s759 + $0x34] sm:$0xf]
        %v830 = vld [vmem:[%s759 + $0x38] sm:$0xf]
        %v831 = vld [vmem:[%s759 + $0x3c] sm:$0xf]
        %v832 = vld [vmem:[%s759 + $0x40] sm:$0xf]
        %v833 = vld [vmem:[%s759 + $0x44] sm:$0xf]
        %v834 = vld [vmem:[%s759 + $0x48] sm:$0xf]
        %v835 = vld [vmem:[%s759 + $0x4c] sm:$0xf]
        %v836 = vld [vmem:[%s759 + $0x50] sm:$0xf]
        %v837 = vld [vmem:[%s759 + $0x54] sm:$0xf]
        %v838 = vld [vmem:[%s759 + $0x58] sm:$0xf]
        %v839 = vld [vmem:[%s759 + $0x5c] sm:$0xf]
        %v840 = vld [vmem:[%s759 + $0x60] sm:$0xf]
        %v841 = vld [vmem:[%s759 + $0x64] sm:$0xf]
        %v842 = vld [vmem:[%s759 + $0x68] sm:$0xf]
        %v843 = vld [vmem:[%s759 + $0x6c] sm:$0xf]
        %v844 = vld [vmem:[%s759 + $0x70] sm:$0xf]
        %v845 = vld [vmem:[%s759 + $0x74] sm:$0xf]
        %v846 = vld [vmem:[%s759 + $0x78] sm:$0xf]
        %v847 = vld [vmem:[%s759 + $0x7c] sm:$0xf]
        %v848 = vld [vmem:[%s759 + $0x80] sm:$0xf]
        %v849 = vld [vmem:[%s759 + $0x84] sm:$0xf]
        %v850 = vld [vmem:[%s759 + $0x88] sm:$0xf]
        %v851 = vld [vmem:[%s759 + $0x8c] sm:$0xf]
        %v852 = vld [vmem:[%s759 + $0x90] sm:$0xf]
        %v853 = vld [vmem:[%s759 + $0x94] sm:$0xf]
        %v854 = vld [vmem:[%s759 + $0x98] sm:$0xf]
        %v855 = vld [vmem:[%s759 + $0x9c] sm:$0xf]
        %v856 = vld [vmem:[%s759 + $0xa0] sm:$0xf]
        %v857 = vld [vmem:[%s759 + $0xa4] sm:$0xf]
        %v858 = vld [vmem:[%s759 + $0xa8] sm:$0xf]
        %v859 = vld [vmem:[%s759 + $0xac] sm:$0xf]
        %v860 = vld [vmem:[%s759 + $0xb0] sm:$0xf]
        %v861 = vld [vmem:[%s759 + $0xb4] sm:$0xf]
        %v862 = vld [vmem:[%s759 + $0xb8] sm:$0xf]
        %v863 = vld [vmem:[%s759 + $0xbc] sm:$0xf]
        %v864 = vld [vmem:[%s759 + $0xc0] sm:$0xf]
        %v865 = vld [vmem:[%s759 + $0xc4] sm:$0xf]
        %v866 = vld [vmem:[%s759 + $0xc8] sm:$0xf]
        %v867 = vld [vmem:[%s759 + $0xcc] sm:$0xf]
        %v868 = vld [vmem:[%s759 + $0xd0] sm:$0xf]
        %v869 = vld [vmem:[%s759 + $0xd4] sm:$0xf]
        %v870 = vld [vmem:[%s759 + $0xd8] sm:$0xf]
        %v871 = vld [vmem:[%s759 + $0xdc] sm:$0xf]
        %v928 = vunpack.c.l.b16 %v816
        %v929 = vunpack.c.l.b16 %v817
        %v930 = vunpack.c.l.b16 %v818
        %v931 = vunpack.c.l.b16 %v819
        %v932 = vunpack.c.l.b16 %v820
        %v933 = vunpack.c.l.b16 %v821
        %v934 = vunpack.c.l.b16 %v822
        %v935 = vunpack.c.l.b16 %v823
        %v936 = vunpack.c.l.b16 %v824
        %v937 = vunpack.c.l.b16 %v825
        %v938 = vunpack.c.l.b16 %v826
        %v939 = vunpack.c.l.b16 %v827
        %v940 = vunpack.c.l.b16 %v828
        %v941 = vunpack.c.l.b16 %v829
        %v942 = vunpack.c.l.b16 %v830
        %v943 = vunpack.c.l.b16 %v831
        %v944 = vunpack.c.l.b16 %v832
        %v945 = vunpack.c.l.b16 %v833
        %v946 = vunpack.c.l.b16 %v834
        %v947 = vunpack.c.l.b16 %v835
        %v948 = vunpack.c.l.b16 %v836
        %v949 = vunpack.c.l.b16 %v837
        %v950 = vunpack.c.l.b16 %v838
        %v951 = vunpack.c.l.b16 %v839
        %v952 = vunpack.c.l.b16 %v840
        %v953 = vunpack.c.l.b16 %v841
        %v954 = vunpack.c.l.b16 %v842
        %v955 = vunpack.c.l.b16 %v843
        %v956 = vunpack.c.l.b16 %v844
        %v957 = vunpack.c.l.b16 %v845
        %v958 = vunpack.c.l.b16 %v846
        %v959 = vunpack.c.l.b16 %v847
        %v960 = vunpack.c.l.b16 %v848
        %v961 = vunpack.c.l.b16 %v849
        %v962 = vunpack.c.l.b16 %v850
        %v963 = vunpack.c.l.b16 %v851
        %v964 = vunpack.c.l.b16 %v852
        %v965 = vunpack.c.l.b16 %v853
        %v966 = vunpack.c.l.b16 %v854
        %v967 = vunpack.c.l.b16 %v855
        %v968 = vunpack.c.l.b16 %v856
        %v969 = vunpack.c.l.b16 %v857
        %v970 = vunpack.c.l.b16 %v858
        %v971 = vunpack.c.l.b16 %v859
        %v972 = vunpack.c.l.b16 %v860
        %v973 = vunpack.c.l.b16 %v861
        %v974 = vunpack.c.l.b16 %v862
        %v975 = vunpack.c.l.b16 %v863
        %v976 = vunpack.c.l.b16 %v864
        %v977 = vunpack.c.l.b16 %v865
        %v978 = vunpack.c.l.b16 %v866
        %v979 = vunpack.c.l.b16 %v867
        %v980 = vunpack.c.l.b16 %v868
        %v981 = vunpack.c.l.b16 %v869
        %v982 = vunpack.c.l.b16 %v870
        %v983 = vunpack.c.l.b16 %v871
        %v984 = vpack.c.b16 %v929, %v928
        %v985 = vpack.c.b16 %v931, %v930
        %v986 = vpack.c.b16 %v933, %v932
        %v987 = vpack.c.b16 %v935, %v934
        %v988 = vpack.c.b16 %v937, %v936
        %v989 = vpack.c.b16 %v939, %v938
        %v990 = vpack.c.b16 %v941, %v940
        %v991 = vpack.c.b16 %v943, %v942
        %v992 = vpack.c.b16 %v945, %v944
        %v993 = vpack.c.b16 %v947, %v946
        %v994 = vpack.c.b16 %v949, %v948
        %v995 = vpack.c.b16 %v951, %v950
        %v996 = vpack.c.b16 %v953, %v952
        %v997 = vpack.c.b16 %v955, %v954
        %v998 = vpack.c.b16 %v957, %v956
        %v999 = vpack.c.b16 %v959, %v958
        %v1000 = vpack.c.b16 %v961, %v960
        %v1001 = vpack.c.b16 %v963, %v962
        %v1002 = vpack.c.b16 %v965, %v964
        %v1003 = vpack.c.b16 %v967, %v966
        %v1004 = vpack.c.b16 %v969, %v968
        %v1005 = vpack.c.b16 %v971, %v970
        %v1006 = vpack.c.b16 %v973, %v972
        %v1007 = vpack.c.b16 %v975, %v974
        %v1008 = vpack.c.b16 %v977, %v976
        %v1009 = vpack.c.b16 %v979, %v978
        %v1010 = vpack.c.b16 %v981, %v980
        %v1011 = vpack.c.b16 %v983, %v982
        %v1012 = vld [vmem:[%s1] sm:$0xff]
        %v1013 = vld [vmem:[%s1 + $0x8] sm:$0xff]
        %v1014 = vld [vmem:[%s1 + $0x10] sm:$0xff]
        %v1015 = vld [vmem:[%s1 + $0x18] sm:$0x33]
        %v1020 = vunpack.c.l.b16 %v1012
        %v1021 = vunpack.c.h.b16 %v1012
        %v1022 = vunpack.c.l.b16 %v1013
        %v1023 = vunpack.c.h.b16 %v1013
        %v1024 = vunpack.c.l.b16 %v1014
        %v1025 = vunpack.c.h.b16 %v1014
        %v1026 = vunpack.c.l.b16 %v1015
        %v1027 = vunpack.c.h.b16 %v1015
        %v1028 = vpack.c.b16 %v1022, %v1020
        %v1029 = vpack.c.b16 %v1023, %v1021
        %v1030 = vpack.c.b16 %v1026, %v1024
        %v1031 = vpack.c.b16 %v1027, %v1025
        %vm1034 = vcmask 228352
        %v1036 = vsel %vm1034, 0, 0
        %v1039 = vsel %vm1034, %v984, 0
        %v1042 = vsel %vm1034, %v985, 0
        %v1045 = vsel %vm1034, %v986, 0
        %v1048 = vsel %vm1034, %v987, 0
        %v1051 = vsel %vm1034, %v988, 0
        %v1054 = vsel %vm1034, %v989, 0
        %v1057 = vsel %vm1034, %v990, 0
        %v1060 = vsel %vm1034, %v991, 0
        %v1063 = vsel %vm1034, %v992, 0
        %v1066 = vsel %vm1034, %v993, 0
        %v1069 = vsel %vm1034, %v994, 0
        %v1072 = vsel %vm1034, %v995, 0
        %v1075 = vsel %vm1034, %v996, 0
        %v1078 = vsel %vm1034, %v997, 0
        %v1081 = vsel %vm1034, %v998, 0
        %v1084 = vsel %vm1034, %v999, 0
        %v1087 = vsel %vm1034, %v1000, 0
        %v1090 = vsel %vm1034, %v1001, 0
        %v1093 = vsel %vm1034, %v1002, 0
        %v1096 = vsel %vm1034, %v1003, 0
        %v1099 = vsel %vm1034, %v1004, 0
        %v1102 = vsel %vm1034, %v1005, 0
        %v1105 = vsel %vm1034, %v1006, 0
        %v1108 = vsel %vm1034, %v1007, 0
        %v1111 = vsel %vm1034, %v1008, 0
        %v1114 = vsel %vm1034, %v1009, 0
        %v1117 = vsel %vm1034, %v1010, 0
        %v1120 = vsel %vm1034, %v1011, 0
        %vm1122 = vcmask 1045504
        %v1124 = vsel %vm1122, %v1030, 0
        %v1127 = vsel %vm1122, %v1031, 0
        %1129 = vmatprep.subr.bf16.mxu0 0
        %1130 = vmatpush1.bf16.msra.mxu0 0
        %1131 = vmatprep.subr.bf16.mxu0 0
        %1132 = vmatpush1.bf16.msra.mxu0 0
        %1133 = vmatprep.subr.bf16.mxu0 0
        %1134 = vmatpush1.bf16.msra.mxu0 0
        %1135 = vmatprep.subr.bf16.mxu0 0
        %1136 = vmatpush1.bf16.msra.mxu0 0
        %1137 = vmatprep.subr.bf16.mxu0 0
        %1138 = vmatpush1.bf16.msra.mxu0 0
        %1139 = vmatprep.subr.bf16.mxu0 0
        %1140 = vmatpush1.bf16.msra.mxu0 0
        %1141 = vmatprep.subr.bf16.mxu0 %v1127
        %1142 = vmatpush1.bf16.msra.mxu0 %v1124
        %1143 = vmatprep.subr.bf16.mxu0 %v1029
        %1144 = vmatpush1.bf16.msra.mxu0 %v1028
        %1145 = vmatprep.subr.bf16.mxu0 0
        %1146 = vmatpush2.bf16.msra.mxu0 0
        %1147 = vmatprep.subr.bf16.mxu0 0
        %1148 = vmatpush2.bf16.msra.mxu0 0
        %1149 = vmatprep.subr.bf16.mxu0 0
        %1150 = vmatpush2.bf16.msra.mxu0 0
        %1151 = vmatprep.subr.bf16.mxu0 0
        %1152 = vmatpush2.bf16.msra.mxu0 0
        %1153 = vmatprep.subr.bf16.mxu0 0
        %1154 = vmatpush2.bf16.msra.mxu0 0
        %1155 = vmatprep.subr.bf16.mxu0 0
        %1156 = vmatpush2.bf16.msra.mxu0 0
        %1157 = vmatprep.subr.bf16.mxu0 0
        %1158 = vmatpush2.bf16.msra.mxu0 0
        %1159 = vmatprep.subr.bf16.mxu0 0
        %1160 = vmatpush2.bf16.msra.mxu0 0
        %1161 = vmatprep.mubr.bf16.mxu0 0
        %1162 = vmatmul.mubr.bf16.gmra.mxu0 %v1036
        %v1163 = vpop.f32.mrf.mxu0
        %v1164 = vadd.f32 0.0, %v1163
        %v1165 = vpop.f32.mrf.mxu0
        %v1166 = vadd.f32 0.0, %v1165
        %v1167 = vpop.f32.mrf.mxu0
        %v1168 = vadd.f32 0.0, %v1167
        %v1169 = vpop.f32.mrf.mxu0
        %v1170 = vadd.f32 0.0, %v1169
        %1171 = vmatprep.mubr.bf16.mxu0 0
        %1172 = vmatmul.mubr.bf16.gmra.mxu0 %v1039
        %v1173 = vpop.f32.mrf.mxu0
        %v1174 = vadd.f32 0.0, %v1173
        %v1175 = vpop.f32.mrf.mxu0
        %v1176 = vadd.f32 0.0, %v1175
        %v1177 = vpop.f32.mrf.mxu0
        %v1178 = vadd.f32 0.0, %v1177
        %v1179 = vpop.f32.mrf.mxu0
        %v1180 = vadd.f32 0.0, %v1179
        %1181 = vmatprep.mubr.bf16.mxu0 0
        %1182 = vmatmul.mubr.bf16.gmra.mxu0 %v1042
        %v1183 = vpop.f32.mrf.mxu0
        %v1184 = vadd.f32 0.0, %v1183
        %v1185 = vpop.f32.mrf.mxu0
        %v1186 = vadd.f32 0.0, %v1185
        %v1187 = vpop.f32.mrf.mxu0
        %v1188 = vadd.f32 0.0, %v1187
        %v1189 = vpop.f32.mrf.mxu0
        %v1190 = vadd.f32 0.0, %v1189
        %1191 = vmatprep.mubr.bf16.mxu0 0
        %1192 = vmatmul.mubr.bf16.gmra.mxu0 %v1045
        %v1193 = vpop.f32.mrf.mxu0
        %v1194 = vadd.f32 0.0, %v1193
        %v1195 = vpop.f32.mrf.mxu0
        %v1196 = vadd.f32 0.0, %v1195
        %v1197 = vpop.f32.mrf.mxu0
        %v1198 = vadd.f32 0.0, %v1197
        %v1199 = vpop.f32.mrf.mxu0
        %v1200 = vadd.f32 0.0, %v1199
        %1201 = vmatprep.mubr.bf16.mxu0 0
        %1202 = vmatmul.mubr.bf16.gmra.mxu0 %v1048
        %v1203 = vpop.f32.mrf.mxu0
        %v1204 = vadd.f32 0.0, %v1203
        %v1205 = vpop.f32.mrf.mxu0
        %v1206 = vadd.f32 0.0, %v1205
        %v1207 = vpop.f32.mrf.mxu0
        %v1208 = vadd.f32 0.0, %v1207
        %v1209 = vpop.f32.mrf.mxu0
        %v1210 = vadd.f32 0.0, %v1209
        %1211 = vmatprep.mubr.bf16.mxu0 0
        %1212 = vmatmul.mubr.bf16.gmra.mxu0 %v1051
        %v1213 = vpop.f32.mrf.mxu0
        %v1214 = vadd.f32 0.0, %v1213
        %v1215 = vpop.f32.mrf.mxu0
        %v1216 = vadd.f32 0.0, %v1215
        %v1217 = vpop.f32.mrf.mxu0
        %v1218 = vadd.f32 0.0, %v1217
        %v1219 = vpop.f32.mrf.mxu0
        %v1220 = vadd.f32 0.0, %v1219
        %1221 = vmatprep.mubr.bf16.mxu0 0
        %1222 = vmatmul.mubr.bf16.gmra.mxu0 %v1054
        %v1223 = vpop.f32.mrf.mxu0
        %v1224 = vadd.f32 0.0, %v1223
        %v1225 = vpop.f32.mrf.mxu0
        %v1226 = vadd.f32 0.0, %v1225
        %v1227 = vpop.f32.mrf.mxu0
        %v1228 = vadd.f32 0.0, %v1227
        %v1229 = vpop.f32.mrf.mxu0
        %v1230 = vadd.f32 0.0, %v1229
        %1231 = vmatprep.mubr.bf16.mxu0 0
        %1232 = vmatmul.mubr.bf16.gmra.mxu0 %v1057
        %v1233 = vpop.f32.mrf.mxu0
        %v1234 = vadd.f32 0.0, %v1233
        %v1235 = vpop.f32.mrf.mxu0
        %v1236 = vadd.f32 0.0, %v1235
        %v1237 = vpop.f32.mrf.mxu0
        %v1238 = vadd.f32 0.0, %v1237
        %v1239 = vpop.f32.mrf.mxu0
        %v1240 = vadd.f32 0.0, %v1239
        %1241 = vmatprep.mubr.bf16.mxu0 0
        %1242 = vmatmul.mubr.bf16.gmra.mxu0 %v1060
        %v1243 = vpop.f32.mrf.mxu0
        %v1244 = vadd.f32 0.0, %v1243
        %v1245 = vpop.f32.mrf.mxu0
        %v1246 = vadd.f32 0.0, %v1245
        %v1247 = vpop.f32.mrf.mxu0
        %v1248 = vadd.f32 0.0, %v1247
        %v1249 = vpop.f32.mrf.mxu0
        %v1250 = vadd.f32 0.0, %v1249
        %1251 = vmatprep.mubr.bf16.mxu0 0
        %1252 = vmatmul.mubr.bf16.gmra.mxu0 %v1063
        %v1253 = vpop.f32.mrf.mxu0
        %v1254 = vadd.f32 0.0, %v1253
        %v1255 = vpop.f32.mrf.mxu0
        %v1256 = vadd.f32 0.0, %v1255
        %v1257 = vpop.f32.mrf.mxu0
        %v1258 = vadd.f32 0.0, %v1257
        %v1259 = vpop.f32.mrf.mxu0
        %v1260 = vadd.f32 0.0, %v1259
        %1261 = vmatprep.mubr.bf16.mxu0 0
        %1262 = vmatmul.mubr.bf16.gmra.mxu0 %v1066
        %v1263 = vpop.f32.mrf.mxu0
        %v1264 = vadd.f32 0.0, %v1263
        %v1265 = vpop.f32.mrf.mxu0
        %v1266 = vadd.f32 0.0, %v1265
        %v1267 = vpop.f32.mrf.mxu0
        %v1268 = vadd.f32 0.0, %v1267
        %v1269 = vpop.f32.mrf.mxu0
        %v1270 = vadd.f32 0.0, %v1269
        %1271 = vmatprep.mubr.bf16.mxu0 0
        %1272 = vmatmul.mubr.bf16.gmra.mxu0 %v1069
        %v1273 = vpop.f32.mrf.mxu0
        %v1274 = vadd.f32 0.0, %v1273
        %v1275 = vpop.f32.mrf.mxu0
        %v1276 = vadd.f32 0.0, %v1275
        %v1277 = vpop.f32.mrf.mxu0
        %v1278 = vadd.f32 0.0, %v1277
        %v1279 = vpop.f32.mrf.mxu0
        %v1280 = vadd.f32 0.0, %v1279
        %1281 = vmatprep.mubr.bf16.mxu0 0
        %1282 = vmatmul.mubr.bf16.gmra.mxu0 %v1072
        %v1283 = vpop.f32.mrf.mxu0
        %v1284 = vadd.f32 0.0, %v1283
        %v1285 = vpop.f32.mrf.mxu0
        %v1286 = vadd.f32 0.0, %v1285
        %v1287 = vpop.f32.mrf.mxu0
        %v1288 = vadd.f32 0.0, %v1287
        %v1289 = vpop.f32.mrf.mxu0
        %v1290 = vadd.f32 0.0, %v1289
        %1291 = vmatprep.mubr.bf16.mxu0 0
        %1292 = vmatmul.mubr.bf16.gmra.mxu0 %v1075
        %v1293 = vpop.f32.mrf.mxu0
        %v1294 = vadd.f32 0.0, %v1293
        %v1295 = vpop.f32.mrf.mxu0
        %v1296 = vadd.f32 0.0, %v1295
        %v1297 = vpop.f32.mrf.mxu0
        %v1298 = vadd.f32 0.0, %v1297
        %v1299 = vpop.f32.mrf.mxu0
        %v1300 = vadd.f32 0.0, %v1299
        %1301 = vmatprep.mubr.bf16.mxu0 0
        %1302 = vmatmul.mubr.bf16.gmra.mxu0 %v1078
        %v1303 = vpop.f32.mrf.mxu0
        %v1304 = vadd.f32 0.0, %v1303
        %v1305 = vpop.f32.mrf.mxu0
        %v1306 = vadd.f32 0.0, %v1305
        %v1307 = vpop.f32.mrf.mxu0
        %v1308 = vadd.f32 0.0, %v1307
        %v1309 = vpop.f32.mrf.mxu0
        %v1310 = vadd.f32 0.0, %v1309
        %1311 = vmatprep.mubr.bf16.mxu0 0
        %1312 = vmatmul.mubr.bf16.gmra.mxu0 %v1081
        %v1313 = vpop.f32.mrf.mxu0
        %v1314 = vadd.f32 0.0, %v1313
        %v1315 = vpop.f32.mrf.mxu0
        %v1316 = vadd.f32 0.0, %v1315
        %v1317 = vpop.f32.mrf.mxu0
        %v1318 = vadd.f32 0.0, %v1317
        %v1319 = vpop.f32.mrf.mxu0
        %v1320 = vadd.f32 0.0, %v1319
        %1321 = vmatprep.mubr.bf16.mxu0 0
        %1322 = vmatmul.mubr.bf16.gmra.mxu0 %v1084
        %v1323 = vpop.f32.mrf.mxu0
        %v1324 = vadd.f32 0.0, %v1323
        %v1325 = vpop.f32.mrf.mxu0
        %v1326 = vadd.f32 0.0, %v1325
        %v1327 = vpop.f32.mrf.mxu0
        %v1328 = vadd.f32 0.0, %v1327
        %v1329 = vpop.f32.mrf.mxu0
        %v1330 = vadd.f32 0.0, %v1329
        %1331 = vmatprep.mubr.bf16.mxu0 0
        %1332 = vmatmul.mubr.bf16.gmra.mxu0 %v1087
        %v1333 = vpop.f32.mrf.mxu0
        %v1334 = vadd.f32 0.0, %v1333
        %v1335 = vpop.f32.mrf.mxu0
        %v1336 = vadd.f32 0.0, %v1335
        %v1337 = vpop.f32.mrf.mxu0
        %v1338 = vadd.f32 0.0, %v1337
        %v1339 = vpop.f32.mrf.mxu0
        %v1340 = vadd.f32 0.0, %v1339
        %1341 = vmatprep.mubr.bf16.mxu0 0
        %1342 = vmatmul.mubr.bf16.gmra.mxu0 %v1090
        %v1343 = vpop.f32.mrf.mxu0
        %v1344 = vadd.f32 0.0, %v1343
        %v1345 = vpop.f32.mrf.mxu0
        %v1346 = vadd.f32 0.0, %v1345
        %v1347 = vpop.f32.mrf.mxu0
        %v1348 = vadd.f32 0.0, %v1347
        %v1349 = vpop.f32.mrf.mxu0
        %v1350 = vadd.f32 0.0, %v1349
        %1351 = vmatprep.mubr.bf16.mxu0 0
        %1352 = vmatmul.mubr.bf16.gmra.mxu0 %v1093
        %v1353 = vpop.f32.mrf.mxu0
        %v1354 = vadd.f32 0.0, %v1353
        %v1355 = vpop.f32.mrf.mxu0
        %v1356 = vadd.f32 0.0, %v1355
        %v1357 = vpop.f32.mrf.mxu0
        %v1358 = vadd.f32 0.0, %v1357
        %v1359 = vpop.f32.mrf.mxu0
        %v1360 = vadd.f32 0.0, %v1359
        %1361 = vmatprep.mubr.bf16.mxu0 0
        %1362 = vmatmul.mubr.bf16.gmra.mxu0 %v1096
        %v1363 = vpop.f32.mrf.mxu0
        %v1364 = vadd.f32 0.0, %v1363
        %v1365 = vpop.f32.mrf.mxu0
        %v1366 = vadd.f32 0.0, %v1365
        %v1367 = vpop.f32.mrf.mxu0
        %v1368 = vadd.f32 0.0, %v1367
        %v1369 = vpop.f32.mrf.mxu0
        %v1370 = vadd.f32 0.0, %v1369
        %1371 = vmatprep.mubr.bf16.mxu0 0
        %1372 = vmatmul.mubr.bf16.gmra.mxu0 %v1099
        %v1373 = vpop.f32.mrf.mxu0
        %v1374 = vadd.f32 0.0, %v1373
        %v1375 = vpop.f32.mrf.mxu0
        %v1376 = vadd.f32 0.0, %v1375
        %v1377 = vpop.f32.mrf.mxu0
        %v1378 = vadd.f32 0.0, %v1377
        %v1379 = vpop.f32.mrf.mxu0
        %v1380 = vadd.f32 0.0, %v1379
        %1381 = vmatprep.mubr.bf16.mxu0 0
        %1382 = vmatmul.mubr.bf16.gmra.mxu0 %v1102
        %v1383 = vpop.f32.mrf.mxu0
        %v1384 = vadd.f32 0.0, %v1383
        %v1385 = vpop.f32.mrf.mxu0
        %v1386 = vadd.f32 0.0, %v1385
        %v1387 = vpop.f32.mrf.mxu0
        %v1388 = vadd.f32 0.0, %v1387
        %v1389 = vpop.f32.mrf.mxu0
        %v1390 = vadd.f32 0.0, %v1389
        %1391 = vmatprep.mubr.bf16.mxu0 0
        %1392 = vmatmul.mubr.bf16.gmra.mxu0 %v1105
        %v1393 = vpop.f32.mrf.mxu0
        %v1394 = vadd.f32 0.0, %v1393
        %v1395 = vpop.f32.mrf.mxu0
        %v1396 = vadd.f32 0.0, %v1395
        %v1397 = vpop.f32.mrf.mxu0
        %v1398 = vadd.f32 0.0, %v1397
        %v1399 = vpop.f32.mrf.mxu0
        %v1400 = vadd.f32 0.0, %v1399
        %1401 = vmatprep.mubr.bf16.mxu0 0
        %1402 = vmatmul.mubr.bf16.gmra.mxu0 %v1108
        %v1403 = vpop.f32.mrf.mxu0
        %v1404 = vadd.f32 0.0, %v1403
        %v1405 = vpop.f32.mrf.mxu0
        %v1406 = vadd.f32 0.0, %v1405
        %v1407 = vpop.f32.mrf.mxu0
        %v1408 = vadd.f32 0.0, %v1407
        %v1409 = vpop.f32.mrf.mxu0
        %v1410 = vadd.f32 0.0, %v1409
        %1411 = vmatprep.mubr.bf16.mxu0 0
        %1412 = vmatmul.mubr.bf16.gmra.mxu0 %v1111
        %v1413 = vpop.f32.mrf.mxu0
        %v1414 = vadd.f32 0.0, %v1413
        %v1415 = vpop.f32.mrf.mxu0
        %v1416 = vadd.f32 0.0, %v1415
        %v1417 = vpop.f32.mrf.mxu0
        %v1418 = vadd.f32 0.0, %v1417
        %v1419 = vpop.f32.mrf.mxu0
        %v1420 = vadd.f32 0.0, %v1419
        %1421 = vmatprep.mubr.bf16.mxu0 0
        %1422 = vmatmul.mubr.bf16.gmra.mxu0 %v1114
        %v1423 = vpop.f32.mrf.mxu0
        %v1424 = vadd.f32 0.0, %v1423
        %v1425 = vpop.f32.mrf.mxu0
        %v1426 = vadd.f32 0.0, %v1425
        %v1427 = vpop.f32.mrf.mxu0
        %v1428 = vadd.f32 0.0, %v1427
        %v1429 = vpop.f32.mrf.mxu0
        %v1430 = vadd.f32 0.0, %v1429
        %1431 = vmatprep.mubr.bf16.mxu0 0
        %1432 = vmatmul.mubr.bf16.gmra.mxu0 %v1117
        %v1433 = vpop.f32.mrf.mxu0
        %v1434 = vadd.f32 0.0, %v1433
        %v1435 = vpop.f32.mrf.mxu0
        %v1436 = vadd.f32 0.0, %v1435
        %v1437 = vpop.f32.mrf.mxu0
        %v1438 = vadd.f32 0.0, %v1437
        %v1439 = vpop.f32.mrf.mxu0
        %v1440 = vadd.f32 0.0, %v1439
        %1441 = vmatprep.mubr.bf16.mxu0 0
        %1442 = vmatmul.mubr.bf16.gmra.mxu0 %v1120
        %v1443 = vpop.f32.mrf.mxu0
        %v1444 = vpop.f32.mrf.mxu0
        %v1445 = vpop.f32.mrf.mxu0
        %v1446 = vpop.f32.mrf.mxu0
        %1447 = vmatprep.mubr.bf16.mxu0 0
        %1448 = vmatmul.mubr.bf16.gmra.mxu0 %v1036
        %v1449 = vpop.f32.mrf.mxu0
        %v1450 = vpop.f32.mrf.mxu0
        %v1451 = vpop.f32.mrf.mxu0
        %v1452 = vpop.f32.mrf.mxu0
        %1453 = vdwg.mxu0
        %s1454 = scalar_lea.vmem %s1, 32
        %v1455 = vld [vmem:[%s1454] sm:$0xff]
        %v1456 = vld [vmem:[%s1454 + $0x8] sm:$0xff]
        %v1457 = vld [vmem:[%s1454 + $0x10] sm:$0xff]
        %v1458 = vld [vmem:[%s1454 + $0x18] sm:$0x33]
        %v1463 = vunpack.c.l.b16 %v1455
        %v1464 = vunpack.c.h.b16 %v1455
        %v1465 = vunpack.c.l.b16 %v1456
        %v1466 = vunpack.c.h.b16 %v1456
        %v1467 = vunpack.c.l.b16 %v1457
        %v1468 = vunpack.c.h.b16 %v1457
        %v1469 = vunpack.c.l.b16 %v1458
        %v1470 = vunpack.c.h.b16 %v1458
        %v1471 = vpack.c.b16 %v1465, %v1463
        %v1472 = vpack.c.b16 %v1466, %v1464
        %v1473 = vpack.c.b16 %v1469, %v1467
        %v1474 = vpack.c.b16 %v1470, %v1468
        %v1478 = vsel %vm1122, %v1473, 0
        %v1481 = vsel %vm1122, %v1474, 0
        %1483 = vmatprep.subr.bf16.mxu0 0
        %1484 = vmatpush1.bf16.msra.mxu0 0
        %1485 = vmatprep.subr.bf16.mxu0 0
        %1486 = vmatpush1.bf16.msra.mxu0 0
        %1487 = vmatprep.subr.bf16.mxu0 0
        %1488 = vmatpush1.bf16.msra.mxu0 0
        %1489 = vmatprep.subr.bf16.mxu0 0
        %1490 = vmatpush1.bf16.msra.mxu0 0
        %1491 = vmatprep.subr.bf16.mxu0 0
        %1492 = vmatpush1.bf16.msra.mxu0 0
        %1493 = vmatprep.subr.bf16.mxu0 0
        %1494 = vmatpush1.bf16.msra.mxu0 0
        %1495 = vmatprep.subr.bf16.mxu0 %v1481
        %1496 = vmatpush1.bf16.msra.mxu0 %v1478
        %1497 = vmatprep.subr.bf16.mxu0 %v1472
        %1498 = vmatpush1.bf16.msra.mxu0 %v1471
        %1499 = vmatprep.subr.bf16.mxu0 0
        %1500 = vmatpush2.bf16.msra.mxu0 0
        %1501 = vmatprep.subr.bf16.mxu0 0
        %1502 = vmatpush2.bf16.msra.mxu0 0
        %1503 = vmatprep.subr.bf16.mxu0 0
        %1504 = vmatpush2.bf16.msra.mxu0 0
        %1505 = vmatprep.subr.bf16.mxu0 0
        %1506 = vmatpush2.bf16.msra.mxu0 0
        %1507 = vmatprep.subr.bf16.mxu0 0
        %1508 = vmatpush2.bf16.msra.mxu0 0
        %1509 = vmatprep.subr.bf16.mxu0 0
        %1510 = vmatpush2.bf16.msra.mxu0 0
        %1511 = vmatprep.subr.bf16.mxu0 0
        %1512 = vmatpush2.bf16.msra.mxu0 0
        %1513 = vmatprep.subr.bf16.mxu0 0
        %1514 = vmatpush2.bf16.msra.mxu0 0
        %1515 = vmatprep.mubr.bf16.mxu0 0
        %1516 = vmatmul.mubr.bf16.gmra.mxu0 %v1036
        %v1517 = vpop.f32.mrf.mxu0
        %v1518 = vpop.f32.mrf.mxu0
        %v1519 = vpop.f32.mrf.mxu0
        %v1520 = vpop.f32.mrf.mxu0
        %1521 = vmatprep.mubr.bf16.mxu0 0
        %1522 = vmatmul.mubr.bf16.gmra.mxu0 %v1039
        %v1523 = vpop.f32.mrf.mxu0
        %v1524 = vadd.f32 0.0, %v1523
        %v1525 = vpop.f32.mrf.mxu0
        %v1526 = vadd.f32 0.0, %v1525
        %v1527 = vpop.f32.mrf.mxu0
        %v1528 = vadd.f32 0.0, %v1527
        %v1529 = vpop.f32.mrf.mxu0
        %v1530 = vadd.f32 0.0, %v1529
        %1531 = vmatprep.mubr.bf16.mxu0 0
        %1532 = vmatmul.mubr.bf16.gmra.mxu0 %v1042
        %v1533 = vpop.f32.mrf.mxu0
        %v1534 = vadd.f32 0.0, %v1533
        %v1535 = vpop.f32.mrf.mxu0
        %v1536 = vadd.f32 0.0, %v1535
        %v1537 = vpop.f32.mrf.mxu0
        %v1538 = vadd.f32 0.0, %v1537
        %v1539 = vpop.f32.mrf.mxu0
        %v1540 = vadd.f32 0.0, %v1539
        %1541 = vmatprep.mubr.bf16.mxu0 0
        %1542 = vmatmul.mubr.bf16.gmra.mxu0 %v1045
        %v1543 = vpop.f32.mrf.mxu0
        %v1544 = vadd.f32 0.0, %v1543
        %v1545 = vpop.f32.mrf.mxu0
        %v1546 = vadd.f32 0.0, %v1545
        %v1547 = vpop.f32.mrf.mxu0
        %v1548 = vadd.f32 0.0, %v1547
        %v1549 = vpop.f32.mrf.mxu0
        %v1550 = vadd.f32 0.0, %v1549
        %1551 = vmatprep.mubr.bf16.mxu0 0
        %1552 = vmatmul.mubr.bf16.gmra.mxu0 %v1048
        %v1553 = vpop.f32.mrf.mxu0
        %v1554 = vadd.f32 0.0, %v1553
        %v1555 = vpop.f32.mrf.mxu0
        %v1556 = vadd.f32 0.0, %v1555
        %v1557 = vpop.f32.mrf.mxu0
        %v1558 = vadd.f32 0.0, %v1557
        %v1559 = vpop.f32.mrf.mxu0
        %v1560 = vadd.f32 0.0, %v1559
        %1561 = vmatprep.mubr.bf16.mxu0 0
        %1562 = vmatmul.mubr.bf16.gmra.mxu0 %v1051
        %v1563 = vpop.f32.mrf.mxu0
        %v1564 = vadd.f32 0.0, %v1563
        %v1565 = vpop.f32.mrf.mxu0
        %v1566 = vadd.f32 0.0, %v1565
        %v1567 = vpop.f32.mrf.mxu0
        %v1568 = vadd.f32 0.0, %v1567
        %v1569 = vpop.f32.mrf.mxu0
        %v1570 = vadd.f32 0.0, %v1569
        %1571 = vmatprep.mubr.bf16.mxu0 0
        %1572 = vmatmul.mubr.bf16.gmra.mxu0 %v1054
        %v1573 = vpop.f32.mrf.mxu0
        %v1574 = vadd.f32 0.0, %v1573
        %v1575 = vpop.f32.mrf.mxu0
        %v1576 = vadd.f32 0.0, %v1575
        %v1577 = vpop.f32.mrf.mxu0
        %v1578 = vadd.f32 0.0, %v1577
        %v1579 = vpop.f32.mrf.mxu0
        %v1580 = vadd.f32 0.0, %v1579
        %1581 = vmatprep.mubr.bf16.mxu0 0
        %1582 = vmatmul.mubr.bf16.gmra.mxu0 %v1057
        %v1583 = vpop.f32.mrf.mxu0
        %v1584 = vadd.f32 0.0, %v1583
        %v1585 = vpop.f32.mrf.mxu0
        %v1586 = vadd.f32 0.0, %v1585
        %v1587 = vpop.f32.mrf.mxu0
        %v1588 = vadd.f32 0.0, %v1587
        %v1589 = vpop.f32.mrf.mxu0
        %v1590 = vadd.f32 0.0, %v1589
        %1591 = vmatprep.mubr.bf16.mxu0 0
        %1592 = vmatmul.mubr.bf16.gmra.mxu0 %v1060
        %v1593 = vpop.f32.mrf.mxu0
        %v1594 = vadd.f32 0.0, %v1593
        %v1595 = vpop.f32.mrf.mxu0
        %v1596 = vadd.f32 0.0, %v1595
        %v1597 = vpop.f32.mrf.mxu0
        %v1598 = vadd.f32 0.0, %v1597
        %v1599 = vpop.f32.mrf.mxu0
        %v1600 = vadd.f32 0.0, %v1599
        %1601 = vmatprep.mubr.bf16.mxu0 0
        %1602 = vmatmul.mubr.bf16.gmra.mxu0 %v1063
        %v1603 = vpop.f32.mrf.mxu0
        %v1604 = vadd.f32 0.0, %v1603
        %v1605 = vpop.f32.mrf.mxu0
        %v1606 = vadd.f32 0.0, %v1605
        %v1607 = vpop.f32.mrf.mxu0
        %v1608 = vadd.f32 0.0, %v1607
        %v1609 = vpop.f32.mrf.mxu0
        %v1610 = vadd.f32 0.0, %v1609
        %1611 = vmatprep.mubr.bf16.mxu0 0
        %1612 = vmatmul.mubr.bf16.gmra.mxu0 %v1066
        %v1613 = vpop.f32.mrf.mxu0
        %v1614 = vadd.f32 0.0, %v1613
        %v1615 = vpop.f32.mrf.mxu0
        %v1616 = vadd.f32 0.0, %v1615
        %v1617 = vpop.f32.mrf.mxu0
        %v1618 = vadd.f32 0.0, %v1617
        %v1619 = vpop.f32.mrf.mxu0
        %v1620 = vadd.f32 0.0, %v1619
        %1621 = vmatprep.mubr.bf16.mxu0 0
        %1622 = vmatmul.mubr.bf16.gmra.mxu0 %v1069
        %v1623 = vpop.f32.mrf.mxu0
        %v1624 = vadd.f32 0.0, %v1623
        %v1625 = vpop.f32.mrf.mxu0
        %v1626 = vadd.f32 0.0, %v1625
        %v1627 = vpop.f32.mrf.mxu0
        %v1628 = vadd.f32 0.0, %v1627
        %v1629 = vpop.f32.mrf.mxu0
        %v1630 = vadd.f32 0.0, %v1629
        %1631 = vmatprep.mubr.bf16.mxu0 0
        %1632 = vmatmul.mubr.bf16.gmra.mxu0 %v1072
        %v1633 = vpop.f32.mrf.mxu0
        %v1634 = vadd.f32 0.0, %v1633
        %v1635 = vpop.f32.mrf.mxu0
        %v1636 = vadd.f32 0.0, %v1635
        %v1637 = vpop.f32.mrf.mxu0
        %v1638 = vadd.f32 0.0, %v1637
        %v1639 = vpop.f32.mrf.mxu0
        %v1640 = vadd.f32 0.0, %v1639
        %1641 = vmatprep.mubr.bf16.mxu0 0
        %1642 = vmatmul.mubr.bf16.gmra.mxu0 %v1075
        %v1643 = vpop.f32.mrf.mxu0
        %v1644 = vadd.f32 0.0, %v1643
        %v1645 = vpop.f32.mrf.mxu0
        %v1646 = vadd.f32 0.0, %v1645
        %v1647 = vpop.f32.mrf.mxu0
        %v1648 = vadd.f32 0.0, %v1647
        %v1649 = vpop.f32.mrf.mxu0
        %v1650 = vadd.f32 0.0, %v1649
        %1651 = vmatprep.mubr.bf16.mxu0 0
        %1652 = vmatmul.mubr.bf16.gmra.mxu0 %v1078
        %v1653 = vpop.f32.mrf.mxu0
        %v1654 = vadd.f32 0.0, %v1653
        %v1655 = vpop.f32.mrf.mxu0
        %v1656 = vadd.f32 0.0, %v1655
        %v1657 = vpop.f32.mrf.mxu0
        %v1658 = vadd.f32 0.0, %v1657
        %v1659 = vpop.f32.mrf.mxu0
        %v1660 = vadd.f32 0.0, %v1659
        %1661 = vmatprep.mubr.bf16.mxu0 0
        %1662 = vmatmul.mubr.bf16.gmra.mxu0 %v1081
        %v1663 = vpop.f32.mrf.mxu0
        %v1664 = vadd.f32 0.0, %v1663
        %v1665 = vpop.f32.mrf.mxu0
        %v1666 = vadd.f32 0.0, %v1665
        %v1667 = vpop.f32.mrf.mxu0
        %v1668 = vadd.f32 0.0, %v1667
        %v1669 = vpop.f32.mrf.mxu0
        %v1670 = vadd.f32 0.0, %v1669
        %1671 = vmatprep.mubr.bf16.mxu0 0
        %1672 = vmatmul.mubr.bf16.gmra.mxu0 %v1084
        %v1673 = vpop.f32.mrf.mxu0
        %v1674 = vadd.f32 0.0, %v1673
        %v1675 = vpop.f32.mrf.mxu0
        %v1676 = vadd.f32 0.0, %v1675
        %v1677 = vpop.f32.mrf.mxu0
        %v1678 = vadd.f32 0.0, %v1677
        %v1679 = vpop.f32.mrf.mxu0
        %v1680 = vadd.f32 0.0, %v1679
        %1681 = vmatprep.mubr.bf16.mxu0 0
        %1682 = vmatmul.mubr.bf16.gmra.mxu0 %v1087
        %v1683 = vpop.f32.mrf.mxu0
        %v1684 = vadd.f32 0.0, %v1683
        %v1685 = vpop.f32.mrf.mxu0
        %v1686 = vadd.f32 0.0, %v1685
        %v1687 = vpop.f32.mrf.mxu0
        %v1688 = vadd.f32 0.0, %v1687
        %v1689 = vpop.f32.mrf.mxu0
        %v1690 = vadd.f32 0.0, %v1689
        %1691 = vmatprep.mubr.bf16.mxu0 0
        %1692 = vmatmul.mubr.bf16.gmra.mxu0 %v1090
        %v1693 = vpop.f32.mrf.mxu0
        %v1694 = vadd.f32 0.0, %v1693
        %v1695 = vpop.f32.mrf.mxu0
        %v1696 = vadd.f32 0.0, %v1695
        %v1697 = vpop.f32.mrf.mxu0
        %v1698 = vadd.f32 0.0, %v1697
        %v1699 = vpop.f32.mrf.mxu0
        %v1700 = vadd.f32 0.0, %v1699
        %1701 = vmatprep.mubr.bf16.mxu0 0
        %1702 = vmatmul.mubr.bf16.gmra.mxu0 %v1093
        %v1703 = vpop.f32.mrf.mxu0
        %v1704 = vadd.f32 0.0, %v1703
        %v1705 = vpop.f32.mrf.mxu0
        %v1706 = vadd.f32 0.0, %v1705
        %v1707 = vpop.f32.mrf.mxu0
        %v1708 = vadd.f32 0.0, %v1707
        %v1709 = vpop.f32.mrf.mxu0
        %v1710 = vadd.f32 0.0, %v1709
        %1711 = vmatprep.mubr.bf16.mxu0 0
        %1712 = vmatmul.mubr.bf16.gmra.mxu0 %v1096
        %v1713 = vpop.f32.mrf.mxu0
        %v1714 = vadd.f32 0.0, %v1713
        %v1715 = vpop.f32.mrf.mxu0
        %v1716 = vadd.f32 0.0, %v1715
        %v1717 = vpop.f32.mrf.mxu0
        %v1718 = vadd.f32 0.0, %v1717
        %v1719 = vpop.f32.mrf.mxu0
        %v1720 = vadd.f32 0.0, %v1719
        %1721 = vmatprep.mubr.bf16.mxu0 0
        %1722 = vmatmul.mubr.bf16.gmra.mxu0 %v1099
        %v1723 = vpop.f32.mrf.mxu0
        %v1724 = vadd.f32 0.0, %v1723
        %v1725 = vpop.f32.mrf.mxu0
        %v1726 = vadd.f32 0.0, %v1725
        %v1727 = vpop.f32.mrf.mxu0
        %v1728 = vadd.f32 0.0, %v1727
        %v1729 = vpop.f32.mrf.mxu0
        %v1730 = vadd.f32 0.0, %v1729
        %1731 = vmatprep.mubr.bf16.mxu0 0
        %1732 = vmatmul.mubr.bf16.gmra.mxu0 %v1102
        %v1733 = vpop.f32.mrf.mxu0
        %v1734 = vadd.f32 0.0, %v1733
        %v1735 = vpop.f32.mrf.mxu0
        %v1736 = vadd.f32 0.0, %v1735
        %v1737 = vpop.f32.mrf.mxu0
        %v1738 = vadd.f32 0.0, %v1737
        %v1739 = vpop.f32.mrf.mxu0
        %v1740 = vadd.f32 0.0, %v1739
        %1741 = vmatprep.mubr.bf16.mxu0 0
        %1742 = vmatmul.mubr.bf16.gmra.mxu0 %v1105
        %v1743 = vpop.f32.mrf.mxu0
        %v1744 = vadd.f32 0.0, %v1743
        %v1745 = vpop.f32.mrf.mxu0
        %v1746 = vadd.f32 0.0, %v1745
        %v1747 = vpop.f32.mrf.mxu0
        %v1748 = vadd.f32 0.0, %v1747
        %v1749 = vpop.f32.mrf.mxu0
        %v1750 = vadd.f32 0.0, %v1749
        %1751 = vmatprep.mubr.bf16.mxu0 0
        %1752 = vmatmul.mubr.bf16.gmra.mxu0 %v1108
        %v1753 = vpop.f32.mrf.mxu0
        %v1754 = vadd.f32 0.0, %v1753
        %v1755 = vpop.f32.mrf.mxu0
        %v1756 = vadd.f32 0.0, %v1755
        %v1757 = vpop.f32.mrf.mxu0
        %v1758 = vadd.f32 0.0, %v1757
        %v1759 = vpop.f32.mrf.mxu0
        %v1760 = vadd.f32 0.0, %v1759
        %1761 = vmatprep.mubr.bf16.mxu0 0
        %1762 = vmatmul.mubr.bf16.gmra.mxu0 %v1111
        %v1763 = vpop.f32.mrf.mxu0
        %v1764 = vadd.f32 0.0, %v1763
        %v1765 = vpop.f32.mrf.mxu0
        %v1766 = vadd.f32 0.0, %v1765
        %v1767 = vpop.f32.mrf.mxu0
        %v1768 = vadd.f32 0.0, %v1767
        %v1769 = vpop.f32.mrf.mxu0
        %v1770 = vadd.f32 0.0, %v1769
        %1771 = vmatprep.mubr.bf16.mxu0 0
        %1772 = vmatmul.mubr.bf16.gmra.mxu0 %v1114
        %v1773 = vpop.f32.mrf.mxu0
        %v1774 = vadd.f32 0.0, %v1773
        %v1775 = vpop.f32.mrf.mxu0
        %v1776 = vadd.f32 0.0, %v1775
        %v1777 = vpop.f32.mrf.mxu0
        %v1778 = vadd.f32 0.0, %v1777
        %v1779 = vpop.f32.mrf.mxu0
        %v1780 = vadd.f32 0.0, %v1779
        %1781 = vmatprep.mubr.bf16.mxu0 0
        %1782 = vmatmul.mubr.bf16.gmra.mxu0 %v1117
        %v1783 = vpop.f32.mrf.mxu0
        %v1784 = vadd.f32 0.0, %v1783
        %v1785 = vpop.f32.mrf.mxu0
        %v1786 = vadd.f32 0.0, %v1785
        %v1787 = vpop.f32.mrf.mxu0
        %v1788 = vadd.f32 0.0, %v1787
        %v1789 = vpop.f32.mrf.mxu0
        %v1790 = vadd.f32 0.0, %v1789
        %1791 = vmatprep.mubr.bf16.mxu0 0
        %1792 = vmatmul.mubr.bf16.gmra.mxu0 %v1120
        %v1793 = vpop.f32.mrf.mxu0
        %v1794 = vadd.f32 0.0, %v1793
        %v1795 = vpop.f32.mrf.mxu0
        %v1796 = vadd.f32 0.0, %v1795
        %v1797 = vpop.f32.mrf.mxu0
        %v1798 = vadd.f32 0.0, %v1797
        %v1799 = vpop.f32.mrf.mxu0
        %v1800 = vadd.f32 0.0, %v1799
        %1801 = vmatprep.mubr.bf16.mxu0 0
        %1802 = vmatmul.mubr.bf16.gmra.mxu0 %v1036
        %v1803 = vpop.f32.mrf.mxu0
        %v1804 = vpop.f32.mrf.mxu0
        %v1805 = vpop.f32.mrf.mxu0
        %v1806 = vpop.f32.mrf.mxu0
        %1807 = vdwg.mxu0
        %s1808 = scalar_lea.vmem %s1, 64
        %v1809 = vld [vmem:[%s1808] sm:$0xff]
        %v1810 = vld [vmem:[%s1808 + $0x8] sm:$0xff]
        %v1811 = vld [vmem:[%s1808 + $0x10] sm:$0xff]
        %v1812 = vld [vmem:[%s1808 + $0x18] sm:$0x33]
        %v1817 = vunpack.c.l.b16 %v1809
        %v1818 = vunpack.c.h.b16 %v1809
        %v1819 = vunpack.c.l.b16 %v1810
        %v1820 = vunpack.c.h.b16 %v1810
        %v1821 = vunpack.c.l.b16 %v1811
        %v1822 = vunpack.c.h.b16 %v1811
        %v1823 = vunpack.c.l.b16 %v1812
        %v1824 = vunpack.c.h.b16 %v1812
        %v1825 = vpack.c.b16 %v1819, %v1817
        %v1826 = vpack.c.b16 %v1820, %v1818
        %v1827 = vpack.c.b16 %v1823, %v1821
        %v1828 = vpack.c.b16 %v1824, %v1822
        %v1832 = vsel %vm1122, %v1827, 0
        %v1835 = vsel %vm1122, %v1828, 0
        %1837 = vmatprep.subr.bf16.mxu0 0
        %1838 = vmatpush1.bf16.msra.mxu0 0
        %1839 = vmatprep.subr.bf16.mxu0 0
        %1840 = vmatpush1.bf16.msra.mxu0 0
        %1841 = vmatprep.subr.bf16.mxu0 0
        %1842 = vmatpush1.bf16.msra.mxu0 0
        %1843 = vmatprep.subr.bf16.mxu0 0
        %1844 = vmatpush1.bf16.msra.mxu0 0
        %1845 = vmatprep.subr.bf16.mxu0 0
        %1846 = vmatpush1.bf16.msra.mxu0 0
        %1847 = vmatprep.subr.bf16.mxu0 0
        %1848 = vmatpush1.bf16.msra.mxu0 0
        %1849 = vmatprep.subr.bf16.mxu0 %v1835
        %1850 = vmatpush1.bf16.msra.mxu0 %v1832
        %1851 = vmatprep.subr.bf16.mxu0 %v1826
        %1852 = vmatpush1.bf16.msra.mxu0 %v1825
        %1853 = vmatprep.subr.bf16.mxu0 0
        %1854 = vmatpush2.bf16.msra.mxu0 0
        %1855 = vmatprep.subr.bf16.mxu0 0
        %1856 = vmatpush2.bf16.msra.mxu0 0
        %1857 = vmatprep.subr.bf16.mxu0 0
        %1858 = vmatpush2.bf16.msra.mxu0 0
        %1859 = vmatprep.subr.bf16.mxu0 0
        %1860 = vmatpush2.bf16.msra.mxu0 0
        %1861 = vmatprep.subr.bf16.mxu0 0
        %1862 = vmatpush2.bf16.msra.mxu0 0
        %1863 = vmatprep.subr.bf16.mxu0 0
        %1864 = vmatpush2.bf16.msra.mxu0 0
        %1865 = vmatprep.subr.bf16.mxu0 0
        %1866 = vmatpush2.bf16.msra.mxu0 0
        %1867 = vmatprep.subr.bf16.mxu0 0
        %1868 = vmatpush2.bf16.msra.mxu0 0
        %1869 = vmatprep.mubr.bf16.mxu0 0
        %1870 = vmatmul.mubr.bf16.gmra.mxu0 %v1036
        %v1871 = vpop.f32.mrf.mxu0
        %v1872 = vpop.f32.mrf.mxu0
        %v1873 = vpop.f32.mrf.mxu0
        %v1874 = vpop.f32.mrf.mxu0
        %1875 = vmatprep.mubr.bf16.mxu0 0
        %1876 = vmatmul.mubr.bf16.gmra.mxu0 %v1039
        %v1877 = vpop.f32.mrf.mxu0
        %v1878 = vpop.f32.mrf.mxu0
        %v1879 = vpop.f32.mrf.mxu0
        %v1880 = vpop.f32.mrf.mxu0
        %1881 = vmatprep.mubr.bf16.mxu0 0
        %1882 = vmatmul.mubr.bf16.gmra.mxu0 %v1042
        %v1883 = vpop.f32.mrf.mxu0
        %v1884 = vadd.f32 0.0, %v1883
        %v1885 = vpop.f32.mrf.mxu0
        %v1886 = vadd.f32 0.0, %v1885
        %v1887 = vpop.f32.mrf.mxu0
        %v1888 = vadd.f32 0.0, %v1887
        %v1889 = vpop.f32.mrf.mxu0
        %v1890 = vadd.f32 0.0, %v1889
        %1891 = vmatprep.mubr.bf16.mxu0 0
        %1892 = vmatmul.mubr.bf16.gmra.mxu0 %v1045
        %v1893 = vpop.f32.mrf.mxu0
        %v1894 = vadd.f32 0.0, %v1893
        %v1895 = vpop.f32.mrf.mxu0
        %v1896 = vadd.f32 0.0, %v1895
        %v1897 = vpop.f32.mrf.mxu0
        %v1898 = vadd.f32 0.0, %v1897
        %v1899 = vpop.f32.mrf.mxu0
        %v1900 = vadd.f32 0.0, %v1899
        %1901 = vmatprep.mubr.bf16.mxu0 0
        %1902 = vmatmul.mubr.bf16.gmra.mxu0 %v1048
        %v1903 = vpop.f32.mrf.mxu0
        %v1904 = vadd.f32 0.0, %v1903
        %v1905 = vpop.f32.mrf.mxu0
        %v1906 = vadd.f32 0.0, %v1905
        %v1907 = vpop.f32.mrf.mxu0
        %v1908 = vadd.f32 0.0, %v1907
        %v1909 = vpop.f32.mrf.mxu0
        %v1910 = vadd.f32 0.0, %v1909
        %1911 = vmatprep.mubr.bf16.mxu0 0
        %1912 = vmatmul.mubr.bf16.gmra.mxu0 %v1051
        %v1913 = vpop.f32.mrf.mxu0
        %v1914 = vadd.f32 0.0, %v1913
        %v1915 = vpop.f32.mrf.mxu0
        %v1916 = vadd.f32 0.0, %v1915
        %v1917 = vpop.f32.mrf.mxu0
        %v1918 = vadd.f32 0.0, %v1917
        %v1919 = vpop.f32.mrf.mxu0
        %v1920 = vadd.f32 0.0, %v1919
        %1921 = vmatprep.mubr.bf16.mxu0 0
        %1922 = vmatmul.mubr.bf16.gmra.mxu0 %v1054
        %v1923 = vpop.f32.mrf.mxu0
        %v1924 = vadd.f32 0.0, %v1923
        %v1925 = vpop.f32.mrf.mxu0
        %v1926 = vadd.f32 0.0, %v1925
        %v1927 = vpop.f32.mrf.mxu0
        %v1928 = vadd.f32 0.0, %v1927
        %v1929 = vpop.f32.mrf.mxu0
        %v1930 = vadd.f32 0.0, %v1929
        %1931 = vmatprep.mubr.bf16.mxu0 0
        %1932 = vmatmul.mubr.bf16.gmra.mxu0 %v1057
        %v1933 = vpop.f32.mrf.mxu0
        %v1934 = vadd.f32 0.0, %v1933
        %v1935 = vpop.f32.mrf.mxu0
        %v1936 = vadd.f32 0.0, %v1935
        %v1937 = vpop.f32.mrf.mxu0
        %v1938 = vadd.f32 0.0, %v1937
        %v1939 = vpop.f32.mrf.mxu0
        %v1940 = vadd.f32 0.0, %v1939
        %1941 = vmatprep.mubr.bf16.mxu0 0
        %1942 = vmatmul.mubr.bf16.gmra.mxu0 %v1060
        %v1943 = vpop.f32.mrf.mxu0
        %v1944 = vadd.f32 0.0, %v1943
        %v1945 = vpop.f32.mrf.mxu0
        %v1946 = vadd.f32 0.0, %v1945
        %v1947 = vpop.f32.mrf.mxu0
        %v1948 = vadd.f32 0.0, %v1947
        %v1949 = vpop.f32.mrf.mxu0
        %v1950 = vadd.f32 0.0, %v1949
        %1951 = vmatprep.mubr.bf16.mxu0 0
        %1952 = vmatmul.mubr.bf16.gmra.mxu0 %v1063
        %v1953 = vpop.f32.mrf.mxu0
        %v1954 = vadd.f32 0.0, %v1953
        %v1955 = vpop.f32.mrf.mxu0
        %v1956 = vadd.f32 0.0, %v1955
        %v1957 = vpop.f32.mrf.mxu0
        %v1958 = vadd.f32 0.0, %v1957
        %v1959 = vpop.f32.mrf.mxu0
        %v1960 = vadd.f32 0.0, %v1959
        %1961 = vmatprep.mubr.bf16.mxu0 0
        %1962 = vmatmul.mubr.bf16.gmra.mxu0 %v1066
        %v1963 = vpop.f32.mrf.mxu0
        %v1964 = vadd.f32 0.0, %v1963
        %v1965 = vpop.f32.mrf.mxu0
        %v1966 = vadd.f32 0.0, %v1965
        %v1967 = vpop.f32.mrf.mxu0
        %v1968 = vadd.f32 0.0, %v1967
        %v1969 = vpop.f32.mrf.mxu0
        %v1970 = vadd.f32 0.0, %v1969
        %1971 = vmatprep.mubr.bf16.mxu0 0
        %1972 = vmatmul.mubr.bf16.gmra.mxu0 %v1069
        %v1973 = vpop.f32.mrf.mxu0
        %v1974 = vadd.f32 0.0, %v1973
        %v1975 = vpop.f32.mrf.mxu0
        %v1976 = vadd.f32 0.0, %v1975
        %v1977 = vpop.f32.mrf.mxu0
        %v1978 = vadd.f32 0.0, %v1977
        %v1979 = vpop.f32.mrf.mxu0
        %v1980 = vadd.f32 0.0, %v1979
        %1981 = vmatprep.mubr.bf16.mxu0 0
        %1982 = vmatmul.mubr.bf16.gmra.mxu0 %v1072
        %v1983 = vpop.f32.mrf.mxu0
        %v1984 = vadd.f32 0.0, %v1983
        %v1985 = vpop.f32.mrf.mxu0
        %v1986 = vadd.f32 0.0, %v1985
        %v1987 = vpop.f32.mrf.mxu0
        %v1988 = vadd.f32 0.0, %v1987
        %v1989 = vpop.f32.mrf.mxu0
        %v1990 = vadd.f32 0.0, %v1989
        %1991 = vmatprep.mubr.bf16.mxu0 0
        %1992 = vmatmul.mubr.bf16.gmra.mxu0 %v1075
        %v1993 = vpop.f32.mrf.mxu0
        %v1994 = vadd.f32 0.0, %v1993
        %v1995 = vpop.f32.mrf.mxu0
        %v1996 = vadd.f32 0.0, %v1995
        %v1997 = vpop.f32.mrf.mxu0
        %v1998 = vadd.f32 0.0, %v1997
        %v1999 = vpop.f32.mrf.mxu0
        %v2000 = vadd.f32 0.0, %v1999
        %2001 = vmatprep.mubr.bf16.mxu0 0
        %2002 = vmatmul.mubr.bf16.gmra.mxu0 %v1078
        %v2003 = vpop.f32.mrf.mxu0
        %v2004 = vadd.f32 0.0, %v2003
        %v2005 = vpop.f32.mrf.mxu0
        %v2006 = vadd.f32 0.0, %v2005
        %v2007 = vpop.f32.mrf.mxu0
        %v2008 = vadd.f32 0.0, %v2007
        %v2009 = vpop.f32.mrf.mxu0
        %v2010 = vadd.f32 0.0, %v2009
        %2011 = vmatprep.mubr.bf16.mxu0 0
        %2012 = vmatmul.mubr.bf16.gmra.mxu0 %v1081
        %v2013 = vpop.f32.mrf.mxu0
        %v2014 = vadd.f32 0.0, %v2013
        %v2015 = vpop.f32.mrf.mxu0
        %v2016 = vadd.f32 0.0, %v2015
        %v2017 = vpop.f32.mrf.mxu0
        %v2018 = vadd.f32 0.0, %v2017
        %v2019 = vpop.f32.mrf.mxu0
        %v2020 = vadd.f32 0.0, %v2019
        %2021 = vmatprep.mubr.bf16.mxu0 0
        %2022 = vmatmul.mubr.bf16.gmra.mxu0 %v1084
        %v2023 = vpop.f32.mrf.mxu0
        %v2024 = vadd.f32 0.0, %v2023
        %v2025 = vpop.f32.mrf.mxu0
        %v2026 = vadd.f32 0.0, %v2025
        %v2027 = vpop.f32.mrf.mxu0
        %v2028 = vadd.f32 0.0, %v2027
        %v2029 = vpop.f32.mrf.mxu0
        %v2030 = vadd.f32 0.0, %v2029
        %2031 = vmatprep.mubr.bf16.mxu0 0
        %2032 = vmatmul.mubr.bf16.gmra.mxu0 %v1087
        %v2033 = vpop.f32.mrf.mxu0
        %v2034 = vadd.f32 0.0, %v2033
        %v2035 = vpop.f32.mrf.mxu0
        %v2036 = vadd.f32 0.0, %v2035
        %v2037 = vpop.f32.mrf.mxu0
        %v2038 = vadd.f32 0.0, %v2037
        %v2039 = vpop.f32.mrf.mxu0
        %v2040 = vadd.f32 0.0, %v2039
        %2041 = vmatprep.mubr.bf16.mxu0 0
        %2042 = vmatmul.mubr.bf16.gmra.mxu0 %v1090
        %v2043 = vpop.f32.mrf.mxu0
        %v2044 = vadd.f32 0.0, %v2043
        %v2045 = vpop.f32.mrf.mxu0
        %v2046 = vadd.f32 0.0, %v2045
        %v2047 = vpop.f32.mrf.mxu0
        %v2048 = vadd.f32 0.0, %v2047
        %v2049 = vpop.f32.mrf.mxu0
        %v2050 = vadd.f32 0.0, %v2049
        %2051 = vmatprep.mubr.bf16.mxu0 0
        %2052 = vmatmul.mubr.bf16.gmra.mxu0 %v1093
        %v2053 = vpop.f32.mrf.mxu0
        %v2054 = vadd.f32 0.0, %v2053
        %v2055 = vpop.f32.mrf.mxu0
        %v2056 = vadd.f32 0.0, %v2055
        %v2057 = vpop.f32.mrf.mxu0
        %v2058 = vadd.f32 0.0, %v2057
        %v2059 = vpop.f32.mrf.mxu0
        %v2060 = vadd.f32 0.0, %v2059
        %2061 = vmatprep.mubr.bf16.mxu0 0
        %2062 = vmatmul.mubr.bf16.gmra.mxu0 %v1096
        %v2063 = vpop.f32.mrf.mxu0
        %v2064 = vadd.f32 0.0, %v2063
        %v2065 = vpop.f32.mrf.mxu0
        %v2066 = vadd.f32 0.0, %v2065
        %v2067 = vpop.f32.mrf.mxu0
        %v2068 = vadd.f32 0.0, %v2067
        %v2069 = vpop.f32.mrf.mxu0
        %v2070 = vadd.f32 0.0, %v2069
        %2071 = vmatprep.mubr.bf16.mxu0 0
        %2072 = vmatmul.mubr.bf16.gmra.mxu0 %v1099
        %v2073 = vpop.f32.mrf.mxu0
        %v2074 = vadd.f32 0.0, %v2073
        %v2075 = vpop.f32.mrf.mxu0
        %v2076 = vadd.f32 0.0, %v2075
        %v2077 = vpop.f32.mrf.mxu0
        %v2078 = vadd.f32 0.0, %v2077
        %v2079 = vpop.f32.mrf.mxu0
        %v2080 = vadd.f32 0.0, %v2079
        %2081 = vmatprep.mubr.bf16.mxu0 0
        %2082 = vmatmul.mubr.bf16.gmra.mxu0 %v1102
        %v2083 = vpop.f32.mrf.mxu0
        %v2084 = vadd.f32 0.0, %v2083
        %v2085 = vpop.f32.mrf.mxu0
        %v2086 = vadd.f32 0.0, %v2085
        %v2087 = vpop.f32.mrf.mxu0
        %v2088 = vadd.f32 0.0, %v2087
        %v2089 = vpop.f32.mrf.mxu0
        %v2090 = vadd.f32 0.0, %v2089
        %2091 = vmatprep.mubr.bf16.mxu0 0
        %2092 = vmatmul.mubr.bf16.gmra.mxu0 %v1105
        %v2093 = vpop.f32.mrf.mxu0
        %v2094 = vadd.f32 0.0, %v2093
        %v2095 = vpop.f32.mrf.mxu0
        %v2096 = vadd.f32 0.0, %v2095
        %v2097 = vpop.f32.mrf.mxu0
        %v2098 = vadd.f32 0.0, %v2097
        %v2099 = vpop.f32.mrf.mxu0
        %v2100 = vadd.f32 0.0, %v2099
        %2101 = vmatprep.mubr.bf16.mxu0 0
        %2102 = vmatmul.mubr.bf16.gmra.mxu0 %v1108
        %v2103 = vpop.f32.mrf.mxu0
        %v2104 = vadd.f32 0.0, %v2103
        %v2105 = vpop.f32.mrf.mxu0
        %v2106 = vadd.f32 0.0, %v2105
        %v2107 = vpop.f32.mrf.mxu0
        %v2108 = vadd.f32 0.0, %v2107
        %v2109 = vpop.f32.mrf.mxu0
        %v2110 = vadd.f32 0.0, %v2109
        %2111 = vmatprep.mubr.bf16.mxu0 0
        %2112 = vmatmul.mubr.bf16.gmra.mxu0 %v1111
        %v2113 = vpop.f32.mrf.mxu0
        %v2114 = vadd.f32 0.0, %v2113
        %v2115 = vpop.f32.mrf.mxu0
        %v2116 = vadd.f32 0.0, %v2115
        %v2117 = vpop.f32.mrf.mxu0
        %v2118 = vadd.f32 0.0, %v2117
        %v2119 = vpop.f32.mrf.mxu0
        %v2120 = vadd.f32 0.0, %v2119
        %2121 = vmatprep.mubr.bf16.mxu0 0
        %2122 = vmatmul.mubr.bf16.gmra.mxu0 %v1114
        %v2123 = vpop.f32.mrf.mxu0
        %v2124 = vadd.f32 0.0, %v2123
        %v2125 = vpop.f32.mrf.mxu0
        %v2126 = vadd.f32 0.0, %v2125
        %v2127 = vpop.f32.mrf.mxu0
        %v2128 = vadd.f32 0.0, %v2127
        %v2129 = vpop.f32.mrf.mxu0
        %v2130 = vadd.f32 0.0, %v2129
        %2131 = vmatprep.mubr.bf16.mxu0 0
        %2132 = vmatmul.mubr.bf16.gmra.mxu0 %v1117
        %v2133 = vpop.f32.mrf.mxu0
        %v2134 = vadd.f32 0.0, %v2133
        %v2135 = vpop.f32.mrf.mxu0
        %v2136 = vadd.f32 0.0, %v2135
        %v2137 = vpop.f32.mrf.mxu0
        %v2138 = vadd.f32 0.0, %v2137
        %v2139 = vpop.f32.mrf.mxu0
        %v2140 = vadd.f32 0.0, %v2139
        %2141 = vmatprep.mubr.bf16.mxu0 0
        %2142 = vmatmul.mubr.bf16.gmra.mxu0 %v1120
        %v2143 = vpop.f32.mrf.mxu0
        %v2144 = vadd.f32 0.0, %v2143
        %v2145 = vpop.f32.mrf.mxu0
        %v2146 = vadd.f32 0.0, %v2145
        %v2147 = vpop.f32.mrf.mxu0
        %v2148 = vadd.f32 0.0, %v2147
        %v2149 = vpop.f32.mrf.mxu0
        %v2150 = vadd.f32 0.0, %v2149
        %2151 = vmatprep.mubr.bf16.mxu0 0
        %2152 = vmatmul.mubr.bf16.gmra.mxu0 %v1036
        %v2153 = vpop.f32.mrf.mxu0
        %v2154 = vadd.f32 0.0, %v2153
        %v2155 = vpop.f32.mrf.mxu0
        %v2156 = vadd.f32 0.0, %v2155
        %v2157 = vpop.f32.mrf.mxu0
        %v2158 = vadd.f32 0.0, %v2157
        %v2159 = vpop.f32.mrf.mxu0
        %v2160 = vadd.f32 0.0, %v2159
        %2161 = vdwg.mxu0
        %v2162 = vadd.f32 %v1164, %v1524
        %v2163 = vadd.f32 %v1166, %v1526
        %v2164 = vadd.f32 %v1168, %v1528
        %v2165 = vadd.f32 %v1170, %v1530
        %v2166 = vadd.f32 %v1174, %v1534
        %v2167 = vadd.f32 %v1176, %v1536
        %v2168 = vadd.f32 %v1178, %v1538
        %v2169 = vadd.f32 %v1180, %v1540
        %v2170 = vadd.f32 %v1184, %v1544
        %v2171 = vadd.f32 %v1186, %v1546
        %v2172 = vadd.f32 %v1188, %v1548
        %v2173 = vadd.f32 %v1190, %v1550
        %v2174 = vadd.f32 %v1194, %v1554
        %v2175 = vadd.f32 %v1196, %v1556
        %v2176 = vadd.f32 %v1198, %v1558
        %v2177 = vadd.f32 %v1200, %v1560
        %v2178 = vadd.f32 %v1204, %v1564
        %v2179 = vadd.f32 %v1206, %v1566
        %v2180 = vadd.f32 %v1208, %v1568
        %v2181 = vadd.f32 %v1210, %v1570
        %v2182 = vadd.f32 %v1214, %v1574
        %v2183 = vadd.f32 %v1216, %v1576
        %v2184 = vadd.f32 %v1218, %v1578
        %v2185 = vadd.f32 %v1220, %v1580
        %v2186 = vadd.f32 %v1224, %v1584
        %v2187 = vadd.f32 %v1226, %v1586
        %v2188 = vadd.f32 %v1228, %v1588
        %v2189 = vadd.f32 %v1230, %v1590
        %v2190 = vadd.f32 %v1234, %v1594
        %v2191 = vadd.f32 %v1236, %v1596
        %v2192 = vadd.f32 %v1238, %v1598
        %v2193 = vadd.f32 %v1240, %v1600
        %v2194 = vadd.f32 %v1244, %v1604
        %v2195 = vadd.f32 %v1246, %v1606
        %v2196 = vadd.f32 %v1248, %v1608
        %v2197 = vadd.f32 %v1250, %v1610
        %v2198 = vadd.f32 %v1254, %v1614
        %v2199 = vadd.f32 %v1256, %v1616
        %v2200 = vadd.f32 %v1258, %v1618
        %v2201 = vadd.f32 %v1260, %v1620
        %v2202 = vadd.f32 %v1264, %v1624
        %v2203 = vadd.f32 %v1266, %v1626
        %v2204 = vadd.f32 %v1268, %v1628
        %v2205 = vadd.f32 %v1270, %v1630
        %v2206 = vadd.f32 %v1274, %v1634
        %v2207 = vadd.f32 %v1276, %v1636
        %v2208 = vadd.f32 %v1278, %v1638
        %v2209 = vadd.f32 %v1280, %v1640
        %v2210 = vadd.f32 %v1284, %v1644
        %v2211 = vadd.f32 %v1286, %v1646
        %v2212 = vadd.f32 %v1288, %v1648
        %v2213 = vadd.f32 %v1290, %v1650
        %v2214 = vadd.f32 %v1294, %v1654
        %v2215 = vadd.f32 %v1296, %v1656
        %v2216 = vadd.f32 %v1298, %v1658
        %v2217 = vadd.f32 %v1300, %v1660
        %v2218 = vadd.f32 %v1304, %v1664
        %v2219 = vadd.f32 %v1306, %v1666
        %v2220 = vadd.f32 %v1308, %v1668
        %v2221 = vadd.f32 %v1310, %v1670
        %v2222 = vadd.f32 %v1314, %v1674
        %v2223 = vadd.f32 %v1316, %v1676
        %v2224 = vadd.f32 %v1318, %v1678
        %v2225 = vadd.f32 %v1320, %v1680
        %v2226 = vadd.f32 %v1324, %v1684
        %v2227 = vadd.f32 %v1326, %v1686
        %v2228 = vadd.f32 %v1328, %v1688
        %v2229 = vadd.f32 %v1330, %v1690
        %v2230 = vadd.f32 %v1334, %v1694
        %v2231 = vadd.f32 %v1336, %v1696
        %v2232 = vadd.f32 %v1338, %v1698
        %v2233 = vadd.f32 %v1340, %v1700
        %v2234 = vadd.f32 %v1344, %v1704
        %v2235 = vadd.f32 %v1346, %v1706
        %v2236 = vadd.f32 %v1348, %v1708
        %v2237 = vadd.f32 %v1350, %v1710
        %v2238 = vadd.f32 %v1354, %v1714
        %v2239 = vadd.f32 %v1356, %v1716
        %v2240 = vadd.f32 %v1358, %v1718
        %v2241 = vadd.f32 %v1360, %v1720
        %v2242 = vadd.f32 %v1364, %v1724
        %v2243 = vadd.f32 %v1366, %v1726
        %v2244 = vadd.f32 %v1368, %v1728
        %v2245 = vadd.f32 %v1370, %v1730
        %v2246 = vadd.f32 %v1374, %v1734
        %v2247 = vadd.f32 %v1376, %v1736
        %v2248 = vadd.f32 %v1378, %v1738
        %v2249 = vadd.f32 %v1380, %v1740
        %v2250 = vadd.f32 %v1384, %v1744
        %v2251 = vadd.f32 %v1386, %v1746
        %v2252 = vadd.f32 %v1388, %v1748
        %v2253 = vadd.f32 %v1390, %v1750
        %v2254 = vadd.f32 %v1394, %v1754
        %v2255 = vadd.f32 %v1396, %v1756
        %v2256 = vadd.f32 %v1398, %v1758
        %v2257 = vadd.f32 %v1400, %v1760
        %v2258 = vadd.f32 %v1404, %v1764
        %v2259 = vadd.f32 %v1406, %v1766
        %v2260 = vadd.f32 %v1408, %v1768
        %v2261 = vadd.f32 %v1410, %v1770
        %v2262 = vadd.f32 %v1414, %v1774
        %v2263 = vadd.f32 %v1416, %v1776
        %v2264 = vadd.f32 %v1418, %v1778
        %v2265 = vadd.f32 %v1420, %v1780
        %v2266 = vadd.f32 %v1424, %v1784
        %v2267 = vadd.f32 %v1426, %v1786
        %v2268 = vadd.f32 %v1428, %v1788
        %v2269 = vadd.f32 %v1430, %v1790
        %v2270 = vadd.f32 %v1434, %v1794
        %v2271 = vadd.f32 %v1436, %v1796
        %v2272 = vadd.f32 %v1438, %v1798
        %v2273 = vadd.f32 %v1440, %v1800
        %v2274 = vadd.f32 %v2162, %v1884
        %v2275 = vadd.f32 %v2163, %v1886
        %v2276 = vadd.f32 %v2164, %v1888
        %v2277 = vadd.f32 %v2165, %v1890
        %v2278 = vadd.f32 %v2166, %v1894
        %v2279 = vadd.f32 %v2167, %v1896
        %v2280 = vadd.f32 %v2168, %v1898
        %v2281 = vadd.f32 %v2169, %v1900
        %v2282 = vadd.f32 %v2170, %v1904
        %v2283 = vadd.f32 %v2171, %v1906
        %v2284 = vadd.f32 %v2172, %v1908
        %v2285 = vadd.f32 %v2173, %v1910
        %v2286 = vadd.f32 %v2174, %v1914
        %v2287 = vadd.f32 %v2175, %v1916
        %v2288 = vadd.f32 %v2176, %v1918
        %v2289 = vadd.f32 %v2177, %v1920
        %v2290 = vadd.f32 %v2178, %v1924
        %v2291 = vadd.f32 %v2179, %v1926
        %v2292 = vadd.f32 %v2180, %v1928
        %v2293 = vadd.f32 %v2181, %v1930
        %v2294 = vadd.f32 %v2182, %v1934
        %v2295 = vadd.f32 %v2183, %v1936
        %v2296 = vadd.f32 %v2184, %v1938
        %v2297 = vadd.f32 %v2185, %v1940
        %v2298 = vadd.f32 %v2186, %v1944
        %v2299 = vadd.f32 %v2187, %v1946
        %v2300 = vadd.f32 %v2188, %v1948
        %v2301 = vadd.f32 %v2189, %v1950
        %v2302 = vadd.f32 %v2190, %v1954
        %v2303 = vadd.f32 %v2191, %v1956
        %v2304 = vadd.f32 %v2192, %v1958
        %v2305 = vadd.f32 %v2193, %v1960
        %v2306 = vadd.f32 %v2194, %v1964
        %v2307 = vadd.f32 %v2195, %v1966
        %v2308 = vadd.f32 %v2196, %v1968
        %v2309 = vadd.f32 %v2197, %v1970
        %v2310 = vadd.f32 %v2198, %v1974
        %v2311 = vadd.f32 %v2199, %v1976
        %v2312 = vadd.f32 %v2200, %v1978
        %v2313 = vadd.f32 %v2201, %v1980
        %v2314 = vadd.f32 %v2202, %v1984
        %v2315 = vadd.f32 %v2203, %v1986
        %v2316 = vadd.f32 %v2204, %v1988
        %v2317 = vadd.f32 %v2205, %v1990
        %v2318 = vadd.f32 %v2206, %v1994
        %v2319 = vadd.f32 %v2207, %v1996
        %v2320 = vadd.f32 %v2208, %v1998
        %v2321 = vadd.f32 %v2209, %v2000
        %v2322 = vadd.f32 %v2210, %v2004
        %v2323 = vadd.f32 %v2211, %v2006
        %v2324 = vadd.f32 %v2212, %v2008
        %v2325 = vadd.f32 %v2213, %v2010
        %v2326 = vadd.f32 %v2214, %v2014
        %v2327 = vadd.f32 %v2215, %v2016
        %v2328 = vadd.f32 %v2216, %v2018
        %v2329 = vadd.f32 %v2217, %v2020
        %v2330 = vadd.f32 %v2218, %v2024
        %v2331 = vadd.f32 %v2219, %v2026
        %v2332 = vadd.f32 %v2220, %v2028
        %v2333 = vadd.f32 %v2221, %v2030
        %v2334 = vadd.f32 %v2222, %v2034
        %v2335 = vadd.f32 %v2223, %v2036
        %v2336 = vadd.f32 %v2224, %v2038
        %v2337 = vadd.f32 %v2225, %v2040
        %v2338 = vadd.f32 %v2226, %v2044
        %v2339 = vadd.f32 %v2227, %v2046
        %v2340 = vadd.f32 %v2228, %v2048
        %v2341 = vadd.f32 %v2229, %v2050
        %v2342 = vadd.f32 %v2230, %v2054
        %v2343 = vadd.f32 %v2231, %v2056
        %v2344 = vadd.f32 %v2232, %v2058
        %v2345 = vadd.f32 %v2233, %v2060
        %v2346 = vadd.f32 %v2234, %v2064
        %v2347 = vadd.f32 %v2235, %v2066
        %v2348 = vadd.f32 %v2236, %v2068
        %v2349 = vadd.f32 %v2237, %v2070
        %v2350 = vadd.f32 %v2238, %v2074
        %v2351 = vadd.f32 %v2239, %v2076
        %v2352 = vadd.f32 %v2240, %v2078
        %v2353 = vadd.f32 %v2241, %v2080
        %v2354 = vadd.f32 %v2242, %v2084
        %v2355 = vadd.f32 %v2243, %v2086
        %v2356 = vadd.f32 %v2244, %v2088
        %v2357 = vadd.f32 %v2245, %v2090
        %v2358 = vadd.f32 %v2246, %v2094
        %v2359 = vadd.f32 %v2247, %v2096
        %v2360 = vadd.f32 %v2248, %v2098
        %v2361 = vadd.f32 %v2249, %v2100
        %v2362 = vadd.f32 %v2250, %v2104
        %v2363 = vadd.f32 %v2251, %v2106
        %v2364 = vadd.f32 %v2252, %v2108
        %v2365 = vadd.f32 %v2253, %v2110
        %v2366 = vadd.f32 %v2254, %v2114
        %v2367 = vadd.f32 %v2255, %v2116
        %v2368 = vadd.f32 %v2256, %v2118
        %v2369 = vadd.f32 %v2257, %v2120
        %v2370 = vadd.f32 %v2258, %v2124
        %v2371 = vadd.f32 %v2259, %v2126
        %v2372 = vadd.f32 %v2260, %v2128
        %v2373 = vadd.f32 %v2261, %v2130
        %v2374 = vadd.f32 %v2262, %v2134
        %v2375 = vadd.f32 %v2263, %v2136
        %v2376 = vadd.f32 %v2264, %v2138
        %v2377 = vadd.f32 %v2265, %v2140
        %v2378 = vadd.f32 %v2266, %v2144
        %v2379 = vadd.f32 %v2267, %v2146
        %v2380 = vadd.f32 %v2268, %v2148
        %v2381 = vadd.f32 %v2269, %v2150
        %v2382 = vadd.f32 %v2270, %v2154
        %v2383 = vadd.f32 %v2271, %v2156
        %v2384 = vadd.f32 %v2272, %v2158
        %v2385 = vadd.f32 %v2273, %v2160
        %v2386 = vld [vmem:[%s2] sm:$0x3]
        %v2388 = vlaneseq
        %v2389 = vshrl.u32 %v2388, 7
        %v2390 = vsub.s32 0, %v2389
        %v2391 = vrot.slane %v2386, %v2390
        %v2392 = vlaneseq
        %v2393 = vshrl.u32 %v2392, 7
        %v2394 = vsub.s32 1, %v2393
        %v2395 = vrot.slane %v2386, %v2394
        %v2398 = vmul.f32 %v2274, %v2391
        %v2399 = vmul.f32 %v2275, %v2395
        %v2400 = vmul.f32 %v2276, %v2391
        %v2401 = vmul.f32 %v2277, %v2395
        %v2402 = vmul.f32 %v2278, %v2391
        %v2403 = vmul.f32 %v2279, %v2395
        %v2404 = vmul.f32 %v2280, %v2391
        %v2405 = vmul.f32 %v2281, %v2395
        %v2406 = vmul.f32 %v2282, %v2391
        %v2407 = vmul.f32 %v2283, %v2395
        %v2408 = vmul.f32 %v2284, %v2391
        %v2409 = vmul.f32 %v2285, %v2395
        %v2410 = vmul.f32 %v2286, %v2391
        %v2411 = vmul.f32 %v2287, %v2395
        %v2412 = vmul.f32 %v2288, %v2391
        %v2413 = vmul.f32 %v2289, %v2395
        %v2414 = vmul.f32 %v2290, %v2391
        %v2415 = vmul.f32 %v2291, %v2395
        %v2416 = vmul.f32 %v2292, %v2391
        %v2417 = vmul.f32 %v2293, %v2395
        %v2418 = vmul.f32 %v2294, %v2391
        %v2419 = vmul.f32 %v2295, %v2395
        %v2420 = vmul.f32 %v2296, %v2391
        %v2421 = vmul.f32 %v2297, %v2395
        %v2422 = vmul.f32 %v2298, %v2391
        %v2423 = vmul.f32 %v2299, %v2395
        %v2424 = vmul.f32 %v2300, %v2391
        %v2425 = vmul.f32 %v2301, %v2395
        %v2426 = vmul.f32 %v2302, %v2391
        %v2427 = vmul.f32 %v2303, %v2395
        %v2428 = vmul.f32 %v2304, %v2391
        %v2429 = vmul.f32 %v2305, %v2395
        %v2430 = vmul.f32 %v2306, %v2391
        %v2431 = vmul.f32 %v2307, %v2395
        %v2432 = vmul.f32 %v2308, %v2391
        %v2433 = vmul.f32 %v2309, %v2395
        %v2434 = vmul.f32 %v2310, %v2391
        %v2435 = vmul.f32 %v2311, %v2395
        %v2436 = vmul.f32 %v2312, %v2391
        %v2437 = vmul.f32 %v2313, %v2395
        %v2438 = vmul.f32 %v2314, %v2391
        %v2439 = vmul.f32 %v2315, %v2395
        %v2440 = vmul.f32 %v2316, %v2391
        %v2441 = vmul.f32 %v2317, %v2395
        %v2442 = vmul.f32 %v2318, %v2391
        %v2443 = vmul.f32 %v2319, %v2395
        %v2444 = vmul.f32 %v2320, %v2391
        %v2445 = vmul.f32 %v2321, %v2395
        %v2446 = vmul.f32 %v2322, %v2391
        %v2447 = vmul.f32 %v2323, %v2395
        %v2448 = vmul.f32 %v2324, %v2391
        %v2449 = vmul.f32 %v2325, %v2395
        %v2450 = vmul.f32 %v2326, %v2391
        %v2451 = vmul.f32 %v2327, %v2395
        %v2452 = vmul.f32 %v2328, %v2391
        %v2453 = vmul.f32 %v2329, %v2395
        %v2454 = vmul.f32 %v2330, %v2391
        %v2455 = vmul.f32 %v2331, %v2395
        %v2456 = vmul.f32 %v2332, %v2391
        %v2457 = vmul.f32 %v2333, %v2395
        %v2458 = vmul.f32 %v2334, %v2391
        %v2459 = vmul.f32 %v2335, %v2395
        %v2460 = vmul.f32 %v2336, %v2391
        %v2461 = vmul.f32 %v2337, %v2395
        %v2462 = vmul.f32 %v2338, %v2391
        %v2463 = vmul.f32 %v2339, %v2395
        %v2464 = vmul.f32 %v2340, %v2391
        %v2465 = vmul.f32 %v2341, %v2395
        %v2466 = vmul.f32 %v2342, %v2391
        %v2467 = vmul.f32 %v2343, %v2395
        %v2468 = vmul.f32 %v2344, %v2391
        %v2469 = vmul.f32 %v2345, %v2395
        %v2470 = vmul.f32 %v2346, %v2391
        %v2471 = vmul.f32 %v2347, %v2395
        %v2472 = vmul.f32 %v2348, %v2391
        %v2473 = vmul.f32 %v2349, %v2395
        %v2474 = vmul.f32 %v2350, %v2391
        %v2475 = vmul.f32 %v2351, %v2395
        %v2476 = vmul.f32 %v2352, %v2391
        %v2477 = vmul.f32 %v2353, %v2395
        %v2478 = vmul.f32 %v2354, %v2391
        %v2479 = vmul.f32 %v2355, %v2395
        %v2480 = vmul.f32 %v2356, %v2391
        %v2481 = vmul.f32 %v2357, %v2395
        %v2482 = vmul.f32 %v2358, %v2391
        %v2483 = vmul.f32 %v2359, %v2395
        %v2484 = vmul.f32 %v2360, %v2391
        %v2485 = vmul.f32 %v2361, %v2395
        %v2486 = vmul.f32 %v2362, %v2391
        %v2487 = vmul.f32 %v2363, %v2395
        %v2488 = vmul.f32 %v2364, %v2391
        %v2489 = vmul.f32 %v2365, %v2395
        %v2490 = vmul.f32 %v2366, %v2391
        %v2491 = vmul.f32 %v2367, %v2395
        %v2492 = vmul.f32 %v2368, %v2391
        %v2493 = vmul.f32 %v2369, %v2395
        %v2494 = vmul.f32 %v2370, %v2391
        %v2495 = vmul.f32 %v2371, %v2395
        %v2496 = vmul.f32 %v2372, %v2391
        %v2497 = vmul.f32 %v2373, %v2395
        %v2498 = vmul.f32 %v2374, %v2391
        %v2499 = vmul.f32 %v2375, %v2395
        %v2500 = vmul.f32 %v2376, %v2391
        %v2501 = vmul.f32 %v2377, %v2395
        %v2502 = vmul.f32 %v2378, %v2391
        %v2503 = vmul.f32 %v2379, %v2395
        %v2504 = vmul.f32 %v2380, %v2391
        %v2505 = vmul.f32 %v2381, %v2395
        %v2506 = vmul.f32 %v2382, %v2391
        %v2507 = vmul.f32 %v2383, %v2395
        %v2508 = vmul.f32 %v2384, %v2391
        %v2509 = vmul.f32 %v2385, %v2395
        %s2510 = scalar_lea.vmem %s2, 2
        %v2511 = vld [vmem:[%s2510] sm:$0x3]
        %v2513 = vlaneseq
        %v2514 = vshrl.u32 %v2513, 7
        %v2515 = vsub.s32 0, %v2514
        %v2516 = vrot.slane %v2511, %v2515
        %v2517 = vlaneseq
        %v2518 = vshrl.u32 %v2517, 7
        %v2519 = vsub.s32 1, %v2518
        %v2520 = vrot.slane %v2511, %v2519
        %v2523 = vadd.f32 %v2398, %v2516
        %v2524 = vadd.f32 %v2399, %v2520
        %v2525 = vadd.f32 %v2400, %v2516
        %v2526 = vadd.f32 %v2401, %v2520
        %v2527 = vadd.f32 %v2402, %v2516
        %v2528 = vadd.f32 %v2403, %v2520
        %v2529 = vadd.f32 %v2404, %v2516
        %v2530 = vadd.f32 %v2405, %v2520
        %v2531 = vadd.f32 %v2406, %v2516
        %v2532 = vadd.f32 %v2407, %v2520
        %v2533 = vadd.f32 %v2408, %v2516
        %v2534 = vadd.f32 %v2409, %v2520
        %v2535 = vadd.f32 %v2410, %v2516
        %v2536 = vadd.f32 %v2411, %v2520
        %v2537 = vadd.f32 %v2412, %v2516
        %v2538 = vadd.f32 %v2413, %v2520
        %v2539 = vadd.f32 %v2414, %v2516
        %v2540 = vadd.f32 %v2415, %v2520
        %v2541 = vadd.f32 %v2416, %v2516
        %v2542 = vadd.f32 %v2417, %v2520
        %v2543 = vadd.f32 %v2418, %v2516
        %v2544 = vadd.f32 %v2419, %v2520
        %v2545 = vadd.f32 %v2420, %v2516
        %v2546 = vadd.f32 %v2421, %v2520
        %v2547 = vadd.f32 %v2422, %v2516
        %v2548 = vadd.f32 %v2423, %v2520
        %v2549 = vadd.f32 %v2424, %v2516
        %v2550 = vadd.f32 %v2425, %v2520
        %v2551 = vadd.f32 %v2426, %v2516
        %v2552 = vadd.f32 %v2427, %v2520
        %v2553 = vadd.f32 %v2428, %v2516
        %v2554 = vadd.f32 %v2429, %v2520
        %v2555 = vadd.f32 %v2430, %v2516
        %v2556 = vadd.f32 %v2431, %v2520
        %v2557 = vadd.f32 %v2432, %v2516
        %v2558 = vadd.f32 %v2433, %v2520
        %v2559 = vadd.f32 %v2434, %v2516
        %v2560 = vadd.f32 %v2435, %v2520
        %v2561 = vadd.f32 %v2436, %v2516
        %v2562 = vadd.f32 %v2437, %v2520
        %v2563 = vadd.f32 %v2438, %v2516
        %v2564 = vadd.f32 %v2439, %v2520
        %v2565 = vadd.f32 %v2440, %v2516
        %v2566 = vadd.f32 %v2441, %v2520
        %v2567 = vadd.f32 %v2442, %v2516
        %v2568 = vadd.f32 %v2443, %v2520
        %v2569 = vadd.f32 %v2444, %v2516
        %v2570 = vadd.f32 %v2445, %v2520
        %v2571 = vadd.f32 %v2446, %v2516
        %v2572 = vadd.f32 %v2447, %v2520
        %v2573 = vadd.f32 %v2448, %v2516
        %v2574 = vadd.f32 %v2449, %v2520
        %v2575 = vadd.f32 %v2450, %v2516
        %v2576 = vadd.f32 %v2451, %v2520
        %v2577 = vadd.f32 %v2452, %v2516
        %v2578 = vadd.f32 %v2453, %v2520
        %v2579 = vadd.f32 %v2454, %v2516
        %v2580 = vadd.f32 %v2455, %v2520
        %v2581 = vadd.f32 %v2456, %v2516
        %v2582 = vadd.f32 %v2457, %v2520
        %v2583 = vadd.f32 %v2458, %v2516
        %v2584 = vadd.f32 %v2459, %v2520
        %v2585 = vadd.f32 %v2460, %v2516
        %v2586 = vadd.f32 %v2461, %v2520
        %v2587 = vadd.f32 %v2462, %v2516
        %v2588 = vadd.f32 %v2463, %v2520
        %v2589 = vadd.f32 %v2464, %v2516
        %v2590 = vadd.f32 %v2465, %v2520
        %v2591 = vadd.f32 %v2466, %v2516
        %v2592 = vadd.f32 %v2467, %v2520
        %v2593 = vadd.f32 %v2468, %v2516
        %v2594 = vadd.f32 %v2469, %v2520
        %v2595 = vadd.f32 %v2470, %v2516
        %v2596 = vadd.f32 %v2471, %v2520
        %v2597 = vadd.f32 %v2472, %v2516
        %v2598 = vadd.f32 %v2473, %v2520
        %v2599 = vadd.f32 %v2474, %v2516
        %v2600 = vadd.f32 %v2475, %v2520
        %v2601 = vadd.f32 %v2476, %v2516
        %v2602 = vadd.f32 %v2477, %v2520
        %v2603 = vadd.f32 %v2478, %v2516
        %v2604 = vadd.f32 %v2479, %v2520
        %v2605 = vadd.f32 %v2480, %v2516
        %v2606 = vadd.f32 %v2481, %v2520
        %v2607 = vadd.f32 %v2482, %v2516
        %v2608 = vadd.f32 %v2483, %v2520
        %v2609 = vadd.f32 %v2484, %v2516
        %v2610 = vadd.f32 %v2485, %v2520
        %v2611 = vadd.f32 %v2486, %v2516
        %v2612 = vadd.f32 %v2487, %v2520
        %v2613 = vadd.f32 %v2488, %v2516
        %v2614 = vadd.f32 %v2489, %v2520
        %v2615 = vadd.f32 %v2490, %v2516
        %v2616 = vadd.f32 %v2491, %v2520
        %v2617 = vadd.f32 %v2492, %v2516
        %v2618 = vadd.f32 %v2493, %v2520
        %v2619 = vadd.f32 %v2494, %v2516
        %v2620 = vadd.f32 %v2495, %v2520
        %v2621 = vadd.f32 %v2496, %v2516
        %v2622 = vadd.f32 %v2497, %v2520
        %v2623 = vadd.f32 %v2498, %v2516
        %v2624 = vadd.f32 %v2499, %v2520
        %v2625 = vadd.f32 %v2500, %v2516
        %v2626 = vadd.f32 %v2501, %v2520
        %v2627 = vadd.f32 %v2502, %v2516
        %v2628 = vadd.f32 %v2503, %v2520
        %v2629 = vadd.f32 %v2504, %v2516
        %v2630 = vadd.f32 %v2505, %v2520
        %v2631 = vadd.f32 %v2506, %v2516
        %v2632 = vadd.f32 %v2507, %v2520
        %v2633 = vadd.f32 %v2508, %v2516
        %v2634 = vadd.f32 %v2509, %v2520
        %v2635 = vmax.f32 %v2523, 0.0
        %v2636 = vmax.f32 %v2524, 0.0
        %v2637 = vmax.f32 %v2525, 0.0
        %v2638 = vmax.f32 %v2526, 0.0
        %v2639 = vmax.f32 %v2527, 0.0
        %v2640 = vmax.f32 %v2528, 0.0
        %v2641 = vmax.f32 %v2529, 0.0
        %v2642 = vmax.f32 %v2530, 0.0
        %v2643 = vmax.f32 %v2531, 0.0
        %v2644 = vmax.f32 %v2532, 0.0
        %v2645 = vmax.f32 %v2533, 0.0
        %v2646 = vmax.f32 %v2534, 0.0
        %v2647 = vmax.f32 %v2535, 0.0
        %v2648 = vmax.f32 %v2536, 0.0
        %v2649 = vmax.f32 %v2537, 0.0
        %v2650 = vmax.f32 %v2538, 0.0
        %v2651 = vmax.f32 %v2539, 0.0
        %v2652 = vmax.f32 %v2540, 0.0
        %v2653 = vmax.f32 %v2541, 0.0
        %v2654 = vmax.f32 %v2542, 0.0
        %v2655 = vmax.f32 %v2543, 0.0
        %v2656 = vmax.f32 %v2544, 0.0
        %v2657 = vmax.f32 %v2545, 0.0
        %v2658 = vmax.f32 %v2546, 0.0
        %v2659 = vmax.f32 %v2547, 0.0
        %v2660 = vmax.f32 %v2548, 0.0
        %v2661 = vmax.f32 %v2549, 0.0
        %v2662 = vmax.f32 %v2550, 0.0
        %v2663 = vmax.f32 %v2551, 0.0
        %v2664 = vmax.f32 %v2552, 0.0
        %v2665 = vmax.f32 %v2553, 0.0
        %v2666 = vmax.f32 %v2554, 0.0
        %v2667 = vmax.f32 %v2555, 0.0
        %v2668 = vmax.f32 %v2556, 0.0
        %v2669 = vmax.f32 %v2557, 0.0
        %v2670 = vmax.f32 %v2558, 0.0
        %v2671 = vmax.f32 %v2559, 0.0
        %v2672 = vmax.f32 %v2560, 0.0
        %v2673 = vmax.f32 %v2561, 0.0
        %v2674 = vmax.f32 %v2562, 0.0
        %v2675 = vmax.f32 %v2563, 0.0
        %v2676 = vmax.f32 %v2564, 0.0
        %v2677 = vmax.f32 %v2565, 0.0
        %v2678 = vmax.f32 %v2566, 0.0
        %v2679 = vmax.f32 %v2567, 0.0
        %v2680 = vmax.f32 %v2568, 0.0
        %v2681 = vmax.f32 %v2569, 0.0
        %v2682 = vmax.f32 %v2570, 0.0
        %v2683 = vmax.f32 %v2571, 0.0
        %v2684 = vmax.f32 %v2572, 0.0
        %v2685 = vmax.f32 %v2573, 0.0
        %v2686 = vmax.f32 %v2574, 0.0
        %v2687 = vmax.f32 %v2575, 0.0
        %v2688 = vmax.f32 %v2576, 0.0
        %v2689 = vmax.f32 %v2577, 0.0
        %v2690 = vmax.f32 %v2578, 0.0
        %v2691 = vmax.f32 %v2579, 0.0
        %v2692 = vmax.f32 %v2580, 0.0
        %v2693 = vmax.f32 %v2581, 0.0
        %v2694 = vmax.f32 %v2582, 0.0
        %v2695 = vmax.f32 %v2583, 0.0
        %v2696 = vmax.f32 %v2584, 0.0
        %v2697 = vmax.f32 %v2585, 0.0
        %v2698 = vmax.f32 %v2586, 0.0
        %v2699 = vmax.f32 %v2587, 0.0
        %v2700 = vmax.f32 %v2588, 0.0
        %v2701 = vmax.f32 %v2589, 0.0
        %v2702 = vmax.f32 %v2590, 0.0
        %v2703 = vmax.f32 %v2591, 0.0
        %v2704 = vmax.f32 %v2592, 0.0
        %v2705 = vmax.f32 %v2593, 0.0
        %v2706 = vmax.f32 %v2594, 0.0
        %v2707 = vmax.f32 %v2595, 0.0
        %v2708 = vmax.f32 %v2596, 0.0
        %v2709 = vmax.f32 %v2597, 0.0
        %v2710 = vmax.f32 %v2598, 0.0
        %v2711 = vmax.f32 %v2599, 0.0
        %v2712 = vmax.f32 %v2600, 0.0
        %v2713 = vmax.f32 %v2601, 0.0
        %v2714 = vmax.f32 %v2602, 0.0
        %v2715 = vmax.f32 %v2603, 0.0
        %v2716 = vmax.f32 %v2604, 0.0
        %v2717 = vmax.f32 %v2605, 0.0
        %v2718 = vmax.f32 %v2606, 0.0
        %v2719 = vmax.f32 %v2607, 0.0
        %v2720 = vmax.f32 %v2608, 0.0
        %v2721 = vmax.f32 %v2609, 0.0
        %v2722 = vmax.f32 %v2610, 0.0
        %v2723 = vmax.f32 %v2611, 0.0
        %v2724 = vmax.f32 %v2612, 0.0
        %v2725 = vmax.f32 %v2613, 0.0
        %v2726 = vmax.f32 %v2614, 0.0
        %v2727 = vmax.f32 %v2615, 0.0
        %v2728 = vmax.f32 %v2616, 0.0
        %v2729 = vmax.f32 %v2617, 0.0
        %v2730 = vmax.f32 %v2618, 0.0
        %v2731 = vmax.f32 %v2619, 0.0
        %v2732 = vmax.f32 %v2620, 0.0
        %v2733 = vmax.f32 %v2621, 0.0
        %v2734 = vmax.f32 %v2622, 0.0
        %v2735 = vmax.f32 %v2623, 0.0
        %v2736 = vmax.f32 %v2624, 0.0
        %v2737 = vmax.f32 %v2625, 0.0
        %v2738 = vmax.f32 %v2626, 0.0
        %v2739 = vmax.f32 %v2627, 0.0
        %v2740 = vmax.f32 %v2628, 0.0
        %v2741 = vmax.f32 %v2629, 0.0
        %v2742 = vmax.f32 %v2630, 0.0
        %v2743 = vmax.f32 %v2631, 0.0
        %v2744 = vmax.f32 %v2632, 0.0
        %v2745 = vmax.f32 %v2633, 0.0
        %v2746 = vmax.f32 %v2634, 0.0
        %v2747 = vmax.f32 %v2635, %v2639
        %v2748 = vmax.f32 %v2636, %v2640
        %v2749 = vmax.f32 %v2637, %v2641
        %v2750 = vmax.f32 %v2638, %v2642
        %v2751 = vmax.f32 %v2643, %v2647
        %v2752 = vmax.f32 %v2644, %v2648
        %v2753 = vmax.f32 %v2645, %v2649
        %v2754 = vmax.f32 %v2646, %v2650
        %v2755 = vmax.f32 %v2651, %v2655
        %v2756 = vmax.f32 %v2652, %v2656
        %v2757 = vmax.f32 %v2653, %v2657
        %v2758 = vmax.f32 %v2654, %v2658
        %v2759 = vmax.f32 %v2659, %v2663
        %v2760 = vmax.f32 %v2660, %v2664
        %v2761 = vmax.f32 %v2661, %v2665
        %v2762 = vmax.f32 %v2662, %v2666
        %v2763 = vmax.f32 %v2667, %v2671
        %v2764 = vmax.f32 %v2668, %v2672
        %v2765 = vmax.f32 %v2669, %v2673
        %v2766 = vmax.f32 %v2670, %v2674
        %v2767 = vmax.f32 %v2675, %v2679
        %v2768 = vmax.f32 %v2676, %v2680
        %v2769 = vmax.f32 %v2677, %v2681
        %v2770 = vmax.f32 %v2678, %v2682
        %v2771 = vmax.f32 %v2683, %v2687
        %v2772 = vmax.f32 %v2684, %v2688
        %v2773 = vmax.f32 %v2685, %v2689
        %v2774 = vmax.f32 %v2686, %v2690
        %v2775 = vmax.f32 %v2691, %v2695
        %v2776 = vmax.f32 %v2692, %v2696
        %v2777 = vmax.f32 %v2693, %v2697
        %v2778 = vmax.f32 %v2694, %v2698
        %v2779 = vmax.f32 %v2699, %v2703
        %v2780 = vmax.f32 %v2700, %v2704
        %v2781 = vmax.f32 %v2701, %v2705
        %v2782 = vmax.f32 %v2702, %v2706
        %v2783 = vmax.f32 %v2707, %v2711
        %v2784 = vmax.f32 %v2708, %v2712
        %v2785 = vmax.f32 %v2709, %v2713
        %v2786 = vmax.f32 %v2710, %v2714
        %v2787 = vmax.f32 %v2715, %v2719
        %v2788 = vmax.f32 %v2716, %v2720
        %v2789 = vmax.f32 %v2717, %v2721
        %v2790 = vmax.f32 %v2718, %v2722
        %v2791 = vmax.f32 %v2723, %v2727
        %v2792 = vmax.f32 %v2724, %v2728
        %v2793 = vmax.f32 %v2725, %v2729
        %v2794 = vmax.f32 %v2726, %v2730
        %v2795 = vmax.f32 %v2731, %v2735
        %v2796 = vmax.f32 %v2732, %v2736
        %v2797 = vmax.f32 %v2733, %v2737
        %v2798 = vmax.f32 %v2734, %v2738
        %v2799 = vmax.f32 %v2739, %v2743
        %v2800 = vmax.f32 %v2740, %v2744
        %v2801 = vmax.f32 %v2741, %v2745
        %v2802 = vmax.f32 %v2742, %v2746
        %v2803 = vpack.c.bf16 %v2749, %v2747
        %v2804 = vpack.c.bf16 %v2750, %v2748
        %v2805 = vpack.c.bf16 %v2753, %v2751
        %v2806 = vpack.c.bf16 %v2754, %v2752
        %v2807 = vpack.c.bf16 %v2757, %v2755
        %v2808 = vpack.c.bf16 %v2758, %v2756
        %v2809 = vpack.c.bf16 %v2761, %v2759
        %v2810 = vpack.c.bf16 %v2762, %v2760
        %v2811 = vpack.c.bf16 %v2765, %v2763
        %v2812 = vpack.c.bf16 %v2766, %v2764
        %v2813 = vpack.c.bf16 %v2769, %v2767
        %v2814 = vpack.c.bf16 %v2770, %v2768
        %v2815 = vpack.c.bf16 %v2773, %v2771
        %v2816 = vpack.c.bf16 %v2774, %v2772
        %v2817 = vpack.c.bf16 %v2777, %v2775
        %v2818 = vpack.c.bf16 %v2778, %v2776
        %v2819 = vpack.c.bf16 %v2781, %v2779
        %v2820 = vpack.c.bf16 %v2782, %v2780
        %v2821 = vpack.c.bf16 %v2785, %v2783
        %v2822 = vpack.c.bf16 %v2786, %v2784
        %v2823 = vpack.c.bf16 %v2789, %v2787
        %v2824 = vpack.c.bf16 %v2790, %v2788
        %v2825 = vpack.c.bf16 %v2793, %v2791
        %v2826 = vpack.c.bf16 %v2794, %v2792
        %v2827 = vpack.c.bf16 %v2797, %v2795
        %v2828 = vpack.c.bf16 %v2798, %v2796
        %v2829 = vpack.c.bf16 %v2801, %v2799
        %v2830 = vpack.c.bf16 %v2802, %v2800
        %v2831 = vld [vmem:[%s3] sm:$0xf]
        %v2832 = vld [vmem:[%s3 + $0x4] sm:$0xf]
        %v2833 = vld [vmem:[%s3 + $0x8] sm:$0xf]
        %v2834 = vld [vmem:[%s3 + $0xc] sm:$0xf]
        %v2835 = vld [vmem:[%s3 + $0x10] sm:$0xf]
        %v2836 = vld [vmem:[%s3 + $0x14] sm:$0xf]
        %v2837 = vld [vmem:[%s3 + $0x18] sm:$0xf]
        %v2838 = vld [vmem:[%s3 + $0x1c] sm:$0xf]
        %v2839 = vld [vmem:[%s3 + $0x20] sm:$0xf]
        %v2840 = vld [vmem:[%s3 + $0x24] sm:$0xf]
        %v2841 = vld [vmem:[%s3 + $0x28] sm:$0xf]
        %v2842 = vld [vmem:[%s3 + $0x2c] sm:$0xf]
        %v2843 = vld [vmem:[%s3 + $0x30] sm:$0xf]
        %v2844 = vld [vmem:[%s3 + $0x34] sm:$0xf]
        %v2845 = vld [vmem:[%s3 + $0x38] sm:$0xf]
        %v2846 = vld [vmem:[%s3 + $0x3c] sm:$0xf]
        %v2847 = vld [vmem:[%s3 + $0x40] sm:$0xf]
        %v2848 = vld [vmem:[%s3 + $0x44] sm:$0xf]
        %v2849 = vld [vmem:[%s3 + $0x48] sm:$0xf]
        %v2850 = vld [vmem:[%s3 + $0x4c] sm:$0xf]
        %v2851 = vld [vmem:[%s3 + $0x50] sm:$0xf]
        %v2852 = vld [vmem:[%s3 + $0x54] sm:$0xf]
        %v2853 = vld [vmem:[%s3 + $0x58] sm:$0xf]
        %v2854 = vld [vmem:[%s3 + $0x5c] sm:$0xf]
        %v2855 = vld [vmem:[%s3 + $0x60] sm:$0xf]
        %v2856 = vld [vmem:[%s3 + $0x64] sm:$0xf]
        %v2857 = vld [vmem:[%s3 + $0x68] sm:$0xf]
        %v2858 = vld [vmem:[%s3 + $0x6c] sm:$0xf]
        %v2887 = vunpack.c.l.b16 %v2831
        %v2888 = vunpack.c.l.b16 %v2832
        %v2889 = vunpack.c.l.b16 %v2833
        %v2890 = vunpack.c.l.b16 %v2834
        %v2891 = vunpack.c.l.b16 %v2835
        %v2892 = vunpack.c.l.b16 %v2836
        %v2893 = vunpack.c.l.b16 %v2837
        %v2894 = vunpack.c.l.b16 %v2838
        %v2895 = vunpack.c.l.b16 %v2839
        %v2896 = vunpack.c.l.b16 %v2840
        %v2897 = vunpack.c.l.b16 %v2841
        %v2898 = vunpack.c.l.b16 %v2842
        %v2899 = vunpack.c.l.b16 %v2843
        %v2900 = vunpack.c.l.b16 %v2844
        %v2901 = vunpack.c.l.b16 %v2845
        %v2902 = vunpack.c.l.b16 %v2846
        %v2903 = vunpack.c.l.b16 %v2847
        %v2904 = vunpack.c.l.b16 %v2848
        %v2905 = vunpack.c.l.b16 %v2849
        %v2906 = vunpack.c.l.b16 %v2850
        %v2907 = vunpack.c.l.b16 %v2851
        %v2908 = vunpack.c.l.b16 %v2852
        %v2909 = vunpack.c.l.b16 %v2853
        %v2910 = vunpack.c.l.b16 %v2854
        %v2911 = vunpack.c.l.b16 %v2855
        %v2912 = vunpack.c.l.b16 %v2856
        %v2913 = vunpack.c.l.b16 %v2857
        %v2914 = vunpack.c.l.b16 %v2858
        %v2915 = vpack.c.b16 %v2888, %v2887
        %v2916 = vpack.c.b16 %v2890, %v2889
        %v2917 = vpack.c.b16 %v2892, %v2891
        %v2918 = vpack.c.b16 %v2894, %v2893
        %v2919 = vpack.c.b16 %v2896, %v2895
        %v2920 = vpack.c.b16 %v2898, %v2897
        %v2921 = vpack.c.b16 %v2900, %v2899
        %v2922 = vpack.c.b16 %v2902, %v2901
        %v2923 = vpack.c.b16 %v2904, %v2903
        %v2924 = vpack.c.b16 %v2906, %v2905
        %v2925 = vpack.c.b16 %v2908, %v2907
        %v2926 = vpack.c.b16 %v2910, %v2909
        %v2927 = vpack.c.b16 %v2912, %v2911
        %v2928 = vpack.c.b16 %v2914, %v2913
        %vm2943 = vcmask 785408
        %v2945 = vsel %vm2943, %v2804, 0
        %v2948 = vsel %vm2943, %v2806, 0
        %v2951 = vsel %vm2943, %v2808, 0
        %v2954 = vsel %vm2943, %v2810, 0
        %v2957 = vsel %vm2943, %v2812, 0
        %v2960 = vsel %vm2943, %v2814, 0
        %v2963 = vsel %vm2943, %v2816, 0
        %v2966 = vsel %vm2943, %v2818, 0
        %v2969 = vsel %vm2943, %v2820, 0
        %v2972 = vsel %vm2943, %v2822, 0
        %v2975 = vsel %vm2943, %v2824, 0
        %v2978 = vsel %vm2943, %v2826, 0
        %v2981 = vsel %vm2943, %v2828, 0
        %v2984 = vsel %vm2943, %v2830, 0
        %2986 = vmatprep.subr.bf16.mxu0 0
        %2987 = vmatpush1.bf16.msra.mxu0 %v2922
        %2988 = vmatprep.subr.bf16.mxu0 0
        %2989 = vmatpush1.bf16.msra.mxu0 %v2921
        %2990 = vmatprep.subr.bf16.mxu0 0
        %2991 = vmatpush1.bf16.msra.mxu0 %v2920
        %2992 = vmatprep.subr.bf16.mxu0 0
        %2993 = vmatpush1.bf16.msra.mxu0 %v2919
        %2994 = vmatprep.subr.bf16.mxu0 0
        %2995 = vmatpush1.bf16.msra.mxu0 %v2918
        %2996 = vmatprep.subr.bf16.mxu0 0
        %2997 = vmatpush1.bf16.msra.mxu0 %v2917
        %2998 = vmatprep.subr.bf16.mxu0 0
        %2999 = vmatpush1.bf16.msra.mxu0 %v2916
        %3000 = vmatprep.subr.bf16.mxu0 0
        %3001 = vmatpush1.bf16.msra.mxu0 %v2915
        %3002 = vmatprep.subr.bf16.mxu0 0
        %3003 = vmatpush2.bf16.msra.mxu0 0
        %3004 = vmatprep.subr.bf16.mxu0 0
        %3005 = vmatpush2.bf16.msra.mxu0 0
        %3006 = vmatprep.subr.bf16.mxu0 0
        %3007 = vmatpush2.bf16.msra.mxu0 %v2928
        %3008 = vmatprep.subr.bf16.mxu0 0
        %3009 = vmatpush2.bf16.msra.mxu0 %v2927
        %3010 = vmatprep.subr.bf16.mxu0 0
        %3011 = vmatpush2.bf16.msra.mxu0 %v2926
        %3012 = vmatprep.subr.bf16.mxu0 0
        %3013 = vmatpush2.bf16.msra.mxu0 %v2925
        %3014 = vmatprep.subr.bf16.mxu0 0
        %3015 = vmatpush2.bf16.msra.mxu0 %v2924
        %3016 = vmatprep.subr.bf16.mxu0 0
        %3017 = vmatpush2.bf16.msra.mxu0 %v2923
        %3018 = vmatprep.mubr.bf16.mxu0 %v2945
        %3019 = vmatmul.mubr.bf16.gmra.mxu0 %v2803
        %v3020 = vpop.f32.mrf.mxu0
        %v3021 = vadd.f32 0.0, %v3020
        %v3022 = vpop.f32.mrf.mxu0
        %v3023 = vpop.f32.mrf.mxu0
        %v3024 = vadd.f32 0.0, %v3023
        %v3025 = vpop.f32.mrf.mxu0
        %3026 = vmatprep.mubr.bf16.mxu0 %v2948
        %3027 = vmatmul.mubr.bf16.gmra.mxu0 %v2805
        %v3028 = vpop.f32.mrf.mxu0
        %v3029 = vadd.f32 0.0, %v3028
        %v3030 = vpop.f32.mrf.mxu0
        %v3031 = vpop.f32.mrf.mxu0
        %v3032 = vadd.f32 0.0, %v3031
        %v3033 = vpop.f32.mrf.mxu0
        %3034 = vmatprep.mubr.bf16.mxu0 %v2951
        %3035 = vmatmul.mubr.bf16.gmra.mxu0 %v2807
        %v3036 = vpop.f32.mrf.mxu0
        %v3037 = vadd.f32 0.0, %v3036
        %v3038 = vpop.f32.mrf.mxu0
        %v3039 = vpop.f32.mrf.mxu0
        %v3040 = vadd.f32 0.0, %v3039
        %v3041 = vpop.f32.mrf.mxu0
        %3042 = vmatprep.mubr.bf16.mxu0 %v2954
        %3043 = vmatmul.mubr.bf16.gmra.mxu0 %v2809
        %v3044 = vpop.f32.mrf.mxu0
        %v3045 = vadd.f32 0.0, %v3044
        %v3046 = vpop.f32.mrf.mxu0
        %v3047 = vpop.f32.mrf.mxu0
        %v3048 = vadd.f32 0.0, %v3047
        %v3049 = vpop.f32.mrf.mxu0
        %3050 = vmatprep.mubr.bf16.mxu0 %v2957
        %3051 = vmatmul.mubr.bf16.gmra.mxu0 %v2811
        %v3052 = vpop.f32.mrf.mxu0
        %v3053 = vadd.f32 0.0, %v3052
        %v3054 = vpop.f32.mrf.mxu0
        %v3055 = vpop.f32.mrf.mxu0
        %v3056 = vadd.f32 0.0, %v3055
        %v3057 = vpop.f32.mrf.mxu0
        %3058 = vmatprep.mubr.bf16.mxu0 %v2960
        %3059 = vmatmul.mubr.bf16.gmra.mxu0 %v2813
        %v3060 = vpop.f32.mrf.mxu0
        %v3061 = vadd.f32 0.0, %v3060
        %v3062 = vpop.f32.mrf.mxu0
        %v3063 = vpop.f32.mrf.mxu0
        %v3064 = vadd.f32 0.0, %v3063
        %v3065 = vpop.f32.mrf.mxu0
        %3066 = vmatprep.mubr.bf16.mxu0 %v2963
        %3067 = vmatmul.mubr.bf16.gmra.mxu0 %v2815
        %v3068 = vpop.f32.mrf.mxu0
        %v3069 = vadd.f32 0.0, %v3068
        %v3070 = vpop.f32.mrf.mxu0
        %v3071 = vpop.f32.mrf.mxu0
        %v3072 = vadd.f32 0.0, %v3071
        %v3073 = vpop.f32.mrf.mxu0
        %3074 = vmatprep.mubr.bf16.mxu0 %v2966
        %3075 = vmatmul.mubr.bf16.gmra.mxu0 %v2817
        %v3076 = vpop.f32.mrf.mxu0
        %v3077 = vadd.f32 0.0, %v3076
        %v3078 = vpop.f32.mrf.mxu0
        %v3079 = vpop.f32.mrf.mxu0
        %v3080 = vadd.f32 0.0, %v3079
        %v3081 = vpop.f32.mrf.mxu0
        %3082 = vmatprep.mubr.bf16.mxu0 %v2969
        %3083 = vmatmul.mubr.bf16.gmra.mxu0 %v2819
        %v3084 = vpop.f32.mrf.mxu0
        %v3085 = vadd.f32 0.0, %v3084
        %v3086 = vpop.f32.mrf.mxu0
        %v3087 = vpop.f32.mrf.mxu0
        %v3088 = vadd.f32 0.0, %v3087
        %v3089 = vpop.f32.mrf.mxu0
        %3090 = vmatprep.mubr.bf16.mxu0 %v2972
        %3091 = vmatmul.mubr.bf16.gmra.mxu0 %v2821
        %v3092 = vpop.f32.mrf.mxu0
        %v3093 = vadd.f32 0.0, %v3092
        %v3094 = vpop.f32.mrf.mxu0
        %v3095 = vpop.f32.mrf.mxu0
        %v3096 = vadd.f32 0.0, %v3095
        %v3097 = vpop.f32.mrf.mxu0
        %3098 = vmatprep.mubr.bf16.mxu0 %v2975
        %3099 = vmatmul.mubr.bf16.gmra.mxu0 %v2823
        %v3100 = vpop.f32.mrf.mxu0
        %v3101 = vadd.f32 0.0, %v3100
        %v3102 = vpop.f32.mrf.mxu0
        %v3103 = vpop.f32.mrf.mxu0
        %v3104 = vadd.f32 0.0, %v3103
        %v3105 = vpop.f32.mrf.mxu0
        %3106 = vmatprep.mubr.bf16.mxu0 %v2978
        %3107 = vmatmul.mubr.bf16.gmra.mxu0 %v2825
        %v3108 = vpop.f32.mrf.mxu0
        %v3109 = vadd.f32 0.0, %v3108
        %v3110 = vpop.f32.mrf.mxu0
        %v3111 = vpop.f32.mrf.mxu0
        %v3112 = vadd.f32 0.0, %v3111
        %v3113 = vpop.f32.mrf.mxu0
        %3114 = vmatprep.mubr.bf16.mxu0 %v2981
        %3115 = vmatmul.mubr.bf16.gmra.mxu0 %v2827
        %v3116 = vpop.f32.mrf.mxu0
        %v3117 = vadd.f32 0.0, %v3116
        %v3118 = vpop.f32.mrf.mxu0
        %v3119 = vpop.f32.mrf.mxu0
        %v3120 = vadd.f32 0.0, %v3119
        %v3121 = vpop.f32.mrf.mxu0
        %3122 = vmatprep.mubr.bf16.mxu0 %v2984
        %3123 = vmatmul.mubr.bf16.gmra.mxu0 %v2829
        %v3124 = vpop.f32.mrf.mxu0
        %v3125 = vadd.f32 0.0, %v3124
        %v3126 = vpop.f32.mrf.mxu0
        %v3127 = vpop.f32.mrf.mxu0
        %v3128 = vadd.f32 0.0, %v3127
        %v3129 = vpop.f32.mrf.mxu0
        %3130 = vdwg.mxu0
        %v3131 = vld [vmem:[%s4] sm:$0xf]
        %v3132 = vld [vmem:[%s4 + $0x4] sm:$0xf]
        %v3133 = vld [vmem:[%s4 + $0x8] sm:$0xf]
        %v3134 = vld [vmem:[%s4 + $0xc] sm:$0xf]
        %v3135 = vld [vmem:[%s4 + $0x10] sm:$0xf]
        %v3136 = vld [vmem:[%s4 + $0x14] sm:$0xf]
        %v3137 = vld [vmem:[%s4 + $0x18] sm:$0xf]
        %v3138 = vld [vmem:[%s4 + $0x1c] sm:$0xf]
        %v3139 = vld [vmem:[%s4 + $0x20] sm:$0xf]
        %v3140 = vld [vmem:[%s4 + $0x24] sm:$0xf]
        %v3141 = vld [vmem:[%s4 + $0x28] sm:$0xf]
        %v3142 = vld [vmem:[%s4 + $0x2c] sm:$0xf]
        %v3143 = vld [vmem:[%s4 + $0x30] sm:$0xf]
        %v3144 = vld [vmem:[%s4 + $0x34] sm:$0xf]
        %v3145 = vld [vmem:[%s4 + $0x38] sm:$0xf]
        %v3146 = vld [vmem:[%s4 + $0x3c] sm:$0xf]
        %v3147 = vld [vmem:[%s4 + $0x40] sm:$0xf]
        %v3148 = vld [vmem:[%s4 + $0x44] sm:$0xf]
        %v3149 = vld [vmem:[%s4 + $0x48] sm:$0xf]
        %v3150 = vld [vmem:[%s4 + $0x4c] sm:$0xf]
        %v3151 = vld [vmem:[%s4 + $0x50] sm:$0xf]
        %v3152 = vld [vmem:[%s4 + $0x54] sm:$0xf]
        %v3153 = vld [vmem:[%s4 + $0x58] sm:$0xf]
        %v3154 = vld [vmem:[%s4 + $0x5c] sm:$0xf]
        %v3155 = vld [vmem:[%s4 + $0x60] sm:$0xf]
        %v3156 = vld [vmem:[%s4 + $0x64] sm:$0xf]
        %v3157 = vld [vmem:[%s4 + $0x68] sm:$0xf]
        %v3158 = vld [vmem:[%s4 + $0x6c] sm:$0xf]
        %v3187 = vunpack.c.l.b16 %v3131
        %v3188 = vunpack.c.l.b16 %v3132
        %v3189 = vunpack.c.l.b16 %v3133
        %v3190 = vunpack.c.l.b16 %v3134
        %v3191 = vunpack.c.l.b16 %v3135
        %v3192 = vunpack.c.l.b16 %v3136
        %v3193 = vunpack.c.l.b16 %v3137
        %v3194 = vunpack.c.l.b16 %v3138
        %v3195 = vunpack.c.l.b16 %v3139
        %v3196 = vunpack.c.l.b16 %v3140
        %v3197 = vunpack.c.l.b16 %v3141
        %v3198 = vunpack.c.l.b16 %v3142
        %v3199 = vunpack.c.l.b16 %v3143
        %v3200 = vunpack.c.l.b16 %v3144
        %v3201 = vunpack.c.l.b16 %v3145
        %v3202 = vunpack.c.l.b16 %v3146
        %v3203 = vunpack.c.l.b16 %v3147
        %v3204 = vunpack.c.l.b16 %v3148
        %v3205 = vunpack.c.l.b16 %v3149
        %v3206 = vunpack.c.l.b16 %v3150
        %v3207 = vunpack.c.l.b16 %v3151
        %v3208 = vunpack.c.l.b16 %v3152
        %v3209 = vunpack.c.l.b16 %v3153
        %v3210 = vunpack.c.l.b16 %v3154
        %v3211 = vunpack.c.l.b16 %v3155
        %v3212 = vunpack.c.l.b16 %v3156
        %v3213 = vunpack.c.l.b16 %v3157
        %v3214 = vunpack.c.l.b16 %v3158
        %v3215 = vpack.c.b16 %v3188, %v3187
        %v3216 = vpack.c.b16 %v3190, %v3189
        %v3217 = vpack.c.b16 %v3192, %v3191
        %v3218 = vpack.c.b16 %v3194, %v3193
        %v3219 = vpack.c.b16 %v3196, %v3195
        %v3220 = vpack.c.b16 %v3198, %v3197
        %v3221 = vpack.c.b16 %v3200, %v3199
        %v3222 = vpack.c.b16 %v3202, %v3201
        %v3223 = vpack.c.b16 %v3204, %v3203
        %v3224 = vpack.c.b16 %v3206, %v3205
        %v3225 = vpack.c.b16 %v3208, %v3207
        %v3226 = vpack.c.b16 %v3210, %v3209
        %v3227 = vpack.c.b16 %v3212, %v3211
        %v3228 = vpack.c.b16 %v3214, %v3213
        %3243 = vmatprep.subr.bf16.mxu0 0
        %3244 = vmatpush1.bf16.msra.mxu0 %v3222
        %3245 = vmatprep.subr.bf16.mxu0 0
        %3246 = vmatpush1.bf16.msra.mxu0 %v3221
        %3247 = vmatprep.subr.bf16.mxu0 0
        %3248 = vmatpush1.bf16.msra.mxu0 %v3220
        %3249 = vmatprep.subr.bf16.mxu0 0
        %3250 = vmatpush1.bf16.msra.mxu0 %v3219
        %3251 = vmatprep.subr.bf16.mxu0 0
        %3252 = vmatpush1.bf16.msra.mxu0 %v3218
        %3253 = vmatprep.subr.bf16.mxu0 0
        %3254 = vmatpush1.bf16.msra.mxu0 %v3217
        %3255 = vmatprep.subr.bf16.mxu0 0
        %3256 = vmatpush1.bf16.msra.mxu0 %v3216
        %3257 = vmatprep.subr.bf16.mxu0 0
        %3258 = vmatpush1.bf16.msra.mxu0 %v3215
        %3259 = vmatprep.subr.bf16.mxu0 0
        %3260 = vmatpush2.bf16.msra.mxu0 0
        %3261 = vmatprep.subr.bf16.mxu0 0
        %3262 = vmatpush2.bf16.msra.mxu0 0
        %3263 = vmatprep.subr.bf16.mxu0 0
        %3264 = vmatpush2.bf16.msra.mxu0 %v3228
        %3265 = vmatprep.subr.bf16.mxu0 0
        %3266 = vmatpush2.bf16.msra.mxu0 %v3227
        %3267 = vmatprep.subr.bf16.mxu0 0
        %3268 = vmatpush2.bf16.msra.mxu0 %v3226
        %3269 = vmatprep.subr.bf16.mxu0 0
        %3270 = vmatpush2.bf16.msra.mxu0 %v3225
        %3271 = vmatprep.subr.bf16.mxu0 0
        %3272 = vmatpush2.bf16.msra.mxu0 %v3224
        %3273 = vmatprep.subr.bf16.mxu0 0
        %3274 = vmatpush2.bf16.msra.mxu0 %v3223
        %3275 = vmatprep.mubr.bf16.mxu0 %v2945
        %3276 = vmatmul.mubr.bf16.gmra.mxu0 %v2803
        %v3277 = vpop.f32.mrf.mxu0
        %v3278 = vadd.f32 0.0, %v3277
        %v3279 = vpop.f32.mrf.mxu0
        %v3280 = vpop.f32.mrf.mxu0
        %v3281 = vadd.f32 0.0, %v3280
        %v3282 = vpop.f32.mrf.mxu0
        %3283 = vmatprep.mubr.bf16.mxu0 %v2948
        %3284 = vmatmul.mubr.bf16.gmra.mxu0 %v2805
        %v3285 = vpop.f32.mrf.mxu0
        %v3286 = vadd.f32 0.0, %v3285
        %v3287 = vpop.f32.mrf.mxu0
        %v3288 = vpop.f32.mrf.mxu0
        %v3289 = vadd.f32 0.0, %v3288
        %v3290 = vpop.f32.mrf.mxu0
        %3291 = vmatprep.mubr.bf16.mxu0 %v2951
        %3292 = vmatmul.mubr.bf16.gmra.mxu0 %v2807
        %v3293 = vpop.f32.mrf.mxu0
        %v3294 = vadd.f32 0.0, %v3293
        %v3295 = vpop.f32.mrf.mxu0
        %v3296 = vpop.f32.mrf.mxu0
        %v3297 = vadd.f32 0.0, %v3296
        %v3298 = vpop.f32.mrf.mxu0
        %3299 = vmatprep.mubr.bf16.mxu0 %v2954
        %3300 = vmatmul.mubr.bf16.gmra.mxu0 %v2809
        %v3301 = vpop.f32.mrf.mxu0
        %v3302 = vadd.f32 0.0, %v3301
        %v3303 = vpop.f32.mrf.mxu0
        %v3304 = vpop.f32.mrf.mxu0
        %v3305 = vadd.f32 0.0, %v3304
        %v3306 = vpop.f32.mrf.mxu0
        %3307 = vmatprep.mubr.bf16.mxu0 %v2957
        %3308 = vmatmul.mubr.bf16.gmra.mxu0 %v2811
        %v3309 = vpop.f32.mrf.mxu0
        %v3310 = vadd.f32 0.0, %v3309
        %v3311 = vpop.f32.mrf.mxu0
        %v3312 = vpop.f32.mrf.mxu0
        %v3313 = vadd.f32 0.0, %v3312
        %v3314 = vpop.f32.mrf.mxu0
        %3315 = vmatprep.mubr.bf16.mxu0 %v2960
        %3316 = vmatmul.mubr.bf16.gmra.mxu0 %v2813
        %v3317 = vpop.f32.mrf.mxu0
        %v3318 = vadd.f32 0.0, %v3317
        %v3319 = vpop.f32.mrf.mxu0
        %v3320 = vpop.f32.mrf.mxu0
        %v3321 = vadd.f32 0.0, %v3320
        %v3322 = vpop.f32.mrf.mxu0
        %3323 = vmatprep.mubr.bf16.mxu0 %v2963
        %3324 = vmatmul.mubr.bf16.gmra.mxu0 %v2815
        %v3325 = vpop.f32.mrf.mxu0
        %v3326 = vadd.f32 0.0, %v3325
        %v3327 = vpop.f32.mrf.mxu0
        %v3328 = vpop.f32.mrf.mxu0
        %v3329 = vadd.f32 0.0, %v3328
        %v3330 = vpop.f32.mrf.mxu0
        %3331 = vmatprep.mubr.bf16.mxu0 %v2966
        %3332 = vmatmul.mubr.bf16.gmra.mxu0 %v2817
        %v3333 = vpop.f32.mrf.mxu0
        %v3334 = vadd.f32 0.0, %v3333
        %v3335 = vpop.f32.mrf.mxu0
        %v3336 = vpop.f32.mrf.mxu0
        %v3337 = vadd.f32 0.0, %v3336
        %v3338 = vpop.f32.mrf.mxu0
        %3339 = vmatprep.mubr.bf16.mxu0 %v2969
        %3340 = vmatmul.mubr.bf16.gmra.mxu0 %v2819
        %v3341 = vpop.f32.mrf.mxu0
        %v3342 = vadd.f32 0.0, %v3341
        %v3343 = vpop.f32.mrf.mxu0
        %v3344 = vpop.f32.mrf.mxu0
        %v3345 = vadd.f32 0.0, %v3344
        %v3346 = vpop.f32.mrf.mxu0
        %3347 = vmatprep.mubr.bf16.mxu0 %v2972
        %3348 = vmatmul.mubr.bf16.gmra.mxu0 %v2821
        %v3349 = vpop.f32.mrf.mxu0
        %v3350 = vadd.f32 0.0, %v3349
        %v3351 = vpop.f32.mrf.mxu0
        %v3352 = vpop.f32.mrf.mxu0
        %v3353 = vadd.f32 0.0, %v3352
        %v3354 = vpop.f32.mrf.mxu0
        %3355 = vmatprep.mubr.bf16.mxu0 %v2975
        %3356 = vmatmul.mubr.bf16.gmra.mxu0 %v2823
        %v3357 = vpop.f32.mrf.mxu0
        %v3358 = vadd.f32 0.0, %v3357
        %v3359 = vpop.f32.mrf.mxu0
        %v3360 = vpop.f32.mrf.mxu0
        %v3361 = vadd.f32 0.0, %v3360
        %v3362 = vpop.f32.mrf.mxu0
        %3363 = vmatprep.mubr.bf16.mxu0 %v2978
        %3364 = vmatmul.mubr.bf16.gmra.mxu0 %v2825
        %v3365 = vpop.f32.mrf.mxu0
        %v3366 = vadd.f32 0.0, %v3365
        %v3367 = vpop.f32.mrf.mxu0
        %v3368 = vpop.f32.mrf.mxu0
        %v3369 = vadd.f32 0.0, %v3368
        %v3370 = vpop.f32.mrf.mxu0
        %3371 = vmatprep.mubr.bf16.mxu0 %v2981
        %3372 = vmatmul.mubr.bf16.gmra.mxu0 %v2827
        %v3373 = vpop.f32.mrf.mxu0
        %v3374 = vadd.f32 0.0, %v3373
        %v3375 = vpop.f32.mrf.mxu0
        %v3376 = vpop.f32.mrf.mxu0
        %v3377 = vadd.f32 0.0, %v3376
        %v3378 = vpop.f32.mrf.mxu0
        %3379 = vmatprep.mubr.bf16.mxu0 %v2984
        %3380 = vmatmul.mubr.bf16.gmra.mxu0 %v2829
        %v3381 = vpop.f32.mrf.mxu0
        %v3382 = vadd.f32 0.0, %v3381
        %v3383 = vpop.f32.mrf.mxu0
        %v3384 = vpop.f32.mrf.mxu0
        %v3385 = vadd.f32 0.0, %v3384
        %v3386 = vpop.f32.mrf.mxu0
        %3387 = vdwg.mxu0
        %v3388 = vmax.f32 %v3021, %v3278
        %v3389 = vmax.f32 %v3024, %v3281
        %v3390 = vmax.f32 %v3029, %v3286
        %v3391 = vmax.f32 %v3032, %v3289
        %v3392 = vmax.f32 %v3037, %v3294
        %v3393 = vmax.f32 %v3040, %v3297
        %v3394 = vmax.f32 %v3045, %v3302
        %v3395 = vmax.f32 %v3048, %v3305
        %v3396 = vmax.f32 %v3053, %v3310
        %v3397 = vmax.f32 %v3056, %v3313
        %v3398 = vmax.f32 %v3061, %v3318
        %v3399 = vmax.f32 %v3064, %v3321
        %v3400 = vmax.f32 %v3069, %v3326
        %v3401 = vmax.f32 %v3072, %v3329
        %v3402 = vmax.f32 %v3077, %v3334
        %v3403 = vmax.f32 %v3080, %v3337
        %v3404 = vmax.f32 %v3085, %v3342
        %v3405 = vmax.f32 %v3088, %v3345
        %v3406 = vmax.f32 %v3093, %v3350
        %v3407 = vmax.f32 %v3096, %v3353
        %v3408 = vmax.f32 %v3101, %v3358
        %v3409 = vmax.f32 %v3104, %v3361
        %v3410 = vmax.f32 %v3109, %v3366
        %v3411 = vmax.f32 %v3112, %v3369
        %v3412 = vmax.f32 %v3117, %v3374
        %v3413 = vmax.f32 %v3120, %v3377
        %v3414 = vmax.f32 %v3125, %v3382
        %v3415 = vmax.f32 %v3128, %v3385
        %v3416 = vpack.c.bf16 %v3389, %v3388
        %v3417 = vpack.c.bf16 %v3391, %v3390
        %v3418 = vpack.c.bf16 %v3393, %v3392
        %v3419 = vpack.c.bf16 %v3395, %v3394
        %v3420 = vpack.c.bf16 %v3397, %v3396
        %v3421 = vpack.c.bf16 %v3399, %v3398
        %v3422 = vpack.c.bf16 %v3401, %v3400
        %v3423 = vpack.c.bf16 %v3403, %v3402
        %v3424 = vpack.c.bf16 %v3405, %v3404
        %v3425 = vpack.c.bf16 %v3407, %v3406
        %v3426 = vpack.c.bf16 %v3409, %v3408
        %v3427 = vpack.c.bf16 %v3411, %v3410
        %v3428 = vpack.c.bf16 %v3413, %v3412
        %v3429 = vpack.c.bf16 %v3415, %v3414
        %v3430 = vld [vmem:[%s5] sm:$0xff]
        %v3431 = vld [vmem:[%s5 + $0x8] sm:$0xff]
        %v3432 = vld [vmem:[%s5 + $0x10] sm:$0xff]
        %v3433 = vld [vmem:[%s5 + $0x18] sm:$0xff]
        %v3434 = vld [vmem:[%s5 + $0x20] sm:$0xff]
        %v3435 = vld [vmem:[%s5 + $0x28] sm:$0xff]
        %v3436 = vld [vmem:[%s5 + $0x30] sm:$0xff]
        %v3437 = vld [vmem:[%s5 + $0x38] sm:$0xff]
        %v3438 = vld [vmem:[%s5 + $0x40] sm:$0xff]
        %v3439 = vld [vmem:[%s5 + $0x48] sm:$0xff]
        %v3440 = vld [vmem:[%s5 + $0x50] sm:$0xff]
        %v3441 = vld [vmem:[%s5 + $0x58] sm:$0xff]
        %v3442 = vld [vmem:[%s5 + $0x60] sm:$0xff]
        %v3443 = vld [vmem:[%s5 + $0x68] sm:$0xff]
        %v3458 = vunpack.c.l.b16 %v3430
        %v3459 = vunpack.c.h.b16 %v3430
        %v3460 = vunpack.c.l.b16 %v3431
        %v3461 = vunpack.c.h.b16 %v3431
        %v3462 = vunpack.c.l.b16 %v3432
        %v3463 = vunpack.c.h.b16 %v3432
        %v3464 = vunpack.c.l.b16 %v3433
        %v3465 = vunpack.c.h.b16 %v3433
        %v3466 = vunpack.c.l.b16 %v3434
        %v3467 = vunpack.c.h.b16 %v3434
        %v3468 = vunpack.c.l.b16 %v3435
        %v3469 = vunpack.c.h.b16 %v3435
        %v3470 = vunpack.c.l.b16 %v3436
        %v3471 = vunpack.c.h.b16 %v3436
        %v3472 = vunpack.c.l.b16 %v3437
        %v3473 = vunpack.c.h.b16 %v3437
        %v3474 = vunpack.c.l.b16 %v3438
        %v3475 = vunpack.c.h.b16 %v3438
        %v3476 = vunpack.c.l.b16 %v3439
        %v3477 = vunpack.c.h.b16 %v3439
        %v3478 = vunpack.c.l.b16 %v3440
        %v3479 = vunpack.c.h.b16 %v3440
        %v3480 = vunpack.c.l.b16 %v3441
        %v3481 = vunpack.c.h.b16 %v3441
        %v3482 = vunpack.c.l.b16 %v3442
        %v3483 = vunpack.c.h.b16 %v3442
        %v3484 = vunpack.c.l.b16 %v3443
        %v3485 = vunpack.c.h.b16 %v3443
        %v3486 = vpack.c.b16 %v3460, %v3458
        %v3487 = vpack.c.b16 %v3461, %v3459
        %v3488 = vpack.c.b16 %v3464, %v3462
        %v3489 = vpack.c.b16 %v3465, %v3463
        %v3490 = vpack.c.b16 %v3468, %v3466
        %v3491 = vpack.c.b16 %v3469, %v3467
        %v3492 = vpack.c.b16 %v3472, %v3470
        %v3493 = vpack.c.b16 %v3473, %v3471
        %v3494 = vpack.c.b16 %v3476, %v3474
        %v3495 = vpack.c.b16 %v3477, %v3475
        %v3496 = vpack.c.b16 %v3480, %v3478
        %v3497 = vpack.c.b16 %v3481, %v3479
        %v3498 = vpack.c.b16 %v3484, %v3482
        %v3499 = vpack.c.b16 %v3485, %v3483
        %vm3514 = vcmask 916480
        %v3515 = vsel %vm3514, 0, 0
        %v3518 = vsel %vm3514, %v3416, 0
        %v3521 = vsel %vm3514, %v3417, 0
        %v3524 = vsel %vm3514, %v3418, 0
        %v3527 = vsel %vm3514, %v3419, 0
        %v3530 = vsel %vm3514, %v3420, 0
        %v3533 = vsel %vm3514, %v3421, 0
        %v3536 = vsel %vm3514, %v3422, 0
        %v3539 = vsel %vm3514, %v3423, 0
        %v3542 = vsel %vm3514, %v3424, 0
        %v3545 = vsel %vm3514, %v3425, 0
        %v3548 = vsel %vm3514, %v3426, 0
        %v3551 = vsel %vm3514, %v3427, 0
        %v3554 = vsel %vm3514, %v3428, 0
        %v3557 = vsel %vm3514, %v3429, 0
        %3559 = vmatprep.subr.bf16.mxu0 0
        %3560 = vmatpush1.bf16.msra.mxu0 0
        %3561 = vmatprep.subr.bf16.mxu0 %v3499
        %3562 = vmatpush1.bf16.msra.mxu0 %v3498
        %3563 = vmatprep.subr.bf16.mxu0 %v3497
        %3564 = vmatpush1.bf16.msra.mxu0 %v3496
        %3565 = vmatprep.subr.bf16.mxu0 %v3495
        %3566 = vmatpush1.bf16.msra.mxu0 %v3494
        %3567 = vmatprep.subr.bf16.mxu0 %v3493
        %3568 = vmatpush1.bf16.msra.mxu0 %v3492
        %3569 = vmatprep.subr.bf16.mxu0 %v3491
        %3570 = vmatpush1.bf16.msra.mxu0 %v3490
        %3571 = vmatprep.subr.bf16.mxu0 %v3489
        %3572 = vmatpush1.bf16.msra.mxu0 %v3488
        %3573 = vmatprep.subr.bf16.mxu0 %v3487
        %3574 = vmatpush1.bf16.msra.mxu0 %v3486
        %3575 = vmatprep.subr.bf16.mxu0 0
        %3576 = vmatpush2.bf16.msra.mxu0 0
        %3577 = vmatprep.subr.bf16.mxu0 0
        %3578 = vmatpush2.bf16.msra.mxu0 0
        %3579 = vmatprep.subr.bf16.mxu0 0
        %3580 = vmatpush2.bf16.msra.mxu0 0
        %3581 = vmatprep.subr.bf16.mxu0 0
        %3582 = vmatpush2.bf16.msra.mxu0 0
        %3583 = vmatprep.subr.bf16.mxu0 0
        %3584 = vmatpush2.bf16.msra.mxu0 0
        %3585 = vmatprep.subr.bf16.mxu0 0
        %3586 = vmatpush2.bf16.msra.mxu0 0
        %3587 = vmatprep.subr.bf16.mxu0 0
        %3588 = vmatpush2.bf16.msra.mxu0 0
        %3589 = vmatprep.subr.bf16.mxu0 0
        %3590 = vmatpush2.bf16.msra.mxu0 0
        %3591 = vmatprep.mubr.bf16.mxu0 0
        %3592 = vmatmul.mubr.bf16.gmra.mxu0 %v3515
        %v3593 = vpop.f32.mrf.mxu0
        %v3594 = vadd.f32 0.0, %v3593
        %v3595 = vpop.f32.mrf.mxu0
        %v3596 = vadd.f32 0.0, %v3595
        %v3597 = vpop.f32.mrf.mxu0
        %v3598 = vadd.f32 0.0, %v3597
        %v3599 = vpop.f32.mrf.mxu0
        %v3600 = vadd.f32 0.0, %v3599
        %3601 = vmatprep.mubr.bf16.mxu0 0
        %3602 = vmatmul.mubr.bf16.gmra.mxu0 %v3518
        %v3603 = vpop.f32.mrf.mxu0
        %v3604 = vadd.f32 0.0, %v3603
        %v3605 = vpop.f32.mrf.mxu0
        %v3606 = vadd.f32 0.0, %v3605
        %v3607 = vpop.f32.mrf.mxu0
        %v3608 = vadd.f32 0.0, %v3607
        %v3609 = vpop.f32.mrf.mxu0
        %v3610 = vadd.f32 0.0, %v3609
        %3611 = vmatprep.mubr.bf16.mxu0 0
        %3612 = vmatmul.mubr.bf16.gmra.mxu0 %v3521
        %v3613 = vpop.f32.mrf.mxu0
        %v3614 = vadd.f32 0.0, %v3613
        %v3615 = vpop.f32.mrf.mxu0
        %v3616 = vadd.f32 0.0, %v3615
        %v3617 = vpop.f32.mrf.mxu0
        %v3618 = vadd.f32 0.0, %v3617
        %v3619 = vpop.f32.mrf.mxu0
        %v3620 = vadd.f32 0.0, %v3619
        %3621 = vmatprep.mubr.bf16.mxu0 0
        %3622 = vmatmul.mubr.bf16.gmra.mxu0 %v3524
        %v3623 = vpop.f32.mrf.mxu0
        %v3624 = vadd.f32 0.0, %v3623
        %v3625 = vpop.f32.mrf.mxu0
        %v3626 = vadd.f32 0.0, %v3625
        %v3627 = vpop.f32.mrf.mxu0
        %v3628 = vadd.f32 0.0, %v3627
        %v3629 = vpop.f32.mrf.mxu0
        %v3630 = vadd.f32 0.0, %v3629
        %3631 = vmatprep.mubr.bf16.mxu0 0
        %3632 = vmatmul.mubr.bf16.gmra.mxu0 %v3527
        %v3633 = vpop.f32.mrf.mxu0
        %v3634 = vadd.f32 0.0, %v3633
        %v3635 = vpop.f32.mrf.mxu0
        %v3636 = vadd.f32 0.0, %v3635
        %v3637 = vpop.f32.mrf.mxu0
        %v3638 = vadd.f32 0.0, %v3637
        %v3639 = vpop.f32.mrf.mxu0
        %v3640 = vadd.f32 0.0, %v3639
        %3641 = vmatprep.mubr.bf16.mxu0 0
        %3642 = vmatmul.mubr.bf16.gmra.mxu0 %v3530
        %v3643 = vpop.f32.mrf.mxu0
        %v3644 = vadd.f32 0.0, %v3643
        %v3645 = vpop.f32.mrf.mxu0
        %v3646 = vadd.f32 0.0, %v3645
        %v3647 = vpop.f32.mrf.mxu0
        %v3648 = vadd.f32 0.0, %v3647
        %v3649 = vpop.f32.mrf.mxu0
        %v3650 = vadd.f32 0.0, %v3649
        %3651 = vmatprep.mubr.bf16.mxu0 0
        %3652 = vmatmul.mubr.bf16.gmra.mxu0 %v3533
        %v3653 = vpop.f32.mrf.mxu0
        %v3654 = vadd.f32 0.0, %v3653
        %v3655 = vpop.f32.mrf.mxu0
        %v3656 = vadd.f32 0.0, %v3655
        %v3657 = vpop.f32.mrf.mxu0
        %v3658 = vadd.f32 0.0, %v3657
        %v3659 = vpop.f32.mrf.mxu0
        %v3660 = vadd.f32 0.0, %v3659
        %3661 = vmatprep.mubr.bf16.mxu0 0
        %3662 = vmatmul.mubr.bf16.gmra.mxu0 %v3536
        %v3663 = vpop.f32.mrf.mxu0
        %v3664 = vadd.f32 0.0, %v3663
        %v3665 = vpop.f32.mrf.mxu0
        %v3666 = vadd.f32 0.0, %v3665
        %v3667 = vpop.f32.mrf.mxu0
        %v3668 = vadd.f32 0.0, %v3667
        %v3669 = vpop.f32.mrf.mxu0
        %v3670 = vadd.f32 0.0, %v3669
        %3671 = vmatprep.mubr.bf16.mxu0 0
        %3672 = vmatmul.mubr.bf16.gmra.mxu0 %v3539
        %v3673 = vpop.f32.mrf.mxu0
        %v3674 = vadd.f32 0.0, %v3673
        %v3675 = vpop.f32.mrf.mxu0
        %v3676 = vadd.f32 0.0, %v3675
        %v3677 = vpop.f32.mrf.mxu0
        %v3678 = vadd.f32 0.0, %v3677
        %v3679 = vpop.f32.mrf.mxu0
        %v3680 = vadd.f32 0.0, %v3679
        %3681 = vmatprep.mubr.bf16.mxu0 0
        %3682 = vmatmul.mubr.bf16.gmra.mxu0 %v3542
        %v3683 = vpop.f32.mrf.mxu0
        %v3684 = vadd.f32 0.0, %v3683
        %v3685 = vpop.f32.mrf.mxu0
        %v3686 = vadd.f32 0.0, %v3685
        %v3687 = vpop.f32.mrf.mxu0
        %v3688 = vadd.f32 0.0, %v3687
        %v3689 = vpop.f32.mrf.mxu0
        %v3690 = vadd.f32 0.0, %v3689
        %3691 = vmatprep.mubr.bf16.mxu0 0
        %3692 = vmatmul.mubr.bf16.gmra.mxu0 %v3545
        %v3693 = vpop.f32.mrf.mxu0
        %v3694 = vadd.f32 0.0, %v3693
        %v3695 = vpop.f32.mrf.mxu0
        %v3696 = vadd.f32 0.0, %v3695
        %v3697 = vpop.f32.mrf.mxu0
        %v3698 = vadd.f32 0.0, %v3697
        %v3699 = vpop.f32.mrf.mxu0
        %v3700 = vadd.f32 0.0, %v3699
        %3701 = vmatprep.mubr.bf16.mxu0 0
        %3702 = vmatmul.mubr.bf16.gmra.mxu0 %v3548
        %v3703 = vpop.f32.mrf.mxu0
        %v3704 = vadd.f32 0.0, %v3703
        %v3705 = vpop.f32.mrf.mxu0
        %v3706 = vadd.f32 0.0, %v3705
        %v3707 = vpop.f32.mrf.mxu0
        %v3708 = vadd.f32 0.0, %v3707
        %v3709 = vpop.f32.mrf.mxu0
        %v3710 = vadd.f32 0.0, %v3709
        %3711 = vmatprep.mubr.bf16.mxu0 0
        %3712 = vmatmul.mubr.bf16.gmra.mxu0 %v3551
        %v3713 = vpop.f32.mrf.mxu0
        %v3714 = vadd.f32 0.0, %v3713
        %v3715 = vpop.f32.mrf.mxu0
        %v3716 = vadd.f32 0.0, %v3715
        %v3717 = vpop.f32.mrf.mxu0
        %v3718 = vadd.f32 0.0, %v3717
        %v3719 = vpop.f32.mrf.mxu0
        %v3720 = vadd.f32 0.0, %v3719
        %3721 = vmatprep.mubr.bf16.mxu0 0
        %3722 = vmatmul.mubr.bf16.gmra.mxu0 %v3554
        %v3723 = vpop.f32.mrf.mxu0
        %v3724 = vadd.f32 0.0, %v3723
        %v3725 = vpop.f32.mrf.mxu0
        %v3726 = vadd.f32 0.0, %v3725
        %v3727 = vpop.f32.mrf.mxu0
        %v3728 = vadd.f32 0.0, %v3727
        %v3729 = vpop.f32.mrf.mxu0
        %v3730 = vadd.f32 0.0, %v3729
        %3731 = vmatprep.mubr.bf16.mxu0 0
        %3732 = vmatmul.mubr.bf16.gmra.mxu0 %v3557
        %v3733 = vpop.f32.mrf.mxu0
        %v3734 = vpop.f32.mrf.mxu0
        %v3735 = vpop.f32.mrf.mxu0
        %v3736 = vpop.f32.mrf.mxu0
        %3737 = vmatprep.mubr.bf16.mxu0 0
        %3738 = vmatmul.mubr.bf16.gmra.mxu0 %v3515
        %v3739 = vpop.f32.mrf.mxu0
        %v3740 = vpop.f32.mrf.mxu0
        %v3741 = vpop.f32.mrf.mxu0
        %v3742 = vpop.f32.mrf.mxu0
        %3743 = vdwg.mxu0
        %s3744 = scalar_lea.vmem %s5, 112
        %v3745 = vld [vmem:[%s3744] sm:$0xff]
        %v3746 = vld [vmem:[%s3744 + $0x8] sm:$0xff]
        %v3747 = vld [vmem:[%s3744 + $0x10] sm:$0xff]
        %v3748 = vld [vmem:[%s3744 + $0x18] sm:$0xff]
        %v3749 = vld [vmem:[%s3744 + $0x20] sm:$0xff]
        %v3750 = vld [vmem:[%s3744 + $0x28] sm:$0xff]
        %v3751 = vld [vmem:[%s3744 + $0x30] sm:$0xff]
        %v3752 = vld [vmem:[%s3744 + $0x38] sm:$0xff]
        %v3753 = vld [vmem:[%s3744 + $0x40] sm:$0xff]
        %v3754 = vld [vmem:[%s3744 + $0x48] sm:$0xff]
        %v3755 = vld [vmem:[%s3744 + $0x50] sm:$0xff]
        %v3756 = vld [vmem:[%s3744 + $0x58] sm:$0xff]
        %v3757 = vld [vmem:[%s3744 + $0x60] sm:$0xff]
        %v3758 = vld [vmem:[%s3744 + $0x68] sm:$0xff]
        %v3773 = vunpack.c.l.b16 %v3745
        %v3774 = vunpack.c.h.b16 %v3745
        %v3775 = vunpack.c.l.b16 %v3746
        %v3776 = vunpack.c.h.b16 %v3746
        %v3777 = vunpack.c.l.b16 %v3747
        %v3778 = vunpack.c.h.b16 %v3747
        %v3779 = vunpack.c.l.b16 %v3748
        %v3780 = vunpack.c.h.b16 %v3748
        %v3781 = vunpack.c.l.b16 %v3749
        %v3782 = vunpack.c.h.b16 %v3749
        %v3783 = vunpack.c.l.b16 %v3750
        %v3784 = vunpack.c.h.b16 %v3750
        %v3785 = vunpack.c.l.b16 %v3751
        %v3786 = vunpack.c.h.b16 %v3751
        %v3787 = vunpack.c.l.b16 %v3752
        %v3788 = vunpack.c.h.b16 %v3752
        %v3789 = vunpack.c.l.b16 %v3753
        %v3790 = vunpack.c.h.b16 %v3753
        %v3791 = vunpack.c.l.b16 %v3754
        %v3792 = vunpack.c.h.b16 %v3754
        %v3793 = vunpack.c.l.b16 %v3755
        %v3794 = vunpack.c.h.b16 %v3755
        %v3795 = vunpack.c.l.b16 %v3756
        %v3796 = vunpack.c.h.b16 %v3756
        %v3797 = vunpack.c.l.b16 %v3757
        %v3798 = vunpack.c.h.b16 %v3757
        %v3799 = vunpack.c.l.b16 %v3758
        %v3800 = vunpack.c.h.b16 %v3758
        %v3801 = vpack.c.b16 %v3775, %v3773
        %v3802 = vpack.c.b16 %v3776, %v3774
        %v3803 = vpack.c.b16 %v3779, %v3777
        %v3804 = vpack.c.b16 %v3780, %v3778
        %v3805 = vpack.c.b16 %v3783, %v3781
        %v3806 = vpack.c.b16 %v3784, %v3782
        %v3807 = vpack.c.b16 %v3787, %v3785
        %v3808 = vpack.c.b16 %v3788, %v3786
        %v3809 = vpack.c.b16 %v3791, %v3789
        %v3810 = vpack.c.b16 %v3792, %v3790
        %v3811 = vpack.c.b16 %v3795, %v3793
        %v3812 = vpack.c.b16 %v3796, %v3794
        %v3813 = vpack.c.b16 %v3799, %v3797
        %v3814 = vpack.c.b16 %v3800, %v3798
        %3829 = vmatprep.subr.bf16.mxu0 0
        %3830 = vmatpush1.bf16.msra.mxu0 0
        %3831 = vmatprep.subr.bf16.mxu0 %v3814
        %3832 = vmatpush1.bf16.msra.mxu0 %v3813
        %3833 = vmatprep.subr.bf16.mxu0 %v3812
        %3834 = vmatpush1.bf16.msra.mxu0 %v3811
        %3835 = vmatprep.subr.bf16.mxu0 %v3810
        %3836 = vmatpush1.bf16.msra.mxu0 %v3809
        %3837 = vmatprep.subr.bf16.mxu0 %v3808
        %3838 = vmatpush1.bf16.msra.mxu0 %v3807
        %3839 = vmatprep.subr.bf16.mxu0 %v3806
        %3840 = vmatpush1.bf16.msra.mxu0 %v3805
        %3841 = vmatprep.subr.bf16.mxu0 %v3804
        %3842 = vmatpush1.bf16.msra.mxu0 %v3803
        %3843 = vmatprep.subr.bf16.mxu0 %v3802
        %3844 = vmatpush1.bf16.msra.mxu0 %v3801
        %3845 = vmatprep.subr.bf16.mxu0 0
        %3846 = vmatpush2.bf16.msra.mxu0 0
        %3847 = vmatprep.subr.bf16.mxu0 0
        %3848 = vmatpush2.bf16.msra.mxu0 0
        %3849 = vmatprep.subr.bf16.mxu0 0
        %3850 = vmatpush2.bf16.msra.mxu0 0
        %3851 = vmatprep.subr.bf16.mxu0 0
        %3852 = vmatpush2.bf16.msra.mxu0 0
        %3853 = vmatprep.subr.bf16.mxu0 0
        %3854 = vmatpush2.bf16.msra.mxu0 0
        %3855 = vmatprep.subr.bf16.mxu0 0
        %3856 = vmatpush2.bf16.msra.mxu0 0
        %3857 = vmatprep.subr.bf16.mxu0 0
        %3858 = vmatpush2.bf16.msra.mxu0 0
        %3859 = vmatprep.subr.bf16.mxu0 0
        %3860 = vmatpush2.bf16.msra.mxu0 0
        %3861 = vmatprep.mubr.bf16.mxu0 0
        %3862 = vmatmul.mubr.bf16.gmra.mxu0 %v3515
        %v3863 = vpop.f32.mrf.mxu0
        %v3864 = vpop.f32.mrf.mxu0
        %v3865 = vpop.f32.mrf.mxu0
        %v3866 = vpop.f32.mrf.mxu0
        %3867 = vmatprep.mubr.bf16.mxu0 0
        %3868 = vmatmul.mubr.bf16.gmra.mxu0 %v3518
        %v3869 = vpop.f32.mrf.mxu0
        %v3870 = vadd.f32 0.0, %v3869
        %v3871 = vpop.f32.mrf.mxu0
        %v3872 = vadd.f32 0.0, %v3871
        %v3873 = vpop.f32.mrf.mxu0
        %v3874 = vadd.f32 0.0, %v3873
        %v3875 = vpop.f32.mrf.mxu0
        %v3876 = vadd.f32 0.0, %v3875
        %3877 = vmatprep.mubr.bf16.mxu0 0
        %3878 = vmatmul.mubr.bf16.gmra.mxu0 %v3521
        %v3879 = vpop.f32.mrf.mxu0
        %v3880 = vadd.f32 0.0, %v3879
        %v3881 = vpop.f32.mrf.mxu0
        %v3882 = vadd.f32 0.0, %v3881
        %v3883 = vpop.f32.mrf.mxu0
        %v3884 = vadd.f32 0.0, %v3883
        %v3885 = vpop.f32.mrf.mxu0
        %v3886 = vadd.f32 0.0, %v3885
        %3887 = vmatprep.mubr.bf16.mxu0 0
        %3888 = vmatmul.mubr.bf16.gmra.mxu0 %v3524
        %v3889 = vpop.f32.mrf.mxu0
        %v3890 = vadd.f32 0.0, %v3889
        %v3891 = vpop.f32.mrf.mxu0
        %v3892 = vadd.f32 0.0, %v3891
        %v3893 = vpop.f32.mrf.mxu0
        %v3894 = vadd.f32 0.0, %v3893
        %v3895 = vpop.f32.mrf.mxu0
        %v3896 = vadd.f32 0.0, %v3895
        %3897 = vmatprep.mubr.bf16.mxu0 0
        %3898 = vmatmul.mubr.bf16.gmra.mxu0 %v3527
        %v3899 = vpop.f32.mrf.mxu0
        %v3900 = vadd.f32 0.0, %v3899
        %v3901 = vpop.f32.mrf.mxu0
        %v3902 = vadd.f32 0.0, %v3901
        %v3903 = vpop.f32.mrf.mxu0
        %v3904 = vadd.f32 0.0, %v3903
        %v3905 = vpop.f32.mrf.mxu0
        %v3906 = vadd.f32 0.0, %v3905
        %3907 = vmatprep.mubr.bf16.mxu0 0
        %3908 = vmatmul.mubr.bf16.gmra.mxu0 %v3530
        %v3909 = vpop.f32.mrf.mxu0
        %v3910 = vadd.f32 0.0, %v3909
        %v3911 = vpop.f32.mrf.mxu0
        %v3912 = vadd.f32 0.0, %v3911
        %v3913 = vpop.f32.mrf.mxu0
        %v3914 = vadd.f32 0.0, %v3913
        %v3915 = vpop.f32.mrf.mxu0
        %v3916 = vadd.f32 0.0, %v3915
        %3917 = vmatprep.mubr.bf16.mxu0 0
        %3918 = vmatmul.mubr.bf16.gmra.mxu0 %v3533
        %v3919 = vpop.f32.mrf.mxu0
        %v3920 = vadd.f32 0.0, %v3919
        %v3921 = vpop.f32.mrf.mxu0
        %v3922 = vadd.f32 0.0, %v3921
        %v3923 = vpop.f32.mrf.mxu0
        %v3924 = vadd.f32 0.0, %v3923
        %v3925 = vpop.f32.mrf.mxu0
        %v3926 = vadd.f32 0.0, %v3925
        %3927 = vmatprep.mubr.bf16.mxu0 0
        %3928 = vmatmul.mubr.bf16.gmra.mxu0 %v3536
        %v3929 = vpop.f32.mrf.mxu0
        %v3930 = vadd.f32 0.0, %v3929
        %v3931 = vpop.f32.mrf.mxu0
        %v3932 = vadd.f32 0.0, %v3931
        %v3933 = vpop.f32.mrf.mxu0
        %v3934 = vadd.f32 0.0, %v3933
        %v3935 = vpop.f32.mrf.mxu0
        %v3936 = vadd.f32 0.0, %v3935
        %3937 = vmatprep.mubr.bf16.mxu0 0
        %3938 = vmatmul.mubr.bf16.gmra.mxu0 %v3539
        %v3939 = vpop.f32.mrf.mxu0
        %v3940 = vadd.f32 0.0, %v3939
        %v3941 = vpop.f32.mrf.mxu0
        %v3942 = vadd.f32 0.0, %v3941
        %v3943 = vpop.f32.mrf.mxu0
        %v3944 = vadd.f32 0.0, %v3943
        %v3945 = vpop.f32.mrf.mxu0
        %v3946 = vadd.f32 0.0, %v3945
        %3947 = vmatprep.mubr.bf16.mxu0 0
        %3948 = vmatmul.mubr.bf16.gmra.mxu0 %v3542
        %v3949 = vpop.f32.mrf.mxu0
        %v3950 = vadd.f32 0.0, %v3949
        %v3951 = vpop.f32.mrf.mxu0
        %v3952 = vadd.f32 0.0, %v3951
        %v3953 = vpop.f32.mrf.mxu0
        %v3954 = vadd.f32 0.0, %v3953
        %v3955 = vpop.f32.mrf.mxu0
        %v3956 = vadd.f32 0.0, %v3955
        %3957 = vmatprep.mubr.bf16.mxu0 0
        %3958 = vmatmul.mubr.bf16.gmra.mxu0 %v3545
        %v3959 = vpop.f32.mrf.mxu0
        %v3960 = vadd.f32 0.0, %v3959
        %v3961 = vpop.f32.mrf.mxu0
        %v3962 = vadd.f32 0.0, %v3961
        %v3963 = vpop.f32.mrf.mxu0
        %v3964 = vadd.f32 0.0, %v3963
        %v3965 = vpop.f32.mrf.mxu0
        %v3966 = vadd.f32 0.0, %v3965
        %3967 = vmatprep.mubr.bf16.mxu0 0
        %3968 = vmatmul.mubr.bf16.gmra.mxu0 %v3548
        %v3969 = vpop.f32.mrf.mxu0
        %v3970 = vadd.f32 0.0, %v3969
        %v3971 = vpop.f32.mrf.mxu0
        %v3972 = vadd.f32 0.0, %v3971
        %v3973 = vpop.f32.mrf.mxu0
        %v3974 = vadd.f32 0.0, %v3973
        %v3975 = vpop.f32.mrf.mxu0
        %v3976 = vadd.f32 0.0, %v3975
        %3977 = vmatprep.mubr.bf16.mxu0 0
        %3978 = vmatmul.mubr.bf16.gmra.mxu0 %v3551
        %v3979 = vpop.f32.mrf.mxu0
        %v3980 = vadd.f32 0.0, %v3979
        %v3981 = vpop.f32.mrf.mxu0
        %v3982 = vadd.f32 0.0, %v3981
        %v3983 = vpop.f32.mrf.mxu0
        %v3984 = vadd.f32 0.0, %v3983
        %v3985 = vpop.f32.mrf.mxu0
        %v3986 = vadd.f32 0.0, %v3985
        %3987 = vmatprep.mubr.bf16.mxu0 0
        %3988 = vmatmul.mubr.bf16.gmra.mxu0 %v3554
        %v3989 = vpop.f32.mrf.mxu0
        %v3990 = vadd.f32 0.0, %v3989
        %v3991 = vpop.f32.mrf.mxu0
        %v3992 = vadd.f32 0.0, %v3991
        %v3993 = vpop.f32.mrf.mxu0
        %v3994 = vadd.f32 0.0, %v3993
        %v3995 = vpop.f32.mrf.mxu0
        %v3996 = vadd.f32 0.0, %v3995
        %3997 = vmatprep.mubr.bf16.mxu0 0
        %3998 = vmatmul.mubr.bf16.gmra.mxu0 %v3557
        %v3999 = vpop.f32.mrf.mxu0
        %v4000 = vadd.f32 0.0, %v3999
        %v4001 = vpop.f32.mrf.mxu0
        %v4002 = vadd.f32 0.0, %v4001
        %v4003 = vpop.f32.mrf.mxu0
        %v4004 = vadd.f32 0.0, %v4003
        %v4005 = vpop.f32.mrf.mxu0
        %v4006 = vadd.f32 0.0, %v4005
        %4007 = vmatprep.mubr.bf16.mxu0 0
        %4008 = vmatmul.mubr.bf16.gmra.mxu0 %v3515
        %v4009 = vpop.f32.mrf.mxu0
        %v4010 = vpop.f32.mrf.mxu0
        %v4011 = vpop.f32.mrf.mxu0
        %v4012 = vpop.f32.mrf.mxu0
        %4013 = vdwg.mxu0
        %s4014 = scalar_lea.vmem %s5, 224
        %v4015 = vld [vmem:[%s4014] sm:$0xff]
        %v4016 = vld [vmem:[%s4014 + $0x8] sm:$0xff]
        %v4017 = vld [vmem:[%s4014 + $0x10] sm:$0xff]
        %v4018 = vld [vmem:[%s4014 + $0x18] sm:$0xff]
        %v4019 = vld [vmem:[%s4014 + $0x20] sm:$0xff]
        %v4020 = vld [vmem:[%s4014 + $0x28] sm:$0xff]
        %v4021 = vld [vmem:[%s4014 + $0x30] sm:$0xff]
        %v4022 = vld [vmem:[%s4014 + $0x38] sm:$0xff]
        %v4023 = vld [vmem:[%s4014 + $0x40] sm:$0xff]
        %v4024 = vld [vmem:[%s4014 + $0x48] sm:$0xff]
        %v4025 = vld [vmem:[%s4014 + $0x50] sm:$0xff]
        %v4026 = vld [vmem:[%s4014 + $0x58] sm:$0xff]
        %v4027 = vld [vmem:[%s4014 + $0x60] sm:$0xff]
        %v4028 = vld [vmem:[%s4014 + $0x68] sm:$0xff]
        %v4043 = vunpack.c.l.b16 %v4015
        %v4044 = vunpack.c.h.b16 %v4015
        %v4045 = vunpack.c.l.b16 %v4016
        %v4046 = vunpack.c.h.b16 %v4016
        %v4047 = vunpack.c.l.b16 %v4017
        %v4048 = vunpack.c.h.b16 %v4017
        %v4049 = vunpack.c.l.b16 %v4018
        %v4050 = vunpack.c.h.b16 %v4018
        %v4051 = vunpack.c.l.b16 %v4019
        %v4052 = vunpack.c.h.b16 %v4019
        %v4053 = vunpack.c.l.b16 %v4020
        %v4054 = vunpack.c.h.b16 %v4020
        %v4055 = vunpack.c.l.b16 %v4021
        %v4056 = vunpack.c.h.b16 %v4021
        %v4057 = vunpack.c.l.b16 %v4022
        %v4058 = vunpack.c.h.b16 %v4022
        %v4059 = vunpack.c.l.b16 %v4023
        %v4060 = vunpack.c.h.b16 %v4023
        %v4061 = vunpack.c.l.b16 %v4024
        %v4062 = vunpack.c.h.b16 %v4024
        %v4063 = vunpack.c.l.b16 %v4025
        %v4064 = vunpack.c.h.b16 %v4025
        %v4065 = vunpack.c.l.b16 %v4026
        %v4066 = vunpack.c.h.b16 %v4026
        %v4067 = vunpack.c.l.b16 %v4027
        %v4068 = vunpack.c.h.b16 %v4027
        %v4069 = vunpack.c.l.b16 %v4028
        %v4070 = vunpack.c.h.b16 %v4028
        %v4071 = vpack.c.b16 %v4045, %v4043
        %v4072 = vpack.c.b16 %v4046, %v4044
        %v4073 = vpack.c.b16 %v4049, %v4047
        %v4074 = vpack.c.b16 %v4050, %v4048
        %v4075 = vpack.c.b16 %v4053, %v4051
        %v4076 = vpack.c.b16 %v4054, %v4052
        %v4077 = vpack.c.b16 %v4057, %v4055
        %v4078 = vpack.c.b16 %v4058, %v4056
        %v4079 = vpack.c.b16 %v4061, %v4059
        %v4080 = vpack.c.b16 %v4062, %v4060
        %v4081 = vpack.c.b16 %v4065, %v4063
        %v4082 = vpack.c.b16 %v4066, %v4064
        %v4083 = vpack.c.b16 %v4069, %v4067
        %v4084 = vpack.c.b16 %v4070, %v4068
        %4099 = vmatprep.subr.bf16.mxu0 0
        %4100 = vmatpush1.bf16.msra.mxu0 0
        %4101 = vmatprep.subr.bf16.mxu0 %v4084
        %4102 = vmatpush1.bf16.msra.mxu0 %v4083
        %4103 = vmatprep.subr.bf16.mxu0 %v4082
        %4104 = vmatpush1.bf16.msra.mxu0 %v4081
        %4105 = vmatprep.subr.bf16.mxu0 %v4080
        %4106 = vmatpush1.bf16.msra.mxu0 %v4079
        %4107 = vmatprep.subr.bf16.mxu0 %v4078
        %4108 = vmatpush1.bf16.msra.mxu0 %v4077
        %4109 = vmatprep.subr.bf16.mxu0 %v4076
        %4110 = vmatpush1.bf16.msra.mxu0 %v4075
        %4111 = vmatprep.subr.bf16.mxu0 %v4074
        %4112 = vmatpush1.bf16.msra.mxu0 %v4073
        %4113 = vmatprep.subr.bf16.mxu0 %v4072
        %4114 = vmatpush1.bf16.msra.mxu0 %v4071
        %4115 = vmatprep.subr.bf16.mxu0 0
        %4116 = vmatpush2.bf16.msra.mxu0 0
        %4117 = vmatprep.subr.bf16.mxu0 0
        %4118 = vmatpush2.bf16.msra.mxu0 0
        %4119 = vmatprep.subr.bf16.mxu0 0
        %4120 = vmatpush2.bf16.msra.mxu0 0
        %4121 = vmatprep.subr.bf16.mxu0 0
        %4122 = vmatpush2.bf16.msra.mxu0 0
        %4123 = vmatprep.subr.bf16.mxu0 0
        %4124 = vmatpush2.bf16.msra.mxu0 0
        %4125 = vmatprep.subr.bf16.mxu0 0
        %4126 = vmatpush2.bf16.msra.mxu0 0
        %4127 = vmatprep.subr.bf16.mxu0 0
        %4128 = vmatpush2.bf16.msra.mxu0 0
        %4129 = vmatprep.subr.bf16.mxu0 0
        %4130 = vmatpush2.bf16.msra.mxu0 0
        %4131 = vmatprep.mubr.bf16.mxu0 0
        %4132 = vmatmul.mubr.bf16.gmra.mxu0 %v3515
        %v4133 = vpop.f32.mrf.mxu0
        %v4134 = vpop.f32.mrf.mxu0
        %v4135 = vpop.f32.mrf.mxu0
        %v4136 = vpop.f32.mrf.mxu0
        %4137 = vmatprep.mubr.bf16.mxu0 0
        %4138 = vmatmul.mubr.bf16.gmra.mxu0 %v3518
        %v4139 = vpop.f32.mrf.mxu0
        %v4140 = vpop.f32.mrf.mxu0
        %v4141 = vpop.f32.mrf.mxu0
        %v4142 = vpop.f32.mrf.mxu0
        %4143 = vmatprep.mubr.bf16.mxu0 0
        %4144 = vmatmul.mubr.bf16.gmra.mxu0 %v3521
        %v4145 = vpop.f32.mrf.mxu0
        %v4146 = vadd.f32 0.0, %v4145
        %v4147 = vpop.f32.mrf.mxu0
        %v4148 = vadd.f32 0.0, %v4147
        %v4149 = vpop.f32.mrf.mxu0
        %v4150 = vadd.f32 0.0, %v4149
        %v4151 = vpop.f32.mrf.mxu0
        %v4152 = vadd.f32 0.0, %v4151
        %4153 = vmatprep.mubr.bf16.mxu0 0
        %4154 = vmatmul.mubr.bf16.gmra.mxu0 %v3524
        %v4155 = vpop.f32.mrf.mxu0
        %v4156 = vadd.f32 0.0, %v4155
        %v4157 = vpop.f32.mrf.mxu0
        %v4158 = vadd.f32 0.0, %v4157
        %v4159 = vpop.f32.mrf.mxu0
        %v4160 = vadd.f32 0.0, %v4159
        %v4161 = vpop.f32.mrf.mxu0
        %v4162 = vadd.f32 0.0, %v4161
        %4163 = vmatprep.mubr.bf16.mxu0 0
        %4164 = vmatmul.mubr.bf16.gmra.mxu0 %v3527
        %v4165 = vpop.f32.mrf.mxu0
        %v4166 = vadd.f32 0.0, %v4165
        %v4167 = vpop.f32.mrf.mxu0
        %v4168 = vadd.f32 0.0, %v4167
        %v4169 = vpop.f32.mrf.mxu0
        %v4170 = vadd.f32 0.0, %v4169
        %v4171 = vpop.f32.mrf.mxu0
        %v4172 = vadd.f32 0.0, %v4171
        %4173 = vmatprep.mubr.bf16.mxu0 0
        %4174 = vmatmul.mubr.bf16.gmra.mxu0 %v3530
        %v4175 = vpop.f32.mrf.mxu0
        %v4176 = vadd.f32 0.0, %v4175
        %v4177 = vpop.f32.mrf.mxu0
        %v4178 = vadd.f32 0.0, %v4177
        %v4179 = vpop.f32.mrf.mxu0
        %v4180 = vadd.f32 0.0, %v4179
        %v4181 = vpop.f32.mrf.mxu0
        %v4182 = vadd.f32 0.0, %v4181
        %4183 = vmatprep.mubr.bf16.mxu0 0
        %4184 = vmatmul.mubr.bf16.gmra.mxu0 %v3533
        %v4185 = vpop.f32.mrf.mxu0
        %v4186 = vadd.f32 0.0, %v4185
        %v4187 = vpop.f32.mrf.mxu0
        %v4188 = vadd.f32 0.0, %v4187
        %v4189 = vpop.f32.mrf.mxu0
        %v4190 = vadd.f32 0.0, %v4189
        %v4191 = vpop.f32.mrf.mxu0
        %v4192 = vadd.f32 0.0, %v4191
        %4193 = vmatprep.mubr.bf16.mxu0 0
        %4194 = vmatmul.mubr.bf16.gmra.mxu0 %v3536
        %v4195 = vpop.f32.mrf.mxu0
        %v4196 = vadd.f32 0.0, %v4195
        %v4197 = vpop.f32.mrf.mxu0
        %v4198 = vadd.f32 0.0, %v4197
        %v4199 = vpop.f32.mrf.mxu0
        %v4200 = vadd.f32 0.0, %v4199
        %v4201 = vpop.f32.mrf.mxu0
        %v4202 = vadd.f32 0.0, %v4201
        %4203 = vmatprep.mubr.bf16.mxu0 0
        %4204 = vmatmul.mubr.bf16.gmra.mxu0 %v3539
        %v4205 = vpop.f32.mrf.mxu0
        %v4206 = vadd.f32 0.0, %v4205
        %v4207 = vpop.f32.mrf.mxu0
        %v4208 = vadd.f32 0.0, %v4207
        %v4209 = vpop.f32.mrf.mxu0
        %v4210 = vadd.f32 0.0, %v4209
        %v4211 = vpop.f32.mrf.mxu0
        %v4212 = vadd.f32 0.0, %v4211
        %4213 = vmatprep.mubr.bf16.mxu0 0
        %4214 = vmatmul.mubr.bf16.gmra.mxu0 %v3542
        %v4215 = vpop.f32.mrf.mxu0
        %v4216 = vadd.f32 0.0, %v4215
        %v4217 = vpop.f32.mrf.mxu0
        %v4218 = vadd.f32 0.0, %v4217
        %v4219 = vpop.f32.mrf.mxu0
        %v4220 = vadd.f32 0.0, %v4219
        %v4221 = vpop.f32.mrf.mxu0
        %v4222 = vadd.f32 0.0, %v4221
        %4223 = vmatprep.mubr.bf16.mxu0 0
        %4224 = vmatmul.mubr.bf16.gmra.mxu0 %v3545
        %v4225 = vpop.f32.mrf.mxu0
        %v4226 = vadd.f32 0.0, %v4225
        %v4227 = vpop.f32.mrf.mxu0
        %v4228 = vadd.f32 0.0, %v4227
        %v4229 = vpop.f32.mrf.mxu0
        %v4230 = vadd.f32 0.0, %v4229
        %v4231 = vpop.f32.mrf.mxu0
        %v4232 = vadd.f32 0.0, %v4231
        %4233 = vmatprep.mubr.bf16.mxu0 0
        %4234 = vmatmul.mubr.bf16.gmra.mxu0 %v3548
        %v4235 = vpop.f32.mrf.mxu0
        %v4236 = vadd.f32 0.0, %v4235
        %v4237 = vpop.f32.mrf.mxu0
        %v4238 = vadd.f32 0.0, %v4237
        %v4239 = vpop.f32.mrf.mxu0
        %v4240 = vadd.f32 0.0, %v4239
        %v4241 = vpop.f32.mrf.mxu0
        %v4242 = vadd.f32 0.0, %v4241
        %4243 = vmatprep.mubr.bf16.mxu0 0
        %4244 = vmatmul.mubr.bf16.gmra.mxu0 %v3551
        %v4245 = vpop.f32.mrf.mxu0
        %v4246 = vadd.f32 0.0, %v4245
        %v4247 = vpop.f32.mrf.mxu0
        %v4248 = vadd.f32 0.0, %v4247
        %v4249 = vpop.f32.mrf.mxu0
        %v4250 = vadd.f32 0.0, %v4249
        %v4251 = vpop.f32.mrf.mxu0
        %v4252 = vadd.f32 0.0, %v4251
        %4253 = vmatprep.mubr.bf16.mxu0 0
        %4254 = vmatmul.mubr.bf16.gmra.mxu0 %v3554
        %v4255 = vpop.f32.mrf.mxu0
        %v4256 = vadd.f32 0.0, %v4255
        %v4257 = vpop.f32.mrf.mxu0
        %v4258 = vadd.f32 0.0, %v4257
        %v4259 = vpop.f32.mrf.mxu0
        %v4260 = vadd.f32 0.0, %v4259
        %v4261 = vpop.f32.mrf.mxu0
        %v4262 = vadd.f32 0.0, %v4261
        %4263 = vmatprep.mubr.bf16.mxu0 0
        %4264 = vmatmul.mubr.bf16.gmra.mxu0 %v3557
        %v4265 = vpop.f32.mrf.mxu0
        %v4266 = vadd.f32 0.0, %v4265
        %v4267 = vpop.f32.mrf.mxu0
        %v4268 = vadd.f32 0.0, %v4267
        %v4269 = vpop.f32.mrf.mxu0
        %v4270 = vadd.f32 0.0, %v4269
        %v4271 = vpop.f32.mrf.mxu0
        %v4272 = vadd.f32 0.0, %v4271
        %4273 = vmatprep.mubr.bf16.mxu0 0
        %4274 = vmatmul.mubr.bf16.gmra.mxu0 %v3515
        %v4275 = vpop.f32.mrf.mxu0
        %v4276 = vadd.f32 0.0, %v4275
        %v4277 = vpop.f32.mrf.mxu0
        %v4278 = vadd.f32 0.0, %v4277
        %v4279 = vpop.f32.mrf.mxu0
        %v4280 = vadd.f32 0.0, %v4279
        %v4281 = vpop.f32.mrf.mxu0
        %v4282 = vadd.f32 0.0, %v4281
        %4283 = vdwg.mxu0
        %v4284 = vadd.f32 %v3594, %v3870
        %v4285 = vadd.f32 %v3596, %v3872
        %v4286 = vadd.f32 %v3598, %v3874
        %v4287 = vadd.f32 %v3600, %v3876
        %v4288 = vadd.f32 %v3604, %v3880
        %v4289 = vadd.f32 %v3606, %v3882
        %v4290 = vadd.f32 %v3608, %v3884
        %v4291 = vadd.f32 %v3610, %v3886
        %v4292 = vadd.f32 %v3614, %v3890
        %v4293 = vadd.f32 %v3616, %v3892
        %v4294 = vadd.f32 %v3618, %v3894
        %v4295 = vadd.f32 %v3620, %v3896
        %v4296 = vadd.f32 %v3624, %v3900
        %v4297 = vadd.f32 %v3626, %v3902
        %v4298 = vadd.f32 %v3628, %v3904
        %v4299 = vadd.f32 %v3630, %v3906
        %v4300 = vadd.f32 %v3634, %v3910
        %v4301 = vadd.f32 %v3636, %v3912
        %v4302 = vadd.f32 %v3638, %v3914
        %v4303 = vadd.f32 %v3640, %v3916
        %v4304 = vadd.f32 %v3644, %v3920
        %v4305 = vadd.f32 %v3646, %v3922
        %v4306 = vadd.f32 %v3648, %v3924
        %v4307 = vadd.f32 %v3650, %v3926
        %v4308 = vadd.f32 %v3654, %v3930
        %v4309 = vadd.f32 %v3656, %v3932
        %v4310 = vadd.f32 %v3658, %v3934
        %v4311 = vadd.f32 %v3660, %v3936
        %v4312 = vadd.f32 %v3664, %v3940
        %v4313 = vadd.f32 %v3666, %v3942
        %v4314 = vadd.f32 %v3668, %v3944
        %v4315 = vadd.f32 %v3670, %v3946
        %v4316 = vadd.f32 %v3674, %v3950
        %v4317 = vadd.f32 %v3676, %v3952
        %v4318 = vadd.f32 %v3678, %v3954
        %v4319 = vadd.f32 %v3680, %v3956
        %v4320 = vadd.f32 %v3684, %v3960
        %v4321 = vadd.f32 %v3686, %v3962
        %v4322 = vadd.f32 %v3688, %v3964
        %v4323 = vadd.f32 %v3690, %v3966
        %v4324 = vadd.f32 %v3694, %v3970
        %v4325 = vadd.f32 %v3696, %v3972
        %v4326 = vadd.f32 %v3698, %v3974
        %v4327 = vadd.f32 %v3700, %v3976
        %v4328 = vadd.f32 %v3704, %v3980
        %v4329 = vadd.f32 %v3706, %v3982
        %v4330 = vadd.f32 %v3708, %v3984
        %v4331 = vadd.f32 %v3710, %v3986
        %v4332 = vadd.f32 %v3714, %v3990
        %v4333 = vadd.f32 %v3716, %v3992
        %v4334 = vadd.f32 %v3718, %v3994
        %v4335 = vadd.f32 %v3720, %v3996
        %v4336 = vadd.f32 %v3724, %v4000
        %v4337 = vadd.f32 %v3726, %v4002
        %v4338 = vadd.f32 %v3728, %v4004
        %v4339 = vadd.f32 %v3730, %v4006
        %v4340 = vadd.f32 %v4284, %v4146
        %v4341 = vadd.f32 %v4285, %v4148
        %v4342 = vadd.f32 %v4286, %v4150
        %v4343 = vadd.f32 %v4287, %v4152
        %v4344 = vadd.f32 %v4288, %v4156
        %v4345 = vadd.f32 %v4289, %v4158
        %v4346 = vadd.f32 %v4290, %v4160
        %v4347 = vadd.f32 %v4291, %v4162
        %v4348 = vadd.f32 %v4292, %v4166
        %v4349 = vadd.f32 %v4293, %v4168
        %v4350 = vadd.f32 %v4294, %v4170
        %v4351 = vadd.f32 %v4295, %v4172
        %v4352 = vadd.f32 %v4296, %v4176
        %v4353 = vadd.f32 %v4297, %v4178
        %v4354 = vadd.f32 %v4298, %v4180
        %v4355 = vadd.f32 %v4299, %v4182
        %v4356 = vadd.f32 %v4300, %v4186
        %v4357 = vadd.f32 %v4301, %v4188
        %v4358 = vadd.f32 %v4302, %v4190
        %v4359 = vadd.f32 %v4303, %v4192
        %v4360 = vadd.f32 %v4304, %v4196
        %v4361 = vadd.f32 %v4305, %v4198
        %v4362 = vadd.f32 %v4306, %v4200
        %v4363 = vadd.f32 %v4307, %v4202
        %v4364 = vadd.f32 %v4308, %v4206
        %v4365 = vadd.f32 %v4309, %v4208
        %v4366 = vadd.f32 %v4310, %v4210
        %v4367 = vadd.f32 %v4311, %v4212
        %v4368 = vadd.f32 %v4312, %v4216
        %v4369 = vadd.f32 %v4313, %v4218
        %v4370 = vadd.f32 %v4314, %v4220
        %v4371 = vadd.f32 %v4315, %v4222
        %v4372 = vadd.f32 %v4316, %v4226
        %v4373 = vadd.f32 %v4317, %v4228
        %v4374 = vadd.f32 %v4318, %v4230
        %v4375 = vadd.f32 %v4319, %v4232
        %v4376 = vadd.f32 %v4320, %v4236
        %v4377 = vadd.f32 %v4321, %v4238
        %v4378 = vadd.f32 %v4322, %v4240
        %v4379 = vadd.f32 %v4323, %v4242
        %v4380 = vadd.f32 %v4324, %v4246
        %v4381 = vadd.f32 %v4325, %v4248
        %v4382 = vadd.f32 %v4326, %v4250
        %v4383 = vadd.f32 %v4327, %v4252
        %v4384 = vadd.f32 %v4328, %v4256
        %v4385 = vadd.f32 %v4329, %v4258
        %v4386 = vadd.f32 %v4330, %v4260
        %v4387 = vadd.f32 %v4331, %v4262
        %v4388 = vadd.f32 %v4332, %v4266
        %v4389 = vadd.f32 %v4333, %v4268
        %v4390 = vadd.f32 %v4334, %v4270
        %v4391 = vadd.f32 %v4335, %v4272
        %v4392 = vadd.f32 %v4336, %v4276
        %v4393 = vadd.f32 %v4337, %v4278
        %v4394 = vadd.f32 %v4338, %v4280
        %v4395 = vadd.f32 %v4339, %v4282
        %v4396 = vld [vmem:[%s6] sm:$0x3]
        %v4398 = vlaneseq
        %v4399 = vshrl.u32 %v4398, 7
        %v4400 = vsub.s32 0, %v4399
        %v4401 = vrot.slane %v4396, %v4400
        %v4402 = vlaneseq
        %v4403 = vshrl.u32 %v4402, 7
        %v4404 = vsub.s32 1, %v4403
        %v4405 = vrot.slane %v4396, %v4404
        %v4408 = vmul.f32 %v4340, %v4401
        %v4409 = vmul.f32 %v4341, %v4405
        %v4410 = vmul.f32 %v4342, %v4401
        %v4411 = vmul.f32 %v4343, %v4405
        %v4412 = vmul.f32 %v4344, %v4401
        %v4413 = vmul.f32 %v4345, %v4405
        %v4414 = vmul.f32 %v4346, %v4401
        %v4415 = vmul.f32 %v4347, %v4405
        %v4416 = vmul.f32 %v4348, %v4401
        %v4417 = vmul.f32 %v4349, %v4405
        %v4418 = vmul.f32 %v4350, %v4401
        %v4419 = vmul.f32 %v4351, %v4405
        %v4420 = vmul.f32 %v4352, %v4401
        %v4421 = vmul.f32 %v4353, %v4405
        %v4422 = vmul.f32 %v4354, %v4401
        %v4423 = vmul.f32 %v4355, %v4405
        %v4424 = vmul.f32 %v4356, %v4401
        %v4425 = vmul.f32 %v4357, %v4405
        %v4426 = vmul.f32 %v4358, %v4401
        %v4427 = vmul.f32 %v4359, %v4405
        %v4428 = vmul.f32 %v4360, %v4401
        %v4429 = vmul.f32 %v4361, %v4405
        %v4430 = vmul.f32 %v4362, %v4401
        %v4431 = vmul.f32 %v4363, %v4405
        %v4432 = vmul.f32 %v4364, %v4401
        %v4433 = vmul.f32 %v4365, %v4405
        %v4434 = vmul.f32 %v4366, %v4401
        %v4435 = vmul.f32 %v4367, %v4405
        %v4436 = vmul.f32 %v4368, %v4401
        %v4437 = vmul.f32 %v4369, %v4405
        %v4438 = vmul.f32 %v4370, %v4401
        %v4439 = vmul.f32 %v4371, %v4405
        %v4440 = vmul.f32 %v4372, %v4401
        %v4441 = vmul.f32 %v4373, %v4405
        %v4442 = vmul.f32 %v4374, %v4401
        %v4443 = vmul.f32 %v4375, %v4405
        %v4444 = vmul.f32 %v4376, %v4401
        %v4445 = vmul.f32 %v4377, %v4405
        %v4446 = vmul.f32 %v4378, %v4401
        %v4447 = vmul.f32 %v4379, %v4405
        %v4448 = vmul.f32 %v4380, %v4401
        %v4449 = vmul.f32 %v4381, %v4405
        %v4450 = vmul.f32 %v4382, %v4401
        %v4451 = vmul.f32 %v4383, %v4405
        %v4452 = vmul.f32 %v4384, %v4401
        %v4453 = vmul.f32 %v4385, %v4405
        %v4454 = vmul.f32 %v4386, %v4401
        %v4455 = vmul.f32 %v4387, %v4405
        %v4456 = vmul.f32 %v4388, %v4401
        %v4457 = vmul.f32 %v4389, %v4405
        %v4458 = vmul.f32 %v4390, %v4401
        %v4459 = vmul.f32 %v4391, %v4405
        %v4460 = vmul.f32 %v4392, %v4401
        %v4461 = vmul.f32 %v4393, %v4405
        %v4462 = vmul.f32 %v4394, %v4401
        %v4463 = vmul.f32 %v4395, %v4405
        %s4464 = scalar_lea.vmem %s6, 2
        %v4465 = vld [vmem:[%s4464] sm:$0x3]
        %v4467 = vlaneseq
        %v4468 = vshrl.u32 %v4467, 7
        %v4469 = vsub.s32 0, %v4468
        %v4470 = vrot.slane %v4465, %v4469
        %v4471 = vlaneseq
        %v4472 = vshrl.u32 %v4471, 7
        %v4473 = vsub.s32 1, %v4472
        %v4474 = vrot.slane %v4465, %v4473
        %v4477 = vadd.f32 %v4408, %v4470
        %v4478 = vadd.f32 %v4409, %v4474
        %v4479 = vadd.f32 %v4410, %v4470
        %v4480 = vadd.f32 %v4411, %v4474
        %v4481 = vadd.f32 %v4412, %v4470
        %v4482 = vadd.f32 %v4413, %v4474
        %v4483 = vadd.f32 %v4414, %v4470
        %v4484 = vadd.f32 %v4415, %v4474
        %v4485 = vadd.f32 %v4416, %v4470
        %v4486 = vadd.f32 %v4417, %v4474
        %v4487 = vadd.f32 %v4418, %v4470
        %v4488 = vadd.f32 %v4419, %v4474
        %v4489 = vadd.f32 %v4420, %v4470
        %v4490 = vadd.f32 %v4421, %v4474
        %v4491 = vadd.f32 %v4422, %v4470
        %v4492 = vadd.f32 %v4423, %v4474
        %v4493 = vadd.f32 %v4424, %v4470
        %v4494 = vadd.f32 %v4425, %v4474
        %v4495 = vadd.f32 %v4426, %v4470
        %v4496 = vadd.f32 %v4427, %v4474
        %v4497 = vadd.f32 %v4428, %v4470
        %v4498 = vadd.f32 %v4429, %v4474
        %v4499 = vadd.f32 %v4430, %v4470
        %v4500 = vadd.f32 %v4431, %v4474
        %v4501 = vadd.f32 %v4432, %v4470
        %v4502 = vadd.f32 %v4433, %v4474
        %v4503 = vadd.f32 %v4434, %v4470
        %v4504 = vadd.f32 %v4435, %v4474
        %v4505 = vadd.f32 %v4436, %v4470
        %v4506 = vadd.f32 %v4437, %v4474
        %v4507 = vadd.f32 %v4438, %v4470
        %v4508 = vadd.f32 %v4439, %v4474
        %v4509 = vadd.f32 %v4440, %v4470
        %v4510 = vadd.f32 %v4441, %v4474
        %v4511 = vadd.f32 %v4442, %v4470
        %v4512 = vadd.f32 %v4443, %v4474
        %v4513 = vadd.f32 %v4444, %v4470
        %v4514 = vadd.f32 %v4445, %v4474
        %v4515 = vadd.f32 %v4446, %v4470
        %v4516 = vadd.f32 %v4447, %v4474
        %v4517 = vadd.f32 %v4448, %v4470
        %v4518 = vadd.f32 %v4449, %v4474
        %v4519 = vadd.f32 %v4450, %v4470
        %v4520 = vadd.f32 %v4451, %v4474
        %v4521 = vadd.f32 %v4452, %v4470
        %v4522 = vadd.f32 %v4453, %v4474
        %v4523 = vadd.f32 %v4454, %v4470
        %v4524 = vadd.f32 %v4455, %v4474
        %v4525 = vadd.f32 %v4456, %v4470
        %v4526 = vadd.f32 %v4457, %v4474
        %v4527 = vadd.f32 %v4458, %v4470
        %v4528 = vadd.f32 %v4459, %v4474
        %v4529 = vadd.f32 %v4460, %v4470
        %v4530 = vadd.f32 %v4461, %v4474
        %v4531 = vadd.f32 %v4462, %v4470
        %v4532 = vadd.f32 %v4463, %v4474
        %v4533 = vmax.f32 %v4477, 0.0
        %v4534 = vmax.f32 %v4478, 0.0
        %v4535 = vmax.f32 %v4479, 0.0
        %v4536 = vmax.f32 %v4480, 0.0
        %v4537 = vmax.f32 %v4481, 0.0
        %v4538 = vmax.f32 %v4482, 0.0
        %v4539 = vmax.f32 %v4483, 0.0
        %v4540 = vmax.f32 %v4484, 0.0
        %v4541 = vmax.f32 %v4485, 0.0
        %v4542 = vmax.f32 %v4486, 0.0
        %v4543 = vmax.f32 %v4487, 0.0
        %v4544 = vmax.f32 %v4488, 0.0
        %v4545 = vmax.f32 %v4489, 0.0
        %v4546 = vmax.f32 %v4490, 0.0
        %v4547 = vmax.f32 %v4491, 0.0
        %v4548 = vmax.f32 %v4492, 0.0
        %v4549 = vmax.f32 %v4493, 0.0
        %v4550 = vmax.f32 %v4494, 0.0
        %v4551 = vmax.f32 %v4495, 0.0
        %v4552 = vmax.f32 %v4496, 0.0
        %v4553 = vmax.f32 %v4497, 0.0
        %v4554 = vmax.f32 %v4498, 0.0
        %v4555 = vmax.f32 %v4499, 0.0
        %v4556 = vmax.f32 %v4500, 0.0
        %v4557 = vmax.f32 %v4501, 0.0
        %v4558 = vmax.f32 %v4502, 0.0
        %v4559 = vmax.f32 %v4503, 0.0
        %v4560 = vmax.f32 %v4504, 0.0
        %v4561 = vmax.f32 %v4505, 0.0
        %v4562 = vmax.f32 %v4506, 0.0
        %v4563 = vmax.f32 %v4507, 0.0
        %v4564 = vmax.f32 %v4508, 0.0
        %v4565 = vmax.f32 %v4509, 0.0
        %v4566 = vmax.f32 %v4510, 0.0
        %v4567 = vmax.f32 %v4511, 0.0
        %v4568 = vmax.f32 %v4512, 0.0
        %v4569 = vmax.f32 %v4513, 0.0
        %v4570 = vmax.f32 %v4514, 0.0
        %v4571 = vmax.f32 %v4515, 0.0
        %v4572 = vmax.f32 %v4516, 0.0
        %v4573 = vmax.f32 %v4517, 0.0
        %v4574 = vmax.f32 %v4518, 0.0
        %v4575 = vmax.f32 %v4519, 0.0
        %v4576 = vmax.f32 %v4520, 0.0
        %v4577 = vmax.f32 %v4521, 0.0
        %v4578 = vmax.f32 %v4522, 0.0
        %v4579 = vmax.f32 %v4523, 0.0
        %v4580 = vmax.f32 %v4524, 0.0
        %v4581 = vmax.f32 %v4525, 0.0
        %v4582 = vmax.f32 %v4526, 0.0
        %v4583 = vmax.f32 %v4527, 0.0
        %v4584 = vmax.f32 %v4528, 0.0
        %v4585 = vmax.f32 %v4529, 0.0
        %v4586 = vmax.f32 %v4530, 0.0
        %v4587 = vmax.f32 %v4531, 0.0
        %v4588 = vmax.f32 %v4532, 0.0
        %v4589 = vmax.f32 %v4533, %v4537
        %v4590 = vmax.f32 %v4534, %v4538
        %v4591 = vmax.f32 %v4535, %v4539
        %v4592 = vmax.f32 %v4536, %v4540
        %v4593 = vmax.f32 %v4541, %v4545
        %v4594 = vmax.f32 %v4542, %v4546
        %v4595 = vmax.f32 %v4543, %v4547
        %v4596 = vmax.f32 %v4544, %v4548
        %v4597 = vmax.f32 %v4549, %v4553
        %v4598 = vmax.f32 %v4550, %v4554
        %v4599 = vmax.f32 %v4551, %v4555
        %v4600 = vmax.f32 %v4552, %v4556
        %v4601 = vmax.f32 %v4557, %v4561
        %v4602 = vmax.f32 %v4558, %v4562
        %v4603 = vmax.f32 %v4559, %v4563
        %v4604 = vmax.f32 %v4560, %v4564
        %v4605 = vmax.f32 %v4565, %v4569
        %v4606 = vmax.f32 %v4566, %v4570
        %v4607 = vmax.f32 %v4567, %v4571
        %v4608 = vmax.f32 %v4568, %v4572
        %v4609 = vmax.f32 %v4573, %v4577
        %v4610 = vmax.f32 %v4574, %v4578
        %v4611 = vmax.f32 %v4575, %v4579
        %v4612 = vmax.f32 %v4576, %v4580
        %v4613 = vmax.f32 %v4581, %v4585
        %v4614 = vmax.f32 %v4582, %v4586
        %v4615 = vmax.f32 %v4583, %v4587
        %v4616 = vmax.f32 %v4584, %v4588
        %v4617 = vpack.c.bf16 %v4591, %v4589
        %v4618 = vpack.c.bf16 %v4592, %v4590
        %v4619 = vpack.c.bf16 %v4595, %v4593
        %v4620 = vpack.c.bf16 %v4596, %v4594
        %v4621 = vpack.c.bf16 %v4599, %v4597
        %v4622 = vpack.c.bf16 %v4600, %v4598
        %v4623 = vpack.c.bf16 %v4603, %v4601
        %v4624 = vpack.c.bf16 %v4604, %v4602
        %v4625 = vpack.c.bf16 %v4607, %v4605
        %v4626 = vpack.c.bf16 %v4608, %v4606
        %v4627 = vpack.c.bf16 %v4611, %v4609
        %v4628 = vpack.c.bf16 %v4612, %v4610
        %v4629 = vpack.c.bf16 %v4615, %v4613
        %v4630 = vpack.c.bf16 %v4616, %v4614
        %v4631 = vld [vmem:[%s7] sm:$0xf]
        %v4632 = vld [vmem:[%s7 + $0x4] sm:$0xf]
        %v4633 = vld [vmem:[%s7 + $0x8] sm:$0xf]
        %v4634 = vld [vmem:[%s7 + $0xc] sm:$0xf]
        %v4635 = vld [vmem:[%s7 + $0x10] sm:$0xf]
        %v4636 = vld [vmem:[%s7 + $0x14] sm:$0xf]
        %v4637 = vld [vmem:[%s7 + $0x18] sm:$0xf]
        %v4638 = vld [vmem:[%s7 + $0x1c] sm:$0xf]
        %v4639 = vld [vmem:[%s7 + $0x20] sm:$0xf]
        %v4640 = vld [vmem:[%s7 + $0x24] sm:$0xf]
        %v4641 = vld [vmem:[%s7 + $0x28] sm:$0xf]
        %v4642 = vld [vmem:[%s7 + $0x2c] sm:$0xf]
        %v4643 = vld [vmem:[%s7 + $0x30] sm:$0xf]
        %v4644 = vld [vmem:[%s7 + $0x34] sm:$0xf]
        %v4645 = vld [vmem:[%s7 + $0x38] sm:$0xf]
        %v4646 = vld [vmem:[%s7 + $0x3c] sm:$0xf]
        %v4647 = vld [vmem:[%s7 + $0x40] sm:$0xf]
        %v4648 = vld [vmem:[%s7 + $0x44] sm:$0xf]
        %v4649 = vld [vmem:[%s7 + $0x48] sm:$0xf]
        %v4650 = vld [vmem:[%s7 + $0x4c] sm:$0xf]
        %v4651 = vld [vmem:[%s7 + $0x50] sm:$0xf]
        %v4652 = vld [vmem:[%s7 + $0x54] sm:$0xf]
        %v4653 = vld [vmem:[%s7 + $0x58] sm:$0xf]
        %v4654 = vld [vmem:[%s7 + $0x5c] sm:$0xf]
        %v4655 = vld [vmem:[%s7 + $0x60] sm:$0xf]
        %v4656 = vld [vmem:[%s7 + $0x64] sm:$0xf]
        %v4657 = vld [vmem:[%s7 + $0x68] sm:$0xf]
        %v4658 = vld [vmem:[%s7 + $0x6c] sm:$0xf]
        %v4687 = vunpack.c.l.b16 %v4631
        %v4688 = vunpack.c.l.b16 %v4632
        %v4689 = vunpack.c.l.b16 %v4633
        %v4690 = vunpack.c.l.b16 %v4634
        %v4691 = vunpack.c.l.b16 %v4635
        %v4692 = vunpack.c.l.b16 %v4636
        %v4693 = vunpack.c.l.b16 %v4637
        %v4694 = vunpack.c.l.b16 %v4638
        %v4695 = vunpack.c.l.b16 %v4639
        %v4696 = vunpack.c.l.b16 %v4640
        %v4697 = vunpack.c.l.b16 %v4641
        %v4698 = vunpack.c.l.b16 %v4642
        %v4699 = vunpack.c.l.b16 %v4643
        %v4700 = vunpack.c.l.b16 %v4644
        %v4701 = vunpack.c.l.b16 %v4645
        %v4702 = vunpack.c.l.b16 %v4646
        %v4703 = vunpack.c.l.b16 %v4647
        %v4704 = vunpack.c.l.b16 %v4648
        %v4705 = vunpack.c.l.b16 %v4649
        %v4706 = vunpack.c.l.b16 %v4650
        %v4707 = vunpack.c.l.b16 %v4651
        %v4708 = vunpack.c.l.b16 %v4652
        %v4709 = vunpack.c.l.b16 %v4653
        %v4710 = vunpack.c.l.b16 %v4654
        %v4711 = vunpack.c.l.b16 %v4655
        %v4712 = vunpack.c.l.b16 %v4656
        %v4713 = vunpack.c.l.b16 %v4657
        %v4714 = vunpack.c.l.b16 %v4658
        %v4715 = vpack.c.b16 %v4688, %v4687
        %v4716 = vpack.c.b16 %v4690, %v4689
        %v4717 = vpack.c.b16 %v4692, %v4691
        %v4718 = vpack.c.b16 %v4694, %v4693
        %v4719 = vpack.c.b16 %v4696, %v4695
        %v4720 = vpack.c.b16 %v4698, %v4697
        %v4721 = vpack.c.b16 %v4700, %v4699
        %v4722 = vpack.c.b16 %v4702, %v4701
        %v4723 = vpack.c.b16 %v4704, %v4703
        %v4724 = vpack.c.b16 %v4706, %v4705
        %v4725 = vpack.c.b16 %v4708, %v4707
        %v4726 = vpack.c.b16 %v4710, %v4709
        %v4727 = vpack.c.b16 %v4712, %v4711
        %v4728 = vpack.c.b16 %v4714, %v4713
        %v4744 = vsel %vm2943, %v4618, 0
        %v4747 = vsel %vm2943, %v4620, 0
        %v4750 = vsel %vm2943, %v4622, 0
        %v4753 = vsel %vm2943, %v4624, 0
        %v4756 = vsel %vm2943, %v4626, 0
        %v4759 = vsel %vm2943, %v4628, 0
        %v4762 = vsel %vm2943, %v4630, 0
        %4764 = vmatprep.subr.bf16.mxu0 0
        %4765 = vmatpush1.bf16.msra.mxu0 %v4722
        %4766 = vmatprep.subr.bf16.mxu0 0
        %4767 = vmatpush1.bf16.msra.mxu0 %v4721
        %4768 = vmatprep.subr.bf16.mxu0 0
        %4769 = vmatpush1.bf16.msra.mxu0 %v4720
        %4770 = vmatprep.subr.bf16.mxu0 0
        %4771 = vmatpush1.bf16.msra.mxu0 %v4719
        %4772 = vmatprep.subr.bf16.mxu0 0
        %4773 = vmatpush1.bf16.msra.mxu0 %v4718
        %4774 = vmatprep.subr.bf16.mxu0 0
        %4775 = vmatpush1.bf16.msra.mxu0 %v4717
        %4776 = vmatprep.subr.bf16.mxu0 0
        %4777 = vmatpush1.bf16.msra.mxu0 %v4716
        %4778 = vmatprep.subr.bf16.mxu0 0
        %4779 = vmatpush1.bf16.msra.mxu0 %v4715
        %4780 = vmatprep.subr.bf16.mxu0 0
        %4781 = vmatpush2.bf16.msra.mxu0 0
        %4782 = vmatprep.subr.bf16.mxu0 0
        %4783 = vmatpush2.bf16.msra.mxu0 0
        %4784 = vmatprep.subr.bf16.mxu0 0
        %4785 = vmatpush2.bf16.msra.mxu0 %v4728
        %4786 = vmatprep.subr.bf16.mxu0 0
        %4787 = vmatpush2.bf16.msra.mxu0 %v4727
        %4788 = vmatprep.subr.bf16.mxu0 0
        %4789 = vmatpush2.bf16.msra.mxu0 %v4726
        %4790 = vmatprep.subr.bf16.mxu0 0
        %4791 = vmatpush2.bf16.msra.mxu0 %v4725
        %4792 = vmatprep.subr.bf16.mxu0 0
        %4793 = vmatpush2.bf16.msra.mxu0 %v4724
        %4794 = vmatprep.subr.bf16.mxu0 0
        %4795 = vmatpush2.bf16.msra.mxu0 %v4723
        %4796 = vmatprep.mubr.bf16.mxu0 %v4744
        %4797 = vmatmul.mubr.bf16.gmra.mxu0 %v4617
        %v4798 = vpop.f32.mrf.mxu0
        %v4799 = vadd.f32 0.0, %v4798
        %v4800 = vpop.f32.mrf.mxu0
        %v4801 = vpop.f32.mrf.mxu0
        %v4802 = vadd.f32 0.0, %v4801
        %v4803 = vpop.f32.mrf.mxu0
        %4804 = vmatprep.mubr.bf16.mxu0 %v4747
        %4805 = vmatmul.mubr.bf16.gmra.mxu0 %v4619
        %v4806 = vpop.f32.mrf.mxu0
        %v4807 = vadd.f32 0.0, %v4806
        %v4808 = vpop.f32.mrf.mxu0
        %v4809 = vpop.f32.mrf.mxu0
        %v4810 = vadd.f32 0.0, %v4809
        %v4811 = vpop.f32.mrf.mxu0
        %4812 = vmatprep.mubr.bf16.mxu0 %v4750
        %4813 = vmatmul.mubr.bf16.gmra.mxu0 %v4621
        %v4814 = vpop.f32.mrf.mxu0
        %v4815 = vadd.f32 0.0, %v4814
        %v4816 = vpop.f32.mrf.mxu0
        %v4817 = vpop.f32.mrf.mxu0
        %v4818 = vadd.f32 0.0, %v4817
        %v4819 = vpop.f32.mrf.mxu0
        %4820 = vmatprep.mubr.bf16.mxu0 %v4753
        %4821 = vmatmul.mubr.bf16.gmra.mxu0 %v4623
        %v4822 = vpop.f32.mrf.mxu0
        %v4823 = vadd.f32 0.0, %v4822
        %v4824 = vpop.f32.mrf.mxu0
        %v4825 = vpop.f32.mrf.mxu0
        %v4826 = vadd.f32 0.0, %v4825
        %v4827 = vpop.f32.mrf.mxu0
        %4828 = vmatprep.mubr.bf16.mxu0 %v4756
        %4829 = vmatmul.mubr.bf16.gmra.mxu0 %v4625
        %v4830 = vpop.f32.mrf.mxu0
        %v4831 = vadd.f32 0.0, %v4830
        %v4832 = vpop.f32.mrf.mxu0
        %v4833 = vpop.f32.mrf.mxu0
        %v4834 = vadd.f32 0.0, %v4833
        %v4835 = vpop.f32.mrf.mxu0
        %4836 = vmatprep.mubr.bf16.mxu0 %v4759
        %4837 = vmatmul.mubr.bf16.gmra.mxu0 %v4627
        %v4838 = vpop.f32.mrf.mxu0
        %v4839 = vadd.f32 0.0, %v4838
        %v4840 = vpop.f32.mrf.mxu0
        %v4841 = vpop.f32.mrf.mxu0
        %v4842 = vadd.f32 0.0, %v4841
        %v4843 = vpop.f32.mrf.mxu0
        %4844 = vmatprep.mubr.bf16.mxu0 %v4762
        %4845 = vmatmul.mubr.bf16.gmra.mxu0 %v4629
        %v4846 = vpop.f32.mrf.mxu0
        %v4847 = vadd.f32 0.0, %v4846
        %v4848 = vpop.f32.mrf.mxu0
        %v4849 = vpop.f32.mrf.mxu0
        %v4850 = vadd.f32 0.0, %v4849
        %v4851 = vpop.f32.mrf.mxu0
        %4852 = vdwg.mxu0
        %v4853 = vld [vmem:[%s8] sm:$0xf]
        %v4854 = vld [vmem:[%s8 + $0x4] sm:$0xf]
        %v4855 = vld [vmem:[%s8 + $0x8] sm:$0xf]
        %v4856 = vld [vmem:[%s8 + $0xc] sm:$0xf]
        %v4857 = vld [vmem:[%s8 + $0x10] sm:$0xf]
        %v4858 = vld [vmem:[%s8 + $0x14] sm:$0xf]
        %v4859 = vld [vmem:[%s8 + $0x18] sm:$0xf]
        %v4860 = vld [vmem:[%s8 + $0x1c] sm:$0xf]
        %v4861 = vld [vmem:[%s8 + $0x20] sm:$0xf]
        %v4862 = vld [vmem:[%s8 + $0x24] sm:$0xf]
        %v4863 = vld [vmem:[%s8 + $0x28] sm:$0xf]
        %v4864 = vld [vmem:[%s8 + $0x2c] sm:$0xf]
        %v4865 = vld [vmem:[%s8 + $0x30] sm:$0xf]
        %v4866 = vld [vmem:[%s8 + $0x34] sm:$0xf]
        %v4867 = vld [vmem:[%s8 + $0x38] sm:$0xf]
        %v4868 = vld [vmem:[%s8 + $0x3c] sm:$0xf]
        %v4869 = vld [vmem:[%s8 + $0x40] sm:$0xf]
        %v4870 = vld [vmem:[%s8 + $0x44] sm:$0xf]
        %v4871 = vld [vmem:[%s8 + $0x48] sm:$0xf]
        %v4872 = vld [vmem:[%s8 + $0x4c] sm:$0xf]
        %v4873 = vld [vmem:[%s8 + $0x50] sm:$0xf]
        %v4874 = vld [vmem:[%s8 + $0x54] sm:$0xf]
        %v4875 = vld [vmem:[%s8 + $0x58] sm:$0xf]
        %v4876 = vld [vmem:[%s8 + $0x5c] sm:$0xf]
        %v4877 = vld [vmem:[%s8 + $0x60] sm:$0xf]
        %v4878 = vld [vmem:[%s8 + $0x64] sm:$0xf]
        %v4879 = vld [vmem:[%s8 + $0x68] sm:$0xf]
        %v4880 = vld [vmem:[%s8 + $0x6c] sm:$0xf]
        %v4909 = vunpack.c.l.b16 %v4853
        %v4910 = vunpack.c.l.b16 %v4854
        %v4911 = vunpack.c.l.b16 %v4855
        %v4912 = vunpack.c.l.b16 %v4856
        %v4913 = vunpack.c.l.b16 %v4857
        %v4914 = vunpack.c.l.b16 %v4858
        %v4915 = vunpack.c.l.b16 %v4859
        %v4916 = vunpack.c.l.b16 %v4860
        %v4917 = vunpack.c.l.b16 %v4861
        %v4918 = vunpack.c.l.b16 %v4862
        %v4919 = vunpack.c.l.b16 %v4863
        %v4920 = vunpack.c.l.b16 %v4864
        %v4921 = vunpack.c.l.b16 %v4865
        %v4922 = vunpack.c.l.b16 %v4866
        %v4923 = vunpack.c.l.b16 %v4867
        %v4924 = vunpack.c.l.b16 %v4868
        %v4925 = vunpack.c.l.b16 %v4869
        %v4926 = vunpack.c.l.b16 %v4870
        %v4927 = vunpack.c.l.b16 %v4871
        %v4928 = vunpack.c.l.b16 %v4872
        %v4929 = vunpack.c.l.b16 %v4873
        %v4930 = vunpack.c.l.b16 %v4874
        %v4931 = vunpack.c.l.b16 %v4875
        %v4932 = vunpack.c.l.b16 %v4876
        %v4933 = vunpack.c.l.b16 %v4877
        %v4934 = vunpack.c.l.b16 %v4878
        %v4935 = vunpack.c.l.b16 %v4879
        %v4936 = vunpack.c.l.b16 %v4880
        %v4937 = vpack.c.b16 %v4910, %v4909
        %v4938 = vpack.c.b16 %v4912, %v4911
        %v4939 = vpack.c.b16 %v4914, %v4913
        %v4940 = vpack.c.b16 %v4916, %v4915
        %v4941 = vpack.c.b16 %v4918, %v4917
        %v4942 = vpack.c.b16 %v4920, %v4919
        %v4943 = vpack.c.b16 %v4922, %v4921
        %v4944 = vpack.c.b16 %v4924, %v4923
        %v4945 = vpack.c.b16 %v4926, %v4925
        %v4946 = vpack.c.b16 %v4928, %v4927
        %v4947 = vpack.c.b16 %v4930, %v4929
        %v4948 = vpack.c.b16 %v4932, %v4931
        %v4949 = vpack.c.b16 %v4934, %v4933
        %v4950 = vpack.c.b16 %v4936, %v4935
        %4965 = vmatprep.subr.bf16.mxu0 0
        %4966 = vmatpush1.bf16.msra.mxu0 %v4944
        %4967 = vmatprep.subr.bf16.mxu0 0
        %4968 = vmatpush1.bf16.msra.mxu0 %v4943
        %4969 = vmatprep.subr.bf16.mxu0 0
        %4970 = vmatpush1.bf16.msra.mxu0 %v4942
        %4971 = vmatprep.subr.bf16.mxu0 0
        %4972 = vmatpush1.bf16.msra.mxu0 %v4941
        %4973 = vmatprep.subr.bf16.mxu0 0
        %4974 = vmatpush1.bf16.msra.mxu0 %v4940
        %4975 = vmatprep.subr.bf16.mxu0 0
        %4976 = vmatpush1.bf16.msra.mxu0 %v4939
        %4977 = vmatprep.subr.bf16.mxu0 0
        %4978 = vmatpush1.bf16.msra.mxu0 %v4938
        %4979 = vmatprep.subr.bf16.mxu0 0
        %4980 = vmatpush1.bf16.msra.mxu0 %v4937
        %4981 = vmatprep.subr.bf16.mxu0 0
        %4982 = vmatpush2.bf16.msra.mxu0 0
        %4983 = vmatprep.subr.bf16.mxu0 0
        %4984 = vmatpush2.bf16.msra.mxu0 0
        %4985 = vmatprep.subr.bf16.mxu0 0
        %4986 = vmatpush2.bf16.msra.mxu0 %v4950
        %4987 = vmatprep.subr.bf16.mxu0 0
        %4988 = vmatpush2.bf16.msra.mxu0 %v4949
        %4989 = vmatprep.subr.bf16.mxu0 0
        %4990 = vmatpush2.bf16.msra.mxu0 %v4948
        %4991 = vmatprep.subr.bf16.mxu0 0
        %4992 = vmatpush2.bf16.msra.mxu0 %v4947
        %4993 = vmatprep.subr.bf16.mxu0 0
        %4994 = vmatpush2.bf16.msra.mxu0 %v4946
        %4995 = vmatprep.subr.bf16.mxu0 0
        %4996 = vmatpush2.bf16.msra.mxu0 %v4945
        %4997 = vmatprep.mubr.bf16.mxu0 %v4744
        %4998 = vmatmul.mubr.bf16.gmra.mxu0 %v4617
        %v4999 = vpop.f32.mrf.mxu0
        %v5000 = vadd.f32 0.0, %v4999
        %v5001 = vpop.f32.mrf.mxu0
        %v5002 = vpop.f32.mrf.mxu0
        %v5003 = vadd.f32 0.0, %v5002
        %v5004 = vpop.f32.mrf.mxu0
        %5005 = vmatprep.mubr.bf16.mxu0 %v4747
        %5006 = vmatmul.mubr.bf16.gmra.mxu0 %v4619
        %v5007 = vpop.f32.mrf.mxu0
        %v5008 = vadd.f32 0.0, %v5007
        %v5009 = vpop.f32.mrf.mxu0
        %v5010 = vpop.f32.mrf.mxu0
        %v5011 = vadd.f32 0.0, %v5010
        %v5012 = vpop.f32.mrf.mxu0
        %5013 = vmatprep.mubr.bf16.mxu0 %v4750
        %5014 = vmatmul.mubr.bf16.gmra.mxu0 %v4621
        %v5015 = vpop.f32.mrf.mxu0
        %v5016 = vadd.f32 0.0, %v5015
        %v5017 = vpop.f32.mrf.mxu0
        %v5018 = vpop.f32.mrf.mxu0
        %v5019 = vadd.f32 0.0, %v5018
        %v5020 = vpop.f32.mrf.mxu0
        %5021 = vmatprep.mubr.bf16.mxu0 %v4753
        %5022 = vmatmul.mubr.bf16.gmra.mxu0 %v4623
        %v5023 = vpop.f32.mrf.mxu0
        %v5024 = vadd.f32 0.0, %v5023
        %v5025 = vpop.f32.mrf.mxu0
        %v5026 = vpop.f32.mrf.mxu0
        %v5027 = vadd.f32 0.0, %v5026
        %v5028 = vpop.f32.mrf.mxu0
        %5029 = vmatprep.mubr.bf16.mxu0 %v4756
        %5030 = vmatmul.mubr.bf16.gmra.mxu0 %v4625
        %v5031 = vpop.f32.mrf.mxu0
        %v5032 = vadd.f32 0.0, %v5031
        %v5033 = vpop.f32.mrf.mxu0
        %v5034 = vpop.f32.mrf.mxu0
        %v5035 = vadd.f32 0.0, %v5034
        %v5036 = vpop.f32.mrf.mxu0
        %5037 = vmatprep.mubr.bf16.mxu0 %v4759
        %5038 = vmatmul.mubr.bf16.gmra.mxu0 %v4627
        %v5039 = vpop.f32.mrf.mxu0
        %v5040 = vadd.f32 0.0, %v5039
        %v5041 = vpop.f32.mrf.mxu0
        %v5042 = vpop.f32.mrf.mxu0
        %v5043 = vadd.f32 0.0, %v5042
        %v5044 = vpop.f32.mrf.mxu0
        %5045 = vmatprep.mubr.bf16.mxu0 %v4762
        %5046 = vmatmul.mubr.bf16.gmra.mxu0 %v4629
        %v5047 = vpop.f32.mrf.mxu0
        %v5048 = vadd.f32 0.0, %v5047
        %v5049 = vpop.f32.mrf.mxu0
        %v5050 = vpop.f32.mrf.mxu0
        %v5051 = vadd.f32 0.0, %v5050
        %v5052 = vpop.f32.mrf.mxu0
        %5053 = vdwg.mxu0
        %v5054 = vmax.f32 %v4799, %v5000
        %v5055 = vmax.f32 %v4802, %v5003
        %v5056 = vmax.f32 %v4807, %v5008
        %v5057 = vmax.f32 %v4810, %v5011
        %v5058 = vmax.f32 %v4815, %v5016
        %v5059 = vmax.f32 %v4818, %v5019
        %v5060 = vmax.f32 %v4823, %v5024
        %v5061 = vmax.f32 %v4826, %v5027
        %v5062 = vmax.f32 %v4831, %v5032
        %v5063 = vmax.f32 %v4834, %v5035
        %v5064 = vmax.f32 %v4839, %v5040
        %v5065 = vmax.f32 %v4842, %v5043
        %v5066 = vmax.f32 %v4847, %v5048
        %v5067 = vmax.f32 %v4850, %v5051
        %v5068 = vpack.c.bf16 %v5055, %v5054
        %v5069 = vpack.c.bf16 %v5057, %v5056
        %v5070 = vpack.c.bf16 %v5059, %v5058
        %v5071 = vpack.c.bf16 %v5061, %v5060
        %v5072 = vpack.c.bf16 %v5063, %v5062
        %v5073 = vpack.c.bf16 %v5065, %v5064
        %v5074 = vpack.c.bf16 %v5067, %v5066
        %v5075 = vld [vmem:[%s9] sm:$0xff]
        %v5076 = vld [vmem:[%s9 + $0x8] sm:$0xff]
        %v5077 = vld [vmem:[%s9 + $0x10] sm:$0xff]
        %v5078 = vld [vmem:[%s9 + $0x18] sm:$0xff]
        %v5079 = vld [vmem:[%s9 + $0x20] sm:$0xff]
        %v5080 = vld [vmem:[%s9 + $0x28] sm:$0xff]
        %v5081 = vld [vmem:[%s9 + $0x30] sm:$0xff]
        %v5082 = vld [vmem:[%s9 + $0x38] sm:$0xff]
        %v5083 = vld [vmem:[%s9 + $0x40] sm:$0xff]
        %v5084 = vld [vmem:[%s9 + $0x48] sm:$0xff]
        %v5085 = vld [vmem:[%s9 + $0x50] sm:$0xff]
        %v5086 = vld [vmem:[%s9 + $0x58] sm:$0xff]
        %v5087 = vld [vmem:[%s9 + $0x60] sm:$0xff]
        %v5088 = vld [vmem:[%s9 + $0x68] sm:$0xff]
        %v5103 = vunpack.c.l.b16 %v5075
        %v5104 = vunpack.c.h.b16 %v5075
        %v5105 = vunpack.c.l.b16 %v5076
        %v5106 = vunpack.c.h.b16 %v5076
        %v5107 = vunpack.c.l.b16 %v5077
        %v5108 = vunpack.c.h.b16 %v5077
        %v5109 = vunpack.c.l.b16 %v5078
        %v5110 = vunpack.c.h.b16 %v5078
        %v5111 = vunpack.c.l.b16 %v5079
        %v5112 = vunpack.c.h.b16 %v5079
        %v5113 = vunpack.c.l.b16 %v5080
        %v5114 = vunpack.c.h.b16 %v5080
        %v5115 = vunpack.c.l.b16 %v5081
        %v5116 = vunpack.c.h.b16 %v5081
        %v5117 = vunpack.c.l.b16 %v5082
        %v5118 = vunpack.c.h.b16 %v5082
        %v5119 = vunpack.c.l.b16 %v5083
        %v5120 = vunpack.c.h.b16 %v5083
        %v5121 = vunpack.c.l.b16 %v5084
        %v5122 = vunpack.c.h.b16 %v5084
        %v5123 = vunpack.c.l.b16 %v5085
        %v5124 = vunpack.c.h.b16 %v5085
        %v5125 = vunpack.c.l.b16 %v5086
        %v5126 = vunpack.c.h.b16 %v5086
        %v5127 = vunpack.c.l.b16 %v5087
        %v5128 = vunpack.c.h.b16 %v5087
        %v5129 = vunpack.c.l.b16 %v5088
        %v5130 = vunpack.c.h.b16 %v5088
        %v5131 = vpack.c.b16 %v5105, %v5103
        %v5132 = vpack.c.b16 %v5106, %v5104
        %v5133 = vpack.c.b16 %v5109, %v5107
        %v5134 = vpack.c.b16 %v5110, %v5108
        %v5135 = vpack.c.b16 %v5113, %v5111
        %v5136 = vpack.c.b16 %v5114, %v5112
        %v5137 = vpack.c.b16 %v5117, %v5115
        %v5138 = vpack.c.b16 %v5118, %v5116
        %v5139 = vpack.c.b16 %v5121, %v5119
        %v5140 = vpack.c.b16 %v5122, %v5120
        %v5141 = vpack.c.b16 %v5125, %v5123
        %v5142 = vpack.c.b16 %v5126, %v5124
        %v5143 = vpack.c.b16 %v5129, %v5127
        %v5144 = vpack.c.b16 %v5130, %v5128
        %v5160 = vsel %vm3514, %v5068, 0
        %v5163 = vsel %vm3514, %v5069, 0
        %v5166 = vsel %vm3514, %v5070, 0
        %v5169 = vsel %vm3514, %v5071, 0
        %v5172 = vsel %vm3514, %v5072, 0
        %v5175 = vsel %vm3514, %v5073, 0
        %v5178 = vsel %vm3514, %v5074, 0
        %5180 = vmatprep.subr.bf16.mxu0 0
        %5181 = vmatpush1.bf16.msra.mxu0 0
        %5182 = vmatprep.subr.bf16.mxu0 %v5144
        %5183 = vmatpush1.bf16.msra.mxu0 %v5143
        %5184 = vmatprep.subr.bf16.mxu0 %v5142
        %5185 = vmatpush1.bf16.msra.mxu0 %v5141
        %5186 = vmatprep.subr.bf16.mxu0 %v5140
        %5187 = vmatpush1.bf16.msra.mxu0 %v5139
        %5188 = vmatprep.subr.bf16.mxu0 %v5138
        %5189 = vmatpush1.bf16.msra.mxu0 %v5137
        %5190 = vmatprep.subr.bf16.mxu0 %v5136
        %5191 = vmatpush1.bf16.msra.mxu0 %v5135
        %5192 = vmatprep.subr.bf16.mxu0 %v5134
        %5193 = vmatpush1.bf16.msra.mxu0 %v5133
        %5194 = vmatprep.subr.bf16.mxu0 %v5132
        %5195 = vmatpush1.bf16.msra.mxu0 %v5131
        %5196 = vmatprep.subr.bf16.mxu0 0
        %5197 = vmatpush2.bf16.msra.mxu0 0
        %5198 = vmatprep.subr.bf16.mxu0 0
        %5199 = vmatpush2.bf16.msra.mxu0 0
        %5200 = vmatprep.subr.bf16.mxu0 0
        %5201 = vmatpush2.bf16.msra.mxu0 0
        %5202 = vmatprep.subr.bf16.mxu0 0
        %5203 = vmatpush2.bf16.msra.mxu0 0
        %5204 = vmatprep.subr.bf16.mxu0 0
        %5205 = vmatpush2.bf16.msra.mxu0 0
        %5206 = vmatprep.subr.bf16.mxu0 0
        %5207 = vmatpush2.bf16.msra.mxu0 0
        %5208 = vmatprep.subr.bf16.mxu0 0
        %5209 = vmatpush2.bf16.msra.mxu0 0
        %5210 = vmatprep.subr.bf16.mxu0 0
        %5211 = vmatpush2.bf16.msra.mxu0 0
        %5212 = vmatprep.mubr.bf16.mxu0 0
        %5213 = vmatmul.mubr.bf16.gmra.mxu0 %v3515
        %v5214 = vpop.f32.mrf.mxu0
        %v5215 = vadd.f32 0.0, %v5214
        %v5216 = vpop.f32.mrf.mxu0
        %v5217 = vadd.f32 0.0, %v5216
        %v5218 = vpop.f32.mrf.mxu0
        %v5219 = vadd.f32 0.0, %v5218
        %v5220 = vpop.f32.mrf.mxu0
        %v5221 = vadd.f32 0.0, %v5220
        %5222 = vmatprep.mubr.bf16.mxu0 0
        %5223 = vmatmul.mubr.bf16.gmra.mxu0 %v5160
        %v5224 = vpop.f32.mrf.mxu0
        %v5225 = vadd.f32 0.0, %v5224
        %v5226 = vpop.f32.mrf.mxu0
        %v5227 = vadd.f32 0.0, %v5226
        %v5228 = vpop.f32.mrf.mxu0
        %v5229 = vadd.f32 0.0, %v5228
        %v5230 = vpop.f32.mrf.mxu0
        %v5231 = vadd.f32 0.0, %v5230
        %5232 = vmatprep.mubr.bf16.mxu0 0
        %5233 = vmatmul.mubr.bf16.gmra.mxu0 %v5163
        %v5234 = vpop.f32.mrf.mxu0
        %v5235 = vadd.f32 0.0, %v5234
        %v5236 = vpop.f32.mrf.mxu0
        %v5237 = vadd.f32 0.0, %v5236
        %v5238 = vpop.f32.mrf.mxu0
        %v5239 = vadd.f32 0.0, %v5238
        %v5240 = vpop.f32.mrf.mxu0
        %v5241 = vadd.f32 0.0, %v5240
        %5242 = vmatprep.mubr.bf16.mxu0 0
        %5243 = vmatmul.mubr.bf16.gmra.mxu0 %v5166
        %v5244 = vpop.f32.mrf.mxu0
        %v5245 = vadd.f32 0.0, %v5244
        %v5246 = vpop.f32.mrf.mxu0
        %v5247 = vadd.f32 0.0, %v5246
        %v5248 = vpop.f32.mrf.mxu0
        %v5249 = vadd.f32 0.0, %v5248
        %v5250 = vpop.f32.mrf.mxu0
        %v5251 = vadd.f32 0.0, %v5250
        %5252 = vmatprep.mubr.bf16.mxu0 0
        %5253 = vmatmul.mubr.bf16.gmra.mxu0 %v5169
        %v5254 = vpop.f32.mrf.mxu0
        %v5255 = vadd.f32 0.0, %v5254
        %v5256 = vpop.f32.mrf.mxu0
        %v5257 = vadd.f32 0.0, %v5256
        %v5258 = vpop.f32.mrf.mxu0
        %v5259 = vadd.f32 0.0, %v5258
        %v5260 = vpop.f32.mrf.mxu0
        %v5261 = vadd.f32 0.0, %v5260
        %5262 = vmatprep.mubr.bf16.mxu0 0
        %5263 = vmatmul.mubr.bf16.gmra.mxu0 %v5172
        %v5264 = vpop.f32.mrf.mxu0
        %v5265 = vadd.f32 0.0, %v5264
        %v5266 = vpop.f32.mrf.mxu0
        %v5267 = vadd.f32 0.0, %v5266
        %v5268 = vpop.f32.mrf.mxu0
        %v5269 = vadd.f32 0.0, %v5268
        %v5270 = vpop.f32.mrf.mxu0
        %v5271 = vadd.f32 0.0, %v5270
        %5272 = vmatprep.mubr.bf16.mxu0 0
        %5273 = vmatmul.mubr.bf16.gmra.mxu0 %v5175
        %v5274 = vpop.f32.mrf.mxu0
        %v5275 = vpop.f32.mrf.mxu0
        %v5276 = vpop.f32.mrf.mxu0
        %v5277 = vpop.f32.mrf.mxu0
        %5278 = vmatprep.mubr.bf16.mxu0 0
        %5279 = vmatmul.mubr.bf16.gmra.mxu0 %v5178
        %v5280 = vpop.f32.mrf.mxu0
        %v5281 = vpop.f32.mrf.mxu0
        %v5282 = vpop.f32.mrf.mxu0
        %v5283 = vpop.f32.mrf.mxu0
        %5284 = vmatprep.mubr.bf16.mxu0 0
        %5285 = vmatmul.mubr.bf16.gmra.mxu0 %v3515
        %v5286 = vpop.f32.mrf.mxu0
        %v5287 = vpop.f32.mrf.mxu0
        %v5288 = vpop.f32.mrf.mxu0
        %v5289 = vpop.f32.mrf.mxu0
        %5290 = vdwg.mxu0
        %s5291 = scalar_lea.vmem %s9, 112
        %v5292 = vld [vmem:[%s5291] sm:$0xff]
        %v5293 = vld [vmem:[%s5291 + $0x8] sm:$0xff]
        %v5294 = vld [vmem:[%s5291 + $0x10] sm:$0xff]
        %v5295 = vld [vmem:[%s5291 + $0x18] sm:$0xff]
        %v5296 = vld [vmem:[%s5291 + $0x20] sm:$0xff]
        %v5297 = vld [vmem:[%s5291 + $0x28] sm:$0xff]
        %v5298 = vld [vmem:[%s5291 + $0x30] sm:$0xff]
        %v5299 = vld [vmem:[%s5291 + $0x38] sm:$0xff]
        %v5300 = vld [vmem:[%s5291 + $0x40] sm:$0xff]
        %v5301 = vld [vmem:[%s5291 + $0x48] sm:$0xff]
        %v5302 = vld [vmem:[%s5291 + $0x50] sm:$0xff]
        %v5303 = vld [vmem:[%s5291 + $0x58] sm:$0xff]
        %v5304 = vld [vmem:[%s5291 + $0x60] sm:$0xff]
        %v5305 = vld [vmem:[%s5291 + $0x68] sm:$0xff]
        %v5320 = vunpack.c.l.b16 %v5292
        %v5321 = vunpack.c.h.b16 %v5292
        %v5322 = vunpack.c.l.b16 %v5293
        %v5323 = vunpack.c.h.b16 %v5293
        %v5324 = vunpack.c.l.b16 %v5294
        %v5325 = vunpack.c.h.b16 %v5294
        %v5326 = vunpack.c.l.b16 %v5295
        %v5327 = vunpack.c.h.b16 %v5295
        %v5328 = vunpack.c.l.b16 %v5296
        %v5329 = vunpack.c.h.b16 %v5296
        %v5330 = vunpack.c.l.b16 %v5297
        %v5331 = vunpack.c.h.b16 %v5297
        %v5332 = vunpack.c.l.b16 %v5298
        %v5333 = vunpack.c.h.b16 %v5298
        %v5334 = vunpack.c.l.b16 %v5299
        %v5335 = vunpack.c.h.b16 %v5299
        %v5336 = vunpack.c.l.b16 %v5300
        %v5337 = vunpack.c.h.b16 %v5300
        %v5338 = vunpack.c.l.b16 %v5301
        %v5339 = vunpack.c.h.b16 %v5301
        %v5340 = vunpack.c.l.b16 %v5302
        %v5341 = vunpack.c.h.b16 %v5302
        %v5342 = vunpack.c.l.b16 %v5303
        %v5343 = vunpack.c.h.b16 %v5303
        %v5344 = vunpack.c.l.b16 %v5304
        %v5345 = vunpack.c.h.b16 %v5304
        %v5346 = vunpack.c.l.b16 %v5305
        %v5347 = vunpack.c.h.b16 %v5305
        %v5348 = vpack.c.b16 %v5322, %v5320
        %v5349 = vpack.c.b16 %v5323, %v5321
        %v5350 = vpack.c.b16 %v5326, %v5324
        %v5351 = vpack.c.b16 %v5327, %v5325
        %v5352 = vpack.c.b16 %v5330, %v5328
        %v5353 = vpack.c.b16 %v5331, %v5329
        %v5354 = vpack.c.b16 %v5334, %v5332
        %v5355 = vpack.c.b16 %v5335, %v5333
        %v5356 = vpack.c.b16 %v5338, %v5336
        %v5357 = vpack.c.b16 %v5339, %v5337
        %v5358 = vpack.c.b16 %v5342, %v5340
        %v5359 = vpack.c.b16 %v5343, %v5341
        %v5360 = vpack.c.b16 %v5346, %v5344
        %v5361 = vpack.c.b16 %v5347, %v5345
        %5376 = vmatprep.subr.bf16.mxu0 0
        %5377 = vmatpush1.bf16.msra.mxu0 0
        %5378 = vmatprep.subr.bf16.mxu0 %v5361
        %5379 = vmatpush1.bf16.msra.mxu0 %v5360
        %5380 = vmatprep.subr.bf16.mxu0 %v5359
        %5381 = vmatpush1.bf16.msra.mxu0 %v5358
        %5382 = vmatprep.subr.bf16.mxu0 %v5357
        %5383 = vmatpush1.bf16.msra.mxu0 %v5356
        %5384 = vmatprep.subr.bf16.mxu0 %v5355
        %5385 = vmatpush1.bf16.msra.mxu0 %v5354
        %5386 = vmatprep.subr.bf16.mxu0 %v5353
        %5387 = vmatpush1.bf16.msra.mxu0 %v5352
        %5388 = vmatprep.subr.bf16.mxu0 %v5351
        %5389 = vmatpush1.bf16.msra.mxu0 %v5350
        %5390 = vmatprep.subr.bf16.mxu0 %v5349
        %5391 = vmatpush1.bf16.msra.mxu0 %v5348
        %5392 = vmatprep.subr.bf16.mxu0 0
        %5393 = vmatpush2.bf16.msra.mxu0 0
        %5394 = vmatprep.subr.bf16.mxu0 0
        %5395 = vmatpush2.bf16.msra.mxu0 0
        %5396 = vmatprep.subr.bf16.mxu0 0
        %5397 = vmatpush2.bf16.msra.mxu0 0
        %5398 = vmatprep.subr.bf16.mxu0 0
        %5399 = vmatpush2.bf16.msra.mxu0 0
        %5400 = vmatprep.subr.bf16.mxu0 0
        %5401 = vmatpush2.bf16.msra.mxu0 0
        %5402 = vmatprep.subr.bf16.mxu0 0
        %5403 = vmatpush2.bf16.msra.mxu0 0
        %5404 = vmatprep.subr.bf16.mxu0 0
        %5405 = vmatpush2.bf16.msra.mxu0 0
        %5406 = vmatprep.subr.bf16.mxu0 0
        %5407 = vmatpush2.bf16.msra.mxu0 0
        %5408 = vmatprep.mubr.bf16.mxu0 0
        %5409 = vmatmul.mubr.bf16.gmra.mxu0 %v3515
        %v5410 = vpop.f32.mrf.mxu0
        %v5411 = vpop.f32.mrf.mxu0
        %v5412 = vpop.f32.mrf.mxu0
        %v5413 = vpop.f32.mrf.mxu0
        %5414 = vmatprep.mubr.bf16.mxu0 0
        %5415 = vmatmul.mubr.bf16.gmra.mxu0 %v5160
        %v5416 = vpop.f32.mrf.mxu0
        %v5417 = vadd.f32 0.0, %v5416
        %v5418 = vpop.f32.mrf.mxu0
        %v5419 = vadd.f32 0.0, %v5418
        %v5420 = vpop.f32.mrf.mxu0
        %v5421 = vadd.f32 0.0, %v5420
        %v5422 = vpop.f32.mrf.mxu0
        %v5423 = vadd.f32 0.0, %v5422
        %5424 = vmatprep.mubr.bf16.mxu0 0
        %5425 = vmatmul.mubr.bf16.gmra.mxu0 %v5163
        %v5426 = vpop.f32.mrf.mxu0
        %v5427 = vadd.f32 0.0, %v5426
        %v5428 = vpop.f32.mrf.mxu0
        %v5429 = vadd.f32 0.0, %v5428
        %v5430 = vpop.f32.mrf.mxu0
        %v5431 = vadd.f32 0.0, %v5430
        %v5432 = vpop.f32.mrf.mxu0
        %v5433 = vadd.f32 0.0, %v5432
        %5434 = vmatprep.mubr.bf16.mxu0 0
        %5435 = vmatmul.mubr.bf16.gmra.mxu0 %v5166
        %v5436 = vpop.f32.mrf.mxu0
        %v5437 = vadd.f32 0.0, %v5436
        %v5438 = vpop.f32.mrf.mxu0
        %v5439 = vadd.f32 0.0, %v5438
        %v5440 = vpop.f32.mrf.mxu0
        %v5441 = vadd.f32 0.0, %v5440
        %v5442 = vpop.f32.mrf.mxu0
        %v5443 = vadd.f32 0.0, %v5442
        %5444 = vmatprep.mubr.bf16.mxu0 0
        %5445 = vmatmul.mubr.bf16.gmra.mxu0 %v5169
        %v5446 = vpop.f32.mrf.mxu0
        %v5447 = vadd.f32 0.0, %v5446
        %v5448 = vpop.f32.mrf.mxu0
        %v5449 = vadd.f32 0.0, %v5448
        %v5450 = vpop.f32.mrf.mxu0
        %v5451 = vadd.f32 0.0, %v5450
        %v5452 = vpop.f32.mrf.mxu0
        %v5453 = vadd.f32 0.0, %v5452
        %5454 = vmatprep.mubr.bf16.mxu0 0
        %5455 = vmatmul.mubr.bf16.gmra.mxu0 %v5172
        %v5456 = vpop.f32.mrf.mxu0
        %v5457 = vadd.f32 0.0, %v5456
        %v5458 = vpop.f32.mrf.mxu0
        %v5459 = vadd.f32 0.0, %v5458
        %v5460 = vpop.f32.mrf.mxu0
        %v5461 = vadd.f32 0.0, %v5460
        %v5462 = vpop.f32.mrf.mxu0
        %v5463 = vadd.f32 0.0, %v5462
        %5464 = vmatprep.mubr.bf16.mxu0 0
        %5465 = vmatmul.mubr.bf16.gmra.mxu0 %v5175
        %v5466 = vpop.f32.mrf.mxu0
        %v5467 = vadd.f32 0.0, %v5466
        %v5468 = vpop.f32.mrf.mxu0
        %v5469 = vadd.f32 0.0, %v5468
        %v5470 = vpop.f32.mrf.mxu0
        %v5471 = vadd.f32 0.0, %v5470
        %v5472 = vpop.f32.mrf.mxu0
        %v5473 = vadd.f32 0.0, %v5472
        %5474 = vmatprep.mubr.bf16.mxu0 0
        %5475 = vmatmul.mubr.bf16.gmra.mxu0 %v5178
        %v5476 = vpop.f32.mrf.mxu0
        %v5477 = vpop.f32.mrf.mxu0
        %v5478 = vpop.f32.mrf.mxu0
        %v5479 = vpop.f32.mrf.mxu0
        %5480 = vmatprep.mubr.bf16.mxu0 0
        %5481 = vmatmul.mubr.bf16.gmra.mxu0 %v3515
        %v5482 = vpop.f32.mrf.mxu0
        %v5483 = vpop.f32.mrf.mxu0
        %v5484 = vpop.f32.mrf.mxu0
        %v5485 = vpop.f32.mrf.mxu0
        %5486 = vdwg.mxu0
        %s5487 = scalar_lea.vmem %s9, 224
        %v5488 = vld [vmem:[%s5487] sm:$0xff]
        %v5489 = vld [vmem:[%s5487 + $0x8] sm:$0xff]
        %v5490 = vld [vmem:[%s5487 + $0x10] sm:$0xff]
        %v5491 = vld [vmem:[%s5487 + $0x18] sm:$0xff]
        %v5492 = vld [vmem:[%s5487 + $0x20] sm:$0xff]
        %v5493 = vld [vmem:[%s5487 + $0x28] sm:$0xff]
        %v5494 = vld [vmem:[%s5487 + $0x30] sm:$0xff]
        %v5495 = vld [vmem:[%s5487 + $0x38] sm:$0xff]
        %v5496 = vld [vmem:[%s5487 + $0x40] sm:$0xff]
        %v5497 = vld [vmem:[%s5487 + $0x48] sm:$0xff]
        %v5498 = vld [vmem:[%s5487 + $0x50] sm:$0xff]
        %v5499 = vld [vmem:[%s5487 + $0x58] sm:$0xff]
        %v5500 = vld [vmem:[%s5487 + $0x60] sm:$0xff]
        %v5501 = vld [vmem:[%s5487 + $0x68] sm:$0xff]
        %v5516 = vunpack.c.l.b16 %v5488
        %v5517 = vunpack.c.h.b16 %v5488
        %v5518 = vunpack.c.l.b16 %v5489
        %v5519 = vunpack.c.h.b16 %v5489
        %v5520 = vunpack.c.l.b16 %v5490
        %v5521 = vunpack.c.h.b16 %v5490
        %v5522 = vunpack.c.l.b16 %v5491
        %v5523 = vunpack.c.h.b16 %v5491
        %v5524 = vunpack.c.l.b16 %v5492
        %v5525 = vunpack.c.h.b16 %v5492
        %v5526 = vunpack.c.l.b16 %v5493
        %v5527 = vunpack.c.h.b16 %v5493
        %v5528 = vunpack.c.l.b16 %v5494
        %v5529 = vunpack.c.h.b16 %v5494
        %v5530 = vunpack.c.l.b16 %v5495
        %v5531 = vunpack.c.h.b16 %v5495
        %v5532 = vunpack.c.l.b16 %v5496
        %v5533 = vunpack.c.h.b16 %v5496
        %v5534 = vunpack.c.l.b16 %v5497
        %v5535 = vunpack.c.h.b16 %v5497
        %v5536 = vunpack.c.l.b16 %v5498
        %v5537 = vunpack.c.h.b16 %v5498
        %v5538 = vunpack.c.l.b16 %v5499
        %v5539 = vunpack.c.h.b16 %v5499
        %v5540 = vunpack.c.l.b16 %v5500
        %v5541 = vunpack.c.h.b16 %v5500
        %v5542 = vunpack.c.l.b16 %v5501
        %v5543 = vunpack.c.h.b16 %v5501
        %v5544 = vpack.c.b16 %v5518, %v5516
        %v5545 = vpack.c.b16 %v5519, %v5517
        %v5546 = vpack.c.b16 %v5522, %v5520
        %v5547 = vpack.c.b16 %v5523, %v5521
        %v5548 = vpack.c.b16 %v5526, %v5524
        %v5549 = vpack.c.b16 %v5527, %v5525
        %v5550 = vpack.c.b16 %v5530, %v5528
        %v5551 = vpack.c.b16 %v5531, %v5529
        %v5552 = vpack.c.b16 %v5534, %v5532
        %v5553 = vpack.c.b16 %v5535, %v5533
        %v5554 = vpack.c.b16 %v5538, %v5536
        %v5555 = vpack.c.b16 %v5539, %v5537
        %v5556 = vpack.c.b16 %v5542, %v5540
        %v5557 = vpack.c.b16 %v5543, %v5541
        %5572 = vmatprep.subr.bf16.mxu0 0
        %5573 = vmatpush1.bf16.msra.mxu0 0
        %5574 = vmatprep.subr.bf16.mxu0 %v5557
        %5575 = vmatpush1.bf16.msra.mxu0 %v5556
        %5576 = vmatprep.subr.bf16.mxu0 %v5555
        %5577 = vmatpush1.bf16.msra.mxu0 %v5554
        %5578 = vmatprep.subr.bf16.mxu0 %v5553
        %5579 = vmatpush1.bf16.msra.mxu0 %v5552
        %5580 = vmatprep.subr.bf16.mxu0 %v5551
        %5581 = vmatpush1.bf16.msra.mxu0 %v5550
        %5582 = vmatprep.subr.bf16.mxu0 %v5549
        %5583 = vmatpush1.bf16.msra.mxu0 %v5548
        %5584 = vmatprep.subr.bf16.mxu0 %v5547
        %5585 = vmatpush1.bf16.msra.mxu0 %v5546
        %5586 = vmatprep.subr.bf16.mxu0 %v5545
        %5587 = vmatpush1.bf16.msra.mxu0 %v5544
        %5588 = vmatprep.subr.bf16.mxu0 0
        %5589 = vmatpush2.bf16.msra.mxu0 0
        %5590 = vmatprep.subr.bf16.mxu0 0
        %5591 = vmatpush2.bf16.msra.mxu0 0
        %5592 = vmatprep.subr.bf16.mxu0 0
        %5593 = vmatpush2.bf16.msra.mxu0 0
        %5594 = vmatprep.subr.bf16.mxu0 0
        %5595 = vmatpush2.bf16.msra.mxu0 0
        %5596 = vmatprep.subr.bf16.mxu0 0
        %5597 = vmatpush2.bf16.msra.mxu0 0
        %5598 = vmatprep.subr.bf16.mxu0 0
        %5599 = vmatpush2.bf16.msra.mxu0 0
        %5600 = vmatprep.subr.bf16.mxu0 0
        %5601 = vmatpush2.bf16.msra.mxu0 0
        %5602 = vmatprep.subr.bf16.mxu0 0
        %5603 = vmatpush2.bf16.msra.mxu0 0
        %5604 = vmatprep.mubr.bf16.mxu0 0
        %5605 = vmatmul.mubr.bf16.gmra.mxu0 %v3515
        %v5606 = vpop.f32.mrf.mxu0
        %v5607 = vpop.f32.mrf.mxu0
        %v5608 = vpop.f32.mrf.mxu0
        %v5609 = vpop.f32.mrf.mxu0
        %5610 = vmatprep.mubr.bf16.mxu0 0
        %5611 = vmatmul.mubr.bf16.gmra.mxu0 %v5160
        %v5612 = vpop.f32.mrf.mxu0
        %v5613 = vpop.f32.mrf.mxu0
        %v5614 = vpop.f32.mrf.mxu0
        %v5615 = vpop.f32.mrf.mxu0
        %5616 = vmatprep.mubr.bf16.mxu0 0
        %5617 = vmatmul.mubr.bf16.gmra.mxu0 %v5163
        %v5618 = vpop.f32.mrf.mxu0
        %v5619 = vadd.f32 0.0, %v5618
        %v5620 = vpop.f32.mrf.mxu0
        %v5621 = vadd.f32 0.0, %v5620
        %v5622 = vpop.f32.mrf.mxu0
        %v5623 = vadd.f32 0.0, %v5622
        %v5624 = vpop.f32.mrf.mxu0
        %v5625 = vadd.f32 0.0, %v5624
        %5626 = vmatprep.mubr.bf16.mxu0 0
        %5627 = vmatmul.mubr.bf16.gmra.mxu0 %v5166
        %v5628 = vpop.f32.mrf.mxu0
        %v5629 = vadd.f32 0.0, %v5628
        %v5630 = vpop.f32.mrf.mxu0
        %v5631 = vadd.f32 0.0, %v5630
        %v5632 = vpop.f32.mrf.mxu0
        %v5633 = vadd.f32 0.0, %v5632
        %v5634 = vpop.f32.mrf.mxu0
        %v5635 = vadd.f32 0.0, %v5634
        %5636 = vmatprep.mubr.bf16.mxu0 0
        %5637 = vmatmul.mubr.bf16.gmra.mxu0 %v5169
        %v5638 = vpop.f32.mrf.mxu0
        %v5639 = vadd.f32 0.0, %v5638
        %v5640 = vpop.f32.mrf.mxu0
        %v5641 = vadd.f32 0.0, %v5640
        %v5642 = vpop.f32.mrf.mxu0
        %v5643 = vadd.f32 0.0, %v5642
        %v5644 = vpop.f32.mrf.mxu0
        %v5645 = vadd.f32 0.0, %v5644
        %5646 = vmatprep.mubr.bf16.mxu0 0
        %5647 = vmatmul.mubr.bf16.gmra.mxu0 %v5172
        %v5648 = vpop.f32.mrf.mxu0
        %v5649 = vadd.f32 0.0, %v5648
        %v5650 = vpop.f32.mrf.mxu0
        %v5651 = vadd.f32 0.0, %v5650
        %v5652 = vpop.f32.mrf.mxu0
        %v5653 = vadd.f32 0.0, %v5652
        %v5654 = vpop.f32.mrf.mxu0
        %v5655 = vadd.f32 0.0, %v5654
        %5656 = vmatprep.mubr.bf16.mxu0 0
        %5657 = vmatmul.mubr.bf16.gmra.mxu0 %v5175
        %v5658 = vpop.f32.mrf.mxu0
        %v5659 = vadd.f32 0.0, %v5658
        %v5660 = vpop.f32.mrf.mxu0
        %v5661 = vadd.f32 0.0, %v5660
        %v5662 = vpop.f32.mrf.mxu0
        %v5663 = vadd.f32 0.0, %v5662
        %v5664 = vpop.f32.mrf.mxu0
        %v5665 = vadd.f32 0.0, %v5664
        %5666 = vmatprep.mubr.bf16.mxu0 0
        %5667 = vmatmul.mubr.bf16.gmra.mxu0 %v5178
        %v5668 = vpop.f32.mrf.mxu0
        %v5669 = vadd.f32 0.0, %v5668
        %v5670 = vpop.f32.mrf.mxu0
        %v5671 = vadd.f32 0.0, %v5670
        %v5672 = vpop.f32.mrf.mxu0
        %v5673 = vadd.f32 0.0, %v5672
        %v5674 = vpop.f32.mrf.mxu0
        %v5675 = vadd.f32 0.0, %v5674
        %5676 = vmatprep.mubr.bf16.mxu0 0
        %5677 = vmatmul.mubr.bf16.gmra.mxu0 %v3515
        %v5678 = vpop.f32.mrf.mxu0
        %v5679 = vpop.f32.mrf.mxu0
        %v5680 = vpop.f32.mrf.mxu0
        %v5681 = vpop.f32.mrf.mxu0
        %5682 = vdwg.mxu0
        %v5683 = vadd.f32 %v5215, %v5417
        %v5684 = vadd.f32 %v5217, %v5419
        %v5685 = vadd.f32 %v5219, %v5421
        %v5686 = vadd.f32 %v5221, %v5423
        %v5687 = vadd.f32 %v5225, %v5427
        %v5688 = vadd.f32 %v5227, %v5429
        %v5689 = vadd.f32 %v5229, %v5431
        %v5690 = vadd.f32 %v5231, %v5433
        %v5691 = vadd.f32 %v5235, %v5437
        %v5692 = vadd.f32 %v5237, %v5439
        %v5693 = vadd.f32 %v5239, %v5441
        %v5694 = vadd.f32 %v5241, %v5443
        %v5695 = vadd.f32 %v5245, %v5447
        %v5696 = vadd.f32 %v5247, %v5449
        %v5697 = vadd.f32 %v5249, %v5451
        %v5698 = vadd.f32 %v5251, %v5453
        %v5699 = vadd.f32 %v5255, %v5457
        %v5700 = vadd.f32 %v5257, %v5459
        %v5701 = vadd.f32 %v5259, %v5461
        %v5702 = vadd.f32 %v5261, %v5463
        %v5703 = vadd.f32 %v5265, %v5467
        %v5704 = vadd.f32 %v5267, %v5469
        %v5705 = vadd.f32 %v5269, %v5471
        %v5706 = vadd.f32 %v5271, %v5473
        %v5707 = vadd.f32 %v5683, %v5619
        %v5708 = vadd.f32 %v5684, %v5621
        %v5709 = vadd.f32 %v5685, %v5623
        %v5710 = vadd.f32 %v5686, %v5625
        %v5711 = vadd.f32 %v5687, %v5629
        %v5712 = vadd.f32 %v5688, %v5631
        %v5713 = vadd.f32 %v5689, %v5633
        %v5714 = vadd.f32 %v5690, %v5635
        %v5715 = vadd.f32 %v5691, %v5639
        %v5716 = vadd.f32 %v5692, %v5641
        %v5717 = vadd.f32 %v5693, %v5643
        %v5718 = vadd.f32 %v5694, %v5645
        %v5719 = vadd.f32 %v5695, %v5649
        %v5720 = vadd.f32 %v5696, %v5651
        %v5721 = vadd.f32 %v5697, %v5653
        %v5722 = vadd.f32 %v5698, %v5655
        %v5723 = vadd.f32 %v5699, %v5659
        %v5724 = vadd.f32 %v5700, %v5661
        %v5725 = vadd.f32 %v5701, %v5663
        %v5726 = vadd.f32 %v5702, %v5665
        %v5727 = vadd.f32 %v5703, %v5669
        %v5728 = vadd.f32 %v5704, %v5671
        %v5729 = vadd.f32 %v5705, %v5673
        %v5730 = vadd.f32 %v5706, %v5675
        %v5731 = vld [vmem:[%s10] sm:$0x3]
        %v5733 = vlaneseq
        %v5734 = vshrl.u32 %v5733, 7
        %v5735 = vsub.s32 0, %v5734
        %v5736 = vrot.slane %v5731, %v5735
        %v5737 = vlaneseq
        %v5738 = vshrl.u32 %v5737, 7
        %v5739 = vsub.s32 1, %v5738
        %v5740 = vrot.slane %v5731, %v5739
        %v5743 = vmul.f32 %v5707, %v5736
        %v5744 = vmul.f32 %v5708, %v5740
        %v5745 = vmul.f32 %v5709, %v5736
        %v5746 = vmul.f32 %v5710, %v5740
        %v5747 = vmul.f32 %v5711, %v5736
        %v5748 = vmul.f32 %v5712, %v5740
        %v5749 = vmul.f32 %v5713, %v5736
        %v5750 = vmul.f32 %v5714, %v5740
        %v5751 = vmul.f32 %v5715, %v5736
        %v5752 = vmul.f32 %v5716, %v5740
        %v5753 = vmul.f32 %v5717, %v5736
        %v5754 = vmul.f32 %v5718, %v5740
        %v5755 = vmul.f32 %v5719, %v5736
        %v5756 = vmul.f32 %v5720, %v5740
        %v5757 = vmul.f32 %v5721, %v5736
        %v5758 = vmul.f32 %v5722, %v5740
        %v5759 = vmul.f32 %v5723, %v5736
        %v5760 = vmul.f32 %v5724, %v5740
        %v5761 = vmul.f32 %v5725, %v5736
        %v5762 = vmul.f32 %v5726, %v5740
        %v5763 = vmul.f32 %v5727, %v5736
        %v5764 = vmul.f32 %v5728, %v5740
        %v5765 = vmul.f32 %v5729, %v5736
        %v5766 = vmul.f32 %v5730, %v5740
        %s5767 = scalar_lea.vmem %s10, 2
        %v5768 = vld [vmem:[%s5767] sm:$0x3]
        %v5770 = vlaneseq
        %v5771 = vshrl.u32 %v5770, 7
        %v5772 = vsub.s32 0, %v5771
        %v5773 = vrot.slane %v5768, %v5772
        %v5774 = vlaneseq
        %v5775 = vshrl.u32 %v5774, 7
        %v5776 = vsub.s32 1, %v5775
        %v5777 = vrot.slane %v5768, %v5776
        %v5780 = vadd.f32 %v5743, %v5773
        %v5781 = vadd.f32 %v5744, %v5777
        %v5782 = vadd.f32 %v5745, %v5773
        %v5783 = vadd.f32 %v5746, %v5777
        %v5784 = vadd.f32 %v5747, %v5773
        %v5785 = vadd.f32 %v5748, %v5777
        %v5786 = vadd.f32 %v5749, %v5773
        %v5787 = vadd.f32 %v5750, %v5777
        %v5788 = vadd.f32 %v5751, %v5773
        %v5789 = vadd.f32 %v5752, %v5777
        %v5790 = vadd.f32 %v5753, %v5773
        %v5791 = vadd.f32 %v5754, %v5777
        %v5792 = vadd.f32 %v5755, %v5773
        %v5793 = vadd.f32 %v5756, %v5777
        %v5794 = vadd.f32 %v5757, %v5773
        %v5795 = vadd.f32 %v5758, %v5777
        %v5796 = vadd.f32 %v5759, %v5773
        %v5797 = vadd.f32 %v5760, %v5777
        %v5798 = vadd.f32 %v5761, %v5773
        %v5799 = vadd.f32 %v5762, %v5777
        %v5800 = vadd.f32 %v5763, %v5773
        %v5801 = vadd.f32 %v5764, %v5777
        %v5802 = vadd.f32 %v5765, %v5773
        %v5803 = vadd.f32 %v5766, %v5777
        %v5804 = vmax.f32 %v5780, 0.0
        %v5805 = vmax.f32 %v5781, 0.0
        %v5806 = vmax.f32 %v5782, 0.0
        %v5807 = vmax.f32 %v5783, 0.0
        %v5808 = vmax.f32 %v5784, 0.0
        %v5809 = vmax.f32 %v5785, 0.0
        %v5810 = vmax.f32 %v5786, 0.0
        %v5811 = vmax.f32 %v5787, 0.0
        %v5812 = vmax.f32 %v5788, 0.0
        %v5813 = vmax.f32 %v5789, 0.0
        %v5814 = vmax.f32 %v5790, 0.0
        %v5815 = vmax.f32 %v5791, 0.0
        %v5816 = vmax.f32 %v5792, 0.0
        %v5817 = vmax.f32 %v5793, 0.0
        %v5818 = vmax.f32 %v5794, 0.0
        %v5819 = vmax.f32 %v5795, 0.0
        %v5820 = vmax.f32 %v5796, 0.0
        %v5821 = vmax.f32 %v5797, 0.0
        %v5822 = vmax.f32 %v5798, 0.0
        %v5823 = vmax.f32 %v5799, 0.0
        %v5824 = vmax.f32 %v5800, 0.0
        %v5825 = vmax.f32 %v5801, 0.0
        %v5826 = vmax.f32 %v5802, 0.0
        %v5827 = vmax.f32 %v5803, 0.0
        %v5828 = vmax.f32 %v5804, %v5808
        %v5829 = vmax.f32 %v5805, %v5809
        %v5830 = vmax.f32 %v5806, %v5810
        %v5831 = vmax.f32 %v5807, %v5811
        %v5832 = vmax.f32 %v5812, %v5816
        %v5833 = vmax.f32 %v5813, %v5817
        %v5834 = vmax.f32 %v5814, %v5818
        %v5835 = vmax.f32 %v5815, %v5819
        %v5836 = vmax.f32 %v5820, %v5824
        %v5837 = vmax.f32 %v5821, %v5825
        %v5838 = vmax.f32 %v5822, %v5826
        %v5839 = vmax.f32 %v5823, %v5827
        %v5840 = vpack.c.bf16 %v5830, %v5828
        %v5841 = vpack.c.bf16 %v5831, %v5829
        %v5842 = vpack.c.bf16 %v5834, %v5832
        %v5843 = vpack.c.bf16 %v5835, %v5833
        %v5844 = vpack.c.bf16 %v5838, %v5836
        %v5845 = vpack.c.bf16 %v5839, %v5837
        %v5846 = vld [vmem:[%s11] sm:$0xf]
        %v5847 = vld [vmem:[%s11 + $0x4] sm:$0xf]
        %v5848 = vld [vmem:[%s11 + $0x8] sm:$0xf]
        %v5849 = vld [vmem:[%s11 + $0xc] sm:$0xf]
        %v5850 = vld [vmem:[%s11 + $0x10] sm:$0xf]
        %v5851 = vld [vmem:[%s11 + $0x14] sm:$0xf]
        %v5852 = vld [vmem:[%s11 + $0x18] sm:$0xf]
        %v5853 = vld [vmem:[%s11 + $0x1c] sm:$0xf]
        %v5854 = vld [vmem:[%s11 + $0x20] sm:$0xf]
        %v5855 = vld [vmem:[%s11 + $0x24] sm:$0xf]
        %v5856 = vld [vmem:[%s11 + $0x28] sm:$0xf]
        %v5857 = vld [vmem:[%s11 + $0x2c] sm:$0xf]
        %v5858 = vld [vmem:[%s11 + $0x30] sm:$0xf]
        %v5859 = vld [vmem:[%s11 + $0x34] sm:$0xf]
        %v5860 = vld [vmem:[%s11 + $0x38] sm:$0xf]
        %v5861 = vld [vmem:[%s11 + $0x3c] sm:$0xf]
        %v5862 = vld [vmem:[%s11 + $0x40] sm:$0xf]
        %v5863 = vld [vmem:[%s11 + $0x44] sm:$0xf]
        %v5864 = vld [vmem:[%s11 + $0x48] sm:$0xf]
        %v5865 = vld [vmem:[%s11 + $0x4c] sm:$0xf]
        %v5866 = vld [vmem:[%s11 + $0x50] sm:$0xf]
        %v5867 = vld [vmem:[%s11 + $0x54] sm:$0xf]
        %v5868 = vld [vmem:[%s11 + $0x58] sm:$0xf]
        %v5869 = vld [vmem:[%s11 + $0x5c] sm:$0xf]
        %v5870 = vld [vmem:[%s11 + $0x60] sm:$0xf]
        %v5871 = vld [vmem:[%s11 + $0x64] sm:$0xf]
        %v5872 = vld [vmem:[%s11 + $0x68] sm:$0xf]
        %v5873 = vld [vmem:[%s11 + $0x6c] sm:$0xf]
        %v5902 = vunpack.c.l.b16 %v5846
        %v5903 = vunpack.c.l.b16 %v5847
        %v5904 = vunpack.c.l.b16 %v5848
        %v5905 = vunpack.c.l.b16 %v5849
        %v5906 = vunpack.c.l.b16 %v5850
        %v5907 = vunpack.c.l.b16 %v5851
        %v5908 = vunpack.c.l.b16 %v5852
        %v5909 = vunpack.c.l.b16 %v5853
        %v5910 = vunpack.c.l.b16 %v5854
        %v5911 = vunpack.c.l.b16 %v5855
        %v5912 = vunpack.c.l.b16 %v5856
        %v5913 = vunpack.c.l.b16 %v5857
        %v5914 = vunpack.c.l.b16 %v5858
        %v5915 = vunpack.c.l.b16 %v5859
        %v5916 = vunpack.c.l.b16 %v5860
        %v5917 = vunpack.c.l.b16 %v5861
        %v5918 = vunpack.c.l.b16 %v5862
        %v5919 = vunpack.c.l.b16 %v5863
        %v5920 = vunpack.c.l.b16 %v5864
        %v5921 = vunpack.c.l.b16 %v5865
        %v5922 = vunpack.c.l.b16 %v5866
        %v5923 = vunpack.c.l.b16 %v5867
        %v5924 = vunpack.c.l.b16 %v5868
        %v5925 = vunpack.c.l.b16 %v5869
        %v5926 = vunpack.c.l.b16 %v5870
        %v5927 = vunpack.c.l.b16 %v5871
        %v5928 = vunpack.c.l.b16 %v5872
        %v5929 = vunpack.c.l.b16 %v5873
        %v5930 = vpack.c.b16 %v5903, %v5902
        %v5931 = vpack.c.b16 %v5905, %v5904
        %v5932 = vpack.c.b16 %v5907, %v5906
        %v5933 = vpack.c.b16 %v5909, %v5908
        %v5934 = vpack.c.b16 %v5911, %v5910
        %v5935 = vpack.c.b16 %v5913, %v5912
        %v5936 = vpack.c.b16 %v5915, %v5914
        %v5937 = vpack.c.b16 %v5917, %v5916
        %v5938 = vpack.c.b16 %v5919, %v5918
        %v5939 = vpack.c.b16 %v5921, %v5920
        %v5940 = vpack.c.b16 %v5923, %v5922
        %v5941 = vpack.c.b16 %v5925, %v5924
        %v5942 = vpack.c.b16 %v5927, %v5926
        %v5943 = vpack.c.b16 %v5929, %v5928
        %v5959 = vsel %vm2943, %v5841, 0
        %v5962 = vsel %vm2943, %v5843, 0
        %v5965 = vsel %vm2943, %v5845, 0
        %5967 = vmatprep.subr.bf16.mxu0 0
        %5968 = vmatpush1.bf16.msra.mxu0 %v5937
        %5969 = vmatprep.subr.bf16.mxu0 0
        %5970 = vmatpush1.bf16.msra.mxu0 %v5936
        %5971 = vmatprep.subr.bf16.mxu0 0
        %5972 = vmatpush1.bf16.msra.mxu0 %v5935
        %5973 = vmatprep.subr.bf16.mxu0 0
        %5974 = vmatpush1.bf16.msra.mxu0 %v5934
        %5975 = vmatprep.subr.bf16.mxu0 0
        %5976 = vmatpush1.bf16.msra.mxu0 %v5933
        %5977 = vmatprep.subr.bf16.mxu0 0
        %5978 = vmatpush1.bf16.msra.mxu0 %v5932
        %5979 = vmatprep.subr.bf16.mxu0 0
        %5980 = vmatpush1.bf16.msra.mxu0 %v5931
        %5981 = vmatprep.subr.bf16.mxu0 0
        %5982 = vmatpush1.bf16.msra.mxu0 %v5930
        %5983 = vmatprep.subr.bf16.mxu0 0
        %5984 = vmatpush2.bf16.msra.mxu0 0
        %5985 = vmatprep.subr.bf16.mxu0 0
        %5986 = vmatpush2.bf16.msra.mxu0 0
        %5987 = vmatprep.subr.bf16.mxu0 0
        %5988 = vmatpush2.bf16.msra.mxu0 %v5943
        %5989 = vmatprep.subr.bf16.mxu0 0
        %5990 = vmatpush2.bf16.msra.mxu0 %v5942
        %5991 = vmatprep.subr.bf16.mxu0 0
        %5992 = vmatpush2.bf16.msra.mxu0 %v5941
        %5993 = vmatprep.subr.bf16.mxu0 0
        %5994 = vmatpush2.bf16.msra.mxu0 %v5940
        %5995 = vmatprep.subr.bf16.mxu0 0
        %5996 = vmatpush2.bf16.msra.mxu0 %v5939
        %5997 = vmatprep.subr.bf16.mxu0 0
        %5998 = vmatpush2.bf16.msra.mxu0 %v5938
        %5999 = vmatprep.mubr.bf16.mxu0 %v5959
        %6000 = vmatmul.mubr.bf16.gmra.mxu0 %v5840
        %v6001 = vpop.f32.mrf.mxu0
        %v6002 = vadd.f32 0.0, %v6001
        %v6003 = vpop.f32.mrf.mxu0
        %v6004 = vpop.f32.mrf.mxu0
        %v6005 = vadd.f32 0.0, %v6004
        %v6006 = vpop.f32.mrf.mxu0
        %6007 = vmatprep.mubr.bf16.mxu0 %v5962
        %6008 = vmatmul.mubr.bf16.gmra.mxu0 %v5842
        %v6009 = vpop.f32.mrf.mxu0
        %v6010 = vadd.f32 0.0, %v6009
        %v6011 = vpop.f32.mrf.mxu0
        %v6012 = vpop.f32.mrf.mxu0
        %v6013 = vadd.f32 0.0, %v6012
        %v6014 = vpop.f32.mrf.mxu0
        %6015 = vmatprep.mubr.bf16.mxu0 %v5965
        %6016 = vmatmul.mubr.bf16.gmra.mxu0 %v5844
        %v6017 = vpop.f32.mrf.mxu0
        %v6018 = vadd.f32 0.0, %v6017
        %v6019 = vpop.f32.mrf.mxu0
        %v6020 = vpop.f32.mrf.mxu0
        %v6021 = vadd.f32 0.0, %v6020
        %v6022 = vpop.f32.mrf.mxu0
        %6023 = vdwg.mxu0
        %v6024 = vld [vmem:[%s12] sm:$0xf]
        %v6025 = vld [vmem:[%s12 + $0x4] sm:$0xf]
        %v6026 = vld [vmem:[%s12 + $0x8] sm:$0xf]
        %v6027 = vld [vmem:[%s12 + $0xc] sm:$0xf]
        %v6028 = vld [vmem:[%s12 + $0x10] sm:$0xf]
        %v6029 = vld [vmem:[%s12 + $0x14] sm:$0xf]
        %v6030 = vld [vmem:[%s12 + $0x18] sm:$0xf]
        %v6031 = vld [vmem:[%s12 + $0x1c] sm:$0xf]
        %v6032 = vld [vmem:[%s12 + $0x20] sm:$0xf]
        %v6033 = vld [vmem:[%s12 + $0x24] sm:$0xf]
        %v6034 = vld [vmem:[%s12 + $0x28] sm:$0xf]
        %v6035 = vld [vmem:[%s12 + $0x2c] sm:$0xf]
        %v6036 = vld [vmem:[%s12 + $0x30] sm:$0xf]
        %v6037 = vld [vmem:[%s12 + $0x34] sm:$0xf]
        %v6038 = vld [vmem:[%s12 + $0x38] sm:$0xf]
        %v6039 = vld [vmem:[%s12 + $0x3c] sm:$0xf]
        %v6040 = vld [vmem:[%s12 + $0x40] sm:$0xf]
        %v6041 = vld [vmem:[%s12 + $0x44] sm:$0xf]
        %v6042 = vld [vmem:[%s12 + $0x48] sm:$0xf]
        %v6043 = vld [vmem:[%s12 + $0x4c] sm:$0xf]
        %v6044 = vld [vmem:[%s12 + $0x50] sm:$0xf]
        %v6045 = vld [vmem:[%s12 + $0x54] sm:$0xf]
        %v6046 = vld [vmem:[%s12 + $0x58] sm:$0xf]
        %v6047 = vld [vmem:[%s12 + $0x5c] sm:$0xf]
        %v6048 = vld [vmem:[%s12 + $0x60] sm:$0xf]
        %v6049 = vld [vmem:[%s12 + $0x64] sm:$0xf]
        %v6050 = vld [vmem:[%s12 + $0x68] sm:$0xf]
        %v6051 = vld [vmem:[%s12 + $0x6c] sm:$0xf]
        %v6080 = vunpack.c.l.b16 %v6024
        %v6081 = vunpack.c.l.b16 %v6025
        %v6082 = vunpack.c.l.b16 %v6026
        %v6083 = vunpack.c.l.b16 %v6027
        %v6084 = vunpack.c.l.b16 %v6028
        %v6085 = vunpack.c.l.b16 %v6029
        %v6086 = vunpack.c.l.b16 %v6030
        %v6087 = vunpack.c.l.b16 %v6031
        %v6088 = vunpack.c.l.b16 %v6032
        %v6089 = vunpack.c.l.b16 %v6033
        %v6090 = vunpack.c.l.b16 %v6034
        %v6091 = vunpack.c.l.b16 %v6035
        %v6092 = vunpack.c.l.b16 %v6036
        %v6093 = vunpack.c.l.b16 %v6037
        %v6094 = vunpack.c.l.b16 %v6038
        %v6095 = vunpack.c.l.b16 %v6039
        %v6096 = vunpack.c.l.b16 %v6040
        %v6097 = vunpack.c.l.b16 %v6041
        %v6098 = vunpack.c.l.b16 %v6042
        %v6099 = vunpack.c.l.b16 %v6043
        %v6100 = vunpack.c.l.b16 %v6044
        %v6101 = vunpack.c.l.b16 %v6045
        %v6102 = vunpack.c.l.b16 %v6046
        %v6103 = vunpack.c.l.b16 %v6047
        %v6104 = vunpack.c.l.b16 %v6048
        %v6105 = vunpack.c.l.b16 %v6049
        %v6106 = vunpack.c.l.b16 %v6050
        %v6107 = vunpack.c.l.b16 %v6051
        %v6108 = vpack.c.b16 %v6081, %v6080
        %v6109 = vpack.c.b16 %v6083, %v6082
        %v6110 = vpack.c.b16 %v6085, %v6084
        %v6111 = vpack.c.b16 %v6087, %v6086
        %v6112 = vpack.c.b16 %v6089, %v6088
        %v6113 = vpack.c.b16 %v6091, %v6090
        %v6114 = vpack.c.b16 %v6093, %v6092
        %v6115 = vpack.c.b16 %v6095, %v6094
        %v6116 = vpack.c.b16 %v6097, %v6096
        %v6117 = vpack.c.b16 %v6099, %v6098
        %v6118 = vpack.c.b16 %v6101, %v6100
        %v6119 = vpack.c.b16 %v6103, %v6102
        %v6120 = vpack.c.b16 %v6105, %v6104
        %v6121 = vpack.c.b16 %v6107, %v6106
        %6136 = vmatprep.subr.bf16.mxu0 0
        %6137 = vmatpush1.bf16.msra.mxu0 %v6115
        %6138 = vmatprep.subr.bf16.mxu0 0
        %6139 = vmatpush1.bf16.msra.mxu0 %v6114
        %6140 = vmatprep.subr.bf16.mxu0 0
        %6141 = vmatpush1.bf16.msra.mxu0 %v6113
        %6142 = vmatprep.subr.bf16.mxu0 0
        %6143 = vmatpush1.bf16.msra.mxu0 %v6112
        %6144 = vmatprep.subr.bf16.mxu0 0
        %6145 = vmatpush1.bf16.msra.mxu0 %v6111
        %6146 = vmatprep.subr.bf16.mxu0 0
        %6147 = vmatpush1.bf16.msra.mxu0 %v6110
        %6148 = vmatprep.subr.bf16.mxu0 0
        %6149 = vmatpush1.bf16.msra.mxu0 %v6109
        %6150 = vmatprep.subr.bf16.mxu0 0
        %6151 = vmatpush1.bf16.msra.mxu0 %v6108
        %6152 = vmatprep.subr.bf16.mxu0 0
        %6153 = vmatpush2.bf16.msra.mxu0 0
        %6154 = vmatprep.subr.bf16.mxu0 0
        %6155 = vmatpush2.bf16.msra.mxu0 0
        %6156 = vmatprep.subr.bf16.mxu0 0
        %6157 = vmatpush2.bf16.msra.mxu0 %v6121
        %6158 = vmatprep.subr.bf16.mxu0 0
        %6159 = vmatpush2.bf16.msra.mxu0 %v6120
        %6160 = vmatprep.subr.bf16.mxu0 0
        %6161 = vmatpush2.bf16.msra.mxu0 %v6119
        %6162 = vmatprep.subr.bf16.mxu0 0
        %6163 = vmatpush2.bf16.msra.mxu0 %v6118
        %6164 = vmatprep.subr.bf16.mxu0 0
        %6165 = vmatpush2.bf16.msra.mxu0 %v6117
        %6166 = vmatprep.subr.bf16.mxu0 0
        %6167 = vmatpush2.bf16.msra.mxu0 %v6116
        %6168 = vmatprep.mubr.bf16.mxu0 %v5959
        %6169 = vmatmul.mubr.bf16.gmra.mxu0 %v5840
        %v6170 = vpop.f32.mrf.mxu0
        %v6171 = vadd.f32 0.0, %v6170
        %v6172 = vpop.f32.mrf.mxu0
        %v6173 = vpop.f32.mrf.mxu0
        %v6174 = vadd.f32 0.0, %v6173
        %v6175 = vpop.f32.mrf.mxu0
        %6176 = vmatprep.mubr.bf16.mxu0 %v5962
        %6177 = vmatmul.mubr.bf16.gmra.mxu0 %v5842
        %v6178 = vpop.f32.mrf.mxu0
        %v6179 = vadd.f32 0.0, %v6178
        %v6180 = vpop.f32.mrf.mxu0
        %v6181 = vpop.f32.mrf.mxu0
        %v6182 = vadd.f32 0.0, %v6181
        %v6183 = vpop.f32.mrf.mxu0
        %6184 = vmatprep.mubr.bf16.mxu0 %v5965
        %6185 = vmatmul.mubr.bf16.gmra.mxu0 %v5844
        %v6186 = vpop.f32.mrf.mxu0
        %v6187 = vadd.f32 0.0, %v6186
        %v6188 = vpop.f32.mrf.mxu0
        %v6189 = vpop.f32.mrf.mxu0
        %v6190 = vadd.f32 0.0, %v6189
        %v6191 = vpop.f32.mrf.mxu0
        %6192 = vdwg.mxu0
        %v6193 = vmax.f32 %v6002, %v6171
        %v6194 = vmax.f32 %v6005, %v6174
        %v6195 = vmax.f32 %v6010, %v6179
        %v6196 = vmax.f32 %v6013, %v6182
        %v6197 = vmax.f32 %v6018, %v6187
        %v6198 = vmax.f32 %v6021, %v6190
        %v6199 = vpack.c.bf16 %v6194, %v6193
        %v6200 = vpack.c.bf16 %v6196, %v6195
        %v6201 = vpack.c.bf16 %v6198, %v6197
        %v6202 = vld [vmem:[%s13] sm:$0xf]
        %v6203 = vld [vmem:[%s13 + $0x4] sm:$0xf]
        %v6204 = vld [vmem:[%s13 + $0x8] sm:$0xf]
        %v6205 = vld [vmem:[%s13 + $0xc] sm:$0xf]
        %v6206 = vld [vmem:[%s13 + $0x10] sm:$0xf]
        %v6207 = vld [vmem:[%s13 + $0x14] sm:$0xf]
        %v6208 = vld [vmem:[%s13 + $0x18] sm:$0xf]
        %v6209 = vld [vmem:[%s13 + $0x1c] sm:$0xf]
        %v6210 = vld [vmem:[%s13 + $0x20] sm:$0xf]
        %v6211 = vld [vmem:[%s13 + $0x24] sm:$0xf]
        %v6212 = vld [vmem:[%s13 + $0x28] sm:$0xf]
        %v6213 = vld [vmem:[%s13 + $0x2c] sm:$0xf]
        %s6214 = scalar_lea.vmem %s13, 48
        %v6215 = vld [vmem:[%s6214] sm:$0xf]
        %v6216 = vld [vmem:[%s6214 + $0x4] sm:$0xf]
        %v6217 = vld [vmem:[%s6214 + $0x8] sm:$0xf]
        %v6218 = vld [vmem:[%s6214 + $0xc] sm:$0xf]
        %v6219 = vld [vmem:[%s6214 + $0x10] sm:$0xf]
        %v6220 = vld [vmem:[%s6214 + $0x14] sm:$0xf]
        %v6221 = vld [vmem:[%s6214 + $0x18] sm:$0xf]
        %v6222 = vld [vmem:[%s6214 + $0x1c] sm:$0xf]
        %v6223 = vld [vmem:[%s6214 + $0x20] sm:$0xf]
        %v6224 = vld [vmem:[%s6214 + $0x24] sm:$0xf]
        %v6225 = vld [vmem:[%s6214 + $0x28] sm:$0xf]
        %v6226 = vld [vmem:[%s6214 + $0x2c] sm:$0xf]
        %v6239 = vunpack.c.l.b16 %v6215
        %v6240 = vunpack.c.l.b16 %v6216
        %v6241 = vunpack.c.l.b16 %v6217
        %v6242 = vunpack.c.l.b16 %v6218
        %v6243 = vunpack.c.l.b16 %v6219
        %v6244 = vunpack.c.l.b16 %v6220
        %v6245 = vunpack.c.l.b16 %v6221
        %v6246 = vunpack.c.l.b16 %v6222
        %v6247 = vunpack.c.l.b16 %v6223
        %v6248 = vunpack.c.l.b16 %v6224
        %v6249 = vunpack.c.l.b16 %v6225
        %v6250 = vunpack.c.l.b16 %v6226
        %v6251 = vpack.c.b16 %v6240, %v6239
        %v6252 = vpack.c.b16 %v6242, %v6241
        %v6253 = vpack.c.b16 %v6244, %v6243
        %v6254 = vpack.c.b16 %v6246, %v6245
        %v6255 = vpack.c.b16 %v6248, %v6247
        %v6256 = vpack.c.b16 %v6250, %v6249
        %v6264 = vsel %vm2943, %v6200, 0
        %6266 = vmatprep.subr.bf16.mxu0 0
        %6267 = vmatpush1.bf16.msra.mxu0 0
        %6268 = vmatprep.subr.bf16.mxu0 0
        %6269 = vmatpush1.bf16.msra.mxu0 0
        %6270 = vmatprep.subr.bf16.mxu0 0
        %6271 = vmatpush1.bf16.msra.mxu0 %v6256
        %6272 = vmatprep.subr.bf16.mxu0 0
        %6273 = vmatpush1.bf16.msra.mxu0 %v6255
        %6274 = vmatprep.subr.bf16.mxu0 0
        %6275 = vmatpush1.bf16.msra.mxu0 %v6254
        %6276 = vmatprep.subr.bf16.mxu0 0
        %6277 = vmatpush1.bf16.msra.mxu0 %v6253
        %6278 = vmatprep.subr.bf16.mxu0 0
        %6279 = vmatpush1.bf16.msra.mxu0 %v6252
        %6280 = vmatprep.subr.bf16.mxu0 0
        %6281 = vmatpush1.bf16.msra.mxu0 %v6251
        %6282 = vmatprep.subr.bf16.mxu0 0
        %6283 = vmatpush2.bf16.msra.mxu0 0
        %6284 = vmatprep.subr.bf16.mxu0 0
        %6285 = vmatpush2.bf16.msra.mxu0 0
        %6286 = vmatprep.subr.bf16.mxu0 0
        %6287 = vmatpush2.bf16.msra.mxu0 0
        %6288 = vmatprep.subr.bf16.mxu0 0
        %6289 = vmatpush2.bf16.msra.mxu0 0
        %6290 = vmatprep.subr.bf16.mxu0 0
        %6291 = vmatpush2.bf16.msra.mxu0 0
        %6292 = vmatprep.subr.bf16.mxu0 0
        %6293 = vmatpush2.bf16.msra.mxu0 0
        %6294 = vmatprep.subr.bf16.mxu0 0
        %6295 = vmatpush2.bf16.msra.mxu0 0
        %6296 = vmatprep.subr.bf16.mxu0 0
        %6297 = vmatpush2.bf16.msra.mxu0 0
        %6298 = vmatprep.mubr.bf16.mxu0 0
        %6299 = vmatmul.mubr.bf16.gmra.mxu0 %v6264
        %v6300 = vpop.f32.mrf.mxu0
        %v6301 = vadd.f32 0.0, %v6300
        %v6302 = vpop.f32.mrf.mxu0
        %v6303 = vpop.f32.mrf.mxu0
        %v6304 = vadd.f32 0.0, %v6303
        %v6305 = vpop.f32.mrf.mxu0
        %6306 = vdwg.mxu0
        %v6319 = vunpack.c.l.b16 %v6202
        %v6320 = vunpack.c.l.b16 %v6203
        %v6321 = vunpack.c.l.b16 %v6204
        %v6322 = vunpack.c.l.b16 %v6205
        %v6323 = vunpack.c.l.b16 %v6206
        %v6324 = vunpack.c.l.b16 %v6207
        %v6325 = vunpack.c.l.b16 %v6208
        %v6326 = vunpack.c.l.b16 %v6209
        %v6327 = vunpack.c.l.b16 %v6210
        %v6328 = vunpack.c.l.b16 %v6211
        %v6329 = vunpack.c.l.b16 %v6212
        %v6330 = vunpack.c.l.b16 %v6213
        %v6331 = vpack.c.b16 %v6320, %v6319
        %v6332 = vpack.c.b16 %v6322, %v6321
        %v6333 = vpack.c.b16 %v6324, %v6323
        %v6334 = vpack.c.b16 %v6326, %v6325
        %v6335 = vpack.c.b16 %v6328, %v6327
        %v6336 = vpack.c.b16 %v6330, %v6329
        %v6344 = vsel %vm2943, %v6199, 0
        %6346 = vmatprep.subr.bf16.mxu0 0
        %6347 = vmatpush1.bf16.msra.mxu0 0
        %6348 = vmatprep.subr.bf16.mxu0 0
        %6349 = vmatpush1.bf16.msra.mxu0 0
        %6350 = vmatprep.subr.bf16.mxu0 0
        %6351 = vmatpush1.bf16.msra.mxu0 %v6336
        %6352 = vmatprep.subr.bf16.mxu0 0
        %6353 = vmatpush1.bf16.msra.mxu0 %v6335
        %6354 = vmatprep.subr.bf16.mxu0 0
        %6355 = vmatpush1.bf16.msra.mxu0 %v6334
        %6356 = vmatprep.subr.bf16.mxu0 0
        %6357 = vmatpush1.bf16.msra.mxu0 %v6333
        %6358 = vmatprep.subr.bf16.mxu0 0
        %6359 = vmatpush1.bf16.msra.mxu0 %v6332
        %6360 = vmatprep.subr.bf16.mxu0 0
        %6361 = vmatpush1.bf16.msra.mxu0 %v6331
        %6362 = vmatprep.subr.bf16.mxu0 0
        %6363 = vmatpush2.bf16.msra.mxu0 0
        %6364 = vmatprep.subr.bf16.mxu0 0
        %6365 = vmatpush2.bf16.msra.mxu0 0
        %6366 = vmatprep.subr.bf16.mxu0 0
        %6367 = vmatpush2.bf16.msra.mxu0 0
        %6368 = vmatprep.subr.bf16.mxu0 0
        %6369 = vmatpush2.bf16.msra.mxu0 0
        %6370 = vmatprep.subr.bf16.mxu0 0
        %6371 = vmatpush2.bf16.msra.mxu0 0
        %6372 = vmatprep.subr.bf16.mxu0 0
        %6373 = vmatpush2.bf16.msra.mxu0 0
        %6374 = vmatprep.subr.bf16.mxu0 0
        %6375 = vmatpush2.bf16.msra.mxu0 0
        %6376 = vmatprep.subr.bf16.mxu0 0
        %6377 = vmatpush2.bf16.msra.mxu0 0
        %6378 = vmatprep.mubr.bf16.mxu0 0
        %6379 = vmatmul.mubr.bf16.gmra.mxu0 %v6344
        %v6380 = vpop.f32.mrf.mxu0
        %v6381 = vadd.f32 %v6301, %v6380
        %v6382 = vpop.f32.mrf.mxu0
        %v6383 = vpop.f32.mrf.mxu0
        %v6384 = vadd.f32 %v6304, %v6383
        %v6385 = vpop.f32.mrf.mxu0
        %6386 = vdwg.mxu0
        %s6387 = scalar_lea.vmem %s13, 96
        %v6388 = vld [vmem:[%s6387] sm:$0xf]
        %v6389 = vld [vmem:[%s6387 + $0x4] sm:$0xf]
        %v6390 = vld [vmem:[%s6387 + $0x8] sm:$0xf]
        %v6391 = vld [vmem:[%s6387 + $0xc] sm:$0xf]
        %v6392 = vld [vmem:[%s6387 + $0x10] sm:$0xf]
        %v6393 = vld [vmem:[%s6387 + $0x14] sm:$0xf]
        %v6394 = vld [vmem:[%s6387 + $0x18] sm:$0xf]
        %v6395 = vld [vmem:[%s6387 + $0x1c] sm:$0xf]
        %v6396 = vld [vmem:[%s6387 + $0x20] sm:$0xf]
        %v6397 = vld [vmem:[%s6387 + $0x24] sm:$0xf]
        %v6398 = vld [vmem:[%s6387 + $0x28] sm:$0xf]
        %v6399 = vld [vmem:[%s6387 + $0x2c] sm:$0xf]
        %v6412 = vunpack.c.l.b16 %v6388
        %v6413 = vunpack.c.l.b16 %v6389
        %v6414 = vunpack.c.l.b16 %v6390
        %v6415 = vunpack.c.l.b16 %v6391
        %v6416 = vunpack.c.l.b16 %v6392
        %v6417 = vunpack.c.l.b16 %v6393
        %v6418 = vunpack.c.l.b16 %v6394
        %v6419 = vunpack.c.l.b16 %v6395
        %v6420 = vunpack.c.l.b16 %v6396
        %v6421 = vunpack.c.l.b16 %v6397
        %v6422 = vunpack.c.l.b16 %v6398
        %v6423 = vunpack.c.l.b16 %v6399
        %v6424 = vpack.c.b16 %v6413, %v6412
        %v6425 = vpack.c.b16 %v6415, %v6414
        %v6426 = vpack.c.b16 %v6417, %v6416
        %v6427 = vpack.c.b16 %v6419, %v6418
        %v6428 = vpack.c.b16 %v6421, %v6420
        %v6429 = vpack.c.b16 %v6423, %v6422
        %v6437 = vsel %vm2943, %v6201, 0
        %6439 = vmatprep.subr.bf16.mxu0 0
        %6440 = vmatpush1.bf16.msra.mxu0 0
        %6441 = vmatprep.subr.bf16.mxu0 0
        %6442 = vmatpush1.bf16.msra.mxu0 0
        %6443 = vmatprep.subr.bf16.mxu0 0
        %6444 = vmatpush1.bf16.msra.mxu0 %v6429
        %6445 = vmatprep.subr.bf16.mxu0 0
        %6446 = vmatpush1.bf16.msra.mxu0 %v6428
        %6447 = vmatprep.subr.bf16.mxu0 0
        %6448 = vmatpush1.bf16.msra.mxu0 %v6427
        %6449 = vmatprep.subr.bf16.mxu0 0
        %6450 = vmatpush1.bf16.msra.mxu0 %v6426
        %6451 = vmatprep.subr.bf16.mxu0 0
        %6452 = vmatpush1.bf16.msra.mxu0 %v6425
        %6453 = vmatprep.subr.bf16.mxu0 0
        %6454 = vmatpush1.bf16.msra.mxu0 %v6424
        %6455 = vmatprep.subr.bf16.mxu0 0
        %6456 = vmatpush2.bf16.msra.mxu0 0
        %6457 = vmatprep.subr.bf16.mxu0 0
        %6458 = vmatpush2.bf16.msra.mxu0 0
        %6459 = vmatprep.subr.bf16.mxu0 0
        %6460 = vmatpush2.bf16.msra.mxu0 0
        %6461 = vmatprep.subr.bf16.mxu0 0
        %6462 = vmatpush2.bf16.msra.mxu0 0
        %6463 = vmatprep.subr.bf16.mxu0 0
        %6464 = vmatpush2.bf16.msra.mxu0 0
        %6465 = vmatprep.subr.bf16.mxu0 0
        %6466 = vmatpush2.bf16.msra.mxu0 0
        %6467 = vmatprep.subr.bf16.mxu0 0
        %6468 = vmatpush2.bf16.msra.mxu0 0
        %6469 = vmatprep.subr.bf16.mxu0 0
        %6470 = vmatpush2.bf16.msra.mxu0 0
        %6471 = vmatprep.mubr.bf16.mxu0 0
        %6472 = vmatmul.mubr.bf16.gmra.mxu0 %v6437
        %v6473 = vpop.f32.mrf.mxu0
        %v6474 = vadd.f32 0.0, %v6473
        %v6475 = vpop.f32.mrf.mxu0
        %v6476 = vpop.f32.mrf.mxu0
        %v6477 = vadd.f32 0.0, %v6476
        %v6478 = vpop.f32.mrf.mxu0
        %6479 = vdwg.mxu0
        %v6480 = vadd.f32 %v6381, %v6474
        %v6481 = vadd.f32 %v6384, %v6477
        %v6482 = vld [vmem:[%s14] sm:$0x1]
        %v6484 = vlaneseq
        %v6485 = vshrl.u32 %v6484, 7
        %v6486 = vsub.s32 0, %v6485
        %v6487 = vrot.slane %v6482, %v6486
        %v6489 = vadd.f32 %v6480, %v6487
        %v6490 = vadd.f32 %v6481, %v6487
        %v6491 = vmax.f32 %v6489, 0.0
        %v6492 = vmax.f32 %v6490, 0.0
        %v6493 = vpack.c.bf16 %v6492, %v6491
        %v6494 = vld [vmem:[%s15] sm:$0xf]
        %v6495 = vld [vmem:[%s15 + $0x4] sm:$0xf]
        %v6496 = vld [vmem:[%s15 + $0x8] sm:$0xf]
        %v6497 = vld [vmem:[%s15 + $0xc] sm:$0xf]
        %v6498 = vld [vmem:[%s16] sm:$0x1]
        %v6500 = vlaneseq
        %v6501 = vshrl.u32 %v6500, 7
        %v6502 = vsub.s32 0, %v6501
        %v6503 = vrot.slane %v6498, %v6502
        %v6509 = vunpack.c.l.b16 %v6494
        %v6510 = vunpack.c.l.b16 %v6495
        %v6511 = vunpack.c.l.b16 %v6496
        %v6512 = vunpack.c.l.b16 %v6497
        %v6513 = vpack.c.b16 %v6510, %v6509
        %v6514 = vpack.c.b16 %v6512, %v6511
        %vm6517 = vcmask 261120
        %v6519 = vsel %vm6517, %v6493, 0
        %6521 = vmatprep.subr.bf16.mxu0 0
        %6522 = vmatpush1.bf16.msra.mxu0 0
        %6523 = vmatprep.subr.bf16.mxu0 0
        %6524 = vmatpush1.bf16.msra.mxu0 0
        %6525 = vmatprep.subr.bf16.mxu0 0
        %6526 = vmatpush1.bf16.msra.mxu0 0
        %6527 = vmatprep.subr.bf16.mxu0 0
        %6528 = vmatpush1.bf16.msra.mxu0 0
        %6529 = vmatprep.subr.bf16.mxu0 0
        %6530 = vmatpush1.bf16.msra.mxu0 0
        %6531 = vmatprep.subr.bf16.mxu0 0
        %6532 = vmatpush1.bf16.msra.mxu0 0
        %6533 = vmatprep.subr.bf16.mxu0 0
        %6534 = vmatpush1.bf16.msra.mxu0 %v6514
        %6535 = vmatprep.subr.bf16.mxu0 0
        %6536 = vmatpush1.bf16.msra.mxu0 %v6513
        %6537 = vmatprep.subr.bf16.mxu0 0
        %6538 = vmatpush2.bf16.msra.mxu0 0
        %6539 = vmatprep.subr.bf16.mxu0 0
        %6540 = vmatpush2.bf16.msra.mxu0 0
        %6541 = vmatprep.subr.bf16.mxu0 0
        %6542 = vmatpush2.bf16.msra.mxu0 0
        %6543 = vmatprep.subr.bf16.mxu0 0
        %6544 = vmatpush2.bf16.msra.mxu0 0
        %6545 = vmatprep.subr.bf16.mxu0 0
        %6546 = vmatpush2.bf16.msra.mxu0 0
        %6547 = vmatprep.subr.bf16.mxu0 0
        %6548 = vmatpush2.bf16.msra.mxu0 0
        %6549 = vmatprep.subr.bf16.mxu0 0
        %6550 = vmatpush2.bf16.msra.mxu0 0
        %6551 = vmatprep.subr.bf16.mxu0 0
        %6552 = vmatpush2.bf16.msra.mxu0 0
        %6553 = vmatprep.mubr.bf16.mxu0 0
        %6554 = vmatmul.mubr.bf16.gmra.mxu0 %v6519
        %v6555 = vpop.f32.mrf.mxu0
        %v6556 = vadd.f32 %v6503, %v6555
        %v6557 = vpop.f32.mrf.mxu0
        %v6558 = vpop.f32.mrf.mxu0
        %v6559 = vadd.f32 %v6503, %v6558
        %v6560 = vpop.f32.mrf.mxu0
        %6561 = vdwg.mxu0
        %6562 = vst [vmem:[%s813] sm:$0xff] %v6556
        %6563 = vst [vmem:[%s813 + $0x8] sm:$0xff] %v6559
        %s6564 = smul.u32 2, %s28
        %p6565 = scmp.lt.s32.totalorder %s6564, 3
        %s6566 = scalar_select %p6565, %s6564, 3
        %s6567 = smul.addr %s6566, 8
        %s6568 = scalar_lea.vmem %s17, %s6567
        // Predicated region
        $region130: #{my_cnn_forward.1} parent=124 // pred_check
          %p6569 = pneg %p408
        $region131: #{my_cnn_forward.1} parent=124 // pred_check_branch
          %6571 = sbr.rel (%p6569) target = $region133
        $region132: #{my_cnn_forward.1} parent=124 // pred_region
          %s6572 = smul.u32 2, %s28
        $region133: #{my_cnn_forward.1} parent=124 // pred_fallthru
          _
      $region125: #{my_cnn_forward.1} parent=5 // pred_fallthru
        _
      %p6573 = scmp.le.s32.totalorder 2, %s23
      // Predicated region
      $region134: #{my_cnn_forward.1} parent=5 // pred_check
        %p6574 = pneg %p6573
      $region135: #{my_cnn_forward.1} parent=5 // pred_check_branch
        %6576 = sbr.rel (%p6574) target = $region137
      $region136: #{my_cnn_forward.1} parent=5 // pred_region
        %s6577 = ssub.s32 %s23, 2
        // Predicated region
        $region138: #{my_cnn_forward.1} parent=136 // pred_check
          %p6578 = pneg %p414
        $region139: #{my_cnn_forward.1} parent=136 // pred_check_branch
          %6580 = sbr.rel (%p6578) target = $region141
        $region140: #{my_cnn_forward.1} parent=136 // pred_region
          %s6581 = smul.u32 2, %s29
          %p6582 = scmp.lt.s32.totalorder %s6581, 3
          %s6583 = scalar_select %p6582, %s6581, 3
          %s6584 = smul.addr %s6583, 8
          %s6585 = scalar_lea.vmem %s17, %s6584
        $region141: #{my_cnn_forward.1} parent=136 // pred_fallthru
          _
      $region137: #{my_cnn_forward.1} parent=5 // pred_fallthru
        _
    $region6: #{my_cnn_forward.1} parent=1 // loop_footer
      %s27 = sadd.s32 1, %s23
    $region7: #{my_cnn_forward.1} parent=1 // loop_footer_branch
      %22 = sbr.rel target = $region3
    $region8: #{my_cnn_forward.1} parent=1 // loop_exit
      _

</llo_original>
